<compile_context>
chip_gen: v7x
topology: tpu7x:2x2x1
jax: 0.10.0
libtpu: 0.0.40
codegen_flags: <defaults>
</compile_context>

<pallas_src>
import functools
import math

import numpy as np

import jax
import jax.numpy as jnp
from jax.experimental import pallas as pl
from jax.experimental.pallas import tpu as pltpu


# ------------------------------- the fused kernel -------------------------------------


def _resnet12_kernel(*refs, cfg, e_lambda):
    """One grid step == one image.  refs = [x0] + 11 per block + [out] + scratch."""
    nb = len(cfg)
    idx = 0
    x0_ref = refs[idx]
    idx += 1
    blocks = []
    for _ in range(nb):
        blocks.append(refs[idx:idx + 11])
        idx += 11
    out_ref = refs[idx]
    idx += 1
    smid = list(refs[idx:idx + nb])          # intra-block padded buffers (Hp, W*Cout)
    idx += nb
    sin_extra = list(refs[idx:idx + nb - 1])  # inputs of blocks 1..nb-1 (Hp, W*Cin)
    idx += nb - 1
    s_fin = refs[idx]                         # final pooled map (hF, wF*C)

    f32 = jnp.float32
    bf16 = jnp.bfloat16

    src = x0_ref
    for b in range(nb):
        c = cfg[b]
        H, Hp, Lo = c["H"], c["Hp"], c["Lo"]
        Lr = H                                # number of valid (interior) output rows
        t1, b1, t2, b2, t3, b3, td, bd, ge, go, sel = blocks[b]
        sm = smid[b]

        # zero the intermediate buffer so its padding ring rows (0 and Hp-1) are 0
        sm[...] = jnp.zeros(sm.shape, f32)

        def conv3(s_ref, t_ref, bias_ref, act, Lr=Lr, Lo=Lo):
            # 3x3 conv == sum over the 3 kh taps of a (Lr, W*Cin) x (W*Cin, W*Cout) matmul
            acc = jnp.zeros((Lr, Lo), f32)
            for kh in range(3):
                lhs = s_ref[pl.ds(kh, Lr), :].astype(bf16)
                acc = acc + jnp.dot(lhs, t_ref[kh], preferred_element_type=f32)
            y = acc + bias_ref[...]
            if act:
                y = jnp.where(y > 0, y, 0.1 * y)      # LeakyReLU(0.1)
            return y

        y = conv3(src, t1, b1, True)
        sm[pl.ds(1, Lr), :] = y                        # interior rows only; ring stays 0
        y = conv3(sm, t2, b2, True)
        sm[pl.ds(1, Lr), :] = y
        y = conv3(sm, t3, b3, False)                   # conv3 + bn3, no activation yet

        # downsample: 1x1 conv + BN on the block input (block-diagonal matmul)
        idn = jnp.dot(src[pl.ds(1, Lr), :].astype(bf16), td[...],
                      preferred_element_type=f32) + bd[...]

        z = y + idn
        z = jnp.where(z > 0, z, 0.1 * z)               # LeakyReLU after residual add
        sm[pl.ds(1, Lr), :] = z

        # 2x2 max-pool
        rowmax = jnp.maximum(sm[pl.ds(1, Lr - 1), :], sm[pl.ds(2, Lr - 1), :])
        pw = jnp.maximum(jnp.dot(rowmax, ge[...], preferred_element_type=f32),
                         jnp.dot(rowmax, go[...], preferred_element_type=f32))
        pooled = jnp.dot(sel[...], pw, preferred_element_type=f32)

        if b + 1 < nb:
            sin_extra[b][...] = pooled                 # already zero-padded for next block
            src = sin_extra[b]
        else:
            s_fin[...] = pooled                        # (hF, wF*C) final feature map

    # ---- SimAM attention + global spatial mean (per image) ----
    cL = cfg[-1]
    hF, wF, C = cL["H"] // 2, cL["W"] // 2, cL["Cout"]
    xs = [s_fin[pl.ds(i, 1), pl.ds(j * C, C)] for i in range(hF) for j in range(wF)]
    npos = float(hF * wF)
    mu = sum(xs) / npos
    d = [(xv - mu) * (xv - mu) for xv in xs]
    ssum = sum(d)
    inv_den = pl.reciprocal(4.0 * (ssum / (npos - 1.0) + e_lambda), approx=True)
    att = [xv * (1.0 / (1.0 + jnp.exp(-(dv * inv_den + 0.5)))) for xv, dv in zip(xs, d)]
    out_ref[...] = (sum(att) / npos).astype(out_ref.dtype)


# ------------------------------ host-side weight folding ------------------------------


def _fold_bn(cout, eps=1e-5):
    # inference-mode BN with default stats (see TODO above)
    gamma = np.ones((cout,), np.float32)
    beta = np.zeros((cout,), np.float32)
    mean = np.zeros((cout,), np.float32)
    var = np.ones((cout,), np.float32)
    scale = gamma / np.sqrt(var + eps)
    bias = beta - mean * scale
    return scale, bias


def _toeplitz3x3(w, W, scale):
    """w: (3, 3, Cin, Cout) -> (3, W*Cin, W*Cout) banded block-Toeplitz (BN scale folded)."""
    _, _, cin, cout = w.shape
    ws = w * scale[None, None, None, :]
    t = np.zeros((3, W * cin, W * cout), np.float32)
    for kw in range(3):
        for wo in range(W):
            wi = wo + kw - 1
            if 0 <= wi < W:
                t[:, wi * cin:(wi + 1) * cin, wo * cout:(wo + 1) * cout] = ws[:, kw]
    return t


def _blockdiag1x1(wd, W, scale):
    """wd: (Cin, Cout) -> (W*Cin, W*Cout) block diagonal (BN scale folded)."""
    cin, cout = wd.shape
    ws = wd * scale[None, :]
    t = np.zeros((W * cin, W * cout), np.float32)
    for wo in range(W):
        t[wo * cin:(wo + 1) * cin, wo * cout:(wo + 1) * cout] = ws
    return t


def _pool_lane_select(W, C):
    """0/1 matrices selecting even / odd w lane-groups and compacting to (W/2)*C lanes."""
    half = W // 2
    ge = np.zeros((W * C, half * C), np.float32)
    go = np.zeros((W * C, half * C), np.float32)
    col = np.arange(half * C)
    wp, cc = col // C, col % C
    ge[(2 * wp) * C + cc, col] = 1.0
    go[(2 * wp + 1) * C + cc, col] = 1.0
    return ge, go


def _pool_row_select(H, hp_next, last):
    """0/1 matrix selecting pooled rows (stride 2) and re-padding for the next block."""
    rows = (H // 2) if last else hp_next
    sel = np.zeros((rows, H - 1), np.float32)
    for hh in range(H // 2):
        sel[(hh if last else hh + 1), 2 * hh] = 1.0
    return sel


def make_cfg(H, W, cin0, channels):
    cfg = []
    cin, h, w = cin0, H, W
    for cout in channels:
        assert h % 2 == 0 and w % 2 == 0
        cfg.append(dict(H=h, W=w, Hp=h + 2, Cin=cin, Cout=cout,
                        Li=w * cin, Lo=w * cout))
        cin, h, w = cout, h // 2, w // 2
    return cfg


def build_kernel_inputs(params, cfg):
    """Flatten per-block parameters into the 11-arrays-per-block list the kernel expects."""
    flat = []
    for b, (p, c) in enumerate(zip(params, cfg)):
        W, Cout = c["W"], c["Cout"]
        scale, bias = _fold_bn(Cout)
        brow = jnp.asarray(np.tile(bias, W)[None, :], jnp.float32)
        t1 = jnp.asarray(_toeplitz3x3(np.asarray(p["w1"]), W, scale), jnp.bfloat16)
        t2 = jnp.asarray(_toeplitz3x3(np.asarray(p["w2"]), W, scale), jnp.bfloat16)
        t3 = jnp.asarray(_toeplitz3x3(np.asarray(p["w3"]), W, scale), jnp.bfloat16)
        td = jnp.asarray(_blockdiag1x1(np.asarray(p["wd"]), W, scale), jnp.bfloat16)
        ge, go = _pool_lane_select(W, Cout)
        last = (b == len(cfg) - 1)
        hp_next = None if last else cfg[b + 1]["Hp"]
        sel = _pool_row_select(c["H"], hp_next, last)
        flat += [t1, brow, t2, brow, t3, brow, td, brow,
                 jnp.asarray(ge), jnp.asarray(go), jnp.asarray(sel)]
    return flat


# ----------------------------------- forward wrapper ----------------------------------


def _const_spec(a):
    nd = a.ndim
    return pl.BlockSpec(a.shape, lambda i, _nd=nd: (0,) * _nd)


def resnet12_forward(x_nchw, flat_inputs, cfg):
    N = x_nchw.shape[0]
    c0 = cfg[0]
    Cl = cfg[-1]["Cout"]

    # one-time layout glue: NCHW -> per-image (H_padded, W*C) rows with zero padding ring
    x = jnp.transpose(x_nchw, (0, 2, 3, 1))                    # (N, H, W, C)
    x = x.reshape(N, c0["H"], c0["W"] * c0["Cin"])             # lanes = (w, c)
    x = jnp.pad(x, ((0, 0), (1, 1), (0, 0)))                   # (N, Hp, W*Cin)

    in_specs = [pl.BlockSpec((None, c0["Hp"], c0["Li"]), lambda i: (i, 0, 0))]
    in_specs += [_const_spec(a) for a in flat_inputs]

    scratch = ([pltpu.VMEM((c["Hp"], c["Lo"]), jnp.float32) for c in cfg]
               + [pltpu.VMEM((c["Hp"], c["Li"]), jnp.float32) for c in cfg[1:]]
               + [pltpu.VMEM((cfg[-1]["H"] // 2, (cfg[-1]["W"] // 2) * Cl), jnp.float32)])

    out = pl.pallas_call(
        functools.partial(_resnet12_kernel, cfg=cfg, e_lambda=1e-4),
        out_shape=jax.ShapeDtypeStruct((N, 1, Cl), jnp.float32),
        grid=(N,),
        in_specs=in_specs,
        out_specs=pl.BlockSpec((None, 1, Cl), lambda i: (i, 0, 0)),
        scratch_shapes=scratch,
        compiler_params=pltpu.CompilerParams(dimension_semantics=("parallel",)),
    )(x, *flat_inputs)
    return out.reshape(N, Cl)


# --------------------------------- parameter construction -----------------------------


def init_params(key, channels, cin0=3):
    layers = []
    cin = cin0
    for c in channels:
        key, k1, k2, k3, kd = jax.random.split(key, 5)

        def w3(k, ci, co):
            std = math.sqrt(2.0 / (co * 9))   # kaiming_normal, fan_out, leaky_relu
            return jax.random.normal(k, (3, 3, ci, co), jnp.float32) * std

        layers.append(dict(
            w1=w3(k1, cin, c),
            w2=w3(k2, c, c),
            w3=w3(k3, c, c),
            wd=jax.random.normal(kd, (cin, c), jnp.float32) * math.sqrt(2.0 / c),
        ))
        cin = c
    return layers


# ----------------------------------------- main ----------------------------------------

if __name__ == "__main__":
    key = jax.random.PRNGKey(0)
    kx, kp = jax.random.split(key)

    channels = [4, 8, 16, 32]
    N, H, W = 2, 32, 32                       # final spatial 2x2 after 4 blocks
    x = jax.random.normal(kx, (N, 3, H, W), jnp.float32)

    cfg = make_cfg(H, W, 3, channels)
    params = init_params(kp, channels, cin0=3)
    flat = build_kernel_inputs(params, cfg)

    fwd = jax.jit(functools.partial(resnet12_forward, cfg=cfg))
    out = jax.block_until_ready(fwd(x, flat))

    assert out.shape == (N, channels[-1]), out.shape
    assert bool(jnp.all(jnp.isfinite(out)))
    print("KERNEL_OK")
</pallas_src>

<mosaic_0001>
module attributes {stable_mosaic.version = 11 : i64} {
  func.func @_resnet12_kernel(%arg0: i32, %arg1: memref<1x34x96xf32, #tpu.memory_space<vmem>>, %arg2: memref<3x96x128xbf16, #tpu.memory_space<vmem>>, %arg3: memref<1x128xf32, #tpu.memory_space<vmem>>, %arg4: memref<3x128x128xbf16, #tpu.memory_space<vmem>>, %arg5: memref<1x128xf32, #tpu.memory_space<vmem>>, %arg6: memref<3x128x128xbf16, #tpu.memory_space<vmem>>, %arg7: memref<1x128xf32, #tpu.memory_space<vmem>>, %arg8: memref<96x128xbf16, #tpu.memory_space<vmem>>, %arg9: memref<1x128xf32, #tpu.memory_space<vmem>>, %arg10: memref<128x64xf32, #tpu.memory_space<vmem>>, %arg11: memref<128x64xf32, #tpu.memory_space<vmem>>, %arg12: memref<18x31xf32, #tpu.memory_space<vmem>>, %arg13: memref<3x64x128xbf16, #tpu.memory_space<vmem>>, %arg14: memref<1x128xf32, #tpu.memory_space<vmem>>, %arg15: memref<3x128x128xbf16, #tpu.memory_space<vmem>>, %arg16: memref<1x128xf32, #tpu.memory_space<vmem>>, %arg17: memref<3x128x128xbf16, #tpu.memory_space<vmem>>, %arg18: memref<1x128xf32, #tpu.memory_space<vmem>>, %arg19: memref<64x128xbf16, #tpu.memory_space<vmem>>, %arg20: memref<1x128xf32, #tpu.memory_space<vmem>>, %arg21: memref<128x64xf32, #tpu.memory_space<vmem>>, %arg22: memref<128x64xf32, #tpu.memory_space<vmem>>, %arg23: memref<10x15xf32, #tpu.memory_space<vmem>>, %arg24: memref<3x64x128xbf16, #tpu.memory_space<vmem>>, %arg25: memref<1x128xf32, #tpu.memory_space<vmem>>, %arg26: memref<3x128x128xbf16, #tpu.memory_space<vmem>>, %arg27: memref<1x128xf32, #tpu.memory_space<vmem>>, %arg28: memref<3x128x128xbf16, #tpu.memory_space<vmem>>, %arg29: memref<1x128xf32, #tpu.memory_space<vmem>>, %arg30: memref<64x128xbf16, #tpu.memory_space<vmem>>, %arg31: memref<1x128xf32, #tpu.memory_space<vmem>>, %arg32: memref<128x64xf32, #tpu.memory_space<vmem>>, %arg33: memref<128x64xf32, #tpu.memory_space<vmem>>, %arg34: memref<6x7xf32, #tpu.memory_space<vmem>>, %arg35: memref<3x64x128xbf16, #tpu.memory_space<vmem>>, %arg36: memref<1x128xf32, #tpu.memory_space<vmem>>, %arg37: memref<3x128x128xbf16, #tpu.memory_space<vmem>>, %arg38: memref<1x128xf32, #tpu.memory_space<vmem>>, %arg39: memref<3x128x128xbf16, #tpu.memory_space<vmem>>, %arg40: memref<1x128xf32, #tpu.memory_space<vmem>>, %arg41: memref<64x128xbf16, #tpu.memory_space<vmem>>, %arg42: memref<1x128xf32, #tpu.memory_space<vmem>>, %arg43: memref<128x64xf32, #tpu.memory_space<vmem>>, %arg44: memref<128x64xf32, #tpu.memory_space<vmem>>, %arg45: memref<2x3xf32, #tpu.memory_space<vmem>>, %arg46: memref<1x1x32xf32, #tpu.memory_space<vmem>>, %arg47: memref<34x128xf32, #tpu.memory_space<vmem>>, %arg48: memref<18x128xf32, #tpu.memory_space<vmem>>, %arg49: memref<10x128xf32, #tpu.memory_space<vmem>>, %arg50: memref<6x128xf32, #tpu.memory_space<vmem>>, %arg51: memref<18x64xf32, #tpu.memory_space<vmem>>, %arg52: memref<10x64xf32, #tpu.memory_space<vmem>>, %arg53: memref<6x64xf32, #tpu.memory_space<vmem>>, %arg54: memref<2x64xf32, #tpu.memory_space<vmem>>) attributes {dimension_semantics = [#tpu.dimension_semantics<parallel>], iteration_bounds = array<i64: 2>, scalar_prefetch = 0 : i64, scratch_operands = 8 : i64, tpu.core_type = #tpu.core_type<tc>, window_params = [{transform_indices = @transform_0, window_bounds = array<i64: 1, 34, 96>}, {pipeline_mode = #tpu.pipeline_mode<synchronous>, transform_indices = @transform_1, window_bounds = array<i64: 3, 96, 128>}, {pipeline_mode = #tpu.pipeline_mode<synchronous>, transform_indices = @transform_2, window_bounds = array<i64: 1, 128>}, {pipeline_mode = #tpu.pipeline_mode<synchronous>, transform_indices = @transform_3, window_bounds = array<i64: 3, 128, 128>}, {pipeline_mode = #tpu.pipeline_mode<synchronous>, transform_indices = @transform_4, window_bounds = array<i64: 1, 128>}, {pipeline_mode = #tpu.pipeline_mode<synchronous>, transform_indices = @transform_5, window_bounds = array<i64: 3, 128, 128>}, {pipeline_mode = #tpu.pipeline_mode<synchronous>, transform_indices = @transform_6, window_bounds = array<i64: 1, 128>}, {pipeline_mode = #tpu.pipeline_mode<synchronous>, transform_indices = @transform_7, window_bounds = array<i64: 96, 128>}, {pipeline_mode = #tpu.pipeline_mode<synchronous>, transform_indices = @transform_8, window_bounds = array<i64: 1, 128>}, {pipeline_mode = #tpu.pipeline_mode<synchronous>, transform_indices = @transform_9, window_bounds = array<i64: 128, 64>}, {pipeline_mode = #tpu.pipeline_mode<synchronous>, transform_indices = @transform_10, window_bounds = array<i64: 128, 64>}, {pipeline_mode = #tpu.pipeline_mode<synchronous>, transform_indices = @transform_11, window_bounds = array<i64: 18, 31>}, {pipeline_mode = #tpu.pipeline_mode<synchronous>, transform_indices = @transform_12, window_bounds = array<i64: 3, 64, 128>}, {pipeline_mode = #tpu.pipeline_mode<synchronous>, transform_indices = @transform_13, window_bounds = array<i64: 1, 128>}, {pipeline_mode = #tpu.pipeline_mode<synchronous>, transform_indices = @transform_14, window_bounds = array<i64: 3, 128, 128>}, {pipeline_mode = #tpu.pipeline_mode<synchronous>, transform_indices = @transform_15, window_bounds = array<i64: 1, 128>}, {pipeline_mode = #tpu.pipeline_mode<synchronous>, transform_indices = @transform_16, window_bounds = array<i64: 3, 128, 128>}, {pipeline_mode = #tpu.pipeline_mode<synchronous>, transform_indices = @transform_17, window_bounds = array<i64: 1, 128>}, {pipeline_mode = #tpu.pipeline_mode<synchronous>, transform_indices = @transform_18, window_bounds = array<i64: 64, 128>}, {pipeline_mode = #tpu.pipeline_mode<synchronous>, transform_indices = @transform_19, window_bounds = array<i64: 1, 128>}, {pipeline_mode = #tpu.pipeline_mode<synchronous>, transform_indices = @transform_20, window_bounds = array<i64: 128, 64>}, {pipeline_mode = #tpu.pipeline_mode<synchronous>, transform_indices = @transform_21, window_bounds = array<i64: 128, 64>}, {pipeline_mode = #tpu.pipeline_mode<synchronous>, transform_indices = @transform_22, window_bounds = array<i64: 10, 15>}, {pipeline_mode = #tpu.pipeline_mode<synchronous>, transform_indices = @transform_23, window_bounds = array<i64: 3, 64, 128>}, {pipeline_mode = #tpu.pipeline_mode<synchronous>, transform_indices = @transform_24, window_bounds = array<i64: 1, 128>}, {pipeline_mode = #tpu.pipeline_mode<synchronous>, transform_indices = @transform_25, window_bounds = array<i64: 3, 128, 128>}, {pipeline_mode = #tpu.pipeline_mode<synchronous>, transform_indices = @transform_26, window_bounds = array<i64: 1, 128>}, {pipeline_mode = #tpu.pipeline_mode<synchronous>, transform_indices = @transform_27, window_bounds = array<i64: 3, 128, 128>}, {pipeline_mode = #tpu.pipeline_mode<synchronous>, transform_indices = @transform_28, window_bounds = array<i64: 1, 128>}, {pipeline_mode = #tpu.pipeline_mode<synchronous>, transform_indices = @transform_29, window_bounds = array<i64: 64, 128>}, {pipeline_mode = #tpu.pipeline_mode<synchronous>, transform_indices = @transform_30, window_bounds = array<i64: 1, 128>}, {pipeline_mode = #tpu.pipeline_mode<synchronous>, transform_indices = @transform_31, window_bounds = array<i64: 128, 64>}, {pipeline_mode = #tpu.pipeline_mode<synchronous>, transform_indices = @transform_32, window_bounds = array<i64: 128, 64>}, {pipeline_mode = #tpu.pipeline_mode<synchronous>, transform_indices = @transform_33, window_bounds = array<i64: 6, 7>}, {pipeline_mode = #tpu.pipeline_mode<synchronous>, transform_indices = @transform_34, window_bounds = array<i64: 3, 64, 128>}, {pipeline_mode = #tpu.pipeline_mode<synchronous>, transform_indices = @transform_35, window_bounds = array<i64: 1, 128>}, {pipeline_mode = #tpu.pipeline_mode<synchronous>, transform_indices = @transform_36, window_bounds = array<i64: 3, 128, 128>}, {pipeline_mode = #tpu.pipeline_mode<synchronous>, transform_indices = @transform_37, window_bounds = array<i64: 1, 128>}, {pipeline_mode = #tpu.pipeline_mode<synchronous>, transform_indices = @transform_38, window_bounds = array<i64: 3, 128, 128>}, {pipeline_mode = #tpu.pipeline_mode<synchronous>, transform_indices = @transform_39, window_bounds = array<i64: 1, 128>}, {pipeline_mode = #tpu.pipeline_mode<synchronous>, transform_indices = @transform_40, window_bounds = array<i64: 64, 128>}, {pipeline_mode = #tpu.pipeline_mode<synchronous>, transform_indices = @transform_41, window_bounds = array<i64: 1, 128>}, {pipeline_mode = #tpu.pipeline_mode<synchronous>, transform_indices = @transform_42, window_bounds = array<i64: 128, 64>}, {pipeline_mode = #tpu.pipeline_mode<synchronous>, transform_indices = @transform_43, window_bounds = array<i64: 128, 64>}, {pipeline_mode = #tpu.pipeline_mode<synchronous>, transform_indices = @transform_44, window_bounds = array<i64: 2, 3>}, {transform_indices = @transform_45, window_bounds = array<i64: 1, 1, 32>}]} {
    %cst = arith.constant 0.000000e+00 : f32
    %0 = vector.broadcast %cst : f32 to vector<34x128xf32>
    %c0 = arith.constant 0 : index
    %c0_0 = arith.constant 0 : index
    %1 = vector.load %arg47[%c0, %c0_0] : memref<34x128xf32, #tpu.memory_space<vmem>>, vector<34x128xf32>
    tpu.vector_store %arg47[%c0, %c0_0], %0 {strides = array<i32>} : memref<34x128xf32, #tpu.memory_space<vmem>>, vector<34x128xf32>,
    %cst_1 = arith.constant 0.000000e+00 : f32
    %2 = vector.broadcast %cst_1 : f32 to vector<32x128xf32>
    %c0_2 = arith.constant 0 : index
    %c0_3 = arith.constant 0 : index
    %c0_4 = arith.constant 0 : index
    %3 = vector.load %arg1[%c0_2, %c0_3, %c0_4] : memref<1x34x96xf32, #tpu.memory_space<vmem>>, vector<1x32x96xf32>
    %4 = vector.shape_cast %3 : vector<1x32x96xf32> to vector<32x96xf32>
    %5 = arith.truncf %4 : vector<32x96xf32> to vector<32x96xbf16>
    %c0_5 = arith.constant 0 : index
    %c0_6 = arith.constant 0 : index
    %c0_7 = arith.constant 0 : index
    %6 = vector.load %arg2[%c0_5, %c0_6, %c0_7] : memref<3x96x128xbf16, #tpu.memory_space<vmem>>, vector<1x96x128xbf16>
    %7 = vector.shape_cast %6 : vector<1x96x128xbf16> to vector<96x128xbf16>
    %cst_8 = arith.constant dense<0.000000e+00> : vector<32x128xf32>
    %8 = tpu.matmul %5, %7, %cst_8 {dimension_numbers = #tpu.dot_dimension_numbers<[1], [0], [0], [1], [0, 0, 1, 1], [], []>} : vector<32x96xbf16>, vector<96x128xbf16>, vector<32x128xf32> -> vector<32x128xf32>
    %9 = arith.addf %2, %8 : vector<32x128xf32>
    %c0_9 = arith.constant 0 : index
    %c1 = arith.constant 1 : index
    %c0_10 = arith.constant 0 : index
    %10 = vector.load %arg1[%c0_9, %c1, %c0_10] : memref<1x34x96xf32, #tpu.memory_space<vmem>>, vector<1x32x96xf32>
    %11 = vector.shape_cast %10 : vector<1x32x96xf32> to vector<32x96xf32>
    %12 = arith.truncf %11 : vector<32x96xf32> to vector<32x96xbf16>
    %c1_11 = arith.constant 1 : index
    %c0_12 = arith.constant 0 : index
    %c0_13 = arith.constant 0 : index
    %13 = vector.load %arg2[%c1_11, %c0_12, %c0_13] : memref<3x96x128xbf16, #tpu.memory_space<vmem>>, vector<1x96x128xbf16>
    %14 = vector.shape_cast %13 : vector<1x96x128xbf16> to vector<96x128xbf16>
    %cst_14 = arith.constant dense<0.000000e+00> : vector<32x128xf32>
    %15 = tpu.matmul %12, %14, %cst_14 {dimension_numbers = #tpu.dot_dimension_numbers<[1], [0], [0], [1], [0, 0, 1, 1], [], []>} : vector<32x96xbf16>, vector<96x128xbf16>, vector<32x128xf32> -> vector<32x128xf32>
    %16 = arith.addf %9, %15 : vector<32x128xf32>
    %c0_15 = arith.constant 0 : index
    %c2 = arith.constant 2 : index
    %c0_16 = arith.constant 0 : index
    %17 = vector.load %arg1[%c0_15, %c2, %c0_16] : memref<1x34x96xf32, #tpu.memory_space<vmem>>, vector<1x32x96xf32>
    %18 = vector.shape_cast %17 : vector<1x32x96xf32> to vector<32x96xf32>
    %19 = arith.truncf %18 : vector<32x96xf32> to vector<32x96xbf16>
    %c2_17 = arith.constant 2 : index
    %c0_18 = arith.constant 0 : index
    %c0_19 = arith.constant 0 : index
    %20 = vector.load %arg2[%c2_17, %c0_18, %c0_19] : memref<3x96x128xbf16, #tpu.memory_space<vmem>>, vector<1x96x128xbf16>
    %21 = vector.shape_cast %20 : vector<1x96x128xbf16> to vector<96x128xbf16>
    %cst_20 = arith.constant dense<0.000000e+00> : vector<32x128xf32>
    %22 = tpu.matmul %19, %21, %cst_20 {dimension_numbers = #tpu.dot_dimension_numbers<[1], [0], [0], [1], [0, 0, 1, 1], [], []>} : vector<32x96xbf16>, vector<96x128xbf16>, vector<32x128xf32> -> vector<32x128xf32>
    %23 = arith.addf %16, %22 : vector<32x128xf32>
    %c0_21 = arith.constant 0 : index
    %c0_22 = arith.constant 0 : index
    %24 = vector.load %arg3[%c0_21, %c0_22] : memref<1x128xf32, #tpu.memory_space<vmem>>, vector<1x128xf32>
    %25 = vector.broadcast %24 : vector<1x128xf32> to vector<32x128xf32>
    %26 = arith.addf %23, %25 : vector<32x128xf32>
    %cst_23 = arith.constant 0.000000e+00 : f32
    %27 = vector.broadcast %cst_23 : f32 to vector<32x128xf32>
    %28 = arith.cmpf ogt, %26, %27 : vector<32x128xf32>
    %cst_24 = arith.constant 1.000000e-01 : f32
    %29 = vector.broadcast %cst_24 : f32 to vector<32x128xf32>
    %30 = arith.mulf %29, %26 : vector<32x128xf32>
    %31 = arith.select %28, %26, %30 : vector<32x128xi1>, vector<32x128xf32>
    %c1_25 = arith.constant 1 : index
    %c0_26 = arith.constant 0 : index
    %32 = vector.load %arg47[%c1_25, %c0_26] : memref<34x128xf32, #tpu.memory_space<vmem>>, vector<32x128xf32>
    tpu.vector_store %arg47[%c1_25, %c0_26], %31 {strides = array<i32>} : memref<34x128xf32, #tpu.memory_space<vmem>>, vector<32x128xf32>,
    %cst_27 = arith.constant 0.000000e+00 : f32
    %33 = vector.broadcast %cst_27 : f32 to vector<32x128xf32>
    %c0_28 = arith.constant 0 : index
    %c0_29 = arith.constant 0 : index
    %34 = vector.load %arg47[%c0_28, %c0_29] : memref<34x128xf32, #tpu.memory_space<vmem>>, vector<32x128xf32>
    %35 = arith.truncf %34 : vector<32x128xf32> to vector<32x128xbf16>
    %c0_30 = arith.constant 0 : index
    %c0_31 = arith.constant 0 : index
    %c0_32 = arith.constant 0 : index
    %36 = vector.load %arg4[%c0_30, %c0_31, %c0_32] : memref<3x128x128xbf16, #tpu.memory_space<vmem>>, vector<1x128x128xbf16>
    %37 = vector.shape_cast %36 : vector<1x128x128xbf16> to vector<128x128xbf16>
    %cst_33 = arith.constant dense<0.000000e+00> : vector<32x128xf32>
    %38 = tpu.matmul %35, %37, %cst_33 {dimension_numbers = #tpu.dot_dimension_numbers<[1], [0], [0], [1], [0, 0, 1, 1], [], []>} : vector<32x128xbf16>, vector<128x128xbf16>, vector<32x128xf32> -> vector<32x128xf32>
    %39 = arith.addf %33, %38 : vector<32x128xf32>
    %c1_34 = arith.constant 1 : index
    %c0_35 = arith.constant 0 : index
    %40 = vector.load %arg47[%c1_34, %c0_35] : memref<34x128xf32, #tpu.memory_space<vmem>>, vector<32x128xf32>
    %41 = arith.truncf %40 : vector<32x128xf32> to vector<32x128xbf16>
    %c1_36 = arith.constant 1 : index
    %c0_37 = arith.constant 0 : index
    %c0_38 = arith.constant 0 : index
    %42 = vector.load %arg4[%c1_36, %c0_37, %c0_38] : memref<3x128x128xbf16, #tpu.memory_space<vmem>>, vector<1x128x128xbf16>
    %43 = vector.shape_cast %42 : vector<1x128x128xbf16> to vector<128x128xbf16>
    %cst_39 = arith.constant dense<0.000000e+00> : vector<32x128xf32>
    %44 = tpu.matmul %41, %43, %cst_39 {dimension_numbers = #tpu.dot_dimension_numbers<[1], [0], [0], [1], [0, 0, 1, 1], [], []>} : vector<32x128xbf16>, vector<128x128xbf16>, vector<32x128xf32> -> vector<32x128xf32>
    %45 = arith.addf %39, %44 : vector<32x128xf32>
    %c2_40 = arith.constant 2 : index
    %c0_41 = arith.constant 0 : index
    %46 = vector.load %arg47[%c2_40, %c0_41] : memref<34x128xf32, #tpu.memory_space<vmem>>, vector<32x128xf32>
    %47 = arith.truncf %46 : vector<32x128xf32> to vector<32x128xbf16>
    %c2_42 = arith.constant 2 : index
    %c0_43 = arith.constant 0 : index
    %c0_44 = arith.constant 0 : index
    %48 = vector.load %arg4[%c2_42, %c0_43, %c0_44] : memref<3x128x128xbf16, #tpu.memory_space<vmem>>, vector<1x128x128xbf16>
    %49 = vector.shape_cast %48 : vector<1x128x128xbf16> to vector<128x128xbf16>
    %cst_45 = arith.constant dense<0.000000e+00> : vector<32x128xf32>
    %50 = tpu.matmul %47, %49, %cst_45 {dimension_numbers = #tpu.dot_dimension_numbers<[1], [0], [0], [1], [0, 0, 1, 1], [], []>} : vector<32x128xbf16>, vector<128x128xbf16>, vector<32x128xf32> -> vector<32x128xf32>
    %51 = arith.addf %45, %50 : vector<32x128xf32>
    %c0_46 = arith.constant 0 : index
    %c0_47 = arith.constant 0 : index
    %52 = vector.load %arg5[%c0_46, %c0_47] : memref<1x128xf32, #tpu.memory_space<vmem>>, vector<1x128xf32>
    %53 = vector.broadcast %52 : vector<1x128xf32> to vector<32x128xf32>
    %54 = arith.addf %51, %53 : vector<32x128xf32>
    %cst_48 = arith.constant 0.000000e+00 : f32
    %55 = vector.broadcast %cst_48 : f32 to vector<32x128xf32>
    %56 = arith.cmpf ogt, %54, %55 : vector<32x128xf32>
    %cst_49 = arith.constant 1.000000e-01 : f32
    %57 = vector.broadcast %cst_49 : f32 to vector<32x128xf32>
    %58 = arith.mulf %57, %54 : vector<32x128xf32>
    %59 = arith.select %56, %54, %58 : vector<32x128xi1>, vector<32x128xf32>
    %c1_50 = arith.constant 1 : index
    %c0_51 = arith.constant 0 : index
    %60 = vector.load %arg47[%c1_50, %c0_51] : memref<34x128xf32, #tpu.memory_space<vmem>>, vector<32x128xf32>
    tpu.vector_store %arg47[%c1_50, %c0_51], %59 {strides = array<i32>} : memref<34x128xf32, #tpu.memory_space<vmem>>, vector<32x128xf32>,
    %cst_52 = arith.constant 0.000000e+00 : f32
    %61 = vector.broadcast %cst_52 : f32 to vector<32x128xf32>
    %c0_53 = arith.constant 0 : index
    %c0_54 = arith.constant 0 : index
    %62 = vector.load %arg47[%c0_53, %c0_54] : memref<34x128xf32, #tpu.memory_space<vmem>>, vector<32x128xf32>
    %63 = arith.truncf %62 : vector<32x128xf32> to vector<32x128xbf16>
    %c0_55 = arith.constant 0 : index
    %c0_56 = arith.constant 0 : index
    %c0_57 = arith.constant 0 : index
    %64 = vector.load %arg6[%c0_55, %c0_56, %c0_57] : memref<3x128x128xbf16, #tpu.memory_space<vmem>>, vector<1x128x128xbf16>
    %65 = vector.shape_cast %64 : vector<1x128x128xbf16> to vector<128x128xbf16>
    %cst_58 = arith.constant dense<0.000000e+00> : vector<32x128xf32>
    %66 = tpu.matmul %63, %65, %cst_58 {dimension_numbers = #tpu.dot_dimension_numbers<[1], [0], [0], [1], [0, 0, 1, 1], [], []>} : vector<32x128xbf16>, vector<128x128xbf16>, vector<32x128xf32> -> vector<32x128xf32>
    %67 = arith.addf %61, %66 : vector<32x128xf32>
    %c1_59 = arith.constant 1 : index
    %c0_60 = arith.constant 0 : index
    %68 = vector.load %arg47[%c1_59, %c0_60] : memref<34x128xf32, #tpu.memory_space<vmem>>, vector<32x128xf32>
    %69 = arith.truncf %68 : vector<32x128xf32> to vector<32x128xbf16>
    %c1_61 = arith.constant 1 : index
    %c0_62 = arith.constant 0 : index
    %c0_63 = arith.constant 0 : index
    %70 = vector.load %arg6[%c1_61, %c0_62, %c0_63] : memref<3x128x128xbf16, #tpu.memory_space<vmem>>, vector<1x128x128xbf16>
    %71 = vector.shape_cast %70 : vector<1x128x128xbf16> to vector<128x128xbf16>
    %cst_64 = arith.constant dense<0.000000e+00> : vector<32x128xf32>
    %72 = tpu.matmul %69, %71, %cst_64 {dimension_numbers = #tpu.dot_dimension_numbers<[1], [0], [0], [1], [0, 0, 1, 1], [], []>} : vector<32x128xbf16>, vector<128x128xbf16>, vector<32x128xf32> -> vector<32x128xf32>
    %73 = arith.addf %67, %72 : vector<32x128xf32>
    %c2_65 = arith.constant 2 : index
    %c0_66 = arith.constant 0 : index
    %74 = vector.load %arg47[%c2_65, %c0_66] : memref<34x128xf32, #tpu.memory_space<vmem>>, vector<32x128xf32>
    %75 = arith.truncf %74 : vector<32x128xf32> to vector<32x128xbf16>
    %c2_67 = arith.constant 2 : index
    %c0_68 = arith.constant 0 : index
    %c0_69 = arith.constant 0 : index
    %76 = vector.load %arg6[%c2_67, %c0_68, %c0_69] : memref<3x128x128xbf16, #tpu.memory_space<vmem>>, vector<1x128x128xbf16>
    %77 = vector.shape_cast %76 : vector<1x128x128xbf16> to vector<128x128xbf16>
    %cst_70 = arith.constant dense<0.000000e+00> : vector<32x128xf32>
    %78 = tpu.matmul %75, %77, %cst_70 {dimension_numbers = #tpu.dot_dimension_numbers<[1], [0], [0], [1], [0, 0, 1, 1], [], []>} : vector<32x128xbf16>, vector<128x128xbf16>, vector<32x128xf32> -> vector<32x128xf32>
    %79 = arith.addf %73, %78 : vector<32x128xf32>
    %c0_71 = arith.constant 0 : index
    %c0_72 = arith.constant 0 : index
    %80 = vector.load %arg7[%c0_71, %c0_72] : memref<1x128xf32, #tpu.memory_space<vmem>>, vector<1x128xf32>
    %81 = vector.broadcast %80 : vector<1x128xf32> to vector<32x128xf32>
    %82 = arith.addf %79, %81 : vector<32x128xf32>
    %c0_73 = arith.constant 0 : index
    %c1_74 = arith.constant 1 : index
    %c0_75 = arith.constant 0 : index
    %83 = vector.load %arg1[%c0_73, %c1_74, %c0_75] : memref<1x34x96xf32, #tpu.memory_space<vmem>>, vector<1x32x96xf32>
    %84 = vector.shape_cast %83 : vector<1x32x96xf32> to vector<32x96xf32>
    %85 = arith.truncf %84 : vector<32x96xf32> to vector<32x96xbf16>
    %c0_76 = arith.constant 0 : index
    %c0_77 = arith.constant 0 : index
    %86 = vector.load %arg8[%c0_76, %c0_77] : memref<96x128xbf16, #tpu.memory_space<vmem>>, vector<96x128xbf16>
    %cst_78 = arith.constant dense<0.000000e+00> : vector<32x128xf32>
    %87 = tpu.matmul %85, %86, %cst_78 {dimension_numbers = #tpu.dot_dimension_numbers<[1], [0], [0], [1], [0, 0, 1, 1], [], []>} : vector<32x96xbf16>, vector<96x128xbf16>, vector<32x128xf32> -> vector<32x128xf32>
    %c0_79 = arith.constant 0 : index
    %c0_80 = arith.constant 0 : index
    %88 = vector.load %arg9[%c0_79, %c0_80] : memref<1x128xf32, #tpu.memory_space<vmem>>, vector<1x128xf32>
    %89 = vector.broadcast %88 : vector<1x128xf32> to vector<32x128xf32>
    %90 = arith.addf %87, %89 : vector<32x128xf32>
    %91 = arith.addf %82, %90 : vector<32x128xf32>
    %cst_81 = arith.constant 0.000000e+00 : f32
    %92 = vector.broadcast %cst_81 : f32 to vector<32x128xf32>
    %93 = arith.cmpf ogt, %91, %92 : vector<32x128xf32>
    %cst_82 = arith.constant 1.000000e-01 : f32
    %94 = vector.broadcast %cst_82 : f32 to vector<32x128xf32>
    %95 = arith.mulf %94, %91 : vector<32x128xf32>
    %96 = arith.select %93, %91, %95 : vector<32x128xi1>, vector<32x128xf32>
    %c1_83 = arith.constant 1 : index
    %c0_84 = arith.constant 0 : index
    %97 = vector.load %arg47[%c1_83, %c0_84] : memref<34x128xf32, #tpu.memory_space<vmem>>, vector<32x128xf32>
    tpu.vector_store %arg47[%c1_83, %c0_84], %96 {strides = array<i32>} : memref<34x128xf32, #tpu.memory_space<vmem>>, vector<32x128xf32>,
    %c1_85 = arith.constant 1 : index
    %c0_86 = arith.constant 0 : index
    %98 = vector.load %arg47[%c1_85, %c0_86] : memref<34x128xf32, #tpu.memory_space<vmem>>, vector<31x128xf32>
    %c2_87 = arith.constant 2 : index
    %c0_88 = arith.constant 0 : index
    %99 = vector.load %arg47[%c2_87, %c0_88] : memref<34x128xf32, #tpu.memory_space<vmem>>, vector<31x128xf32>
    %100 = arith.maximumf %98, %99 : vector<31x128xf32>
    %c0_89 = arith.constant 0 : index
    %c0_90 = arith.constant 0 : index
    %101 = vector.load %arg10[%c0_89, %c0_90] : memref<128x64xf32, #tpu.memory_space<vmem>>, vector<128x64xf32>
    %cst_91 = arith.constant dense<0.000000e+00> : vector<31x64xf32>
    %102 = tpu.matmul %100, %101, %cst_91 {dimension_numbers = #tpu.dot_dimension_numbers<[1], [0], [0], [1], [0, 0, 1, 1], [], []>} : vector<31x128xf32>, vector<128x64xf32>, vector<31x64xf32> -> vector<31x64xf32>
    %c0_92 = arith.constant 0 : index
    %c0_93 = arith.constant 0 : index
    %103 = vector.load %arg11[%c0_92, %c0_93] : memref<128x64xf32, #tpu.memory_space<vmem>>, vector<128x64xf32>
    %cst_94 = arith.constant dense<0.000000e+00> : vector<31x64xf32>
    %104 = tpu.matmul %100, %103, %cst_94 {dimension_numbers = #tpu.dot_dimension_numbers<[1], [0], [0], [1], [0, 0, 1, 1], [], []>} : vector<31x128xf32>, vector<128x64xf32>, vector<31x64xf32> -> vector<31x64xf32>
    %105 = arith.maximumf %102, %104 : vector<31x64xf32>
    %c0_95 = arith.constant 0 : index
    %c0_96 = arith.constant 0 : index
    %106 = vector.load %arg12[%c0_95, %c0_96] : memref<18x31xf32, #tpu.memory_space<vmem>>, vector<18x31xf32>
    %cst_97 = arith.constant dense<0.000000e+00> : vector<18x64xf32>
    %107 = tpu.matmul %106, %105, %cst_97 {dimension_numbers = #tpu.dot_dimension_numbers<[1], [0], [0], [1], [0, 0, 1, 1], [], []>} : vector<18x31xf32>, vector<31x64xf32>, vector<18x64xf32> -> vector<18x64xf32>
    %c0_98 = arith.constant 0 : index
    %c0_99 = arith.constant 0 : index
    %108 = vector.load %arg51[%c0_98, %c0_99] : memref<18x64xf32, #tpu.memory_space<vmem>>, vector<18x64xf32>
    tpu.vector_store %arg51[%c0_98, %c0_99], %107 {strides = array<i32>} : memref<18x64xf32, #tpu.memory_space<vmem>>, vector<18x64xf32>,
    %cst_100 = arith.constant 0.000000e+00 : f32
    %109 = vector.broadcast %cst_100 : f32 to vector<18x128xf32>
    %c0_101 = arith.constant 0 : index
    %c0_102 = arith.constant 0 : index
    %110 = vector.load %arg48[%c0_101, %c0_102] : memref<18x128xf32, #tpu.memory_space<vmem>>, vector<18x128xf32>
    tpu.vector_store %arg48[%c0_101, %c0_102], %109 {strides = array<i32>} : memref<18x128xf32, #tpu.memory_space<vmem>>, vector<18x128xf32>,
    %cst_103 = arith.constant 0.000000e+00 : f32
    %111 = vector.broadcast %cst_103 : f32 to vector<16x128xf32>
    %c0_104 = arith.constant 0 : index
    %c0_105 = arith.constant 0 : index
    %112 = vector.load %arg51[%c0_104, %c0_105] : memref<18x64xf32, #tpu.memory_space<vmem>>, vector<16x64xf32>
    %113 = arith.truncf %112 : vector<16x64xf32> to vector<16x64xbf16>
    %c0_106 = arith.constant 0 : index
    %c0_107 = arith.constant 0 : index
    %c0_108 = arith.constant 0 : index
    %114 = vector.load %arg13[%c0_106, %c0_107, %c0_108] : memref<3x64x128xbf16, #tpu.memory_space<vmem>>, vector<1x64x128xbf16>
    %115 = vector.shape_cast %114 : vector<1x64x128xbf16> to vector<64x128xbf16>
    %cst_109 = arith.constant dense<0.000000e+00> : vector<16x128xf32>
    %116 = tpu.matmul %113, %115, %cst_109 {dimension_numbers = #tpu.dot_dimension_numbers<[1], [0], [0], [1], [0, 0, 1, 1], [], []>} : vector<16x64xbf16>, vector<64x128xbf16>, vector<16x128xf32> -> vector<16x128xf32>
    %117 = arith.addf %111, %116 : vector<16x128xf32>
    %c1_110 = arith.constant 1 : index
    %c0_111 = arith.constant 0 : index
    %118 = vector.load %arg51[%c1_110, %c0_111] : memref<18x64xf32, #tpu.memory_space<vmem>>, vector<16x64xf32>
    %119 = arith.truncf %118 : vector<16x64xf32> to vector<16x64xbf16>
    %c1_112 = arith.constant 1 : index
    %c0_113 = arith.constant 0 : index
    %c0_114 = arith.constant 0 : index
    %120 = vector.load %arg13[%c1_112, %c0_113, %c0_114] : memref<3x64x128xbf16, #tpu.memory_space<vmem>>, vector<1x64x128xbf16>
    %121 = vector.shape_cast %120 : vector<1x64x128xbf16> to vector<64x128xbf16>
    %cst_115 = arith.constant dense<0.000000e+00> : vector<16x128xf32>
    %122 = tpu.matmul %119, %121, %cst_115 {dimension_numbers = #tpu.dot_dimension_numbers<[1], [0], [0], [1], [0, 0, 1, 1], [], []>} : vector<16x64xbf16>, vector<64x128xbf16>, vector<16x128xf32> -> vector<16x128xf32>
    %123 = arith.addf %117, %122 : vector<16x128xf32>
    %c2_116 = arith.constant 2 : index
    %c0_117 = arith.constant 0 : index
    %124 = vector.load %arg51[%c2_116, %c0_117] : memref<18x64xf32, #tpu.memory_space<vmem>>, vector<16x64xf32>
    %125 = arith.truncf %124 : vector<16x64xf32> to vector<16x64xbf16>
    %c2_118 = arith.constant 2 : index
    %c0_119 = arith.constant 0 : index
    %c0_120 = arith.constant 0 : index
    %126 = vector.load %arg13[%c2_118, %c0_119, %c0_120] : memref<3x64x128xbf16, #tpu.memory_space<vmem>>, vector<1x64x128xbf16>
    %127 = vector.shape_cast %126 : vector<1x64x128xbf16> to vector<64x128xbf16>
    %cst_121 = arith.constant dense<0.000000e+00> : vector<16x128xf32>
    %128 = tpu.matmul %125, %127, %cst_121 {dimension_numbers = #tpu.dot_dimension_numbers<[1], [0], [0], [1], [0, 0, 1, 1], [], []>} : vector<16x64xbf16>, vector<64x128xbf16>, vector<16x128xf32> -> vector<16x128xf32>
    %129 = arith.addf %123, %128 : vector<16x128xf32>
    %c0_122 = arith.constant 0 : index
    %c0_123 = arith.constant 0 : index
    %130 = vector.load %arg14[%c0_122, %c0_123] : memref<1x128xf32, #tpu.memory_space<vmem>>, vector<1x128xf32>
    %131 = vector.broadcast %130 : vector<1x128xf32> to vector<16x128xf32>
    %132 = arith.addf %129, %131 : vector<16x128xf32>
    %cst_124 = arith.constant 0.000000e+00 : f32
    %133 = vector.broadcast %cst_124 : f32 to vector<16x128xf32>
    %134 = arith.cmpf ogt, %132, %133 : vector<16x128xf32>
    %cst_125 = arith.constant 1.000000e-01 : f32
    %135 = vector.broadcast %cst_125 : f32 to vector<16x128xf32>
    %136 = arith.mulf %135, %132 : vector<16x128xf32>
    %137 = arith.select %134, %132, %136 : vector<16x128xi1>, vector<16x128xf32>
    %c1_126 = arith.constant 1 : index
    %c0_127 = arith.constant 0 : index
    %138 = vector.load %arg48[%c1_126, %c0_127] : memref<18x128xf32, #tpu.memory_space<vmem>>, vector<16x128xf32>
    tpu.vector_store %arg48[%c1_126, %c0_127], %137 {strides = array<i32>} : memref<18x128xf32, #tpu.memory_space<vmem>>, vector<16x128xf32>,
    %cst_128 = arith.constant 0.000000e+00 : f32
    %139 = vector.broadcast %cst_128 : f32 to vector<16x128xf32>
    %c0_129 = arith.constant 0 : index
    %c0_130 = arith.constant 0 : index
    %140 = vector.load %arg48[%c0_129, %c0_130] : memref<18x128xf32, #tpu.memory_space<vmem>>, vector<16x128xf32>
    %141 = arith.truncf %140 : vector<16x128xf32> to vector<16x128xbf16>
    %c0_131 = arith.constant 0 : index
    %c0_132 = arith.constant 0 : index
    %c0_133 = arith.constant 0 : index
    %142 = vector.load %arg15[%c0_131, %c0_132, %c0_133] : memref<3x128x128xbf16, #tpu.memory_space<vmem>>, vector<1x128x128xbf16>
    %143 = vector.shape_cast %142 : vector<1x128x128xbf16> to vector<128x128xbf16>
    %cst_134 = arith.constant dense<0.000000e+00> : vector<16x128xf32>
    %144 = tpu.matmul %141, %143, %cst_134 {dimension_numbers = #tpu.dot_dimension_numbers<[1], [0], [0], [1], [0, 0, 1, 1], [], []>} : vector<16x128xbf16>, vector<128x128xbf16>, vector<16x128xf32> -> vector<16x128xf32>
    %145 = arith.addf %139, %144 : vector<16x128xf32>
    %c1_135 = arith.constant 1 : index
    %c0_136 = arith.constant 0 : index
    %146 = vector.load %arg48[%c1_135, %c0_136] : memref<18x128xf32, #tpu.memory_space<vmem>>, vector<16x128xf32>
    %147 = arith.truncf %146 : vector<16x128xf32> to vector<16x128xbf16>
    %c1_137 = arith.constant 1 : index
    %c0_138 = arith.constant 0 : index
    %c0_139 = arith.constant 0 : index
    %148 = vector.load %arg15[%c1_137, %c0_138, %c0_139] : memref<3x128x128xbf16, #tpu.memory_space<vmem>>, vector<1x128x128xbf16>
    %149 = vector.shape_cast %148 : vector<1x128x128xbf16> to vector<128x128xbf16>
    %cst_140 = arith.constant dense<0.000000e+00> : vector<16x128xf32>
    %150 = tpu.matmul %147, %149, %cst_140 {dimension_numbers = #tpu.dot_dimension_numbers<[1], [0], [0], [1], [0, 0, 1, 1], [], []>} : vector<16x128xbf16>, vector<128x128xbf16>, vector<16x128xf32> -> vector<16x128xf32>
    %151 = arith.addf %145, %150 : vector<16x128xf32>
    %c2_141 = arith.constant 2 : index
    %c0_142 = arith.constant 0 : index
    %152 = vector.load %arg48[%c2_141, %c0_142] : memref<18x128xf32, #tpu.memory_space<vmem>>, vector<16x128xf32>
    %153 = arith.truncf %152 : vector<16x128xf32> to vector<16x128xbf16>
    %c2_143 = arith.constant 2 : index
    %c0_144 = arith.constant 0 : index
    %c0_145 = arith.constant 0 : index
    %154 = vector.load %arg15[%c2_143, %c0_144, %c0_145] : memref<3x128x128xbf16, #tpu.memory_space<vmem>>, vector<1x128x128xbf16>
    %155 = vector.shape_cast %154 : vector<1x128x128xbf16> to vector<128x128xbf16>
    %cst_146 = arith.constant dense<0.000000e+00> : vector<16x128xf32>
    %156 = tpu.matmul %153, %155, %cst_146 {dimension_numbers = #tpu.dot_dimension_numbers<[1], [0], [0], [1], [0, 0, 1, 1], [], []>} : vector<16x128xbf16>, vector<128x128xbf16>, vector<16x128xf32> -> vector<16x128xf32>
    %157 = arith.addf %151, %156 : vector<16x128xf32>
    %c0_147 = arith.constant 0 : index
    %c0_148 = arith.constant 0 : index
    %158 = vector.load %arg16[%c0_147, %c0_148] : memref<1x128xf32, #tpu.memory_space<vmem>>, vector<1x128xf32>
    %159 = vector.broadcast %158 : vector<1x128xf32> to vector<16x128xf32>
    %160 = arith.addf %157, %159 : vector<16x128xf32>
    %cst_149 = arith.constant 0.000000e+00 : f32
    %161 = vector.broadcast %cst_149 : f32 to vector<16x128xf32>
    %162 = arith.cmpf ogt, %160, %161 : vector<16x128xf32>
    %cst_150 = arith.constant 1.000000e-01 : f32
    %163 = vector.broadcast %cst_150 : f32 to vector<16x128xf32>
    %164 = arith.mulf %163, %160 : vector<16x128xf32>
    %165 = arith.select %162, %160, %164 : vector<16x128xi1>, vector<16x128xf32>
    %c1_151 = arith.constant 1 : index
    %c0_152 = arith.constant 0 : index
    %166 = vector.load %arg48[%c1_151, %c0_152] : memref<18x128xf32, #tpu.memory_space<vmem>>, vector<16x128xf32>
    tpu.vector_store %arg48[%c1_151, %c0_152], %165 {strides = array<i32>} : memref<18x128xf32, #tpu.memory_space<vmem>>, vector<16x128xf32>,
    %cst_153 = arith.constant 0.000000e+00 : f32
    %167 = vector.broadcast %cst_153 : f32 to vector<16x128xf32>
    %c0_154 = arith.constant 0 : index
    %c0_155 = arith.constant 0 : index
    %168 = vector.load %arg48[%c0_154, %c0_155] : memref<18x128xf32, #tpu.memory_space<vmem>>, vector<16x128xf32>
    %169 = arith.truncf %168 : vector<16x128xf32> to vector<16x128xbf16>
    %c0_156 = arith.constant 0 : index
    %c0_157 = arith.constant 0 : index
    %c0_158 = arith.constant 0 : index
    %170 = vector.load %arg17[%c0_156, %c0_157, %c0_158] : memref<3x128x128xbf16, #tpu.memory_space<vmem>>, vector<1x128x128xbf16>
    %171 = vector.shape_cast %170 : vector<1x128x128xbf16> to vector<128x128xbf16>
    %cst_159 = arith.constant dense<0.000000e+00> : vector<16x128xf32>
    %172 = tpu.matmul %169, %171, %cst_159 {dimension_numbers = #tpu.dot_dimension_numbers<[1], [0], [0], [1], [0, 0, 1, 1], [], []>} : vector<16x128xbf16>, vector<128x128xbf16>, vector<16x128xf32> -> vector<16x128xf32>
    %173 = arith.addf %167, %172 : vector<16x128xf32>
    %c1_160 = arith.constant 1 : index
    %c0_161 = arith.constant 0 : index
    %174 = vector.load %arg48[%c1_160, %c0_161] : memref<18x128xf32, #tpu.memory_space<vmem>>, vector<16x128xf32>
    %175 = arith.truncf %174 : vector<16x128xf32> to vector<16x128xbf16>
    %c1_162 = arith.constant 1 : index
    %c0_163 = arith.constant 0 : index
    %c0_164 = arith.constant 0 : index
    %176 = vector.load %arg17[%c1_162, %c0_163, %c0_164] : memref<3x128x128xbf16, #tpu.memory_space<vmem>>, vector<1x128x128xbf16>
    %177 = vector.shape_cast %176 : vector<1x128x128xbf16> to vector<128x128xbf16>
    %cst_165 = arith.constant dense<0.000000e+00> : vector<16x128xf32>
    %178 = tpu.matmul %175, %177, %cst_165 {dimension_numbers = #tpu.dot_dimension_numbers<[1], [0], [0], [1], [0, 0, 1, 1], [], []>} : vector<16x128xbf16>, vector<128x128xbf16>, vector<16x128xf32> -> vector<16x128xf32>
    %179 = arith.addf %173, %178 : vector<16x128xf32>
    %c2_166 = arith.constant 2 : index
    %c0_167 = arith.constant 0 : index
    %180 = vector.load %arg48[%c2_166, %c0_167] : memref<18x128xf32, #tpu.memory_space<vmem>>, vector<16x128xf32>
    %181 = arith.truncf %180 : vector<16x128xf32> to vector<16x128xbf16>
    %c2_168 = arith.constant 2 : index
    %c0_169 = arith.constant 0 : index
    %c0_170 = arith.constant 0 : index
    %182 = vector.load %arg17[%c2_168, %c0_169, %c0_170] : memref<3x128x128xbf16, #tpu.memory_space<vmem>>, vector<1x128x128xbf16>
    %183 = vector.shape_cast %182 : vector<1x128x128xbf16> to vector<128x128xbf16>
    %cst_171 = arith.constant dense<0.000000e+00> : vector<16x128xf32>
    %184 = tpu.matmul %181, %183, %cst_171 {dimension_numbers = #tpu.dot_dimension_numbers<[1], [0], [0], [1], [0, 0, 1, 1], [], []>} : vector<16x128xbf16>, vector<128x128xbf16>, vector<16x128xf32> -> vector<16x128xf32>
    %185 = arith.addf %179, %184 : vector<16x128xf32>
    %c0_172 = arith.constant 0 : index
    %c0_173 = arith.constant 0 : index
    %186 = vector.load %arg18[%c0_172, %c0_173] : memref<1x128xf32, #tpu.memory_space<vmem>>, vector<1x128xf32>
    %187 = vector.broadcast %186 : vector<1x128xf32> to vector<16x128xf32>
    %188 = arith.addf %185, %187 : vector<16x128xf32>
    %c1_174 = arith.constant 1 : index
    %c0_175 = arith.constant 0 : index
    %189 = vector.load %arg51[%c1_174, %c0_175] : memref<18x64xf32, #tpu.memory_space<vmem>>, vector<16x64xf32>
    %190 = arith.truncf %189 : vector<16x64xf32> to vector<16x64xbf16>
    %c0_176 = arith.constant 0 : index
    %c0_177 = arith.constant 0 : index
    %191 = vector.load %arg19[%c0_176, %c0_177] : memref<64x128xbf16, #tpu.memory_space<vmem>>, vector<64x128xbf16>
    %cst_178 = arith.constant dense<0.000000e+00> : vector<16x128xf32>
    %192 = tpu.matmul %190, %191, %cst_178 {dimension_numbers = #tpu.dot_dimension_numbers<[1], [0], [0], [1], [0, 0, 1, 1], [], []>} : vector<16x64xbf16>, vector<64x128xbf16>, vector<16x128xf32> -> vector<16x128xf32>
    %c0_179 = arith.constant 0 : index
    %c0_180 = arith.constant 0 : index
    %193 = vector.load %arg20[%c0_179, %c0_180] : memref<1x128xf32, #tpu.memory_space<vmem>>, vector<1x128xf32>
    %194 = vector.broadcast %193 : vector<1x128xf32> to vector<16x128xf32>
    %195 = arith.addf %192, %194 : vector<16x128xf32>
    %196 = arith.addf %188, %195 : vector<16x128xf32>
    %cst_181 = arith.constant 0.000000e+00 : f32
    %197 = vector.broadcast %cst_181 : f32 to vector<16x128xf32>
    %198 = arith.cmpf ogt, %196, %197 : vector<16x128xf32>
    %cst_182 = arith.constant 1.000000e-01 : f32
    %199 = vector.broadcast %cst_182 : f32 to vector<16x128xf32>
    %200 = arith.mulf %199, %196 : vector<16x128xf32>
    %201 = arith.select %198, %196, %200 : vector<16x128xi1>, vector<16x128xf32>
    %c1_183 = arith.constant 1 : index
    %c0_184 = arith.constant 0 : index
    %202 = vector.load %arg48[%c1_183, %c0_184] : memref<18x128xf32, #tpu.memory_space<vmem>>, vector<16x128xf32>
    tpu.vector_store %arg48[%c1_183, %c0_184], %201 {strides = array<i32>} : memref<18x128xf32, #tpu.memory_space<vmem>>, vector<16x128xf32>,
    %c1_185 = arith.constant 1 : index
    %c0_186 = arith.constant 0 : index
    %203 = vector.load %arg48[%c1_185, %c0_186] : memref<18x128xf32, #tpu.memory_space<vmem>>, vector<15x128xf32>
    %c2_187 = arith.constant 2 : index
    %c0_188 = arith.constant 0 : index
    %204 = vector.load %arg48[%c2_187, %c0_188] : memref<18x128xf32, #tpu.memory_space<vmem>>, vector<15x128xf32>
    %205 = arith.maximumf %203, %204 : vector<15x128xf32>
    %c0_189 = arith.constant 0 : index
    %c0_190 = arith.constant 0 : index
    %206 = vector.load %arg21[%c0_189, %c0_190] : memref<128x64xf32, #tpu.memory_space<vmem>>, vector<128x64xf32>
    %cst_191 = arith.constant dense<0.000000e+00> : vector<15x64xf32>
    %207 = tpu.matmul %205, %206, %cst_191 {dimension_numbers = #tpu.dot_dimension_numbers<[1], [0], [0], [1], [0, 0, 1, 1], [], []>} : vector<15x128xf32>, vector<128x64xf32>, vector<15x64xf32> -> vector<15x64xf32>
    %c0_192 = arith.constant 0 : index
    %c0_193 = arith.constant 0 : index
    %208 = vector.load %arg22[%c0_192, %c0_193] : memref<128x64xf32, #tpu.memory_space<vmem>>, vector<128x64xf32>
    %cst_194 = arith.constant dense<0.000000e+00> : vector<15x64xf32>
    %209 = tpu.matmul %205, %208, %cst_194 {dimension_numbers = #tpu.dot_dimension_numbers<[1], [0], [0], [1], [0, 0, 1, 1], [], []>} : vector<15x128xf32>, vector<128x64xf32>, vector<15x64xf32> -> vector<15x64xf32>
    %210 = arith.maximumf %207, %209 : vector<15x64xf32>
    %c0_195 = arith.constant 0 : index
    %c0_196 = arith.constant 0 : index
    %211 = vector.load %arg23[%c0_195, %c0_196] : memref<10x15xf32, #tpu.memory_space<vmem>>, vector<10x15xf32>
    %cst_197 = arith.constant dense<0.000000e+00> : vector<10x64xf32>
    %212 = tpu.matmul %211, %210, %cst_197 {dimension_numbers = #tpu.dot_dimension_numbers<[1], [0], [0], [1], [0, 0, 1, 1], [], []>} : vector<10x15xf32>, vector<15x64xf32>, vector<10x64xf32> -> vector<10x64xf32>
    %c0_198 = arith.constant 0 : index
    %c0_199 = arith.constant 0 : index
    %213 = vector.load %arg52[%c0_198, %c0_199] : memref<10x64xf32, #tpu.memory_space<vmem>>, vector<10x64xf32>
    tpu.vector_store %arg52[%c0_198, %c0_199], %212 {strides = array<i32>} : memref<10x64xf32, #tpu.memory_space<vmem>>, vector<10x64xf32>,
    %cst_200 = arith.constant 0.000000e+00 : f32
    %214 = vector.broadcast %cst_200 : f32 to vector<10x128xf32>
    %c0_201 = arith.constant 0 : index
    %c0_202 = arith.constant 0 : index
    %215 = vector.load %arg49[%c0_201, %c0_202] : memref<10x128xf32, #tpu.memory_space<vmem>>, vector<10x128xf32>
    tpu.vector_store %arg49[%c0_201, %c0_202], %214 {strides = array<i32>} : memref<10x128xf32, #tpu.memory_space<vmem>>, vector<10x128xf32>,
    %cst_203 = arith.constant 0.000000e+00 : f32
    %216 = vector.broadcast %cst_203 : f32 to vector<8x128xf32>
    %c0_204 = arith.constant 0 : index
    %c0_205 = arith.constant 0 : index
    %217 = vector.load %arg52[%c0_204, %c0_205] : memref<10x64xf32, #tpu.memory_space<vmem>>, vector<8x64xf32>
    %218 = arith.truncf %217 : vector<8x64xf32> to vector<8x64xbf16>
    %c0_206 = arith.constant 0 : index
    %c0_207 = arith.constant 0 : index
    %c0_208 = arith.constant 0 : index
    %219 = vector.load %arg24[%c0_206, %c0_207, %c0_208] : memref<3x64x128xbf16, #tpu.memory_space<vmem>>, vector<1x64x128xbf16>
    %220 = vector.shape_cast %219 : vector<1x64x128xbf16> to vector<64x128xbf16>
    %cst_209 = arith.constant dense<0.000000e+00> : vector<8x128xf32>
    %221 = tpu.matmul %218, %220, %cst_209 {dimension_numbers = #tpu.dot_dimension_numbers<[1], [0], [0], [1], [0, 0, 1, 1], [], []>} : vector<8x64xbf16>, vector<64x128xbf16>, vector<8x128xf32> -> vector<8x128xf32>
    %222 = arith.addf %216, %221 : vector<8x128xf32>
    %c1_210 = arith.constant 1 : index
    %c0_211 = arith.constant 0 : index
    %223 = vector.load %arg52[%c1_210, %c0_211] : memref<10x64xf32, #tpu.memory_space<vmem>>, vector<8x64xf32>
    %224 = arith.truncf %223 : vector<8x64xf32> to vector<8x64xbf16>
    %c1_212 = arith.constant 1 : index
    %c0_213 = arith.constant 0 : index
    %c0_214 = arith.constant 0 : index
    %225 = vector.load %arg24[%c1_212, %c0_213, %c0_214] : memref<3x64x128xbf16, #tpu.memory_space<vmem>>, vector<1x64x128xbf16>
    %226 = vector.shape_cast %225 : vector<1x64x128xbf16> to vector<64x128xbf16>
    %cst_215 = arith.constant dense<0.000000e+00> : vector<8x128xf32>
    %227 = tpu.matmul %224, %226, %cst_215 {dimension_numbers = #tpu.dot_dimension_numbers<[1], [0], [0], [1], [0, 0, 1, 1], [], []>} : vector<8x64xbf16>, vector<64x128xbf16>, vector<8x128xf32> -> vector<8x128xf32>
    %228 = arith.addf %222, %227 : vector<8x128xf32>
    %c2_216 = arith.constant 2 : index
    %c0_217 = arith.constant 0 : index
    %229 = vector.load %arg52[%c2_216, %c0_217] : memref<10x64xf32, #tpu.memory_space<vmem>>, vector<8x64xf32>
    %230 = arith.truncf %229 : vector<8x64xf32> to vector<8x64xbf16>
    %c2_218 = arith.constant 2 : index
    %c0_219 = arith.constant 0 : index
    %c0_220 = arith.constant 0 : index
    %231 = vector.load %arg24[%c2_218, %c0_219, %c0_220] : memref<3x64x128xbf16, #tpu.memory_space<vmem>>, vector<1x64x128xbf16>
    %232 = vector.shape_cast %231 : vector<1x64x128xbf16> to vector<64x128xbf16>
    %cst_221 = arith.constant dense<0.000000e+00> : vector<8x128xf32>
    %233 = tpu.matmul %230, %232, %cst_221 {dimension_numbers = #tpu.dot_dimension_numbers<[1], [0], [0], [1], [0, 0, 1, 1], [], []>} : vector<8x64xbf16>, vector<64x128xbf16>, vector<8x128xf32> -> vector<8x128xf32>
    %234 = arith.addf %228, %233 : vector<8x128xf32>
    %c0_222 = arith.constant 0 : index
    %c0_223 = arith.constant 0 : index
    %235 = vector.load %arg25[%c0_222, %c0_223] : memref<1x128xf32, #tpu.memory_space<vmem>>, vector<1x128xf32>
    %236 = vector.broadcast %235 : vector<1x128xf32> to vector<8x128xf32>
    %237 = arith.addf %234, %236 : vector<8x128xf32>
    %cst_224 = arith.constant 0.000000e+00 : f32
    %238 = vector.broadcast %cst_224 : f32 to vector<8x128xf32>
    %239 = arith.cmpf ogt, %237, %238 : vector<8x128xf32>
    %cst_225 = arith.constant 1.000000e-01 : f32
    %240 = vector.broadcast %cst_225 : f32 to vector<8x128xf32>
    %241 = arith.mulf %240, %237 : vector<8x128xf32>
    %242 = arith.select %239, %237, %241 : vector<8x128xi1>, vector<8x128xf32>
    %c1_226 = arith.constant 1 : index
    %c0_227 = arith.constant 0 : index
    %243 = vector.load %arg49[%c1_226, %c0_227] : memref<10x128xf32, #tpu.memory_space<vmem>>, vector<8x128xf32>
    tpu.vector_store %arg49[%c1_226, %c0_227], %242 {strides = array<i32>} : memref<10x128xf32, #tpu.memory_space<vmem>>, vector<8x128xf32>,
    %cst_228 = arith.constant 0.000000e+00 : f32
    %244 = vector.broadcast %cst_228 : f32 to vector<8x128xf32>
    %c0_229 = arith.constant 0 : index
    %c0_230 = arith.constant 0 : index
    %245 = vector.load %arg49[%c0_229, %c0_230] : memref<10x128xf32, #tpu.memory_space<vmem>>, vector<8x128xf32>
    %246 = arith.truncf %245 : vector<8x128xf32> to vector<8x128xbf16>
    %c0_231 = arith.constant 0 : index
    %c0_232 = arith.constant 0 : index
    %c0_233 = arith.constant 0 : index
    %247 = vector.load %arg26[%c0_231, %c0_232, %c0_233] : memref<3x128x128xbf16, #tpu.memory_space<vmem>>, vector<1x128x128xbf16>
    %248 = vector.shape_cast %247 : vector<1x128x128xbf16> to vector<128x128xbf16>
    %cst_234 = arith.constant dense<0.000000e+00> : vector<8x128xf32>
    %249 = tpu.matmul %246, %248, %cst_234 {dimension_numbers = #tpu.dot_dimension_numbers<[1], [0], [0], [1], [0, 0, 1, 1], [], []>} : vector<8x128xbf16>, vector<128x128xbf16>, vector<8x128xf32> -> vector<8x128xf32>
    %250 = arith.addf %244, %249 : vector<8x128xf32>
    %c1_235 = arith.constant 1 : index
    %c0_236 = arith.constant 0 : index
    %251 = vector.load %arg49[%c1_235, %c0_236] : memref<10x128xf32, #tpu.memory_space<vmem>>, vector<8x128xf32>
    %252 = arith.truncf %251 : vector<8x128xf32> to vector<8x128xbf16>
    %c1_237 = arith.constant 1 : index
    %c0_238 = arith.constant 0 : index
    %c0_239 = arith.constant 0 : index
    %253 = vector.load %arg26[%c1_237, %c0_238, %c0_239] : memref<3x128x128xbf16, #tpu.memory_space<vmem>>, vector<1x128x128xbf16>
    %254 = vector.shape_cast %253 : vector<1x128x128xbf16> to vector<128x128xbf16>
    %cst_240 = arith.constant dense<0.000000e+00> : vector<8x128xf32>
    %255 = tpu.matmul %252, %254, %cst_240 {dimension_numbers = #tpu.dot_dimension_numbers<[1], [0], [0], [1], [0, 0, 1, 1], [], []>} : vector<8x128xbf16>, vector<128x128xbf16>, vector<8x128xf32> -> vector<8x128xf32>
    %256 = arith.addf %250, %255 : vector<8x128xf32>
    %c2_241 = arith.constant 2 : index
    %c0_242 = arith.constant 0 : index
    %257 = vector.load %arg49[%c2_241, %c0_242] : memref<10x128xf32, #tpu.memory_space<vmem>>, vector<8x128xf32>
    %258 = arith.truncf %257 : vector<8x128xf32> to vector<8x128xbf16>
    %c2_243 = arith.constant 2 : index
    %c0_244 = arith.constant 0 : index
    %c0_245 = arith.constant 0 : index
    %259 = vector.load %arg26[%c2_243, %c0_244, %c0_245] : memref<3x128x128xbf16, #tpu.memory_space<vmem>>, vector<1x128x128xbf16>
    %260 = vector.shape_cast %259 : vector<1x128x128xbf16> to vector<128x128xbf16>
    %cst_246 = arith.constant dense<0.000000e+00> : vector<8x128xf32>
    %261 = tpu.matmul %258, %260, %cst_246 {dimension_numbers = #tpu.dot_dimension_numbers<[1], [0], [0], [1], [0, 0, 1, 1], [], []>} : vector<8x128xbf16>, vector<128x128xbf16>, vector<8x128xf32> -> vector<8x128xf32>
    %262 = arith.addf %256, %261 : vector<8x128xf32>
    %c0_247 = arith.constant 0 : index
    %c0_248 = arith.constant 0 : index
    %263 = vector.load %arg27[%c0_247, %c0_248] : memref<1x128xf32, #tpu.memory_space<vmem>>, vector<1x128xf32>
    %264 = vector.broadcast %263 : vector<1x128xf32> to vector<8x128xf32>
    %265 = arith.addf %262, %264 : vector<8x128xf32>
    %cst_249 = arith.constant 0.000000e+00 : f32
    %266 = vector.broadcast %cst_249 : f32 to vector<8x128xf32>
    %267 = arith.cmpf ogt, %265, %266 : vector<8x128xf32>
    %cst_250 = arith.constant 1.000000e-01 : f32
    %268 = vector.broadcast %cst_250 : f32 to vector<8x128xf32>
    %269 = arith.mulf %268, %265 : vector<8x128xf32>
    %270 = arith.select %267, %265, %269 : vector<8x128xi1>, vector<8x128xf32>
    %c1_251 = arith.constant 1 : index
    %c0_252 = arith.constant 0 : index
    %271 = vector.load %arg49[%c1_251, %c0_252] : memref<10x128xf32, #tpu.memory_space<vmem>>, vector<8x128xf32>
    tpu.vector_store %arg49[%c1_251, %c0_252], %270 {strides = array<i32>} : memref<10x128xf32, #tpu.memory_space<vmem>>, vector<8x128xf32>,
    %cst_253 = arith.constant 0.000000e+00 : f32
    %272 = vector.broadcast %cst_253 : f32 to vector<8x128xf32>
    %c0_254 = arith.constant 0 : index
    %c0_255 = arith.constant 0 : index
    %273 = vector.load %arg49[%c0_254, %c0_255] : memref<10x128xf32, #tpu.memory_space<vmem>>, vector<8x128xf32>
    %274 = arith.truncf %273 : vector<8x128xf32> to vector<8x128xbf16>
    %c0_256 = arith.constant 0 : index
    %c0_257 = arith.constant 0 : index
    %c0_258 = arith.constant 0 : index
    %275 = vector.load %arg28[%c0_256, %c0_257, %c0_258] : memref<3x128x128xbf16, #tpu.memory_space<vmem>>, vector<1x128x128xbf16>
    %276 = vector.shape_cast %275 : vector<1x128x128xbf16> to vector<128x128xbf16>
    %cst_259 = arith.constant dense<0.000000e+00> : vector<8x128xf32>
    %277 = tpu.matmul %274, %276, %cst_259 {dimension_numbers = #tpu.dot_dimension_numbers<[1], [0], [0], [1], [0, 0, 1, 1], [], []>} : vector<8x128xbf16>, vector<128x128xbf16>, vector<8x128xf32> -> vector<8x128xf32>
    %278 = arith.addf %272, %277 : vector<8x128xf32>
    %c1_260 = arith.constant 1 : index
    %c0_261 = arith.constant 0 : index
    %279 = vector.load %arg49[%c1_260, %c0_261] : memref<10x128xf32, #tpu.memory_space<vmem>>, vector<8x128xf32>
    %280 = arith.truncf %279 : vector<8x128xf32> to vector<8x128xbf16>
    %c1_262 = arith.constant 1 : index
    %c0_263 = arith.constant 0 : index
    %c0_264 = arith.constant 0 : index
    %281 = vector.load %arg28[%c1_262, %c0_263, %c0_264] : memref<3x128x128xbf16, #tpu.memory_space<vmem>>, vector<1x128x128xbf16>
    %282 = vector.shape_cast %281 : vector<1x128x128xbf16> to vector<128x128xbf16>
    %cst_265 = arith.constant dense<0.000000e+00> : vector<8x128xf32>
    %283 = tpu.matmul %280, %282, %cst_265 {dimension_numbers = #tpu.dot_dimension_numbers<[1], [0], [0], [1], [0, 0, 1, 1], [], []>} : vector<8x128xbf16>, vector<128x128xbf16>, vector<8x128xf32> -> vector<8x128xf32>
    %284 = arith.addf %278, %283 : vector<8x128xf32>
    %c2_266 = arith.constant 2 : index
    %c0_267 = arith.constant 0 : index
    %285 = vector.load %arg49[%c2_266, %c0_267] : memref<10x128xf32, #tpu.memory_space<vmem>>, vector<8x128xf32>
    %286 = arith.truncf %285 : vector<8x128xf32> to vector<8x128xbf16>
    %c2_268 = arith.constant 2 : index
    %c0_269 = arith.constant 0 : index
    %c0_270 = arith.constant 0 : index
    %287 = vector.load %arg28[%c2_268, %c0_269, %c0_270] : memref<3x128x128xbf16, #tpu.memory_space<vmem>>, vector<1x128x128xbf16>
    %288 = vector.shape_cast %287 : vector<1x128x128xbf16> to vector<128x128xbf16>
    %cst_271 = arith.constant dense<0.000000e+00> : vector<8x128xf32>
    %289 = tpu.matmul %286, %288, %cst_271 {dimension_numbers = #tpu.dot_dimension_numbers<[1], [0], [0], [1], [0, 0, 1, 1], [], []>} : vector<8x128xbf16>, vector<128x128xbf16>, vector<8x128xf32> -> vector<8x128xf32>
    %290 = arith.addf %284, %289 : vector<8x128xf32>
    %c0_272 = arith.constant 0 : index
    %c0_273 = arith.constant 0 : index
    %291 = vector.load %arg29[%c0_272, %c0_273] : memref<1x128xf32, #tpu.memory_space<vmem>>, vector<1x128xf32>
    %292 = vector.broadcast %291 : vector<1x128xf32> to vector<8x128xf32>
    %293 = arith.addf %290, %292 : vector<8x128xf32>
    %c1_274 = arith.constant 1 : index
    %c0_275 = arith.constant 0 : index
    %294 = vector.load %arg52[%c1_274, %c0_275] : memref<10x64xf32, #tpu.memory_space<vmem>>, vector<8x64xf32>
    %295 = arith.truncf %294 : vector<8x64xf32> to vector<8x64xbf16>
    %c0_276 = arith.constant 0 : index
    %c0_277 = arith.constant 0 : index
    %296 = vector.load %arg30[%c0_276, %c0_277] : memref<64x128xbf16, #tpu.memory_space<vmem>>, vector<64x128xbf16>
    %cst_278 = arith.constant dense<0.000000e+00> : vector<8x128xf32>
    %297 = tpu.matmul %295, %296, %cst_278 {dimension_numbers = #tpu.dot_dimension_numbers<[1], [0], [0], [1], [0, 0, 1, 1], [], []>} : vector<8x64xbf16>, vector<64x128xbf16>, vector<8x128xf32> -> vector<8x128xf32>
    %c0_279 = arith.constant 0 : index
    %c0_280 = arith.constant 0 : index
    %298 = vector.load %arg31[%c0_279, %c0_280] : memref<1x128xf32, #tpu.memory_space<vmem>>, vector<1x128xf32>
    %299 = vector.broadcast %298 : vector<1x128xf32> to vector<8x128xf32>
    %300 = arith.addf %297, %299 : vector<8x128xf32>
    %301 = arith.addf %293, %300 : vector<8x128xf32>
    %cst_281 = arith.constant 0.000000e+00 : f32
    %302 = vector.broadcast %cst_281 : f32 to vector<8x128xf32>
    %303 = arith.cmpf ogt, %301, %302 : vector<8x128xf32>
    %cst_282 = arith.constant 1.000000e-01 : f32
    %304 = vector.broadcast %cst_282 : f32 to vector<8x128xf32>
    %305 = arith.mulf %304, %301 : vector<8x128xf32>
    %306 = arith.select %303, %301, %305 : vector<8x128xi1>, vector<8x128xf32>
    %c1_283 = arith.constant 1 : index
    %c0_284 = arith.constant 0 : index
    %307 = vector.load %arg49[%c1_283, %c0_284] : memref<10x128xf32, #tpu.memory_space<vmem>>, vector<8x128xf32>
    tpu.vector_store %arg49[%c1_283, %c0_284], %306 {strides = array<i32>} : memref<10x128xf32, #tpu.memory_space<vmem>>, vector<8x128xf32>,
    %c1_285 = arith.constant 1 : index
    %c0_286 = arith.constant 0 : index
    %308 = vector.load %arg49[%c1_285, %c0_286] : memref<10x128xf32, #tpu.memory_space<vmem>>, vector<7x128xf32>
    %c2_287 = arith.constant 2 : index
    %c0_288 = arith.constant 0 : index
    %309 = vector.load %arg49[%c2_287, %c0_288] : memref<10x128xf32, #tpu.memory_space<vmem>>, vector<7x128xf32>
    %310 = arith.maximumf %308, %309 : vector<7x128xf32>
    %c0_289 = arith.constant 0 : index
    %c0_290 = arith.constant 0 : index
    %311 = vector.load %arg32[%c0_289, %c0_290] : memref<128x64xf32, #tpu.memory_space<vmem>>, vector<128x64xf32>
    %cst_291 = arith.constant dense<0.000000e+00> : vector<7x64xf32>
    %312 = tpu.matmul %310, %311, %cst_291 {dimension_numbers = #tpu.dot_dimension_numbers<[1], [0], [0], [1], [0, 0, 1, 1], [], []>} : vector<7x128xf32>, vector<128x64xf32>, vector<7x64xf32> -> vector<7x64xf32>
    %c0_292 = arith.constant 0 : index
    %c0_293 = arith.constant 0 : index
    %313 = vector.load %arg33[%c0_292, %c0_293] : memref<128x64xf32, #tpu.memory_space<vmem>>, vector<128x64xf32>
    %cst_294 = arith.constant dense<0.000000e+00> : vector<7x64xf32>
    %314 = tpu.matmul %310, %313, %cst_294 {dimension_numbers = #tpu.dot_dimension_numbers<[1], [0], [0], [1], [0, 0, 1, 1], [], []>} : vector<7x128xf32>, vector<128x64xf32>, vector<7x64xf32> -> vector<7x64xf32>
    %315 = arith.maximumf %312, %314 : vector<7x64xf32>
    %c0_295 = arith.constant 0 : index
    %c0_296 = arith.constant 0 : index
    %316 = vector.load %arg34[%c0_295, %c0_296] : memref<6x7xf32, #tpu.memory_space<vmem>>, vector<6x7xf32>
    %cst_297 = arith.constant dense<0.000000e+00> : vector<6x64xf32>
    %317 = tpu.matmul %316, %315, %cst_297 {dimension_numbers = #tpu.dot_dimension_numbers<[1], [0], [0], [1], [0, 0, 1, 1], [], []>} : vector<6x7xf32>, vector<7x64xf32>, vector<6x64xf32> -> vector<6x64xf32>
    %c0_298 = arith.constant 0 : index
    %c0_299 = arith.constant 0 : index
    %318 = vector.load %arg53[%c0_298, %c0_299] : memref<6x64xf32, #tpu.memory_space<vmem>>, vector<6x64xf32>
    tpu.vector_store %arg53[%c0_298, %c0_299], %317 {strides = array<i32>} : memref<6x64xf32, #tpu.memory_space<vmem>>, vector<6x64xf32>,
    %cst_300 = arith.constant 0.000000e+00 : f32
    %319 = vector.broadcast %cst_300 : f32 to vector<6x128xf32>
    %c0_301 = arith.constant 0 : index
    %c0_302 = arith.constant 0 : index
    %320 = vector.load %arg50[%c0_301, %c0_302] : memref<6x128xf32, #tpu.memory_space<vmem>>, vector<6x128xf32>
    tpu.vector_store %arg50[%c0_301, %c0_302], %319 {strides = array<i32>} : memref<6x128xf32, #tpu.memory_space<vmem>>, vector<6x128xf32>,
    %cst_303 = arith.constant 0.000000e+00 : f32
    %321 = vector.broadcast %cst_303 : f32 to vector<4x128xf32>
    %c0_304 = arith.constant 0 : index
    %c0_305 = arith.constant 0 : index
    %322 = vector.load %arg53[%c0_304, %c0_305] : memref<6x64xf32, #tpu.memory_space<vmem>>, vector<4x64xf32>
    %323 = arith.truncf %322 : vector<4x64xf32> to vector<4x64xbf16>
    %c0_306 = arith.constant 0 : index
    %c0_307 = arith.constant 0 : index
    %c0_308 = arith.constant 0 : index
    %324 = vector.load %arg35[%c0_306, %c0_307, %c0_308] : memref<3x64x128xbf16, #tpu.memory_space<vmem>>, vector<1x64x128xbf16>
    %325 = vector.shape_cast %324 : vector<1x64x128xbf16> to vector<64x128xbf16>
    %cst_309 = arith.constant dense<0.000000e+00> : vector<4x128xf32>
    %326 = tpu.matmul %323, %325, %cst_309 {dimension_numbers = #tpu.dot_dimension_numbers<[1], [0], [0], [1], [0, 0, 1, 1], [], []>} : vector<4x64xbf16>, vector<64x128xbf16>, vector<4x128xf32> -> vector<4x128xf32>
    %327 = arith.addf %321, %326 : vector<4x128xf32>
    %c1_310 = arith.constant 1 : index
    %c0_311 = arith.constant 0 : index
    %328 = vector.load %arg53[%c1_310, %c0_311] : memref<6x64xf32, #tpu.memory_space<vmem>>, vector<4x64xf32>
    %329 = arith.truncf %328 : vector<4x64xf32> to vector<4x64xbf16>
    %c1_312 = arith.constant 1 : index
    %c0_313 = arith.constant 0 : index
    %c0_314 = arith.constant 0 : index
    %330 = vector.load %arg35[%c1_312, %c0_313, %c0_314] : memref<3x64x128xbf16, #tpu.memory_space<vmem>>, vector<1x64x128xbf16>
    %331 = vector.shape_cast %330 : vector<1x64x128xbf16> to vector<64x128xbf16>
    %cst_315 = arith.constant dense<0.000000e+00> : vector<4x128xf32>
    %332 = tpu.matmul %329, %331, %cst_315 {dimension_numbers = #tpu.dot_dimension_numbers<[1], [0], [0], [1], [0, 0, 1, 1], [], []>} : vector<4x64xbf16>, vector<64x128xbf16>, vector<4x128xf32> -> vector<4x128xf32>
    %333 = arith.addf %327, %332 : vector<4x128xf32>
    %c2_316 = arith.constant 2 : index
    %c0_317 = arith.constant 0 : index
    %334 = vector.load %arg53[%c2_316, %c0_317] : memref<6x64xf32, #tpu.memory_space<vmem>>, vector<4x64xf32>
    %335 = arith.truncf %334 : vector<4x64xf32> to vector<4x64xbf16>
    %c2_318 = arith.constant 2 : index
    %c0_319 = arith.constant 0 : index
    %c0_320 = arith.constant 0 : index
    %336 = vector.load %arg35[%c2_318, %c0_319, %c0_320] : memref<3x64x128xbf16, #tpu.memory_space<vmem>>, vector<1x64x128xbf16>
    %337 = vector.shape_cast %336 : vector<1x64x128xbf16> to vector<64x128xbf16>
    %cst_321 = arith.constant dense<0.000000e+00> : vector<4x128xf32>
    %338 = tpu.matmul %335, %337, %cst_321 {dimension_numbers = #tpu.dot_dimension_numbers<[1], [0], [0], [1], [0, 0, 1, 1], [], []>} : vector<4x64xbf16>, vector<64x128xbf16>, vector<4x128xf32> -> vector<4x128xf32>
    %339 = arith.addf %333, %338 : vector<4x128xf32>
    %c0_322 = arith.constant 0 : index
    %c0_323 = arith.constant 0 : index
    %340 = vector.load %arg36[%c0_322, %c0_323] : memref<1x128xf32, #tpu.memory_space<vmem>>, vector<1x128xf32>
    %341 = vector.broadcast %340 : vector<1x128xf32> to vector<4x128xf32>
    %342 = arith.addf %339, %341 : vector<4x128xf32>
    %cst_324 = arith.constant 0.000000e+00 : f32
    %343 = vector.broadcast %cst_324 : f32 to vector<4x128xf32>
    %344 = arith.cmpf ogt, %342, %343 : vector<4x128xf32>
    %cst_325 = arith.constant 1.000000e-01 : f32
    %345 = vector.broadcast %cst_325 : f32 to vector<4x128xf32>
    %346 = arith.mulf %345, %342 : vector<4x128xf32>
    %347 = arith.select %344, %342, %346 : vector<4x128xi1>, vector<4x128xf32>
    %c1_326 = arith.constant 1 : index
    %c0_327 = arith.constant 0 : index
    %348 = vector.load %arg50[%c1_326, %c0_327] : memref<6x128xf32, #tpu.memory_space<vmem>>, vector<4x128xf32>
    tpu.vector_store %arg50[%c1_326, %c0_327], %347 {strides = array<i32>} : memref<6x128xf32, #tpu.memory_space<vmem>>, vector<4x128xf32>,
    %cst_328 = arith.constant 0.000000e+00 : f32
    %349 = vector.broadcast %cst_328 : f32 to vector<4x128xf32>
    %c0_329 = arith.constant 0 : index
    %c0_330 = arith.constant 0 : index
    %350 = vector.load %arg50[%c0_329, %c0_330] : memref<6x128xf32, #tpu.memory_space<vmem>>, vector<4x128xf32>
    %351 = arith.truncf %350 : vector<4x128xf32> to vector<4x128xbf16>
    %c0_331 = arith.constant 0 : index
    %c0_332 = arith.constant 0 : index
    %c0_333 = arith.constant 0 : index
    %352 = vector.load %arg37[%c0_331, %c0_332, %c0_333] : memref<3x128x128xbf16, #tpu.memory_space<vmem>>, vector<1x128x128xbf16>
    %353 = vector.shape_cast %352 : vector<1x128x128xbf16> to vector<128x128xbf16>
    %cst_334 = arith.constant dense<0.000000e+00> : vector<4x128xf32>
    %354 = tpu.matmul %351, %353, %cst_334 {dimension_numbers = #tpu.dot_dimension_numbers<[1], [0], [0], [1], [0, 0, 1, 1], [], []>} : vector<4x128xbf16>, vector<128x128xbf16>, vector<4x128xf32> -> vector<4x128xf32>
    %355 = arith.addf %349, %354 : vector<4x128xf32>
    %c1_335 = arith.constant 1 : index
    %c0_336 = arith.constant 0 : index
    %356 = vector.load %arg50[%c1_335, %c0_336] : memref<6x128xf32, #tpu.memory_space<vmem>>, vector<4x128xf32>
    %357 = arith.truncf %356 : vector<4x128xf32> to vector<4x128xbf16>
    %c1_337 = arith.constant 1 : index
    %c0_338 = arith.constant 0 : index
    %c0_339 = arith.constant 0 : index
    %358 = vector.load %arg37[%c1_337, %c0_338, %c0_339] : memref<3x128x128xbf16, #tpu.memory_space<vmem>>, vector<1x128x128xbf16>
    %359 = vector.shape_cast %358 : vector<1x128x128xbf16> to vector<128x128xbf16>
    %cst_340 = arith.constant dense<0.000000e+00> : vector<4x128xf32>
    %360 = tpu.matmul %357, %359, %cst_340 {dimension_numbers = #tpu.dot_dimension_numbers<[1], [0], [0], [1], [0, 0, 1, 1], [], []>} : vector<4x128xbf16>, vector<128x128xbf16>, vector<4x128xf32> -> vector<4x128xf32>
    %361 = arith.addf %355, %360 : vector<4x128xf32>
    %c2_341 = arith.constant 2 : index
    %c0_342 = arith.constant 0 : index
    %362 = vector.load %arg50[%c2_341, %c0_342] : memref<6x128xf32, #tpu.memory_space<vmem>>, vector<4x128xf32>
    %363 = arith.truncf %362 : vector<4x128xf32> to vector<4x128xbf16>
    %c2_343 = arith.constant 2 : index
    %c0_344 = arith.constant 0 : index
    %c0_345 = arith.constant 0 : index
    %364 = vector.load %arg37[%c2_343, %c0_344, %c0_345] : memref<3x128x128xbf16, #tpu.memory_space<vmem>>, vector<1x128x128xbf16>
    %365 = vector.shape_cast %364 : vector<1x128x128xbf16> to vector<128x128xbf16>
    %cst_346 = arith.constant dense<0.000000e+00> : vector<4x128xf32>
    %366 = tpu.matmul %363, %365, %cst_346 {dimension_numbers = #tpu.dot_dimension_numbers<[1], [0], [0], [1], [0, 0, 1, 1], [], []>} : vector<4x128xbf16>, vector<128x128xbf16>, vector<4x128xf32> -> vector<4x128xf32>
    %367 = arith.addf %361, %366 : vector<4x128xf32>
    %c0_347 = arith.constant 0 : index
    %c0_348 = arith.constant 0 : index
    %368 = vector.load %arg38[%c0_347, %c0_348] : memref<1x128xf32, #tpu.memory_space<vmem>>, vector<1x128xf32>
    %369 = vector.broadcast %368 : vector<1x128xf32> to vector<4x128xf32>
    %370 = arith.addf %367, %369 : vector<4x128xf32>
    %cst_349 = arith.constant 0.000000e+00 : f32
    %371 = vector.broadcast %cst_349 : f32 to vector<4x128xf32>
    %372 = arith.cmpf ogt, %370, %371 : vector<4x128xf32>
    %cst_350 = arith.constant 1.000000e-01 : f32
    %373 = vector.broadcast %cst_350 : f32 to vector<4x128xf32>
    %374 = arith.mulf %373, %370 : vector<4x128xf32>
    %375 = arith.select %372, %370, %374 : vector<4x128xi1>, vector<4x128xf32>
    %c1_351 = arith.constant 1 : index
    %c0_352 = arith.constant 0 : index
    %376 = vector.load %arg50[%c1_351, %c0_352] : memref<6x128xf32, #tpu.memory_space<vmem>>, vector<4x128xf32>
    tpu.vector_store %arg50[%c1_351, %c0_352], %375 {strides = array<i32>} : memref<6x128xf32, #tpu.memory_space<vmem>>, vector<4x128xf32>,
    %cst_353 = arith.constant 0.000000e+00 : f32
    %377 = vector.broadcast %cst_353 : f32 to vector<4x128xf32>
    %c0_354 = arith.constant 0 : index
    %c0_355 = arith.constant 0 : index
    %378 = vector.load %arg50[%c0_354, %c0_355] : memref<6x128xf32, #tpu.memory_space<vmem>>, vector<4x128xf32>
    %379 = arith.truncf %378 : vector<4x128xf32> to vector<4x128xbf16>
    %c0_356 = arith.constant 0 : index
    %c0_357 = arith.constant 0 : index
    %c0_358 = arith.constant 0 : index
    %380 = vector.load %arg39[%c0_356, %c0_357, %c0_358] : memref<3x128x128xbf16, #tpu.memory_space<vmem>>, vector<1x128x128xbf16>
    %381 = vector.shape_cast %380 : vector<1x128x128xbf16> to vector<128x128xbf16>
    %cst_359 = arith.constant dense<0.000000e+00> : vector<4x128xf32>
    %382 = tpu.matmul %379, %381, %cst_359 {dimension_numbers = #tpu.dot_dimension_numbers<[1], [0], [0], [1], [0, 0, 1, 1], [], []>} : vector<4x128xbf16>, vector<128x128xbf16>, vector<4x128xf32> -> vector<4x128xf32>
    %383 = arith.addf %377, %382 : vector<4x128xf32>
    %c1_360 = arith.constant 1 : index
    %c0_361 = arith.constant 0 : index
    %384 = vector.load %arg50[%c1_360, %c0_361] : memref<6x128xf32, #tpu.memory_space<vmem>>, vector<4x128xf32>
    %385 = arith.truncf %384 : vector<4x128xf32> to vector<4x128xbf16>
    %c1_362 = arith.constant 1 : index
    %c0_363 = arith.constant 0 : index
    %c0_364 = arith.constant 0 : index
    %386 = vector.load %arg39[%c1_362, %c0_363, %c0_364] : memref<3x128x128xbf16, #tpu.memory_space<vmem>>, vector<1x128x128xbf16>
    %387 = vector.shape_cast %386 : vector<1x128x128xbf16> to vector<128x128xbf16>
    %cst_365 = arith.constant dense<0.000000e+00> : vector<4x128xf32>
    %388 = tpu.matmul %385, %387, %cst_365 {dimension_numbers = #tpu.dot_dimension_numbers<[1], [0], [0], [1], [0, 0, 1, 1], [], []>} : vector<4x128xbf16>, vector<128x128xbf16>, vector<4x128xf32> -> vector<4x128xf32>
    %389 = arith.addf %383, %388 : vector<4x128xf32>
    %c2_366 = arith.constant 2 : index
    %c0_367 = arith.constant 0 : index
    %390 = vector.load %arg50[%c2_366, %c0_367] : memref<6x128xf32, #tpu.memory_space<vmem>>, vector<4x128xf32>
    %391 = arith.truncf %390 : vector<4x128xf32> to vector<4x128xbf16>
    %c2_368 = arith.constant 2 : index
    %c0_369 = arith.constant 0 : index
    %c0_370 = arith.constant 0 : index
    %392 = vector.load %arg39[%c2_368, %c0_369, %c0_370] : memref<3x128x128xbf16, #tpu.memory_space<vmem>>, vector<1x128x128xbf16>
    %393 = vector.shape_cast %392 : vector<1x128x128xbf16> to vector<128x128xbf16>
    %cst_371 = arith.constant dense<0.000000e+00> : vector<4x128xf32>
    %394 = tpu.matmul %391, %393, %cst_371 {dimension_numbers = #tpu.dot_dimension_numbers<[1], [0], [0], [1], [0, 0, 1, 1], [], []>} : vector<4x128xbf16>, vector<128x128xbf16>, vector<4x128xf32> -> vector<4x128xf32>
    %395 = arith.addf %389, %394 : vector<4x128xf32>
    %c0_372 = arith.constant 0 : index
    %c0_373 = arith.constant 0 : index
    %396 = vector.load %arg40[%c0_372, %c0_373] : memref<1x128xf32, #tpu.memory_space<vmem>>, vector<1x128xf32>
    %397 = vector.broadcast %396 : vector<1x128xf32> to vector<4x128xf32>
    %398 = arith.addf %395, %397 : vector<4x128xf32>
    %c1_374 = arith.constant 1 : index
    %c0_375 = arith.constant 0 : index
    %399 = vector.load %arg53[%c1_374, %c0_375] : memref<6x64xf32, #tpu.memory_space<vmem>>, vector<4x64xf32>
    %400 = arith.truncf %399 : vector<4x64xf32> to vector<4x64xbf16>
    %c0_376 = arith.constant 0 : index
    %c0_377 = arith.constant 0 : index
    %401 = vector.load %arg41[%c0_376, %c0_377] : memref<64x128xbf16, #tpu.memory_space<vmem>>, vector<64x128xbf16>
    %cst_378 = arith.constant dense<0.000000e+00> : vector<4x128xf32>
    %402 = tpu.matmul %400, %401, %cst_378 {dimension_numbers = #tpu.dot_dimension_numbers<[1], [0], [0], [1], [0, 0, 1, 1], [], []>} : vector<4x64xbf16>, vector<64x128xbf16>, vector<4x128xf32> -> vector<4x128xf32>
    %c0_379 = arith.constant 0 : index
    %c0_380 = arith.constant 0 : index
    %403 = vector.load %arg42[%c0_379, %c0_380] : memref<1x128xf32, #tpu.memory_space<vmem>>, vector<1x128xf32>
    %404 = vector.broadcast %403 : vector<1x128xf32> to vector<4x128xf32>
    %405 = arith.addf %402, %404 : vector<4x128xf32>
    %406 = arith.addf %398, %405 : vector<4x128xf32>
    %cst_381 = arith.constant 0.000000e+00 : f32
    %407 = vector.broadcast %cst_381 : f32 to vector<4x128xf32>
    %408 = arith.cmpf ogt, %406, %407 : vector<4x128xf32>
    %cst_382 = arith.constant 1.000000e-01 : f32
    %409 = vector.broadcast %cst_382 : f32 to vector<4x128xf32>
    %410 = arith.mulf %409, %406 : vector<4x128xf32>
    %411 = arith.select %408, %406, %410 : vector<4x128xi1>, vector<4x128xf32>
    %c1_383 = arith.constant 1 : index
    %c0_384 = arith.constant 0 : index
    %412 = vector.load %arg50[%c1_383, %c0_384] : memref<6x128xf32, #tpu.memory_space<vmem>>, vector<4x128xf32>
    tpu.vector_store %arg50[%c1_383, %c0_384], %411 {strides = array<i32>} : memref<6x128xf32, #tpu.memory_space<vmem>>, vector<4x128xf32>,
    %c1_385 = arith.constant 1 : index
    %c0_386 = arith.constant 0 : index
    %413 = vector.load %arg50[%c1_385, %c0_386] : memref<6x128xf32, #tpu.memory_space<vmem>>, vector<3x128xf32>
    %c2_387 = arith.constant 2 : index
    %c0_388 = arith.constant 0 : index
    %414 = vector.load %arg50[%c2_387, %c0_388] : memref<6x128xf32, #tpu.memory_space<vmem>>, vector<3x128xf32>
    %415 = arith.maximumf %413, %414 : vector<3x128xf32>
    %c0_389 = arith.constant 0 : index
    %c0_390 = arith.constant 0 : index
    %416 = vector.load %arg43[%c0_389, %c0_390] : memref<128x64xf32, #tpu.memory_space<vmem>>, vector<128x64xf32>
    %cst_391 = arith.constant dense<0.000000e+00> : vector<3x64xf32>
    %417 = tpu.matmul %415, %416, %cst_391 {dimension_numbers = #tpu.dot_dimension_numbers<[1], [0], [0], [1], [0, 0, 1, 1], [], []>} : vector<3x128xf32>, vector<128x64xf32>, vector<3x64xf32> -> vector<3x64xf32>
    %c0_392 = arith.constant 0 : index
    %c0_393 = arith.constant 0 : index
    %418 = vector.load %arg44[%c0_392, %c0_393] : memref<128x64xf32, #tpu.memory_space<vmem>>, vector<128x64xf32>
    %cst_394 = arith.constant dense<0.000000e+00> : vector<3x64xf32>
    %419 = tpu.matmul %415, %418, %cst_394 {dimension_numbers = #tpu.dot_dimension_numbers<[1], [0], [0], [1], [0, 0, 1, 1], [], []>} : vector<3x128xf32>, vector<128x64xf32>, vector<3x64xf32> -> vector<3x64xf32>
    %420 = arith.maximumf %417, %419 : vector<3x64xf32>
    %c0_395 = arith.constant 0 : index
    %c0_396 = arith.constant 0 : index
    %421 = vector.load %arg45[%c0_395, %c0_396] : memref<2x3xf32, #tpu.memory_space<vmem>>, vector<2x3xf32>
    %cst_397 = arith.constant dense<0.000000e+00> : vector<2x64xf32>
    %422 = tpu.matmul %421, %420, %cst_397 {dimension_numbers = #tpu.dot_dimension_numbers<[1], [0], [0], [1], [0, 0, 1, 1], [], []>} : vector<2x3xf32>, vector<3x64xf32>, vector<2x64xf32> -> vector<2x64xf32>
    %c0_398 = arith.constant 0 : index
    %c0_399 = arith.constant 0 : index
    %423 = vector.load %arg54[%c0_398, %c0_399] : memref<2x64xf32, #tpu.memory_space<vmem>>, vector<2x64xf32>
    tpu.vector_store %arg54[%c0_398, %c0_399], %422 {strides = array<i32>} : memref<2x64xf32, #tpu.memory_space<vmem>>, vector<2x64xf32>,
    %c0_400 = arith.constant 0 : index
    %c0_401 = arith.constant 0 : index
    %424 = vector.load %arg54[%c0_400, %c0_401] : memref<2x64xf32, #tpu.memory_space<vmem>>, vector<1x32xf32>
    %c0_402 = arith.constant 0 : index
    %c32 = arith.constant 32 : index
    %425 = vector.load %arg54[%c0_402, %c32] : memref<2x64xf32, #tpu.memory_space<vmem>>, vector<1x32xf32>
    %c1_403 = arith.constant 1 : index
    %c0_404 = arith.constant 0 : index
    %426 = vector.load %arg54[%c1_403, %c0_404] : memref<2x64xf32, #tpu.memory_space<vmem>>, vector<1x32xf32>
    %c1_405 = arith.constant 1 : index
    %c32_406 = arith.constant 32 : index
    %427 = vector.load %arg54[%c1_405, %c32_406] : memref<2x64xf32, #tpu.memory_space<vmem>>, vector<1x32xf32>
    %cst_407 = arith.constant 0.000000e+00 : f32
    %428 = vector.broadcast %cst_407 : f32 to vector<1x32xf32>
    %429 = arith.addf %428, %424 : vector<1x32xf32>
    %430 = arith.addf %429, %425 : vector<1x32xf32>
    %431 = arith.addf %430, %426 : vector<1x32xf32>
    %432 = arith.addf %431, %427 : vector<1x32xf32>
    %cst_408 = arith.constant 4.000000e+00 : f32
    %433 = vector.broadcast %cst_408 : f32 to vector<1x32xf32>
    %434 = arith.divf %432, %433 : vector<1x32xf32>
    %435 = arith.subf %424, %434 : vector<1x32xf32>
    %436 = arith.subf %424, %434 : vector<1x32xf32>
    %437 = arith.mulf %435, %436 : vector<1x32xf32>
    %438 = arith.subf %425, %434 : vector<1x32xf32>
    %439 = arith.subf %425, %434 : vector<1x32xf32>
    %440 = arith.mulf %438, %439 : vector<1x32xf32>
    %441 = arith.subf %426, %434 : vector<1x32xf32>
    %442 = arith.subf %426, %434 : vector<1x32xf32>
    %443 = arith.mulf %441, %442 : vector<1x32xf32>
    %444 = arith.subf %427, %434 : vector<1x32xf32>
    %445 = arith.subf %427, %434 : vector<1x32xf32>
    %446 = arith.mulf %444, %445 : vector<1x32xf32>
    %cst_409 = arith.constant 0.000000e+00 : f32
    %447 = vector.broadcast %cst_409 : f32 to vector<1x32xf32>
    %448 = arith.addf %447, %437 : vector<1x32xf32>
    %449 = arith.addf %448, %440 : vector<1x32xf32>
    %450 = arith.addf %449, %443 : vector<1x32xf32>
    %451 = arith.addf %450, %446 : vector<1x32xf32>
    %cst_410 = arith.constant 3.000000e+00 : f32
    %452 = vector.broadcast %cst_410 : f32 to vector<1x32xf32>
    %453 = arith.divf %451, %452 : vector<1x32xf32>
    %cst_411 = arith.constant 9.99999974E-5 : f32
    %454 = vector.broadcast %cst_411 : f32 to vector<1x32xf32>
    %455 = arith.addf %453, %454 : vector<1x32xf32>
    %cst_412 = arith.constant 4.000000e+00 : f32
    %456 = vector.broadcast %cst_412 : f32 to vector<1x32xf32>
    %457 = arith.mulf %456, %455 : vector<1x32xf32>
    %458 = tpu.reciprocal %457 {approx = true} : vector<1x32xf32> -> vector<1x32xf32>
    %459 = arith.mulf %437, %458 : vector<1x32xf32>
    %cst_413 = arith.constant 5.000000e-01 : f32
    %460 = vector.broadcast %cst_413 : f32 to vector<1x32xf32>
    %461 = arith.addf %459, %460 : vector<1x32xf32>
    %cst_414 = arith.constant 0.000000e+00 : f32
    %462 = vector.broadcast %cst_414 : f32 to vector<1x32xf32>
    %463 = arith.subf %462, %461 : vector<1x32xf32>
    %464 = math.exp %463 : vector<1x32xf32>
    %cst_415 = arith.constant 1.000000e+00 : f32
    %465 = vector.broadcast %cst_415 : f32 to vector<1x32xf32>
    %466 = arith.addf %465, %464 : vector<1x32xf32>
    %cst_416 = arith.constant 1.000000e+00 : f32
    %467 = vector.broadcast %cst_416 : f32 to vector<1x32xf32>
    %468 = arith.divf %467, %466 : vector<1x32xf32>
    %469 = arith.mulf %424, %468 : vector<1x32xf32>
    %470 = arith.mulf %440, %458 : vector<1x32xf32>
    %cst_417 = arith.constant 5.000000e-01 : f32
    %471 = vector.broadcast %cst_417 : f32 to vector<1x32xf32>
    %472 = arith.addf %470, %471 : vector<1x32xf32>
    %cst_418 = arith.constant 0.000000e+00 : f32
    %473 = vector.broadcast %cst_418 : f32 to vector<1x32xf32>
    %474 = arith.subf %473, %472 : vector<1x32xf32>
    %475 = math.exp %474 : vector<1x32xf32>
    %cst_419 = arith.constant 1.000000e+00 : f32
    %476 = vector.broadcast %cst_419 : f32 to vector<1x32xf32>
    %477 = arith.addf %476, %475 : vector<1x32xf32>
    %cst_420 = arith.constant 1.000000e+00 : f32
    %478 = vector.broadcast %cst_420 : f32 to vector<1x32xf32>
    %479 = arith.divf %478, %477 : vector<1x32xf32>
    %480 = arith.mulf %425, %479 : vector<1x32xf32>
    %481 = arith.mulf %443, %458 : vector<1x32xf32>
    %cst_421 = arith.constant 5.000000e-01 : f32
    %482 = vector.broadcast %cst_421 : f32 to vector<1x32xf32>
    %483 = arith.addf %481, %482 : vector<1x32xf32>
    %cst_422 = arith.constant 0.000000e+00 : f32
    %484 = vector.broadcast %cst_422 : f32 to vector<1x32xf32>
    %485 = arith.subf %484, %483 : vector<1x32xf32>
    %486 = math.exp %485 : vector<1x32xf32>
    %cst_423 = arith.constant 1.000000e+00 : f32
    %487 = vector.broadcast %cst_423 : f32 to vector<1x32xf32>
    %488 = arith.addf %487, %486 : vector<1x32xf32>
    %cst_424 = arith.constant 1.000000e+00 : f32
    %489 = vector.broadcast %cst_424 : f32 to vector<1x32xf32>
    %490 = arith.divf %489, %488 : vector<1x32xf32>
    %491 = arith.mulf %426, %490 : vector<1x32xf32>
    %492 = arith.mulf %446, %458 : vector<1x32xf32>
    %cst_425 = arith.constant 5.000000e-01 : f32
    %493 = vector.broadcast %cst_425 : f32 to vector<1x32xf32>
    %494 = arith.addf %492, %493 : vector<1x32xf32>
    %cst_426 = arith.constant 0.000000e+00 : f32
    %495 = vector.broadcast %cst_426 : f32 to vector<1x32xf32>
    %496 = arith.subf %495, %494 : vector<1x32xf32>
    %497 = math.exp %496 : vector<1x32xf32>
    %cst_427 = arith.constant 1.000000e+00 : f32
    %498 = vector.broadcast %cst_427 : f32 to vector<1x32xf32>
    %499 = arith.addf %498, %497 : vector<1x32xf32>
    %cst_428 = arith.constant 1.000000e+00 : f32
    %500 = vector.broadcast %cst_428 : f32 to vector<1x32xf32>
    %501 = arith.divf %500, %499 : vector<1x32xf32>
    %502 = arith.mulf %427, %501 : vector<1x32xf32>
    %cst_429 = arith.constant 0.000000e+00 : f32
    %503 = vector.broadcast %cst_429 : f32 to vector<1x32xf32>
    %504 = arith.addf %503, %469 : vector<1x32xf32>
    %505 = arith.addf %504, %480 : vector<1x32xf32>
    %506 = arith.addf %505, %491 : vector<1x32xf32>
    %507 = arith.addf %506, %502 : vector<1x32xf32>
    %cst_430 = arith.constant 4.000000e+00 : f32
    %508 = vector.broadcast %cst_430 : f32 to vector<1x32xf32>
    %509 = arith.divf %507, %508 : vector<1x32xf32>
    %c0_431 = arith.constant 0 : index
    %c0_432 = arith.constant 0 : index
    %c0_433 = arith.constant 0 : index
    %510 = vector.load %arg46[%c0_431, %c0_432, %c0_433] : memref<1x1x32xf32, #tpu.memory_space<vmem>>, vector<1x1x32xf32>
    %511 = vector.shape_cast %510 : vector<1x1x32xf32> to vector<1x32xf32>
    %512 = vector.shape_cast %509 : vector<1x32xf32> to vector<1x1x32xf32>
    tpu.vector_store %arg46[%c0_431, %c0_432, %c0_433], %512 {strides = array<i32>} : memref<1x1x32xf32, #tpu.memory_space<vmem>>, vector<1x1x32xf32>,
    return
  }
  func.func @transform_0(%arg0: i32) -> (i32, i32, i32) {
    %c0_i32 = arith.constant 0 : i32
    %c0_i32_0 = arith.constant 0 : i32
    %c0_i32_1 = arith.constant 0 : i32
    return %arg0, %c0_i32, %c0_i32_0 : i32, i32, i32
  }
  func.func @transform_1(%arg0: i32) -> (i32, i32, i32) {
    %c0_i32 = arith.constant 0 : i32
    %c0_i32_0 = arith.constant 0 : i32
    %c0_i32_1 = arith.constant 0 : i32
    %c0_i32_2 = arith.constant 0 : i32
    return %c0_i32, %c0_i32_0, %c0_i32_1 : i32, i32, i32
  }
  func.func @transform_2(%arg0: i32) -> (i32, i32) {
    %c0_i32 = arith.constant 0 : i32
    %c0_i32_0 = arith.constant 0 : i32
    %c0_i32_1 = arith.constant 0 : i32
    return %c0_i32, %c0_i32_0 : i32, i32
  }
  func.func @transform_3(%arg0: i32) -> (i32, i32, i32) {
    %c0_i32 = arith.constant 0 : i32
    %c0_i32_0 = arith.constant 0 : i32
    %c0_i32_1 = arith.constant 0 : i32
    %c0_i32_2 = arith.constant 0 : i32
    return %c0_i32, %c0_i32_0, %c0_i32_1 : i32, i32, i32
  }
  func.func @transform_4(%arg0: i32) -> (i32, i32) {
    %c0_i32 = arith.constant 0 : i32
    %c0_i32_0 = arith.constant 0 : i32
    %c0_i32_1 = arith.constant 0 : i32
    return %c0_i32, %c0_i32_0 : i32, i32
  }
  func.func @transform_5(%arg0: i32) -> (i32, i32, i32) {
    %c0_i32 = arith.constant 0 : i32
    %c0_i32_0 = arith.constant 0 : i32
    %c0_i32_1 = arith.constant 0 : i32
    %c0_i32_2 = arith.constant 0 : i32
    return %c0_i32, %c0_i32_0, %c0_i32_1 : i32, i32, i32
  }
  func.func @transform_6(%arg0: i32) -> (i32, i32) {
    %c0_i32 = arith.constant 0 : i32
    %c0_i32_0 = arith.constant 0 : i32
    %c0_i32_1 = arith.constant 0 : i32
    return %c0_i32, %c0_i32_0 : i32, i32
  }
  func.func @transform_7(%arg0: i32) -> (i32, i32) {
    %c0_i32 = arith.constant 0 : i32
    %c0_i32_0 = arith.constant 0 : i32
    %c0_i32_1 = arith.constant 0 : i32
    return %c0_i32, %c0_i32_0 : i32, i32
  }
  func.func @transform_8(%arg0: i32) -> (i32, i32) {
    %c0_i32 = arith.constant 0 : i32
    %c0_i32_0 = arith.constant 0 : i32
    %c0_i32_1 = arith.constant 0 : i32
    return %c0_i32, %c0_i32_0 : i32, i32
  }
  func.func @transform_9(%arg0: i32) -> (i32, i32) {
    %c0_i32 = arith.constant 0 : i32
    %c0_i32_0 = arith.constant 0 : i32
    %c0_i32_1 = arith.constant 0 : i32
    return %c0_i32, %c0_i32_0 : i32, i32
  }
  func.func @transform_10(%arg0: i32) -> (i32, i32) {
    %c0_i32 = arith.constant 0 : i32
    %c0_i32_0 = arith.constant 0 : i32
    %c0_i32_1 = arith.constant 0 : i32
    return %c0_i32, %c0_i32_0 : i32, i32
  }
  func.func @transform_11(%arg0: i32) -> (i32, i32) {
    %c0_i32 = arith.constant 0 : i32
    %c0_i32_0 = arith.constant 0 : i32
    %c0_i32_1 = arith.constant 0 : i32
    return %c0_i32, %c0_i32_0 : i32, i32
  }
  func.func @transform_12(%arg0: i32) -> (i32, i32, i32) {
    %c0_i32 = arith.constant 0 : i32
    %c0_i32_0 = arith.constant 0 : i32
    %c0_i32_1 = arith.constant 0 : i32
    %c0_i32_2 = arith.constant 0 : i32
    return %c0_i32, %c0_i32_0, %c0_i32_1 : i32, i32, i32
  }
  func.func @transform_13(%arg0: i32) -> (i32, i32) {
    %c0_i32 = arith.constant 0 : i32
    %c0_i32_0 = arith.constant 0 : i32
    %c0_i32_1 = arith.constant 0 : i32
    return %c0_i32, %c0_i32_0 : i32, i32
  }
  func.func @transform_14(%arg0: i32) -> (i32, i32, i32) {
    %c0_i32 = arith.constant 0 : i32
    %c0_i32_0 = arith.constant 0 : i32
    %c0_i32_1 = arith.constant 0 : i32
    %c0_i32_2 = arith.constant 0 : i32
    return %c0_i32, %c0_i32_0, %c0_i32_1 : i32, i32, i32
  }
  func.func @transform_15(%arg0: i32) -> (i32, i32) {
    %c0_i32 = arith.constant 0 : i32
    %c0_i32_0 = arith.constant 0 : i32
    %c0_i32_1 = arith.constant 0 : i32
    return %c0_i32, %c0_i32_0 : i32, i32
  }
  func.func @transform_16(%arg0: i32) -> (i32, i32, i32) {
    %c0_i32 = arith.constant 0 : i32
    %c0_i32_0 = arith.constant 0 : i32
    %c0_i32_1 = arith.constant 0 : i32
    %c0_i32_2 = arith.constant 0 : i32
    return %c0_i32, %c0_i32_0, %c0_i32_1 : i32, i32, i32
  }
  func.func @transform_17(%arg0: i32) -> (i32, i32) {
    %c0_i32 = arith.constant 0 : i32
    %c0_i32_0 = arith.constant 0 : i32
    %c0_i32_1 = arith.constant 0 : i32
    return %c0_i32, %c0_i32_0 : i32, i32
  }
  func.func @transform_18(%arg0: i32) -> (i32, i32) {
    %c0_i32 = arith.constant 0 : i32
    %c0_i32_0 = arith.constant 0 : i32
    %c0_i32_1 = arith.constant 0 : i32
    return %c0_i32, %c0_i32_0 : i32, i32
  }
  func.func @transform_19(%arg0: i32) -> (i32, i32) {
    %c0_i32 = arith.constant 0 : i32
    %c0_i32_0 = arith.constant 0 : i32
    %c0_i32_1 = arith.constant 0 : i32
    return %c0_i32, %c0_i32_0 : i32, i32
  }
  func.func @transform_20(%arg0: i32) -> (i32, i32) {
    %c0_i32 = arith.constant 0 : i32
    %c0_i32_0 = arith.constant 0 : i32
    %c0_i32_1 = arith.constant 0 : i32
    return %c0_i32, %c0_i32_0 : i32, i32
  }
  func.func @transform_21(%arg0: i32) -> (i32, i32) {
    %c0_i32 = arith.constant 0 : i32
    %c0_i32_0 = arith.constant 0 : i32
    %c0_i32_1 = arith.constant 0 : i32
    return %c0_i32, %c0_i32_0 : i32, i32
  }
  func.func @transform_22(%arg0: i32) -> (i32, i32) {
    %c0_i32 = arith.constant 0 : i32
    %c0_i32_0 = arith.constant 0 : i32
    %c0_i32_1 = arith.constant 0 : i32
    return %c0_i32, %c0_i32_0 : i32, i32
  }
  func.func @transform_23(%arg0: i32) -> (i32, i32, i32) {
    %c0_i32 = arith.constant 0 : i32
    %c0_i32_0 = arith.constant 0 : i32
    %c0_i32_1 = arith.constant 0 : i32
    %c0_i32_2 = arith.constant 0 : i32
    return %c0_i32, %c0_i32_0, %c0_i32_1 : i32, i32, i32
  }
  func.func @transform_24(%arg0: i32) -> (i32, i32) {
    %c0_i32 = arith.constant 0 : i32
    %c0_i32_0 = arith.constant 0 : i32
    %c0_i32_1 = arith.constant 0 : i32
    return %c0_i32, %c0_i32_0 : i32, i32
  }
  func.func @transform_25(%arg0: i32) -> (i32, i32, i32) {
    %c0_i32 = arith.constant 0 : i32
    %c0_i32_0 = arith.constant 0 : i32
    %c0_i32_1 = arith.constant 0 : i32
    %c0_i32_2 = arith.constant 0 : i32
    return %c0_i32, %c0_i32_0, %c0_i32_1 : i32, i32, i32
  }
  func.func @transform_26(%arg0: i32) -> (i32, i32) {
    %c0_i32 = arith.constant 0 : i32
    %c0_i32_0 = arith.constant 0 : i32
    %c0_i32_1 = arith.constant 0 : i32
    return %c0_i32, %c0_i32_0 : i32, i32
  }
  func.func @transform_27(%arg0: i32) -> (i32, i32, i32) {
    %c0_i32 = arith.constant 0 : i32
    %c0_i32_0 = arith.constant 0 : i32
    %c0_i32_1 = arith.constant 0 : i32
    %c0_i32_2 = arith.constant 0 : i32
    return %c0_i32, %c0_i32_0, %c0_i32_1 : i32, i32, i32
  }
  func.func @transform_28(%arg0: i32) -> (i32, i32) {
    %c0_i32 = arith.constant 0 : i32
    %c0_i32_0 = arith.constant 0 : i32
    %c0_i32_1 = arith.constant 0 : i32
    return %c0_i32, %c0_i32_0 : i32, i32
  }
  func.func @transform_29(%arg0: i32) -> (i32, i32) {
    %c0_i32 = arith.constant 0 : i32
    %c0_i32_0 = arith.constant 0 : i32
    %c0_i32_1 = arith.constant 0 : i32
    return %c0_i32, %c0_i32_0 : i32, i32
  }
  func.func @transform_30(%arg0: i32) -> (i32, i32) {
    %c0_i32 = arith.constant 0 : i32
    %c0_i32_0 = arith.constant 0 : i32
    %c0_i32_1 = arith.constant 0 : i32
    return %c0_i32, %c0_i32_0 : i32, i32
  }
  func.func @transform_31(%arg0: i32) -> (i32, i32) {
    %c0_i32 = arith.constant 0 : i32
    %c0_i32_0 = arith.constant 0 : i32
    %c0_i32_1 = arith.constant 0 : i32
    return %c0_i32, %c0_i32_0 : i32, i32
  }
  func.func @transform_32(%arg0: i32) -> (i32, i32) {
    %c0_i32 = arith.constant 0 : i32
    %c0_i32_0 = arith.constant 0 : i32
    %c0_i32_1 = arith.constant 0 : i32
    return %c0_i32, %c0_i32_0 : i32, i32
  }
  func.func @transform_33(%arg0: i32) -> (i32, i32) {
    %c0_i32 = arith.constant 0 : i32
    %c0_i32_0 = arith.constant 0 : i32
    %c0_i32_1 = arith.constant 0 : i32
    return %c0_i32, %c0_i32_0 : i32, i32
  }
  func.func @transform_34(%arg0: i32) -> (i32, i32, i32) {
    %c0_i32 = arith.constant 0 : i32
    %c0_i32_0 = arith.constant 0 : i32
    %c0_i32_1 = arith.constant 0 : i32
    %c0_i32_2 = arith.constant 0 : i32
    return %c0_i32, %c0_i32_0, %c0_i32_1 : i32, i32, i32
  }
  func.func @transform_35(%arg0: i32) -> (i32, i32) {
    %c0_i32 = arith.constant 0 : i32
    %c0_i32_0 = arith.constant 0 : i32
    %c0_i32_1 = arith.constant 0 : i32
    return %c0_i32, %c0_i32_0 : i32, i32
  }
  func.func @transform_36(%arg0: i32) -> (i32, i32, i32) {
    %c0_i32 = arith.constant 0 : i32
    %c0_i32_0 = arith.constant 0 : i32
    %c0_i32_1 = arith.constant 0 : i32
    %c0_i32_2 = arith.constant 0 : i32
    return %c0_i32, %c0_i32_0, %c0_i32_1 : i32, i32, i32
  }
  func.func @transform_37(%arg0: i32) -> (i32, i32) {
    %c0_i32 = arith.constant 0 : i32
    %c0_i32_0 = arith.constant 0 : i32
    %c0_i32_1 = arith.constant 0 : i32
    return %c0_i32, %c0_i32_0 : i32, i32
  }
  func.func @transform_38(%arg0: i32) -> (i32, i32, i32) {
    %c0_i32 = arith.constant 0 : i32
    %c0_i32_0 = arith.constant 0 : i32
    %c0_i32_1 = arith.constant 0 : i32
    %c0_i32_2 = arith.constant 0 : i32
    return %c0_i32, %c0_i32_0, %c0_i32_1 : i32, i32, i32
  }
  func.func @transform_39(%arg0: i32) -> (i32, i32) {
    %c0_i32 = arith.constant 0 : i32
    %c0_i32_0 = arith.constant 0 : i32
    %c0_i32_1 = arith.constant 0 : i32
    return %c0_i32, %c0_i32_0 : i32, i32
  }
  func.func @transform_40(%arg0: i32) -> (i32, i32) {
    %c0_i32 = arith.constant 0 : i32
    %c0_i32_0 = arith.constant 0 : i32
    %c0_i32_1 = arith.constant 0 : i32
    return %c0_i32, %c0_i32_0 : i32, i32
  }
  func.func @transform_41(%arg0: i32) -> (i32, i32) {
    %c0_i32 = arith.constant 0 : i32
    %c0_i32_0 = arith.constant 0 : i32
    %c0_i32_1 = arith.constant 0 : i32
    return %c0_i32, %c0_i32_0 : i32, i32
  }
  func.func @transform_42(%arg0: i32) -> (i32, i32) {
    %c0_i32 = arith.constant 0 : i32
    %c0_i32_0 = arith.constant 0 : i32
    %c0_i32_1 = arith.constant 0 : i32
    return %c0_i32, %c0_i32_0 : i32, i32
  }
  func.func @transform_43(%arg0: i32) -> (i32, i32) {
    %c0_i32 = arith.constant 0 : i32
    %c0_i32_0 = arith.constant 0 : i32
    %c0_i32_1 = arith.constant 0 : i32
    return %c0_i32, %c0_i32_0 : i32, i32
  }
  func.func @transform_44(%arg0: i32) -> (i32, i32) {
    %c0_i32 = arith.constant 0 : i32
    %c0_i32_0 = arith.constant 0 : i32
    %c0_i32_1 = arith.constant 0 : i32
    return %c0_i32, %c0_i32_0 : i32, i32
  }
  func.func @transform_45(%arg0: i32) -> (i32, i32, i32) {
    %c0_i32 = arith.constant 0 : i32
    %c0_i32_0 = arith.constant 0 : i32
    %c0_i32_1 = arith.constant 0 : i32
    return %arg0, %c0_i32, %c0_i32_0 : i32, i32, i32
  }
}

</mosaic_0001>

<llo_original>
// kernel: resnet12_forward.1
$region0: #{resnet12_forward.1}
  #allocation0 [shape = 'u32[]', space=smem, size = 0x4, offset = 0x4, fixed_abs, tag = 'smem constant byte address 0x4 - core index']
  #allocation1 [shape = 'u32[144,128]{1,0:T(1,128)}', space=vmem, size = 0x12000, scoped, tag = 'internal scratch']
  #allocation2 [shape = 'f32[34,128]{1,0:T(8,128)}', space=vmem, size = 0x5000, scoped, tag = 'scratch operand']
  #allocation3 [shape = 'f32[18,128]{1,0:T(8,128)}', space=vmem, size = 0x3000, scoped, tag = 'scratch operand']
  #allocation4 [shape = 'f32[10,128]{1,0:T(8,128)}', space=vmem, size = 0x2000, scoped, tag = 'scratch operand']
  #allocation5 [shape = 'f32[6,128]{1,0:T(8,128)}', space=vmem, size = 0x1000, scoped, tag = 'scratch operand']
  #allocation6 [shape = 'f32[18,64]{1,0:T(8,128)}', space=vmem, size = 0x3000, scoped, tag = 'scratch operand']
  #allocation7 [shape = 'f32[10,64]{1,0:T(8,128)}', space=vmem, size = 0x2000, scoped, tag = 'scratch operand']
  #allocation8 [shape = 'f32[6,64]{1,0:T(8,128)}', space=vmem, size = 0x1000, scoped, tag = 'scratch operand']
  #allocation9 [shape = 'f32[2,64]{1,0:T(2,128)}', space=vmem, size = 0x400, scoped, tag = 'scratch operand']
  %s0 = inlined_call_operand.smem [shape: u32[46], index: -1, kind: input, shape index: {}]
  %s1 = sld [smem:[%s0]]
  %s2 = scalar_lea.smem %s0, 1
  %s3 = sld [smem:[%s2]]
  %s4 = scalar_lea.smem %s0, 2
  %s5 = sld [smem:[%s4]]
  %s6 = scalar_lea.smem %s0, 3
  %s7 = sld [smem:[%s6]]
  %s8 = scalar_lea.smem %s0, 4
  %s9 = sld [smem:[%s8]]
  %s10 = scalar_lea.smem %s0, 5
  %s11 = sld [smem:[%s10]]
  %s12 = scalar_lea.smem %s0, 6
  %s13 = sld [smem:[%s12]]
  %s14 = scalar_lea.smem %s0, 7
  %s15 = sld [smem:[%s14]]
  %s16 = scalar_lea.smem %s0, 8
  %s17 = sld [smem:[%s16]]
  %s18 = scalar_lea.smem %s0, 9
  %s19 = sld [smem:[%s18]]
  %s20 = scalar_lea.smem %s0, 10
  %s21 = sld [smem:[%s20]]
  %s22 = scalar_lea.smem %s0, 11
  %s23 = sld [smem:[%s22]]
  %s24 = scalar_lea.smem %s0, 12
  %s25 = sld [smem:[%s24]]
  %s26 = scalar_lea.smem %s0, 13
  %s27 = sld [smem:[%s26]]
  %s28 = scalar_lea.smem %s0, 14
  %s29 = sld [smem:[%s28]]
  %s30 = scalar_lea.smem %s0, 15
  %s31 = sld [smem:[%s30]]
  %s32 = scalar_lea.smem %s0, 16
  %s33 = sld [smem:[%s32]]
  %s34 = scalar_lea.smem %s0, 17
  %s35 = sld [smem:[%s34]]
  %s36 = scalar_lea.smem %s0, 18
  %s37 = sld [smem:[%s36]]
  %s38 = scalar_lea.smem %s0, 19
  %s39 = sld [smem:[%s38]]
  %s40 = scalar_lea.smem %s0, 20
  %s41 = sld [smem:[%s40]]
  %s42 = scalar_lea.smem %s0, 21
  %s43 = sld [smem:[%s42]]
  %s44 = scalar_lea.smem %s0, 22
  %s45 = sld [smem:[%s44]]
  %s46 = scalar_lea.smem %s0, 23
  %s47 = sld [smem:[%s46]]
  %s48 = scalar_lea.smem %s0, 24
  %s49 = sld [smem:[%s48]]
  %s50 = scalar_lea.smem %s0, 25
  %s51 = sld [smem:[%s50]]
  %s52 = scalar_lea.smem %s0, 26
  %s53 = sld [smem:[%s52]]
  %s54 = scalar_lea.smem %s0, 27
  %s55 = sld [smem:[%s54]]
  %s56 = scalar_lea.smem %s0, 28
  %s57 = sld [smem:[%s56]]
  %s58 = scalar_lea.smem %s0, 29
  %s59 = sld [smem:[%s58]]
  %s60 = scalar_lea.smem %s0, 30
  %s61 = sld [smem:[%s60]]
  %s62 = scalar_lea.smem %s0, 31
  %s63 = sld [smem:[%s62]]
  %s64 = scalar_lea.smem %s0, 32
  %s65 = sld [smem:[%s64]]
  %s66 = scalar_lea.smem %s0, 33
  %s67 = sld [smem:[%s66]]
  %s68 = scalar_lea.smem %s0, 34
  %s69 = sld [smem:[%s68]]
  %s70 = scalar_lea.smem %s0, 35
  %s71 = sld [smem:[%s70]]
  %s72 = scalar_lea.smem %s0, 36
  %s73 = sld [smem:[%s72]]
  %s74 = scalar_lea.smem %s0, 37
  %s75 = sld [smem:[%s74]]
  %s76 = scalar_lea.smem %s0, 38
  %s77 = sld [smem:[%s76]]
  %s78 = scalar_lea.smem %s0, 39
  %s79 = sld [smem:[%s78]]
  %s80 = scalar_lea.smem %s0, 40
  %s81 = sld [smem:[%s80]]
  %s82 = scalar_lea.smem %s0, 41
  %s83 = sld [smem:[%s82]]
  %s84 = scalar_lea.smem %s0, 42
  %s85 = sld [smem:[%s84]]
  %s86 = scalar_lea.smem %s0, 43
  %s87 = sld [smem:[%s86]]
  %s88 = scalar_lea.smem %s0, 44
  %s89 = sld [smem:[%s88]]
  %s90 = scalar_lea.smem %s0, 45
  %s91 = sld [smem:[%s90]]
  %s92 = sld [smem:[#allocation0]]
  $region297: #{resnet12_forward.1} parent=0
    _
  %s94 = ssub.s32 1, %s92
  %s95 = scalar_select 0, %s94, %s92
  $region1: #{resnet12_forward.1} parent=0
    #allocation10 [shape = 'u8[512]{0}', space=vmem, size = 0x400, scoped, tag = 'input window, operand 4, single buffered']
    #allocation11 [shape = 's32[2]{0}', space=sflag, size = 0x8, scoped, tag = 'scoped memory for resnet12_forward.1']
    #allocation12 [shape = 's32[2]{0}', space=sflag, size = 0x8, scoped, tag = 'scoped memory for resnet12_forward.1']
    #allocation13 [shape = 'u8[512]{0}', space=vmem, size = 0x400, scoped, tag = 'input window, operand 6, single buffered']
    #allocation14 [shape = 's32[1]{0}', space=sflag, size = 0x4, scoped, tag = 'scoped memory for resnet12_forward.1']
    #allocation15 [shape = 'u8[24576]{0}', space=vmem, size = 0x6000, scoped, tag = 'input window, operand 7, single buffered']
    #allocation16 [shape = 'u8[512]{0}', space=vmem, size = 0x400, scoped, tag = 'input window, operand 8, single buffered']
    #allocation17 [shape = 's32[1]{0}', space=sflag, size = 0x4, scoped, tag = 'scoped memory for resnet12_forward.1']
    #allocation18 [shape = 'u8[512]{0}', space=vmem, size = 0x400, scoped, tag = 'input window, operand 13, single buffered']
    #allocation19 [shape = 'u8[512]{0}', space=vmem, size = 0x400, scoped, tag = 'input window, operand 15, single buffered']
    #allocation20 [shape = 's32[1]{0}', space=sflag, size = 0x4, scoped, tag = 'scoped memory for resnet12_forward.1']
    #allocation21 [shape = 'u8[512]{0}', space=vmem, size = 0x400, scoped, tag = 'input window, operand 17, single buffered']
    #allocation22 [shape = 'u8[16384]{0}', space=vmem, size = 0x4000, scoped, tag = 'input window, operand 18, single buffered']
    #allocation23 [shape = 's32[1]{0}', space=sflag, size = 0x4, scoped, tag = 'scoped memory for resnet12_forward.1']
    #allocation24 [shape = 'u8[512]{0}', space=vmem, size = 0x400, scoped, tag = 'input window, operand 19, single buffered']
    #allocation25 [shape = 'u8[512]{0}', space=vmem, size = 0x400, scoped, tag = 'input window, operand 24, single buffered']
    #allocation26 [shape = 's32[1]{0}', space=sflag, size = 0x4, scoped, tag = 'scoped memory for resnet12_forward.1']
    #allocation27 [shape = 'u8[512]{0}', space=vmem, size = 0x400, scoped, tag = 'input window, operand 26, single buffered']
    #allocation28 [shape = 'u8[512]{0}', space=vmem, size = 0x400, scoped, tag = 'input window, operand 28, single buffered']
    #allocation29 [shape = 's32[1]{0}', space=sflag, size = 0x4, scoped, tag = 'scoped memory for resnet12_forward.1']
    #allocation30 [shape = 'u8[16384]{0}', space=vmem, size = 0x4000, scoped, tag = 'input window, operand 29, single buffered']
    #allocation31 [shape = 'u8[512]{0}', space=vmem, size = 0x400, scoped, tag = 'input window, operand 30, single buffered']
    #allocation32 [shape = 's32[1]{0}', space=sflag, size = 0x4, scoped, tag = 'scoped memory for resnet12_forward.1']
    #allocation33 [shape = 'u8[4096]{0}', space=vmem, size = 0x1000, scoped, tag = 'input window, operand 33, single buffered']
    #allocation34 [shape = 'u8[512]{0}', space=vmem, size = 0x400, scoped, tag = 'input window, operand 35, single buffered']
    #allocation35 [shape = 's32[1]{0}', space=sflag, size = 0x4, scoped, tag = 'scoped memory for resnet12_forward.1']
    #allocation36 [shape = 'u8[512]{0}', space=vmem, size = 0x400, scoped, tag = 'input window, operand 37, single buffered']
    #allocation37 [shape = 'u8[512]{0}', space=vmem, size = 0x400, scoped, tag = 'input window, operand 39, single buffered']
    #allocation38 [shape = 's32[1]{0}', space=sflag, size = 0x4, scoped, tag = 'scoped memory for resnet12_forward.1']
    #allocation39 [shape = 'u8[16384]{0}', space=vmem, size = 0x4000, scoped, tag = 'input window, operand 40, single buffered']
    #allocation40 [shape = 'u8[512]{0}', space=vmem, size = 0x400, scoped, tag = 'input window, operand 41, single buffered']
    #allocation41 [shape = 's32[1]{0}', space=sflag, size = 0x4, scoped, tag = 'scoped memory for resnet12_forward.1']
    #allocation42 [shape = 'u8[1024]{0}', space=vmem, size = 0x400, scoped, tag = 'input window, operand 44, single buffered']
    #allocation43 [shape = 'u8[1024]{0}', space=vmem, size = 0x400, scoped, tag = 'output window, operand 0']
    %96 = vsyncpa [#allocation11], 0
    %97 = vsyncpa [#allocation14], 0
    %98 = vsyncpa [#allocation17], 0
    %99 = vsyncpa [#allocation20], 0
    %100 = vsyncpa [#allocation23], 0
    %101 = vsyncpa [#allocation26], 0
    %102 = vsyncpa [#allocation29], 0
    %103 = vsyncpa [#allocation32], 0
    %104 = vsyncpa [#allocation35], 0
    %105 = vsyncpa [#allocation38], 0
    %106 = vsyncpa [#allocation41], 0
    %107 = vsyncpa [#allocation12], 0
    %s108 = scalar_lea.sflag [#allocation12], 1
    %109 = vsyncpa %s108, 0
    loop: start=0, step=1, limit=4
    $region2: #{resnet12_forward.1} parent=1 // loop_pre_header
      _
    $region3: #{resnet12_forward.1} parent=1 // loop_header
      %s111 = sphi 0, %s115
      %p112 = scmp.ge.s32.totalorder %s111, 4
      %s121 = sphi 0, %s123
      %s124 = sphi 0, %s121
      %s125 = sphi 0, %s124
      %s141 = sphi 0, %s125
      %s145 = sphi 0, %s145
      %s147 = sphi 0, %s145
      %s148 = sphi 0, %s147
      %s162 = sphi 0, %s148
      %s166 = sphi 0, %s166
      %s168 = sphi 0, %s166
      %s169 = sphi 0, %s168
      %s183 = sphi 0, %s169
      %s187 = sphi 0, %s187
      %s189 = sphi 0, %s187
      %s190 = sphi 0, %s189
      %s204 = sphi 0, %s190
      %s208 = sphi 0, %s208
      %s210 = sphi 0, %s208
      %s211 = sphi 0, %s210
      %s225 = sphi 0, %s211
      %s229 = sphi 0, %s229
      %s231 = sphi 0, %s229
      %s232 = sphi 0, %s231
      %s246 = sphi 0, %s232
      %s250 = sphi 0, %s250
      %s252 = sphi 0, %s250
      %s253 = sphi 0, %s252
      %s267 = sphi 0, %s253
      %s271 = sphi 0, %s271
      %s273 = sphi 0, %s271
      %s274 = sphi 0, %s273
      %s288 = sphi 0, %s274
      %s292 = sphi 0, %s292
      %s294 = sphi 0, %s292
      %s295 = sphi 0, %s294
      %s309 = sphi 0, %s295
      %s313 = sphi 0, %s313
      %s315 = sphi 0, %s313
      %s316 = sphi 0, %s315
      %s330 = sphi 0, %s316
      %s334 = sphi 0, %s334
      %s336 = sphi 0, %s334
      %s337 = sphi 0, %s336
      %s351 = sphi 0, %s337
      %s355 = sphi 0, %s355
      %s357 = sphi 0, %s355
      %s358 = sphi 0, %s357
      %s372 = sphi 0, %s358
      %s376 = sphi 0, %s376
      %s378 = sphi 0, %s376
      %s379 = sphi 0, %s378
      %s393 = sphi 0, %s379
      %s397 = sphi 0, %s397
      %s399 = sphi 0, %s397
      %s400 = sphi 0, %s399
      %s414 = sphi 0, %s400
      %s418 = sphi 0, %s418
      %s420 = sphi 0, %s418
      %s421 = sphi 0, %s420
      %s435 = sphi 0, %s421
      %s439 = sphi 0, %s439
      %s441 = sphi 0, %s439
      %s442 = sphi 0, %s441
      %s456 = sphi 0, %s442
      %s460 = sphi 0, %s460
      %s462 = sphi 0, %s460
      %s463 = sphi 0, %s462
      %s477 = sphi 0, %s463
      %s481 = sphi 0, %s481
      %s483 = sphi 0, %s481
      %s484 = sphi 0, %s483
      %s498 = sphi 0, %s484
      %s502 = sphi 0, %s502
      %s504 = sphi 0, %s502
      %s505 = sphi 0, %s504
      %s519 = sphi 0, %s505
      %s523 = sphi 0, %s523
      %s525 = sphi 0, %s523
      %s526 = sphi 0, %s525
      %s540 = sphi 0, %s526
      %s544 = sphi 0, %s544
      %s546 = sphi 0, %s544
      %s547 = sphi 0, %s546
      %s561 = sphi 0, %s547
      %s565 = sphi 0, %s565
      %s567 = sphi 0, %s565
      %s568 = sphi 0, %s567
      %s582 = sphi 0, %s568
      %s586 = sphi 0, %s586
      %s588 = sphi 0, %s586
      %s589 = sphi 0, %s588
      %s603 = sphi 0, %s589
      %s607 = sphi 0, %s607
      %s609 = sphi 0, %s607
      %s610 = sphi 0, %s609
      %s624 = sphi 0, %s610
      %s628 = sphi 0, %s628
      %s630 = sphi 0, %s628
      %s631 = sphi 0, %s630
      %s645 = sphi 0, %s631
      %s649 = sphi 0, %s649
      %s651 = sphi 0, %s649
      %s652 = sphi 0, %s651
      %s666 = sphi 0, %s652
      %s670 = sphi 0, %s670
      %s672 = sphi 0, %s670
      %s673 = sphi 0, %s672
      %s687 = sphi 0, %s673
      %s691 = sphi 0, %s691
      %s693 = sphi 0, %s691
      %s694 = sphi 0, %s693
      %s708 = sphi 0, %s694
      %s712 = sphi 0, %s712
      %s714 = sphi 0, %s712
      %s715 = sphi 0, %s714
      %s729 = sphi 0, %s715
      %s733 = sphi 0, %s733
      %s735 = sphi 0, %s733
      %s736 = sphi 0, %s735
      %s750 = sphi 0, %s736
      %s754 = sphi 0, %s754
      %s756 = sphi 0, %s754
      %s757 = sphi 0, %s756
      %s771 = sphi 0, %s757
      %s775 = sphi 0, %s775
      %s777 = sphi 0, %s775
      %s778 = sphi 0, %s777
      %s792 = sphi 0, %s778
      %s796 = sphi 0, %s796
      %s798 = sphi 0, %s796
      %s799 = sphi 0, %s798
      %s813 = sphi 0, %s799
      %s817 = sphi 0, %s817
      %s819 = sphi 0, %s817
      %s820 = sphi 0, %s819
      %s834 = sphi 0, %s820
      %s838 = sphi 0, %s838
      %s840 = sphi 0, %s838
      %s841 = sphi 0, %s840
      %s855 = sphi 0, %s841
      %s859 = sphi 0, %s859
      %s861 = sphi 0, %s859
      %s862 = sphi 0, %s861
      %s876 = sphi 0, %s862
      %s880 = sphi 0, %s880
      %s882 = sphi 0, %s880
      %s883 = sphi 0, %s882
      %s897 = sphi 0, %s883
      %s901 = sphi 0, %s901
      %s903 = sphi 0, %s901
      %s904 = sphi 0, %s903
      %s918 = sphi 0, %s904
      %s922 = sphi 0, %s922
      %s924 = sphi 0, %s922
      %s925 = sphi 0, %s924
      %s939 = sphi 0, %s925
      %s943 = sphi 0, %s943
      %s945 = sphi 0, %s943
      %s946 = sphi 0, %s945
      %s960 = sphi 0, %s946
      %s964 = sphi 0, %s964
      %s966 = sphi 0, %s964
      %s967 = sphi 0, %s966
      %s981 = sphi 0, %s967
      %s985 = sphi 0, %s985
      %s987 = sphi 0, %s985
      %s988 = sphi 0, %s987
      %s1002 = sphi 0, %s988
      %s1006 = sphi 0, %s1006
      %s1008 = sphi 0, %s1006
      %s1009 = sphi 0, %s1008
      %s1023 = sphi 0, %s1009
      %s1027 = sphi 0, %s1027
      %s1029 = sphi 0, %s1027
      %s1030 = sphi 0, %s1029
      %s1044 = sphi 0, %s1030
      %s1048 = sphi 0, %s1048
      %s1050 = sphi 0, %s1048
      %s1051 = sphi 0, %s1050
      %s1065 = sphi 0, %s1051
      %s1071 = sphi 0, %s1073
      %s1074 = sphi 0, %s1071
      %s1075 = sphi 0, %s1074
      %s1091 = sphi 0, %s1075
    $region4: #{resnet12_forward.1} parent=1 // loop_header_branch
      %114 = sbr.rel (%p112) target = $region8
    $region5: #{resnet12_forward.1} parent=1 // loop_body
      %s116 = ssub.s32 %s111, 1
      %s117 = ssub.s32 %s111, 2
      %s118 = sadd.s32 %s111, 1
      %s119 = ssub.s32 %s111, %s118
      %p120 = scmp.eq.s32.totalorder %s119, 0
      %s122 = sadd.s32 %s121, 1
      %s123 = scalar_select %p120, %s121, %s122
      %p126 = pneg %p120
      %p127 = scmp.eq.s32.totalorder %s111, 1
      %p128 = por %p126, %p127
      %p129 = scmp.ne.s32.totalorder %s121, %s124
      %p130 = scmp.eq.s32.totalorder %s111, 0
      %p131 = por %p129, %p130
      %p132 = scmp.ne.s32.totalorder %s121, %s124
      %p133 = scmp.eq.s32.totalorder %s116, 1
      %p134 = por %p132, %p133
      %p135 = scmp.ne.s32.totalorder %s124, %s125
      %p136 = scmp.eq.s32.totalorder %s116, 0
      %p137 = por %p135, %p136
      %p138 = scmp.ne.s32.totalorder %s124, %s125
      %p139 = scmp.eq.s32.totalorder %s117, 1
      %p140 = por %p138, %p139
      %p142 = scmp.ne.s32.totalorder %s125, %s141
      %p143 = scmp.eq.s32.totalorder %s117, 0
      %p144 = por %p142, %p143
      %s146 = sadd.s32 %s145, 1
      %p149 = scmp.eq.s32.totalorder %s111, 1
      %p150 = scmp.ne.s32.totalorder %s145, %s147
      %p151 = scmp.eq.s32.totalorder %s111, 0
      %p152 = por %p150, %p151
      %p153 = scmp.ne.s32.totalorder %s145, %s147
      %p154 = scmp.eq.s32.totalorder %s116, 1
      %p155 = por %p153, %p154
      %p156 = scmp.ne.s32.totalorder %s147, %s148
      %p157 = scmp.eq.s32.totalorder %s116, 0
      %p158 = por %p156, %p157
      %p159 = scmp.ne.s32.totalorder %s147, %s148
      %p160 = scmp.eq.s32.totalorder %s117, 1
      %p161 = por %p159, %p160
      %p163 = scmp.ne.s32.totalorder %s148, %s162
      %p164 = scmp.eq.s32.totalorder %s117, 0
      %p165 = por %p163, %p164
      %s167 = sadd.s32 %s166, 1
      %p170 = scmp.eq.s32.totalorder %s111, 1
      %p171 = scmp.ne.s32.totalorder %s166, %s168
      %p172 = scmp.eq.s32.totalorder %s111, 0
      %p173 = por %p171, %p172
      %p174 = scmp.ne.s32.totalorder %s166, %s168
      %p175 = scmp.eq.s32.totalorder %s116, 1
      %p176 = por %p174, %p175
      %p177 = scmp.ne.s32.totalorder %s168, %s169
      %p178 = scmp.eq.s32.totalorder %s116, 0
      %p179 = por %p177, %p178
      %p180 = scmp.ne.s32.totalorder %s168, %s169
      %p181 = scmp.eq.s32.totalorder %s117, 1
      %p182 = por %p180, %p181
      %p184 = scmp.ne.s32.totalorder %s169, %s183
      %p185 = scmp.eq.s32.totalorder %s117, 0
      %p186 = por %p184, %p185
      %s188 = sadd.s32 %s187, 1
      %p191 = scmp.eq.s32.totalorder %s111, 1
      %p192 = scmp.ne.s32.totalorder %s187, %s189
      %p193 = scmp.eq.s32.totalorder %s111, 0
      %p194 = por %p192, %p193
      %p195 = scmp.ne.s32.totalorder %s187, %s189
      %p196 = scmp.eq.s32.totalorder %s116, 1
      %p197 = por %p195, %p196
      %p198 = scmp.ne.s32.totalorder %s189, %s190
      %p199 = scmp.eq.s32.totalorder %s116, 0
      %p200 = por %p198, %p199
      %p201 = scmp.ne.s32.totalorder %s189, %s190
      %p202 = scmp.eq.s32.totalorder %s117, 1
      %p203 = por %p201, %p202
      %p205 = scmp.ne.s32.totalorder %s190, %s204
      %p206 = scmp.eq.s32.totalorder %s117, 0
      %p207 = por %p205, %p206
      %s209 = sadd.s32 %s208, 1
      %p212 = scmp.eq.s32.totalorder %s111, 1
      %p213 = scmp.ne.s32.totalorder %s208, %s210
      %p214 = scmp.eq.s32.totalorder %s111, 0
      %p215 = por %p213, %p214
      %p216 = scmp.ne.s32.totalorder %s208, %s210
      %p217 = scmp.eq.s32.totalorder %s116, 1
      %p218 = por %p216, %p217
      %p219 = scmp.ne.s32.totalorder %s210, %s211
      %p220 = scmp.eq.s32.totalorder %s116, 0
      %p221 = por %p219, %p220
      %p222 = scmp.ne.s32.totalorder %s210, %s211
      %p223 = scmp.eq.s32.totalorder %s117, 1
      %p224 = por %p222, %p223
      %p226 = scmp.ne.s32.totalorder %s211, %s225
      %p227 = scmp.eq.s32.totalorder %s117, 0
      %p228 = por %p226, %p227
      %s230 = sadd.s32 %s229, 1
      %p233 = scmp.eq.s32.totalorder %s111, 1
      %p234 = scmp.ne.s32.totalorder %s229, %s231
      %p235 = scmp.eq.s32.totalorder %s111, 0
      %p236 = por %p234, %p235
      %p237 = scmp.ne.s32.totalorder %s229, %s231
      %p238 = scmp.eq.s32.totalorder %s116, 1
      %p239 = por %p237, %p238
      %p240 = scmp.ne.s32.totalorder %s231, %s232
      %p241 = scmp.eq.s32.totalorder %s116, 0
      %p242 = por %p240, %p241
      %p243 = scmp.ne.s32.totalorder %s231, %s232
      %p244 = scmp.eq.s32.totalorder %s117, 1
      %p245 = por %p243, %p244
      %p247 = scmp.ne.s32.totalorder %s232, %s246
      %p248 = scmp.eq.s32.totalorder %s117, 0
      %p249 = por %p247, %p248
      %s251 = sadd.s32 %s250, 1
      %p254 = scmp.eq.s32.totalorder %s111, 1
      %p255 = scmp.ne.s32.totalorder %s250, %s252
      %p256 = scmp.eq.s32.totalorder %s111, 0
      %p257 = por %p255, %p256
      %p258 = scmp.ne.s32.totalorder %s250, %s252
      %p259 = scmp.eq.s32.totalorder %s116, 1
      %p260 = por %p258, %p259
      %p261 = scmp.ne.s32.totalorder %s252, %s253
      %p262 = scmp.eq.s32.totalorder %s116, 0
      %p263 = por %p261, %p262
      %p264 = scmp.ne.s32.totalorder %s252, %s253
      %p265 = scmp.eq.s32.totalorder %s117, 1
      %p266 = por %p264, %p265
      %p268 = scmp.ne.s32.totalorder %s253, %s267
      %p269 = scmp.eq.s32.totalorder %s117, 0
      %p270 = por %p268, %p269
      %s272 = sadd.s32 %s271, 1
      %p275 = scmp.eq.s32.totalorder %s111, 1
      %p276 = scmp.ne.s32.totalorder %s271, %s273
      %p277 = scmp.eq.s32.totalorder %s111, 0
      %p278 = por %p276, %p277
      %p279 = scmp.ne.s32.totalorder %s271, %s273
      %p280 = scmp.eq.s32.totalorder %s116, 1
      %p281 = por %p279, %p280
      %p282 = scmp.ne.s32.totalorder %s273, %s274
      %p283 = scmp.eq.s32.totalorder %s116, 0
      %p284 = por %p282, %p283
      %p285 = scmp.ne.s32.totalorder %s273, %s274
      %p286 = scmp.eq.s32.totalorder %s117, 1
      %p287 = por %p285, %p286
      %p289 = scmp.ne.s32.totalorder %s274, %s288
      %p290 = scmp.eq.s32.totalorder %s117, 0
      %p291 = por %p289, %p290
      %s293 = sadd.s32 %s292, 1
      %p296 = scmp.eq.s32.totalorder %s111, 1
      %p297 = scmp.ne.s32.totalorder %s292, %s294
      %p298 = scmp.eq.s32.totalorder %s111, 0
      %p299 = por %p297, %p298
      %p300 = scmp.ne.s32.totalorder %s292, %s294
      %p301 = scmp.eq.s32.totalorder %s116, 1
      %p302 = por %p300, %p301
      %p303 = scmp.ne.s32.totalorder %s294, %s295
      %p304 = scmp.eq.s32.totalorder %s116, 0
      %p305 = por %p303, %p304
      %p306 = scmp.ne.s32.totalorder %s294, %s295
      %p307 = scmp.eq.s32.totalorder %s117, 1
      %p308 = por %p306, %p307
      %p310 = scmp.ne.s32.totalorder %s295, %s309
      %p311 = scmp.eq.s32.totalorder %s117, 0
      %p312 = por %p310, %p311
      %s314 = sadd.s32 %s313, 1
      %p317 = scmp.eq.s32.totalorder %s111, 1
      %p318 = scmp.ne.s32.totalorder %s313, %s315
      %p319 = scmp.eq.s32.totalorder %s111, 0
      %p320 = por %p318, %p319
      %p321 = scmp.ne.s32.totalorder %s313, %s315
      %p322 = scmp.eq.s32.totalorder %s116, 1
      %p323 = por %p321, %p322
      %p324 = scmp.ne.s32.totalorder %s315, %s316
      %p325 = scmp.eq.s32.totalorder %s116, 0
      %p326 = por %p324, %p325
      %p327 = scmp.ne.s32.totalorder %s315, %s316
      %p328 = scmp.eq.s32.totalorder %s117, 1
      %p329 = por %p327, %p328
      %p331 = scmp.ne.s32.totalorder %s316, %s330
      %p332 = scmp.eq.s32.totalorder %s117, 0
      %p333 = por %p331, %p332
      %s335 = sadd.s32 %s334, 1
      %p338 = scmp.eq.s32.totalorder %s111, 1
      %p339 = scmp.ne.s32.totalorder %s334, %s336
      %p340 = scmp.eq.s32.totalorder %s111, 0
      %p341 = por %p339, %p340
      %p342 = scmp.ne.s32.totalorder %s334, %s336
      %p343 = scmp.eq.s32.totalorder %s116, 1
      %p344 = por %p342, %p343
      %p345 = scmp.ne.s32.totalorder %s336, %s337
      %p346 = scmp.eq.s32.totalorder %s116, 0
      %p347 = por %p345, %p346
      %p348 = scmp.ne.s32.totalorder %s336, %s337
      %p349 = scmp.eq.s32.totalorder %s117, 1
      %p350 = por %p348, %p349
      %p352 = scmp.ne.s32.totalorder %s337, %s351
      %p353 = scmp.eq.s32.totalorder %s117, 0
      %p354 = por %p352, %p353
      %s356 = sadd.s32 %s355, 1
      %p359 = scmp.eq.s32.totalorder %s111, 1
      %p360 = scmp.ne.s32.totalorder %s355, %s357
      %p361 = scmp.eq.s32.totalorder %s111, 0
      %p362 = por %p360, %p361
      %p363 = scmp.ne.s32.totalorder %s355, %s357
      %p364 = scmp.eq.s32.totalorder %s116, 1
      %p365 = por %p363, %p364
      %p366 = scmp.ne.s32.totalorder %s357, %s358
      %p367 = scmp.eq.s32.totalorder %s116, 0
      %p368 = por %p366, %p367
      %p369 = scmp.ne.s32.totalorder %s357, %s358
      %p370 = scmp.eq.s32.totalorder %s117, 1
      %p371 = por %p369, %p370
      %p373 = scmp.ne.s32.totalorder %s358, %s372
      %p374 = scmp.eq.s32.totalorder %s117, 0
      %p375 = por %p373, %p374
      %s377 = sadd.s32 %s376, 1
      %p380 = scmp.eq.s32.totalorder %s111, 1
      %p381 = scmp.ne.s32.totalorder %s376, %s378
      %p382 = scmp.eq.s32.totalorder %s111, 0
      %p383 = por %p381, %p382
      %p384 = scmp.ne.s32.totalorder %s376, %s378
      %p385 = scmp.eq.s32.totalorder %s116, 1
      %p386 = por %p384, %p385
      %p387 = scmp.ne.s32.totalorder %s378, %s379
      %p388 = scmp.eq.s32.totalorder %s116, 0
      %p389 = por %p387, %p388
      %p390 = scmp.ne.s32.totalorder %s378, %s379
      %p391 = scmp.eq.s32.totalorder %s117, 1
      %p392 = por %p390, %p391
      %p394 = scmp.ne.s32.totalorder %s379, %s393
      %p395 = scmp.eq.s32.totalorder %s117, 0
      %p396 = por %p394, %p395
      %s398 = sadd.s32 %s397, 1
      %p401 = scmp.eq.s32.totalorder %s111, 1
      %p402 = scmp.ne.s32.totalorder %s397, %s399
      %p403 = scmp.eq.s32.totalorder %s111, 0
      %p404 = por %p402, %p403
      %p405 = scmp.ne.s32.totalorder %s397, %s399
      %p406 = scmp.eq.s32.totalorder %s116, 1
      %p407 = por %p405, %p406
      %p408 = scmp.ne.s32.totalorder %s399, %s400
      %p409 = scmp.eq.s32.totalorder %s116, 0
      %p410 = por %p408, %p409
      %p411 = scmp.ne.s32.totalorder %s399, %s400
      %p412 = scmp.eq.s32.totalorder %s117, 1
      %p413 = por %p411, %p412
      %p415 = scmp.ne.s32.totalorder %s400, %s414
      %p416 = scmp.eq.s32.totalorder %s117, 0
      %p417 = por %p415, %p416
      %s419 = sadd.s32 %s418, 1
      %p422 = scmp.eq.s32.totalorder %s111, 1
      %p423 = scmp.ne.s32.totalorder %s418, %s420
      %p424 = scmp.eq.s32.totalorder %s111, 0
      %p425 = por %p423, %p424
      %p426 = scmp.ne.s32.totalorder %s418, %s420
      %p427 = scmp.eq.s32.totalorder %s116, 1
      %p428 = por %p426, %p427
      %p429 = scmp.ne.s32.totalorder %s420, %s421
      %p430 = scmp.eq.s32.totalorder %s116, 0
      %p431 = por %p429, %p430
      %p432 = scmp.ne.s32.totalorder %s420, %s421
      %p433 = scmp.eq.s32.totalorder %s117, 1
      %p434 = por %p432, %p433
      %p436 = scmp.ne.s32.totalorder %s421, %s435
      %p437 = scmp.eq.s32.totalorder %s117, 0
      %p438 = por %p436, %p437
      %s440 = sadd.s32 %s439, 1
      %p443 = scmp.eq.s32.totalorder %s111, 1
      %p444 = scmp.ne.s32.totalorder %s439, %s441
      %p445 = scmp.eq.s32.totalorder %s111, 0
      %p446 = por %p444, %p445
      %p447 = scmp.ne.s32.totalorder %s439, %s441
      %p448 = scmp.eq.s32.totalorder %s116, 1
      %p449 = por %p447, %p448
      %p450 = scmp.ne.s32.totalorder %s441, %s442
      %p451 = scmp.eq.s32.totalorder %s116, 0
      %p452 = por %p450, %p451
      %p453 = scmp.ne.s32.totalorder %s441, %s442
      %p454 = scmp.eq.s32.totalorder %s117, 1
      %p455 = por %p453, %p454
      %p457 = scmp.ne.s32.totalorder %s442, %s456
      %p458 = scmp.eq.s32.totalorder %s117, 0
      %p459 = por %p457, %p458
      %s461 = sadd.s32 %s460, 1
      %p464 = scmp.eq.s32.totalorder %s111, 1
      %p465 = scmp.ne.s32.totalorder %s460, %s462
      %p466 = scmp.eq.s32.totalorder %s111, 0
      %p467 = por %p465, %p466
      %p468 = scmp.ne.s32.totalorder %s460, %s462
      %p469 = scmp.eq.s32.totalorder %s116, 1
      %p470 = por %p468, %p469
      %p471 = scmp.ne.s32.totalorder %s462, %s463
      %p472 = scmp.eq.s32.totalorder %s116, 0
      %p473 = por %p471, %p472
      %p474 = scmp.ne.s32.totalorder %s462, %s463
      %p475 = scmp.eq.s32.totalorder %s117, 1
      %p476 = por %p474, %p475
      %p478 = scmp.ne.s32.totalorder %s463, %s477
      %p479 = scmp.eq.s32.totalorder %s117, 0
      %p480 = por %p478, %p479
      %s482 = sadd.s32 %s481, 1
      %p485 = scmp.eq.s32.totalorder %s111, 1
      %p486 = scmp.ne.s32.totalorder %s481, %s483
      %p487 = scmp.eq.s32.totalorder %s111, 0
      %p488 = por %p486, %p487
      %p489 = scmp.ne.s32.totalorder %s481, %s483
      %p490 = scmp.eq.s32.totalorder %s116, 1
      %p491 = por %p489, %p490
      %p492 = scmp.ne.s32.totalorder %s483, %s484
      %p493 = scmp.eq.s32.totalorder %s116, 0
      %p494 = por %p492, %p493
      %p495 = scmp.ne.s32.totalorder %s483, %s484
      %p496 = scmp.eq.s32.totalorder %s117, 1
      %p497 = por %p495, %p496
      %p499 = scmp.ne.s32.totalorder %s484, %s498
      %p500 = scmp.eq.s32.totalorder %s117, 0
      %p501 = por %p499, %p500
      %s503 = sadd.s32 %s502, 1
      %p506 = scmp.eq.s32.totalorder %s111, 1
      %p507 = scmp.ne.s32.totalorder %s502, %s504
      %p508 = scmp.eq.s32.totalorder %s111, 0
      %p509 = por %p507, %p508
      %p510 = scmp.ne.s32.totalorder %s502, %s504
      %p511 = scmp.eq.s32.totalorder %s116, 1
      %p512 = por %p510, %p511
      %p513 = scmp.ne.s32.totalorder %s504, %s505
      %p514 = scmp.eq.s32.totalorder %s116, 0
      %p515 = por %p513, %p514
      %p516 = scmp.ne.s32.totalorder %s504, %s505
      %p517 = scmp.eq.s32.totalorder %s117, 1
      %p518 = por %p516, %p517
      %p520 = scmp.ne.s32.totalorder %s505, %s519
      %p521 = scmp.eq.s32.totalorder %s117, 0
      %p522 = por %p520, %p521
      %s524 = sadd.s32 %s523, 1
      %p527 = scmp.eq.s32.totalorder %s111, 1
      %p528 = scmp.ne.s32.totalorder %s523, %s525
      %p529 = scmp.eq.s32.totalorder %s111, 0
      %p530 = por %p528, %p529
      %p531 = scmp.ne.s32.totalorder %s523, %s525
      %p532 = scmp.eq.s32.totalorder %s116, 1
      %p533 = por %p531, %p532
      %p534 = scmp.ne.s32.totalorder %s525, %s526
      %p535 = scmp.eq.s32.totalorder %s116, 0
      %p536 = por %p534, %p535
      %p537 = scmp.ne.s32.totalorder %s525, %s526
      %p538 = scmp.eq.s32.totalorder %s117, 1
      %p539 = por %p537, %p538
      %p541 = scmp.ne.s32.totalorder %s526, %s540
      %p542 = scmp.eq.s32.totalorder %s117, 0
      %p543 = por %p541, %p542
      %s545 = sadd.s32 %s544, 1
      %p548 = scmp.eq.s32.totalorder %s111, 1
      %p549 = scmp.ne.s32.totalorder %s544, %s546
      %p550 = scmp.eq.s32.totalorder %s111, 0
      %p551 = por %p549, %p550
      %p552 = scmp.ne.s32.totalorder %s544, %s546
      %p553 = scmp.eq.s32.totalorder %s116, 1
      %p554 = por %p552, %p553
      %p555 = scmp.ne.s32.totalorder %s546, %s547
      %p556 = scmp.eq.s32.totalorder %s116, 0
      %p557 = por %p555, %p556
      %p558 = scmp.ne.s32.totalorder %s546, %s547
      %p559 = scmp.eq.s32.totalorder %s117, 1
      %p560 = por %p558, %p559
      %p562 = scmp.ne.s32.totalorder %s547, %s561
      %p563 = scmp.eq.s32.totalorder %s117, 0
      %p564 = por %p562, %p563
      %s566 = sadd.s32 %s565, 1
      %p569 = scmp.eq.s32.totalorder %s111, 1
      %p570 = scmp.ne.s32.totalorder %s565, %s567
      %p571 = scmp.eq.s32.totalorder %s111, 0
      %p572 = por %p570, %p571
      %p573 = scmp.ne.s32.totalorder %s565, %s567
      %p574 = scmp.eq.s32.totalorder %s116, 1
      %p575 = por %p573, %p574
      %p576 = scmp.ne.s32.totalorder %s567, %s568
      %p577 = scmp.eq.s32.totalorder %s116, 0
      %p578 = por %p576, %p577
      %p579 = scmp.ne.s32.totalorder %s567, %s568
      %p580 = scmp.eq.s32.totalorder %s117, 1
      %p581 = por %p579, %p580
      %p583 = scmp.ne.s32.totalorder %s568, %s582
      %p584 = scmp.eq.s32.totalorder %s117, 0
      %p585 = por %p583, %p584
      %s587 = sadd.s32 %s586, 1
      %p590 = scmp.eq.s32.totalorder %s111, 1
      %p591 = scmp.ne.s32.totalorder %s586, %s588
      %p592 = scmp.eq.s32.totalorder %s111, 0
      %p593 = por %p591, %p592
      %p594 = scmp.ne.s32.totalorder %s586, %s588
      %p595 = scmp.eq.s32.totalorder %s116, 1
      %p596 = por %p594, %p595
      %p597 = scmp.ne.s32.totalorder %s588, %s589
      %p598 = scmp.eq.s32.totalorder %s116, 0
      %p599 = por %p597, %p598
      %p600 = scmp.ne.s32.totalorder %s588, %s589
      %p601 = scmp.eq.s32.totalorder %s117, 1
      %p602 = por %p600, %p601
      %p604 = scmp.ne.s32.totalorder %s589, %s603
      %p605 = scmp.eq.s32.totalorder %s117, 0
      %p606 = por %p604, %p605
      %s608 = sadd.s32 %s607, 1
      %p611 = scmp.eq.s32.totalorder %s111, 1
      %p612 = scmp.ne.s32.totalorder %s607, %s609
      %p613 = scmp.eq.s32.totalorder %s111, 0
      %p614 = por %p612, %p613
      %p615 = scmp.ne.s32.totalorder %s607, %s609
      %p616 = scmp.eq.s32.totalorder %s116, 1
      %p617 = por %p615, %p616
      %p618 = scmp.ne.s32.totalorder %s609, %s610
      %p619 = scmp.eq.s32.totalorder %s116, 0
      %p620 = por %p618, %p619
      %p621 = scmp.ne.s32.totalorder %s609, %s610
      %p622 = scmp.eq.s32.totalorder %s117, 1
      %p623 = por %p621, %p622
      %p625 = scmp.ne.s32.totalorder %s610, %s624
      %p626 = scmp.eq.s32.totalorder %s117, 0
      %p627 = por %p625, %p626
      %s629 = sadd.s32 %s628, 1
      %p632 = scmp.eq.s32.totalorder %s111, 1
      %p633 = scmp.ne.s32.totalorder %s628, %s630
      %p634 = scmp.eq.s32.totalorder %s111, 0
      %p635 = por %p633, %p634
      %p636 = scmp.ne.s32.totalorder %s628, %s630
      %p637 = scmp.eq.s32.totalorder %s116, 1
      %p638 = por %p636, %p637
      %p639 = scmp.ne.s32.totalorder %s630, %s631
      %p640 = scmp.eq.s32.totalorder %s116, 0
      %p641 = por %p639, %p640
      %p642 = scmp.ne.s32.totalorder %s630, %s631
      %p643 = scmp.eq.s32.totalorder %s117, 1
      %p644 = por %p642, %p643
      %p646 = scmp.ne.s32.totalorder %s631, %s645
      %p647 = scmp.eq.s32.totalorder %s117, 0
      %p648 = por %p646, %p647
      %s650 = sadd.s32 %s649, 1
      %p653 = scmp.eq.s32.totalorder %s111, 1
      %p654 = scmp.ne.s32.totalorder %s649, %s651
      %p655 = scmp.eq.s32.totalorder %s111, 0
      %p656 = por %p654, %p655
      %p657 = scmp.ne.s32.totalorder %s649, %s651
      %p658 = scmp.eq.s32.totalorder %s116, 1
      %p659 = por %p657, %p658
      %p660 = scmp.ne.s32.totalorder %s651, %s652
      %p661 = scmp.eq.s32.totalorder %s116, 0
      %p662 = por %p660, %p661
      %p663 = scmp.ne.s32.totalorder %s651, %s652
      %p664 = scmp.eq.s32.totalorder %s117, 1
      %p665 = por %p663, %p664
      %p667 = scmp.ne.s32.totalorder %s652, %s666
      %p668 = scmp.eq.s32.totalorder %s117, 0
      %p669 = por %p667, %p668
      %s671 = sadd.s32 %s670, 1
      %p674 = scmp.eq.s32.totalorder %s111, 1
      %p675 = scmp.ne.s32.totalorder %s670, %s672
      %p676 = scmp.eq.s32.totalorder %s111, 0
      %p677 = por %p675, %p676
      %p678 = scmp.ne.s32.totalorder %s670, %s672
      %p679 = scmp.eq.s32.totalorder %s116, 1
      %p680 = por %p678, %p679
      %p681 = scmp.ne.s32.totalorder %s672, %s673
      %p682 = scmp.eq.s32.totalorder %s116, 0
      %p683 = por %p681, %p682
      %p684 = scmp.ne.s32.totalorder %s672, %s673
      %p685 = scmp.eq.s32.totalorder %s117, 1
      %p686 = por %p684, %p685
      %p688 = scmp.ne.s32.totalorder %s673, %s687
      %p689 = scmp.eq.s32.totalorder %s117, 0
      %p690 = por %p688, %p689
      %s692 = sadd.s32 %s691, 1
      %p695 = scmp.eq.s32.totalorder %s111, 1
      %p696 = scmp.ne.s32.totalorder %s691, %s693
      %p697 = scmp.eq.s32.totalorder %s111, 0
      %p698 = por %p696, %p697
      %p699 = scmp.ne.s32.totalorder %s691, %s693
      %p700 = scmp.eq.s32.totalorder %s116, 1
      %p701 = por %p699, %p700
      %p702 = scmp.ne.s32.totalorder %s693, %s694
      %p703 = scmp.eq.s32.totalorder %s116, 0
      %p704 = por %p702, %p703
      %p705 = scmp.ne.s32.totalorder %s693, %s694
      %p706 = scmp.eq.s32.totalorder %s117, 1
      %p707 = por %p705, %p706
      %p709 = scmp.ne.s32.totalorder %s694, %s708
      %p710 = scmp.eq.s32.totalorder %s117, 0
      %p711 = por %p709, %p710
      %s713 = sadd.s32 %s712, 1
      %p716 = scmp.eq.s32.totalorder %s111, 1
      %p717 = scmp.ne.s32.totalorder %s712, %s714
      %p718 = scmp.eq.s32.totalorder %s111, 0
      %p719 = por %p717, %p718
      %p720 = scmp.ne.s32.totalorder %s712, %s714
      %p721 = scmp.eq.s32.totalorder %s116, 1
      %p722 = por %p720, %p721
      %p723 = scmp.ne.s32.totalorder %s714, %s715
      %p724 = scmp.eq.s32.totalorder %s116, 0
      %p725 = por %p723, %p724
      %p726 = scmp.ne.s32.totalorder %s714, %s715
      %p727 = scmp.eq.s32.totalorder %s117, 1
      %p728 = por %p726, %p727
      %p730 = scmp.ne.s32.totalorder %s715, %s729
      %p731 = scmp.eq.s32.totalorder %s117, 0
      %p732 = por %p730, %p731
      %s734 = sadd.s32 %s733, 1
      %p737 = scmp.eq.s32.totalorder %s111, 1
      %p738 = scmp.ne.s32.totalorder %s733, %s735
      %p739 = scmp.eq.s32.totalorder %s111, 0
      %p740 = por %p738, %p739
      %p741 = scmp.ne.s32.totalorder %s733, %s735
      %p742 = scmp.eq.s32.totalorder %s116, 1
      %p743 = por %p741, %p742
      %p744 = scmp.ne.s32.totalorder %s735, %s736
      %p745 = scmp.eq.s32.totalorder %s116, 0
      %p746 = por %p744, %p745
      %p747 = scmp.ne.s32.totalorder %s735, %s736
      %p748 = scmp.eq.s32.totalorder %s117, 1
      %p749 = por %p747, %p748
      %p751 = scmp.ne.s32.totalorder %s736, %s750
      %p752 = scmp.eq.s32.totalorder %s117, 0
      %p753 = por %p751, %p752
      %s755 = sadd.s32 %s754, 1
      %p758 = scmp.eq.s32.totalorder %s111, 1
      %p759 = scmp.ne.s32.totalorder %s754, %s756
      %p760 = scmp.eq.s32.totalorder %s111, 0
      %p761 = por %p759, %p760
      %p762 = scmp.ne.s32.totalorder %s754, %s756
      %p763 = scmp.eq.s32.totalorder %s116, 1
      %p764 = por %p762, %p763
      %p765 = scmp.ne.s32.totalorder %s756, %s757
      %p766 = scmp.eq.s32.totalorder %s116, 0
      %p767 = por %p765, %p766
      %p768 = scmp.ne.s32.totalorder %s756, %s757
      %p769 = scmp.eq.s32.totalorder %s117, 1
      %p770 = por %p768, %p769
      %p772 = scmp.ne.s32.totalorder %s757, %s771
      %p773 = scmp.eq.s32.totalorder %s117, 0
      %p774 = por %p772, %p773
      %s776 = sadd.s32 %s775, 1
      %p779 = scmp.eq.s32.totalorder %s111, 1
      %p780 = scmp.ne.s32.totalorder %s775, %s777
      %p781 = scmp.eq.s32.totalorder %s111, 0
      %p782 = por %p780, %p781
      %p783 = scmp.ne.s32.totalorder %s775, %s777
      %p784 = scmp.eq.s32.totalorder %s116, 1
      %p785 = por %p783, %p784
      %p786 = scmp.ne.s32.totalorder %s777, %s778
      %p787 = scmp.eq.s32.totalorder %s116, 0
      %p788 = por %p786, %p787
      %p789 = scmp.ne.s32.totalorder %s777, %s778
      %p790 = scmp.eq.s32.totalorder %s117, 1
      %p791 = por %p789, %p790
      %p793 = scmp.ne.s32.totalorder %s778, %s792
      %p794 = scmp.eq.s32.totalorder %s117, 0
      %p795 = por %p793, %p794
      %s797 = sadd.s32 %s796, 1
      %p800 = scmp.eq.s32.totalorder %s111, 1
      %p801 = scmp.ne.s32.totalorder %s796, %s798
      %p802 = scmp.eq.s32.totalorder %s111, 0
      %p803 = por %p801, %p802
      %p804 = scmp.ne.s32.totalorder %s796, %s798
      %p805 = scmp.eq.s32.totalorder %s116, 1
      %p806 = por %p804, %p805
      %p807 = scmp.ne.s32.totalorder %s798, %s799
      %p808 = scmp.eq.s32.totalorder %s116, 0
      %p809 = por %p807, %p808
      %p810 = scmp.ne.s32.totalorder %s798, %s799
      %p811 = scmp.eq.s32.totalorder %s117, 1
      %p812 = por %p810, %p811
      %p814 = scmp.ne.s32.totalorder %s799, %s813
      %p815 = scmp.eq.s32.totalorder %s117, 0
      %p816 = por %p814, %p815
      %s818 = sadd.s32 %s817, 1
      %p821 = scmp.eq.s32.totalorder %s111, 1
      %p822 = scmp.ne.s32.totalorder %s817, %s819
      %p823 = scmp.eq.s32.totalorder %s111, 0
      %p824 = por %p822, %p823
      %p825 = scmp.ne.s32.totalorder %s817, %s819
      %p826 = scmp.eq.s32.totalorder %s116, 1
      %p827 = por %p825, %p826
      %p828 = scmp.ne.s32.totalorder %s819, %s820
      %p829 = scmp.eq.s32.totalorder %s116, 0
      %p830 = por %p828, %p829
      %p831 = scmp.ne.s32.totalorder %s819, %s820
      %p832 = scmp.eq.s32.totalorder %s117, 1
      %p833 = por %p831, %p832
      %p835 = scmp.ne.s32.totalorder %s820, %s834
      %p836 = scmp.eq.s32.totalorder %s117, 0
      %p837 = por %p835, %p836
      %s839 = sadd.s32 %s838, 1
      %p842 = scmp.eq.s32.totalorder %s111, 1
      %p843 = scmp.ne.s32.totalorder %s838, %s840
      %p844 = scmp.eq.s32.totalorder %s111, 0
      %p845 = por %p843, %p844
      %p846 = scmp.ne.s32.totalorder %s838, %s840
      %p847 = scmp.eq.s32.totalorder %s116, 1
      %p848 = por %p846, %p847
      %p849 = scmp.ne.s32.totalorder %s840, %s841
      %p850 = scmp.eq.s32.totalorder %s116, 0
      %p851 = por %p849, %p850
      %p852 = scmp.ne.s32.totalorder %s840, %s841
      %p853 = scmp.eq.s32.totalorder %s117, 1
      %p854 = por %p852, %p853
      %p856 = scmp.ne.s32.totalorder %s841, %s855
      %p857 = scmp.eq.s32.totalorder %s117, 0
      %p858 = por %p856, %p857
      %s860 = sadd.s32 %s859, 1
      %p863 = scmp.eq.s32.totalorder %s111, 1
      %p864 = scmp.ne.s32.totalorder %s859, %s861
      %p865 = scmp.eq.s32.totalorder %s111, 0
      %p866 = por %p864, %p865
      %p867 = scmp.ne.s32.totalorder %s859, %s861
      %p868 = scmp.eq.s32.totalorder %s116, 1
      %p869 = por %p867, %p868
      %p870 = scmp.ne.s32.totalorder %s861, %s862
      %p871 = scmp.eq.s32.totalorder %s116, 0
      %p872 = por %p870, %p871
      %p873 = scmp.ne.s32.totalorder %s861, %s862
      %p874 = scmp.eq.s32.totalorder %s117, 1
      %p875 = por %p873, %p874
      %p877 = scmp.ne.s32.totalorder %s862, %s876
      %p878 = scmp.eq.s32.totalorder %s117, 0
      %p879 = por %p877, %p878
      %s881 = sadd.s32 %s880, 1
      %p884 = scmp.eq.s32.totalorder %s111, 1
      %p885 = scmp.ne.s32.totalorder %s880, %s882
      %p886 = scmp.eq.s32.totalorder %s111, 0
      %p887 = por %p885, %p886
      %p888 = scmp.ne.s32.totalorder %s880, %s882
      %p889 = scmp.eq.s32.totalorder %s116, 1
      %p890 = por %p888, %p889
      %p891 = scmp.ne.s32.totalorder %s882, %s883
      %p892 = scmp.eq.s32.totalorder %s116, 0
      %p893 = por %p891, %p892
      %p894 = scmp.ne.s32.totalorder %s882, %s883
      %p895 = scmp.eq.s32.totalorder %s117, 1
      %p896 = por %p894, %p895
      %p898 = scmp.ne.s32.totalorder %s883, %s897
      %p899 = scmp.eq.s32.totalorder %s117, 0
      %p900 = por %p898, %p899
      %s902 = sadd.s32 %s901, 1
      %p905 = scmp.eq.s32.totalorder %s111, 1
      %p906 = scmp.ne.s32.totalorder %s901, %s903
      %p907 = scmp.eq.s32.totalorder %s111, 0
      %p908 = por %p906, %p907
      %p909 = scmp.ne.s32.totalorder %s901, %s903
      %p910 = scmp.eq.s32.totalorder %s116, 1
      %p911 = por %p909, %p910
      %p912 = scmp.ne.s32.totalorder %s903, %s904
      %p913 = scmp.eq.s32.totalorder %s116, 0
      %p914 = por %p912, %p913
      %p915 = scmp.ne.s32.totalorder %s903, %s904
      %p916 = scmp.eq.s32.totalorder %s117, 1
      %p917 = por %p915, %p916
      %p919 = scmp.ne.s32.totalorder %s904, %s918
      %p920 = scmp.eq.s32.totalorder %s117, 0
      %p921 = por %p919, %p920
      %s923 = sadd.s32 %s922, 1
      %p926 = scmp.eq.s32.totalorder %s111, 1
      %p927 = scmp.ne.s32.totalorder %s922, %s924
      %p928 = scmp.eq.s32.totalorder %s111, 0
      %p929 = por %p927, %p928
      %p930 = scmp.ne.s32.totalorder %s922, %s924
      %p931 = scmp.eq.s32.totalorder %s116, 1
      %p932 = por %p930, %p931
      %p933 = scmp.ne.s32.totalorder %s924, %s925
      %p934 = scmp.eq.s32.totalorder %s116, 0
      %p935 = por %p933, %p934
      %p936 = scmp.ne.s32.totalorder %s924, %s925
      %p937 = scmp.eq.s32.totalorder %s117, 1
      %p938 = por %p936, %p937
      %p940 = scmp.ne.s32.totalorder %s925, %s939
      %p941 = scmp.eq.s32.totalorder %s117, 0
      %p942 = por %p940, %p941
      %s944 = sadd.s32 %s943, 1
      %p947 = scmp.eq.s32.totalorder %s111, 1
      %p948 = scmp.ne.s32.totalorder %s943, %s945
      %p949 = scmp.eq.s32.totalorder %s111, 0
      %p950 = por %p948, %p949
      %p951 = scmp.ne.s32.totalorder %s943, %s945
      %p952 = scmp.eq.s32.totalorder %s116, 1
      %p953 = por %p951, %p952
      %p954 = scmp.ne.s32.totalorder %s945, %s946
      %p955 = scmp.eq.s32.totalorder %s116, 0
      %p956 = por %p954, %p955
      %p957 = scmp.ne.s32.totalorder %s945, %s946
      %p958 = scmp.eq.s32.totalorder %s117, 1
      %p959 = por %p957, %p958
      %p961 = scmp.ne.s32.totalorder %s946, %s960
      %p962 = scmp.eq.s32.totalorder %s117, 0
      %p963 = por %p961, %p962
      %s965 = sadd.s32 %s964, 1
      %p968 = scmp.eq.s32.totalorder %s111, 1
      %p969 = scmp.ne.s32.totalorder %s964, %s966
      %p970 = scmp.eq.s32.totalorder %s111, 0
      %p971 = por %p969, %p970
      %p972 = scmp.ne.s32.totalorder %s964, %s966
      %p973 = scmp.eq.s32.totalorder %s116, 1
      %p974 = por %p972, %p973
      %p975 = scmp.ne.s32.totalorder %s966, %s967
      %p976 = scmp.eq.s32.totalorder %s116, 0
      %p977 = por %p975, %p976
      %p978 = scmp.ne.s32.totalorder %s966, %s967
      %p979 = scmp.eq.s32.totalorder %s117, 1
      %p980 = por %p978, %p979
      %p982 = scmp.ne.s32.totalorder %s967, %s981
      %p983 = scmp.eq.s32.totalorder %s117, 0
      %p984 = por %p982, %p983
      %s986 = sadd.s32 %s985, 1
      %p989 = scmp.eq.s32.totalorder %s111, 1
      %p990 = scmp.ne.s32.totalorder %s985, %s987
      %p991 = scmp.eq.s32.totalorder %s111, 0
      %p992 = por %p990, %p991
      %p993 = scmp.ne.s32.totalorder %s985, %s987
      %p994 = scmp.eq.s32.totalorder %s116, 1
      %p995 = por %p993, %p994
      %p996 = scmp.ne.s32.totalorder %s987, %s988
      %p997 = scmp.eq.s32.totalorder %s116, 0
      %p998 = por %p996, %p997
      %p999 = scmp.ne.s32.totalorder %s987, %s988
      %p1000 = scmp.eq.s32.totalorder %s117, 1
      %p1001 = por %p999, %p1000
      %p1003 = scmp.ne.s32.totalorder %s988, %s1002
      %p1004 = scmp.eq.s32.totalorder %s117, 0
      %p1005 = por %p1003, %p1004
      %s1007 = sadd.s32 %s1006, 1
      %p1010 = scmp.eq.s32.totalorder %s111, 1
      %p1011 = scmp.ne.s32.totalorder %s1006, %s1008
      %p1012 = scmp.eq.s32.totalorder %s111, 0
      %p1013 = por %p1011, %p1012
      %p1014 = scmp.ne.s32.totalorder %s1006, %s1008
      %p1015 = scmp.eq.s32.totalorder %s116, 1
      %p1016 = por %p1014, %p1015
      %p1017 = scmp.ne.s32.totalorder %s1008, %s1009
      %p1018 = scmp.eq.s32.totalorder %s116, 0
      %p1019 = por %p1017, %p1018
      %p1020 = scmp.ne.s32.totalorder %s1008, %s1009
      %p1021 = scmp.eq.s32.totalorder %s117, 1
      %p1022 = por %p1020, %p1021
      %p1024 = scmp.ne.s32.totalorder %s1009, %s1023
      %p1025 = scmp.eq.s32.totalorder %s117, 0
      %p1026 = por %p1024, %p1025
      %s1028 = sadd.s32 %s1027, 1
      %p1031 = scmp.eq.s32.totalorder %s111, 1
      %p1032 = scmp.ne.s32.totalorder %s1027, %s1029
      %p1033 = scmp.eq.s32.totalorder %s111, 0
      %p1034 = por %p1032, %p1033
      %p1035 = scmp.ne.s32.totalorder %s1027, %s1029
      %p1036 = scmp.eq.s32.totalorder %s116, 1
      %p1037 = por %p1035, %p1036
      %p1038 = scmp.ne.s32.totalorder %s1029, %s1030
      %p1039 = scmp.eq.s32.totalorder %s116, 0
      %p1040 = por %p1038, %p1039
      %p1041 = scmp.ne.s32.totalorder %s1029, %s1030
      %p1042 = scmp.eq.s32.totalorder %s117, 1
      %p1043 = por %p1041, %p1042
      %p1045 = scmp.ne.s32.totalorder %s1030, %s1044
      %p1046 = scmp.eq.s32.totalorder %s117, 0
      %p1047 = por %p1045, %p1046
      %s1049 = sadd.s32 %s1048, 1
      %p1052 = scmp.eq.s32.totalorder %s111, 1
      %p1053 = scmp.ne.s32.totalorder %s1048, %s1050
      %p1054 = scmp.eq.s32.totalorder %s111, 0
      %p1055 = por %p1053, %p1054
      %p1056 = scmp.ne.s32.totalorder %s1048, %s1050
      %p1057 = scmp.eq.s32.totalorder %s116, 1
      %p1058 = por %p1056, %p1057
      %p1059 = scmp.ne.s32.totalorder %s1050, %s1051
      %p1060 = scmp.eq.s32.totalorder %s116, 0
      %p1061 = por %p1059, %p1060
      %p1062 = scmp.ne.s32.totalorder %s1050, %s1051
      %p1063 = scmp.eq.s32.totalorder %s117, 1
      %p1064 = por %p1062, %p1063
      %p1066 = scmp.ne.s32.totalorder %s1051, %s1065
      %p1067 = scmp.eq.s32.totalorder %s117, 0
      %p1068 = por %p1066, %p1067
      %s1069 = ssub.s32 %s111, %s118
      %p1070 = scmp.eq.s32.totalorder %s1069, 0
      %s1072 = sadd.s32 %s1071, 1
      %s1073 = scalar_select %p1070, %s1071, %s1072
      %p1076 = pneg %p1070
      %p1077 = scmp.eq.s32.totalorder %s111, 1
      %p1078 = por %p1076, %p1077
      %p1079 = scmp.ne.s32.totalorder %s1071, %s1074
      %p1080 = scmp.eq.s32.totalorder %s111, 0
      %p1081 = por %p1079, %p1080
      %p1082 = scmp.ne.s32.totalorder %s1071, %s1074
      %p1083 = scmp.eq.s32.totalorder %s116, 1
      %p1084 = por %p1082, %p1083
      %p1085 = scmp.ne.s32.totalorder %s1074, %s1075
      %p1086 = scmp.eq.s32.totalorder %s116, 0
      %p1087 = por %p1085, %p1086
      %p1088 = scmp.ne.s32.totalorder %s1074, %s1075
      %p1089 = scmp.eq.s32.totalorder %s117, 1
      %p1090 = por %p1088, %p1089
      %p1092 = scmp.ne.s32.totalorder %s1075, %s1091
      %p1093 = scmp.eq.s32.totalorder %s117, 0
      %p1094 = por %p1092, %p1093
      %p1095 = scmp.le.s32.totalorder 1, %s111
      %p1096 = scmp.lt.s32.totalorder %s111, 3
      %p1097 = pnand %p1095, %p1096
      %p1098 = pneg %p1097
      // Predicated region
      $region9: #{resnet12_forward.1} parent=5 // pred_check
        _
      $region10: #{resnet12_forward.1} parent=5 // pred_check_branch
        %1100 = sbr.rel (%p1097) target = $region12
      $region11: #{resnet12_forward.1} parent=5 // pred_region
        %s1101 = ssub.s32 %s111, 1
        // Predicated region
        $region13: #{resnet12_forward.1} parent=11 // pred_check
          %p1102 = pneg %p158
        $region14: #{resnet12_forward.1} parent=11 // pred_check_branch
          %1104 = sbr.rel (%p1102) target = $region16
        $region15: #{resnet12_forward.1} parent=11 // pred_region
          _
        $region16: #{resnet12_forward.1} parent=11 // pred_fallthru
          _
        // Predicated region
        $region17: #{resnet12_forward.1} parent=11 // pred_check
          %p1105 = pneg %p179
        $region18: #{resnet12_forward.1} parent=11 // pred_check_branch
          %1107 = sbr.rel (%p1105) target = $region20
        $region19: #{resnet12_forward.1} parent=11 // pred_region
          _
        $region20: #{resnet12_forward.1} parent=11 // pred_fallthru
          _
        // Predicated region
        $region21: #{resnet12_forward.1} parent=11 // pred_check
          %p1108 = pneg %p200
        $region22: #{resnet12_forward.1} parent=11 // pred_check_branch
          %1110 = sbr.rel (%p1108) target = $region24
        $region23: #{resnet12_forward.1} parent=11 // pred_region
          _
        $region24: #{resnet12_forward.1} parent=11 // pred_fallthru
          _
        // Predicated region
        $region25: #{resnet12_forward.1} parent=11 // pred_check
          %p1111 = pneg %p221
        $region26: #{resnet12_forward.1} parent=11 // pred_check_branch
          %1113 = sbr.rel (%p1111) target = $region28
        $region27: #{resnet12_forward.1} parent=11 // pred_region
          %s1115 = ssub.s32 16, 16
          %1116 = vsyncadd [#allocation11], %s1115
          %s1118 = sshll.u32 [#allocation10], 4
          %s1119 = int_to_ptr.vmem [resolvable:$true] %s1118
          %1121 = dma.hbm_to_vmem [thread:$0]  %s9, 16, %s1119, [#allocation11]
        $region28: #{resnet12_forward.1} parent=11 // pred_fallthru
          _
        // Predicated region
        $region29: #{resnet12_forward.1} parent=11 // pred_check
          %p1122 = pneg %p242
        $region30: #{resnet12_forward.1} parent=11 // pred_check_branch
          %1124 = sbr.rel (%p1122) target = $region32
        $region31: #{resnet12_forward.1} parent=11 // pred_region
          _
        $region32: #{resnet12_forward.1} parent=11 // pred_fallthru
          _
        // Predicated region
        $region33: #{resnet12_forward.1} parent=11 // pred_check
          %p1125 = pneg %p263
        $region34: #{resnet12_forward.1} parent=11 // pred_check_branch
          %1127 = sbr.rel (%p1125) target = $region36
        $region35: #{resnet12_forward.1} parent=11 // pred_region
          %s1129 = ssub.s32 16, 16
          %1130 = vsyncadd [#allocation14], %s1129
          %s1132 = sshll.u32 [#allocation13], 4
          %s1133 = int_to_ptr.vmem [resolvable:$true] %s1132
          %1135 = dma.hbm_to_vmem [thread:$0]  %s13, 16, %s1133, [#allocation14]
        $region36: #{resnet12_forward.1} parent=11 // pred_fallthru
          _
        // Predicated region
        $region37: #{resnet12_forward.1} parent=11 // pred_check
          %p1136 = pneg %p284
        $region38: #{resnet12_forward.1} parent=11 // pred_check_branch
          %1138 = sbr.rel (%p1136) target = $region40
        $region39: #{resnet12_forward.1} parent=11 // pred_region
          %s1140 = ssub.s32 768, 768
          %1141 = vsyncadd [#allocation14], %s1140
          %s1142 = sshll.u32 [#allocation15], 4
          %s1143 = int_to_ptr.vmem [resolvable:$true] %s1142
          %1148 = dma.hbm_to_vmem [thread:$0]  %s15, 768, %s1143, [#allocation14], 64, 64, 4
        $region40: #{resnet12_forward.1} parent=11 // pred_fallthru
          _
        // Predicated region
        $region41: #{resnet12_forward.1} parent=11 // pred_check
          %p1149 = pneg %p305
        $region42: #{resnet12_forward.1} parent=11 // pred_check_branch
          %1151 = sbr.rel (%p1149) target = $region44
        $region43: #{resnet12_forward.1} parent=11 // pred_region
          %s1153 = ssub.s32 16, 16
          %1154 = vsyncadd [#allocation17], %s1153
          %s1156 = sshll.u32 [#allocation16], 4
          %s1157 = int_to_ptr.vmem [resolvable:$true] %s1156
          %1159 = dma.hbm_to_vmem [thread:$0]  %s17, 16, %s1157, [#allocation17]
        $region44: #{resnet12_forward.1} parent=11 // pred_fallthru
          _
        // Predicated region
        $region45: #{resnet12_forward.1} parent=11 // pred_check
          %p1160 = pneg %p326
        $region46: #{resnet12_forward.1} parent=11 // pred_check_branch
          %1162 = sbr.rel (%p1160) target = $region48
        $region47: #{resnet12_forward.1} parent=11 // pred_region
          _
        $region48: #{resnet12_forward.1} parent=11 // pred_fallthru
          _
        // Predicated region
        $region49: #{resnet12_forward.1} parent=11 // pred_check
          %p1163 = pneg %p347
        $region50: #{resnet12_forward.1} parent=11 // pred_check_branch
          %1165 = sbr.rel (%p1163) target = $region52
        $region51: #{resnet12_forward.1} parent=11 // pred_region
          _
        $region52: #{resnet12_forward.1} parent=11 // pred_fallthru
          _
        // Predicated region
        $region53: #{resnet12_forward.1} parent=11 // pred_check
          %p1166 = pneg %p368
        $region54: #{resnet12_forward.1} parent=11 // pred_check_branch
          %1168 = sbr.rel (%p1166) target = $region56
        $region55: #{resnet12_forward.1} parent=11 // pred_region
          _
        $region56: #{resnet12_forward.1} parent=11 // pred_fallthru
          _
        // Predicated region
        $region57: #{resnet12_forward.1} parent=11 // pred_check
          %p1169 = pneg %p389
        $region58: #{resnet12_forward.1} parent=11 // pred_check_branch
          %1171 = sbr.rel (%p1169) target = $region60
        $region59: #{resnet12_forward.1} parent=11 // pred_region
          _
        $region60: #{resnet12_forward.1} parent=11 // pred_fallthru
          _
        // Predicated region
        $region61: #{resnet12_forward.1} parent=11 // pred_check
          %p1172 = pneg %p410
        $region62: #{resnet12_forward.1} parent=11 // pred_check_branch
          %1174 = sbr.rel (%p1172) target = $region64
        $region63: #{resnet12_forward.1} parent=11 // pred_region
          %s1176 = ssub.s32 16, 16
          %1177 = vsyncadd [#allocation17], %s1176
          %s1179 = sshll.u32 [#allocation18], 4
          %s1180 = int_to_ptr.vmem [resolvable:$true] %s1179
          %1182 = dma.hbm_to_vmem [thread:$0]  %s27, 16, %s1180, [#allocation17]
        $region64: #{resnet12_forward.1} parent=11 // pred_fallthru
          _
        // Predicated region
        $region65: #{resnet12_forward.1} parent=11 // pred_check
          %p1183 = pneg %p431
        $region66: #{resnet12_forward.1} parent=11 // pred_check_branch
          %1185 = sbr.rel (%p1183) target = $region68
        $region67: #{resnet12_forward.1} parent=11 // pred_region
          _
        $region68: #{resnet12_forward.1} parent=11 // pred_fallthru
          _
        // Predicated region
        $region69: #{resnet12_forward.1} parent=11 // pred_check
          %p1186 = pneg %p452
        $region70: #{resnet12_forward.1} parent=11 // pred_check_branch
          %1188 = sbr.rel (%p1186) target = $region72
        $region71: #{resnet12_forward.1} parent=11 // pred_region
          %s1190 = ssub.s32 16, 16
          %1191 = vsyncadd [#allocation20], %s1190
          %s1193 = sshll.u32 [#allocation19], 4
          %s1194 = int_to_ptr.vmem [resolvable:$true] %s1193
          %1196 = dma.hbm_to_vmem [thread:$0]  %s31, 16, %s1194, [#allocation20]
        $region72: #{resnet12_forward.1} parent=11 // pred_fallthru
          _
        // Predicated region
        $region73: #{resnet12_forward.1} parent=11 // pred_check
          %p1197 = pneg %p473
        $region74: #{resnet12_forward.1} parent=11 // pred_check_branch
          %1199 = sbr.rel (%p1197) target = $region76
        $region75: #{resnet12_forward.1} parent=11 // pred_region
          _
        $region76: #{resnet12_forward.1} parent=11 // pred_fallthru
          _
        // Predicated region
        $region77: #{resnet12_forward.1} parent=11 // pred_check
          %p1200 = pneg %p494
        $region78: #{resnet12_forward.1} parent=11 // pred_check_branch
          %1202 = sbr.rel (%p1200) target = $region80
        $region79: #{resnet12_forward.1} parent=11 // pred_region
          %s1204 = ssub.s32 16, 16
          %1205 = vsyncadd [#allocation20], %s1204
          %s1207 = sshll.u32 [#allocation21], 4
          %s1208 = int_to_ptr.vmem [resolvable:$true] %s1207
          %1210 = dma.hbm_to_vmem [thread:$0]  %s35, 16, %s1208, [#allocation20]
        $region80: #{resnet12_forward.1} parent=11 // pred_fallthru
          _
        // Predicated region
        $region81: #{resnet12_forward.1} parent=11 // pred_check
          %p1211 = pneg %p515
        $region82: #{resnet12_forward.1} parent=11 // pred_check_branch
          %1213 = sbr.rel (%p1211) target = $region84
        $region83: #{resnet12_forward.1} parent=11 // pred_region
          %s1215 = ssub.s32 512, 512
          %1216 = vsyncadd [#allocation23], %s1215
          %s1217 = sshll.u32 [#allocation22], 4
          %s1218 = int_to_ptr.vmem [resolvable:$true] %s1217
          %1223 = dma.hbm_to_vmem [thread:$0]  %s37, 512, %s1218, [#allocation23], 64, 64, 4
        $region84: #{resnet12_forward.1} parent=11 // pred_fallthru
          _
        // Predicated region
        $region85: #{resnet12_forward.1} parent=11 // pred_check
          %p1224 = pneg %p536
        $region86: #{resnet12_forward.1} parent=11 // pred_check_branch
          %1226 = sbr.rel (%p1224) target = $region88
        $region87: #{resnet12_forward.1} parent=11 // pred_region
          %s1228 = ssub.s32 16, 16
          %1229 = vsyncadd [#allocation23], %s1228
          %s1231 = sshll.u32 [#allocation24], 4
          %s1232 = int_to_ptr.vmem [resolvable:$true] %s1231
          %1234 = dma.hbm_to_vmem [thread:$0]  %s39, 16, %s1232, [#allocation23]
        $region88: #{resnet12_forward.1} parent=11 // pred_fallthru
          _
        // Predicated region
        $region89: #{resnet12_forward.1} parent=11 // pred_check
          %p1235 = pneg %p557
        $region90: #{resnet12_forward.1} parent=11 // pred_check_branch
          %1237 = sbr.rel (%p1235) target = $region92
        $region91: #{resnet12_forward.1} parent=11 // pred_region
          _
        $region92: #{resnet12_forward.1} parent=11 // pred_fallthru
          _
        // Predicated region
        $region93: #{resnet12_forward.1} parent=11 // pred_check
          %p1238 = pneg %p578
        $region94: #{resnet12_forward.1} parent=11 // pred_check_branch
          %1240 = sbr.rel (%p1238) target = $region96
        $region95: #{resnet12_forward.1} parent=11 // pred_region
          _
        $region96: #{resnet12_forward.1} parent=11 // pred_fallthru
          _
        // Predicated region
        $region97: #{resnet12_forward.1} parent=11 // pred_check
          %p1241 = pneg %p599
        $region98: #{resnet12_forward.1} parent=11 // pred_check_branch
          %1243 = sbr.rel (%p1241) target = $region100
        $region99: #{resnet12_forward.1} parent=11 // pred_region
          _
        $region100: #{resnet12_forward.1} parent=11 // pred_fallthru
          _
        // Predicated region
        $region101: #{resnet12_forward.1} parent=11 // pred_check
          %p1244 = pneg %p620
        $region102: #{resnet12_forward.1} parent=11 // pred_check_branch
          %1246 = sbr.rel (%p1244) target = $region104
        $region103: #{resnet12_forward.1} parent=11 // pred_region
          _
        $region104: #{resnet12_forward.1} parent=11 // pred_fallthru
          _
        // Predicated region
        $region105: #{resnet12_forward.1} parent=11 // pred_check
          %p1247 = pneg %p641
        $region106: #{resnet12_forward.1} parent=11 // pred_check_branch
          %1249 = sbr.rel (%p1247) target = $region108
        $region107: #{resnet12_forward.1} parent=11 // pred_region
          %s1251 = ssub.s32 16, 16
          %1252 = vsyncadd [#allocation26], %s1251
          %s1254 = sshll.u32 [#allocation25], 4
          %s1255 = int_to_ptr.vmem [resolvable:$true] %s1254
          %1257 = dma.hbm_to_vmem [thread:$0]  %s49, 16, %s1255, [#allocation26]
        $region108: #{resnet12_forward.1} parent=11 // pred_fallthru
          _
        // Predicated region
        $region109: #{resnet12_forward.1} parent=11 // pred_check
          %p1258 = pneg %p662
        $region110: #{resnet12_forward.1} parent=11 // pred_check_branch
          %1260 = sbr.rel (%p1258) target = $region112
        $region111: #{resnet12_forward.1} parent=11 // pred_region
          _
        $region112: #{resnet12_forward.1} parent=11 // pred_fallthru
          _
        // Predicated region
        $region113: #{resnet12_forward.1} parent=11 // pred_check
          %p1261 = pneg %p683
        $region114: #{resnet12_forward.1} parent=11 // pred_check_branch
          %1263 = sbr.rel (%p1261) target = $region116
        $region115: #{resnet12_forward.1} parent=11 // pred_region
          %s1265 = ssub.s32 16, 16
          %1266 = vsyncadd [#allocation26], %s1265
          %s1268 = sshll.u32 [#allocation27], 4
          %s1269 = int_to_ptr.vmem [resolvable:$true] %s1268
          %1271 = dma.hbm_to_vmem [thread:$0]  %s53, 16, %s1269, [#allocation26]
        $region116: #{resnet12_forward.1} parent=11 // pred_fallthru
          _
        // Predicated region
        $region117: #{resnet12_forward.1} parent=11 // pred_check
          %p1272 = pneg %p704
        $region118: #{resnet12_forward.1} parent=11 // pred_check_branch
          %1274 = sbr.rel (%p1272) target = $region120
        $region119: #{resnet12_forward.1} parent=11 // pred_region
          _
        $region120: #{resnet12_forward.1} parent=11 // pred_fallthru
          _
        // Predicated region
        $region121: #{resnet12_forward.1} parent=11 // pred_check
          %p1275 = pneg %p725
        $region122: #{resnet12_forward.1} parent=11 // pred_check_branch
          %1277 = sbr.rel (%p1275) target = $region124
        $region123: #{resnet12_forward.1} parent=11 // pred_region
          %s1279 = ssub.s32 16, 16
          %1280 = vsyncadd [#allocation29], %s1279
          %s1282 = sshll.u32 [#allocation28], 4
          %s1283 = int_to_ptr.vmem [resolvable:$true] %s1282
          %1285 = dma.hbm_to_vmem [thread:$0]  %s57, 16, %s1283, [#allocation29]
        $region124: #{resnet12_forward.1} parent=11 // pred_fallthru
          _
        // Predicated region
        $region125: #{resnet12_forward.1} parent=11 // pred_check
          %p1286 = pneg %p746
        $region126: #{resnet12_forward.1} parent=11 // pred_check_branch
          %1288 = sbr.rel (%p1286) target = $region128
        $region127: #{resnet12_forward.1} parent=11 // pred_region
          %s1290 = ssub.s32 512, 512
          %1291 = vsyncadd [#allocation29], %s1290
          %s1292 = sshll.u32 [#allocation30], 4
          %s1293 = int_to_ptr.vmem [resolvable:$true] %s1292
          %1298 = dma.hbm_to_vmem [thread:$0]  %s59, 512, %s1293, [#allocation29], 64, 64, 4
        $region128: #{resnet12_forward.1} parent=11 // pred_fallthru
          _
        // Predicated region
        $region129: #{resnet12_forward.1} parent=11 // pred_check
          %p1299 = pneg %p767
        $region130: #{resnet12_forward.1} parent=11 // pred_check_branch
          %1301 = sbr.rel (%p1299) target = $region132
        $region131: #{resnet12_forward.1} parent=11 // pred_region
          %s1303 = ssub.s32 16, 16
          %1304 = vsyncadd [#allocation32], %s1303
          %s1306 = sshll.u32 [#allocation31], 4
          %s1307 = int_to_ptr.vmem [resolvable:$true] %s1306
          %1309 = dma.hbm_to_vmem [thread:$0]  %s61, 16, %s1307, [#allocation32]
        $region132: #{resnet12_forward.1} parent=11 // pred_fallthru
          _
        // Predicated region
        $region133: #{resnet12_forward.1} parent=11 // pred_check
          %p1310 = pneg %p788
        $region134: #{resnet12_forward.1} parent=11 // pred_check_branch
          %1312 = sbr.rel (%p1310) target = $region136
        $region135: #{resnet12_forward.1} parent=11 // pred_region
          _
        $region136: #{resnet12_forward.1} parent=11 // pred_fallthru
          _
        // Predicated region
        $region137: #{resnet12_forward.1} parent=11 // pred_check
          %p1313 = pneg %p809
        $region138: #{resnet12_forward.1} parent=11 // pred_check_branch
          %1315 = sbr.rel (%p1313) target = $region140
        $region139: #{resnet12_forward.1} parent=11 // pred_region
          _
        $region140: #{resnet12_forward.1} parent=11 // pred_fallthru
          _
        // Predicated region
        $region141: #{resnet12_forward.1} parent=11 // pred_check
          %p1316 = pneg %p830
        $region142: #{resnet12_forward.1} parent=11 // pred_check_branch
          %1318 = sbr.rel (%p1316) target = $region144
        $region143: #{resnet12_forward.1} parent=11 // pred_region
          %s1320 = ssub.s32 128, 128
          %1321 = vsyncadd [#allocation32], %s1320
          %s1323 = sshll.u32 [#allocation33], 4
          %s1324 = int_to_ptr.vmem [resolvable:$true] %s1323
          %1326 = dma.hbm_to_vmem [thread:$0]  %s67, 128, %s1324, [#allocation32]
        $region144: #{resnet12_forward.1} parent=11 // pred_fallthru
          _
        // Predicated region
        $region145: #{resnet12_forward.1} parent=11 // pred_check
          %p1327 = pneg %p851
        $region146: #{resnet12_forward.1} parent=11 // pred_check_branch
          %1329 = sbr.rel (%p1327) target = $region148
        $region147: #{resnet12_forward.1} parent=11 // pred_region
          _
        $region148: #{resnet12_forward.1} parent=11 // pred_fallthru
          _
        // Predicated region
        $region149: #{resnet12_forward.1} parent=11 // pred_check
          %p1330 = pneg %p872
        $region150: #{resnet12_forward.1} parent=11 // pred_check_branch
          %1332 = sbr.rel (%p1330) target = $region152
        $region151: #{resnet12_forward.1} parent=11 // pred_region
          %s1334 = ssub.s32 16, 16
          %1335 = vsyncadd [#allocation35], %s1334
          %s1337 = sshll.u32 [#allocation34], 4
          %s1338 = int_to_ptr.vmem [resolvable:$true] %s1337
          %1340 = dma.hbm_to_vmem [thread:$0]  %s71, 16, %s1338, [#allocation35]
        $region152: #{resnet12_forward.1} parent=11 // pred_fallthru
          _
        // Predicated region
        $region153: #{resnet12_forward.1} parent=11 // pred_check
          %p1341 = pneg %p893
        $region154: #{resnet12_forward.1} parent=11 // pred_check_branch
          %1343 = sbr.rel (%p1341) target = $region156
        $region155: #{resnet12_forward.1} parent=11 // pred_region
          _
        $region156: #{resnet12_forward.1} parent=11 // pred_fallthru
          _
        // Predicated region
        $region157: #{resnet12_forward.1} parent=11 // pred_check
          %p1344 = pneg %p914
        $region158: #{resnet12_forward.1} parent=11 // pred_check_branch
          %1346 = sbr.rel (%p1344) target = $region160
        $region159: #{resnet12_forward.1} parent=11 // pred_region
          %s1348 = ssub.s32 16, 16
          %1349 = vsyncadd [#allocation35], %s1348
          %s1351 = sshll.u32 [#allocation36], 4
          %s1352 = int_to_ptr.vmem [resolvable:$true] %s1351
          %1354 = dma.hbm_to_vmem [thread:$0]  %s75, 16, %s1352, [#allocation35]
        $region160: #{resnet12_forward.1} parent=11 // pred_fallthru
          _
        // Predicated region
        $region161: #{resnet12_forward.1} parent=11 // pred_check
          %p1355 = pneg %p935
        $region162: #{resnet12_forward.1} parent=11 // pred_check_branch
          %1357 = sbr.rel (%p1355) target = $region164
        $region163: #{resnet12_forward.1} parent=11 // pred_region
          _
        $region164: #{resnet12_forward.1} parent=11 // pred_fallthru
          _
        // Predicated region
        $region165: #{resnet12_forward.1} parent=11 // pred_check
          %p1358 = pneg %p956
        $region166: #{resnet12_forward.1} parent=11 // pred_check_branch
          %1360 = sbr.rel (%p1358) target = $region168
        $region167: #{resnet12_forward.1} parent=11 // pred_region
          %s1362 = ssub.s32 16, 16
          %1363 = vsyncadd [#allocation38], %s1362
          %s1365 = sshll.u32 [#allocation37], 4
          %s1366 = int_to_ptr.vmem [resolvable:$true] %s1365
          %1368 = dma.hbm_to_vmem [thread:$0]  %s79, 16, %s1366, [#allocation38]
        $region168: #{resnet12_forward.1} parent=11 // pred_fallthru
          _
        // Predicated region
        $region169: #{resnet12_forward.1} parent=11 // pred_check
          %p1369 = pneg %p977
        $region170: #{resnet12_forward.1} parent=11 // pred_check_branch
          %1371 = sbr.rel (%p1369) target = $region172
        $region171: #{resnet12_forward.1} parent=11 // pred_region
          %s1373 = ssub.s32 512, 512
          %1374 = vsyncadd [#allocation38], %s1373
          %s1375 = sshll.u32 [#allocation39], 4
          %s1376 = int_to_ptr.vmem [resolvable:$true] %s1375
          %1381 = dma.hbm_to_vmem [thread:$0]  %s81, 512, %s1376, [#allocation38], 64, 64, 4
        $region172: #{resnet12_forward.1} parent=11 // pred_fallthru
          _
        // Predicated region
        $region173: #{resnet12_forward.1} parent=11 // pred_check
          %p1382 = pneg %p998
        $region174: #{resnet12_forward.1} parent=11 // pred_check_branch
          %1384 = sbr.rel (%p1382) target = $region176
        $region175: #{resnet12_forward.1} parent=11 // pred_region
          %s1386 = ssub.s32 16, 16
          %1387 = vsyncadd [#allocation41], %s1386
          %s1389 = sshll.u32 [#allocation40], 4
          %s1390 = int_to_ptr.vmem [resolvable:$true] %s1389
          %1392 = dma.hbm_to_vmem [thread:$0]  %s83, 16, %s1390, [#allocation41]
        $region176: #{resnet12_forward.1} parent=11 // pred_fallthru
          _
        // Predicated region
        $region177: #{resnet12_forward.1} parent=11 // pred_check
          %p1393 = pneg %p1019
        $region178: #{resnet12_forward.1} parent=11 // pred_check_branch
          %1395 = sbr.rel (%p1393) target = $region180
        $region179: #{resnet12_forward.1} parent=11 // pred_region
          _
        $region180: #{resnet12_forward.1} parent=11 // pred_fallthru
          _
        // Predicated region
        $region181: #{resnet12_forward.1} parent=11 // pred_check
          %p1396 = pneg %p1040
        $region182: #{resnet12_forward.1} parent=11 // pred_check_branch
          %1398 = sbr.rel (%p1396) target = $region184
        $region183: #{resnet12_forward.1} parent=11 // pred_region
          _
        $region184: #{resnet12_forward.1} parent=11 // pred_fallthru
          _
        // Predicated region
        $region185: #{resnet12_forward.1} parent=11 // pred_check
          %p1399 = pneg %p1061
        $region186: #{resnet12_forward.1} parent=11 // pred_check_branch
          %1401 = sbr.rel (%p1399) target = $region188
        $region187: #{resnet12_forward.1} parent=11 // pred_region
          %s1403 = ssub.s32 32, 32
          %1404 = vsyncadd [#allocation41], %s1403
          %s1406 = sshll.u32 [#allocation42], 4
          %s1407 = int_to_ptr.vmem [resolvable:$true] %s1406
          %1409 = dma.hbm_to_vmem [thread:$0]  %s89, 32, %s1407, [#allocation41]
        $region188: #{resnet12_forward.1} parent=11 // pred_fallthru
          _
      $region12: #{resnet12_forward.1} parent=5 // pred_fallthru
        _
      %p1410 = scmp.lt.s32.totalorder %s111, 2
      // Predicated region
      $region189: #{resnet12_forward.1} parent=5 // pred_check
        %p1411 = pneg %p1410
      $region190: #{resnet12_forward.1} parent=5 // pred_check_branch
        %1413 = sbr.rel (%p1411) target = $region192
      $region191: #{resnet12_forward.1} parent=5 // pred_region
        // Predicated region
        $region193: #{resnet12_forward.1} parent=191 // pred_check
          %p1414 = pneg %p131
        $region194: #{resnet12_forward.1} parent=191 // pred_check_branch
          %1416 = sbr.rel (%p1414) target = $region196
        $region195: #{resnet12_forward.1} parent=191 // pred_region
          %p1417 = scmp.lt.s32.totalorder %s111, 1
          %s1418 = scalar_select %p1417, %s111, 1
          %s1419 = smul.addr %s1418, 5
          %s1420 = smul.addr %s1419, 8
          %s1421 = scalar_lea.vmem %s1, %s1420
        $region196: #{resnet12_forward.1} parent=191 // pred_fallthru
          _
      $region192: #{resnet12_forward.1} parent=5 // pred_fallthru
        _
      %p1422 = scmp.le.s32.totalorder 1, %s111
      %p1423 = scmp.lt.s32.totalorder %s111, 3
      %p1424 = pnand %p1422, %p1423
      %p1425 = pneg %p1424
      // Predicated region
      $region197: #{resnet12_forward.1} parent=5 // pred_check
        _
      $region198: #{resnet12_forward.1} parent=5 // pred_check_branch
        %1427 = sbr.rel (%p1424) target = $region200
      $region199: #{resnet12_forward.1} parent=5 // pred_region
        %s1428 = ssub.s32 %s111, 1
        // Predicated region
        $region201: #{resnet12_forward.1} parent=199 // pred_check
          %p1429 = pneg %p221
        $region202: #{resnet12_forward.1} parent=199 // pred_check_branch
          %1431 = sbr.rel (%p1429) target = $region204
        $region203: #{resnet12_forward.1} parent=199 // pred_region
          %1432 = dma.done [#allocation11], 16
        $region204: #{resnet12_forward.1} parent=199 // pred_fallthru
          _
        // Predicated region
        $region205: #{resnet12_forward.1} parent=199 // pred_check
          %p1433 = pneg %p263
        $region206: #{resnet12_forward.1} parent=199 // pred_check_branch
          %1435 = sbr.rel (%p1433) target = $region208
        $region207: #{resnet12_forward.1} parent=199 // pred_region
          %1436 = dma.done [#allocation14], 16
        $region208: #{resnet12_forward.1} parent=199 // pred_fallthru
          _
        // Predicated region
        $region209: #{resnet12_forward.1} parent=199 // pred_check
          %p1437 = pneg %p284
        $region210: #{resnet12_forward.1} parent=199 // pred_check_branch
          %1439 = sbr.rel (%p1437) target = $region212
        $region211: #{resnet12_forward.1} parent=199 // pred_region
          %1440 = dma.done [#allocation14], 768
        $region212: #{resnet12_forward.1} parent=199 // pred_fallthru
          _
        // Predicated region
        $region213: #{resnet12_forward.1} parent=199 // pred_check
          %p1441 = pneg %p305
        $region214: #{resnet12_forward.1} parent=199 // pred_check_branch
          %1443 = sbr.rel (%p1441) target = $region216
        $region215: #{resnet12_forward.1} parent=199 // pred_region
          %1444 = dma.done [#allocation17], 16
        $region216: #{resnet12_forward.1} parent=199 // pred_fallthru
          _
        // Predicated region
        $region217: #{resnet12_forward.1} parent=199 // pred_check
          %p1445 = pneg %p410
        $region218: #{resnet12_forward.1} parent=199 // pred_check_branch
          %1447 = sbr.rel (%p1445) target = $region220
        $region219: #{resnet12_forward.1} parent=199 // pred_region
          %1448 = dma.done [#allocation17], 16
        $region220: #{resnet12_forward.1} parent=199 // pred_fallthru
          _
        // Predicated region
        $region221: #{resnet12_forward.1} parent=199 // pred_check
          %p1449 = pneg %p452
        $region222: #{resnet12_forward.1} parent=199 // pred_check_branch
          %1451 = sbr.rel (%p1449) target = $region224
        $region223: #{resnet12_forward.1} parent=199 // pred_region
          %1452 = dma.done [#allocation20], 16
        $region224: #{resnet12_forward.1} parent=199 // pred_fallthru
          _
        // Predicated region
        $region225: #{resnet12_forward.1} parent=199 // pred_check
          %p1453 = pneg %p494
        $region226: #{resnet12_forward.1} parent=199 // pred_check_branch
          %1455 = sbr.rel (%p1453) target = $region228
        $region227: #{resnet12_forward.1} parent=199 // pred_region
          %1456 = dma.done [#allocation20], 16
        $region228: #{resnet12_forward.1} parent=199 // pred_fallthru
          _
        // Predicated region
        $region229: #{resnet12_forward.1} parent=199 // pred_check
          %p1457 = pneg %p515
        $region230: #{resnet12_forward.1} parent=199 // pred_check_branch
          %1459 = sbr.rel (%p1457) target = $region232
        $region231: #{resnet12_forward.1} parent=199 // pred_region
          %1460 = dma.done [#allocation23], 512
        $region232: #{resnet12_forward.1} parent=199 // pred_fallthru
          _
        // Predicated region
        $region233: #{resnet12_forward.1} parent=199 // pred_check
          %p1461 = pneg %p536
        $region234: #{resnet12_forward.1} parent=199 // pred_check_branch
          %1463 = sbr.rel (%p1461) target = $region236
        $region235: #{resnet12_forward.1} parent=199 // pred_region
          %1464 = dma.done [#allocation23], 16
        $region236: #{resnet12_forward.1} parent=199 // pred_fallthru
          _
        // Predicated region
        $region237: #{resnet12_forward.1} parent=199 // pred_check
          %p1465 = pneg %p641
        $region238: #{resnet12_forward.1} parent=199 // pred_check_branch
          %1467 = sbr.rel (%p1465) target = $region240
        $region239: #{resnet12_forward.1} parent=199 // pred_region
          %1468 = dma.done [#allocation26], 16
        $region240: #{resnet12_forward.1} parent=199 // pred_fallthru
          _
        // Predicated region
        $region241: #{resnet12_forward.1} parent=199 // pred_check
          %p1469 = pneg %p683
        $region242: #{resnet12_forward.1} parent=199 // pred_check_branch
          %1471 = sbr.rel (%p1469) target = $region244
        $region243: #{resnet12_forward.1} parent=199 // pred_region
          %1472 = dma.done [#allocation26], 16
        $region244: #{resnet12_forward.1} parent=199 // pred_fallthru
          _
        // Predicated region
        $region245: #{resnet12_forward.1} parent=199 // pred_check
          %p1473 = pneg %p725
        $region246: #{resnet12_forward.1} parent=199 // pred_check_branch
          %1475 = sbr.rel (%p1473) target = $region248
        $region247: #{resnet12_forward.1} parent=199 // pred_region
          %1476 = dma.done [#allocation29], 16
        $region248: #{resnet12_forward.1} parent=199 // pred_fallthru
          _
        // Predicated region
        $region249: #{resnet12_forward.1} parent=199 // pred_check
          %p1477 = pneg %p746
        $region250: #{resnet12_forward.1} parent=199 // pred_check_branch
          %1479 = sbr.rel (%p1477) target = $region252
        $region251: #{resnet12_forward.1} parent=199 // pred_region
          %1480 = dma.done [#allocation29], 512
        $region252: #{resnet12_forward.1} parent=199 // pred_fallthru
          _
        // Predicated region
        $region253: #{resnet12_forward.1} parent=199 // pred_check
          %p1481 = pneg %p767
        $region254: #{resnet12_forward.1} parent=199 // pred_check_branch
          %1483 = sbr.rel (%p1481) target = $region256
        $region255: #{resnet12_forward.1} parent=199 // pred_region
          %1484 = dma.done [#allocation32], 16
        $region256: #{resnet12_forward.1} parent=199 // pred_fallthru
          _
        // Predicated region
        $region257: #{resnet12_forward.1} parent=199 // pred_check
          %p1485 = pneg %p830
        $region258: #{resnet12_forward.1} parent=199 // pred_check_branch
          %1487 = sbr.rel (%p1485) target = $region260
        $region259: #{resnet12_forward.1} parent=199 // pred_region
          %1488 = dma.done [#allocation32], 128
        $region260: #{resnet12_forward.1} parent=199 // pred_fallthru
          _
        // Predicated region
        $region261: #{resnet12_forward.1} parent=199 // pred_check
          %p1489 = pneg %p872
        $region262: #{resnet12_forward.1} parent=199 // pred_check_branch
          %1491 = sbr.rel (%p1489) target = $region264
        $region263: #{resnet12_forward.1} parent=199 // pred_region
          %1492 = dma.done [#allocation35], 16
        $region264: #{resnet12_forward.1} parent=199 // pred_fallthru
          _
        // Predicated region
        $region265: #{resnet12_forward.1} parent=199 // pred_check
          %p1493 = pneg %p914
        $region266: #{resnet12_forward.1} parent=199 // pred_check_branch
          %1495 = sbr.rel (%p1493) target = $region268
        $region267: #{resnet12_forward.1} parent=199 // pred_region
          %1496 = dma.done [#allocation35], 16
        $region268: #{resnet12_forward.1} parent=199 // pred_fallthru
          _
        // Predicated region
        $region269: #{resnet12_forward.1} parent=199 // pred_check
          %p1497 = pneg %p956
        $region270: #{resnet12_forward.1} parent=199 // pred_check_branch
          %1499 = sbr.rel (%p1497) target = $region272
        $region271: #{resnet12_forward.1} parent=199 // pred_region
          %1500 = dma.done [#allocation38], 16
        $region272: #{resnet12_forward.1} parent=199 // pred_fallthru
          _
        // Predicated region
        $region273: #{resnet12_forward.1} parent=199 // pred_check
          %p1501 = pneg %p977
        $region274: #{resnet12_forward.1} parent=199 // pred_check_branch
          %1503 = sbr.rel (%p1501) target = $region276
        $region275: #{resnet12_forward.1} parent=199 // pred_region
          %1504 = dma.done [#allocation38], 512
        $region276: #{resnet12_forward.1} parent=199 // pred_fallthru
          _
        // Predicated region
        $region277: #{resnet12_forward.1} parent=199 // pred_check
          %p1505 = pneg %p998
        $region278: #{resnet12_forward.1} parent=199 // pred_check_branch
          %1507 = sbr.rel (%p1505) target = $region280
        $region279: #{resnet12_forward.1} parent=199 // pred_region
          %1508 = dma.done [#allocation41], 16
        $region280: #{resnet12_forward.1} parent=199 // pred_fallthru
          _
        // Predicated region
        $region281: #{resnet12_forward.1} parent=199 // pred_check
          %p1509 = pneg %p1061
        $region282: #{resnet12_forward.1} parent=199 // pred_check_branch
          %1511 = sbr.rel (%p1509) target = $region284
        $region283: #{resnet12_forward.1} parent=199 // pred_region
          %1512 = dma.done [#allocation41], 32
        $region284: #{resnet12_forward.1} parent=199 // pred_fallthru
          _
        %p1513 = scmp.lt.s32.totalorder %s116, 1
        %s1514 = scalar_select %p1513, %s116, 1
        %s1515 = smul.addr %s1514, 5
        %s1516 = smul.addr %s1515, 8
        %s1517 = scalar_lea.vmem %s1, %s1516
        %p1518 = pneg %p137
        %p1519 = pneg %p134
        %p1520 = pneg %p158
        %p1521 = pneg %p155
        %p1522 = pneg %p179
        %p1523 = pneg %p176
        %p1524 = pneg %p200
        %p1525 = pneg %p197
        %p1526 = pneg %p221
        %p1527 = pneg %p218
        %p1528 = pneg %p242
        %p1529 = pneg %p239
        %p1530 = pneg %p263
        %p1531 = pneg %p260
        %p1532 = pneg %p284
        %p1533 = pneg %p281
        %p1534 = pneg %p305
        %p1535 = pneg %p302
        %p1536 = pneg %p326
        %p1537 = pneg %p323
        %p1538 = pneg %p347
        %p1539 = pneg %p344
        %p1540 = pneg %p368
        %p1541 = pneg %p365
        %p1542 = pneg %p389
        %p1543 = pneg %p386
        %p1544 = pneg %p410
        %p1545 = pneg %p407
        %p1546 = pneg %p431
        %p1547 = pneg %p428
        %p1548 = pneg %p452
        %p1549 = pneg %p449
        %p1550 = pneg %p473
        %p1551 = pneg %p470
        %p1552 = pneg %p494
        %p1553 = pneg %p491
        %p1554 = pneg %p515
        %p1555 = pneg %p512
        %p1556 = pneg %p536
        %p1557 = pneg %p533
        %p1558 = pneg %p557
        %p1559 = pneg %p554
        %p1560 = pneg %p578
        %p1561 = pneg %p575
        %p1562 = pneg %p599
        %p1563 = pneg %p596
        %p1564 = pneg %p620
        %p1565 = pneg %p617
        %p1566 = pneg %p641
        %p1567 = pneg %p638
        %p1568 = pneg %p662
        %p1569 = pneg %p659
        %p1570 = pneg %p683
        %p1571 = pneg %p680
        %p1572 = pneg %p704
        %p1573 = pneg %p701
        %p1574 = pneg %p725
        %p1575 = pneg %p722
        %p1576 = pneg %p746
        %p1577 = pneg %p743
        %p1578 = pneg %p767
        %p1579 = pneg %p764
        %p1580 = pneg %p788
        %p1581 = pneg %p785
        %p1582 = pneg %p809
        %p1583 = pneg %p806
        %p1584 = pneg %p830
        %p1585 = pneg %p827
        %p1586 = pneg %p851
        %p1587 = pneg %p848
        %p1588 = pneg %p872
        %p1589 = pneg %p869
        %p1590 = pneg %p893
        %p1591 = pneg %p890
        %p1592 = pneg %p914
        %p1593 = pneg %p911
        %p1594 = pneg %p935
        %p1595 = pneg %p932
        %p1596 = pneg %p956
        %p1597 = pneg %p953
        %p1598 = pneg %p977
        %p1599 = pneg %p974
        %p1600 = pneg %p998
        %p1601 = pneg %p995
        %p1602 = pneg %p1019
        %p1603 = pneg %p1016
        %p1604 = pneg %p1040
        %p1605 = pneg %p1037
        %p1606 = pneg %p1061
        %p1607 = pneg %p1058
        %p1608 = pneg %p1087
        %p1609 = pneg %p1084
        %s1610 = sand.u32 %s1074, 1
        %s1611 = scalar_lea.sflag [#allocation12], %s1610
        %s1612 = sand.u32 %s1074, 1
        %s1613 = scalar_lea.vmem [#allocation43], %s1612
        %p1614 = scmp.lt.s32.totalorder %s116, 1
        %s1615 = scalar_select %p1614, %s116, 1
        %s1616 = smul.addr %s1615, 5
        %s1617 = smul.addr %s1616, 8
        %s1618 = scalar_lea.vmem %s1, %s1617
        %1620 = vst [vmem:[#allocation2] sm:$0xff] 0.0
        %1621 = vst [vmem:[#allocation2 + $0x8] sm:$0xff] 0.0
        %1622 = vst [vmem:[#allocation2 + $0x10] sm:$0xff] 0.0
        %1623 = vst [vmem:[#allocation2 + $0x18] sm:$0xff] 0.0
        %1624 = vst [vmem:[#allocation2 + $0x20] sm:$0x3] 0.0
        %v1625 = vld [vmem:[%s1618] sm:$0xff]
        %v1626 = vld [vmem:[%s1618 + $0x8] sm:$0xff]
        %v1627 = vld [vmem:[%s1618 + $0x10] sm:$0xff]
        %v1628 = vld [vmem:[%s1618 + $0x18] sm:$0xff]
        %v1629 = vpack.c.bf16 %v1626, %v1625
        %v1630 = vpack.c.bf16 %v1628, %v1627
        %v1631 = vld [vmem:[%s3] sm:$0xf]
        %v1632 = vld [vmem:[%s3 + $0x4] sm:$0xf]
        %v1633 = vld [vmem:[%s3 + $0x8] sm:$0xf]
        %v1634 = vld [vmem:[%s3 + $0xc] sm:$0xf]
        %v1635 = vld [vmem:[%s3 + $0x10] sm:$0xf]
        %v1636 = vld [vmem:[%s3 + $0x14] sm:$0xf]
        %v1637 = vld [vmem:[%s3 + $0x18] sm:$0xf]
        %v1638 = vld [vmem:[%s3 + $0x1c] sm:$0xf]
        %v1639 = vld [vmem:[%s3 + $0x20] sm:$0xf]
        %v1640 = vld [vmem:[%s3 + $0x24] sm:$0xf]
        %v1641 = vld [vmem:[%s3 + $0x28] sm:$0xf]
        %v1642 = vld [vmem:[%s3 + $0x2c] sm:$0xf]
        %v1643 = vld [vmem:[%s1618 + $0x1] sm:$0xff]
        %v1644 = vld [vmem:[%s1618 + $0x9] sm:$0xff]
        %v1645 = vld [vmem:[%s1618 + $0x11] sm:$0xff]
        %v1646 = vld [vmem:[%s1618 + $0x19] sm:$0xff]
        %v1647 = vpack.c.bf16 %v1644, %v1643
        %v1648 = vpack.c.bf16 %v1646, %v1645
        %s1649 = scalar_lea.vmem %s3, 48
        %v1650 = vld [vmem:[%s1649] sm:$0xf]
        %v1651 = vld [vmem:[%s1649 + $0x4] sm:$0xf]
        %v1652 = vld [vmem:[%s1649 + $0x8] sm:$0xf]
        %v1653 = vld [vmem:[%s1649 + $0xc] sm:$0xf]
        %v1654 = vld [vmem:[%s1649 + $0x10] sm:$0xf]
        %v1655 = vld [vmem:[%s1649 + $0x14] sm:$0xf]
        %v1656 = vld [vmem:[%s1649 + $0x18] sm:$0xf]
        %v1657 = vld [vmem:[%s1649 + $0x1c] sm:$0xf]
        %v1658 = vld [vmem:[%s1649 + $0x20] sm:$0xf]
        %v1659 = vld [vmem:[%s1649 + $0x24] sm:$0xf]
        %v1660 = vld [vmem:[%s1649 + $0x28] sm:$0xf]
        %v1661 = vld [vmem:[%s1649 + $0x2c] sm:$0xf]
        %v1674 = vunpack.c.l.b16 %v1650
        %v1675 = vunpack.c.l.b16 %v1651
        %v1676 = vunpack.c.l.b16 %v1652
        %v1677 = vunpack.c.l.b16 %v1653
        %v1678 = vunpack.c.l.b16 %v1654
        %v1679 = vunpack.c.l.b16 %v1655
        %v1680 = vunpack.c.l.b16 %v1656
        %v1681 = vunpack.c.l.b16 %v1657
        %v1682 = vunpack.c.l.b16 %v1658
        %v1683 = vunpack.c.l.b16 %v1659
        %v1684 = vunpack.c.l.b16 %v1660
        %v1685 = vunpack.c.l.b16 %v1661
        %v1686 = vpack.c.b16 %v1675, %v1674
        %v1687 = vpack.c.b16 %v1677, %v1676
        %v1688 = vpack.c.b16 %v1679, %v1678
        %v1689 = vpack.c.b16 %v1681, %v1680
        %v1690 = vpack.c.b16 %v1683, %v1682
        %v1691 = vpack.c.b16 %v1685, %v1684
        %vm1698 = vcmask 785408
        %v1700 = vsel %vm1698, %v1647, 0
        %v1703 = vsel %vm1698, %v1648, 0
        %1705 = vmatprep.subr.bf16.mxu0 0
        %1706 = vmatpush1.bf16.msra.mxu0 %v1686
        %1707 = vmatprep.subr.bf16.mxu0 0
        %1708 = vmatpush1.bf16.msra.mxu0 %v1687
        %1709 = vmatprep.subr.bf16.mxu0 0
        %1710 = vmatpush1.bf16.msra.mxu0 %v1688
        %1711 = vmatprep.subr.bf16.mxu0 0
        %1712 = vmatpush1.bf16.msra.mxu0 %v1689
        %1713 = vmatprep.subr.bf16.mxu0 0
        %1714 = vmatpush1.bf16.msra.mxu0 %v1690
        %1715 = vmatprep.subr.bf16.mxu0 0
        %1716 = vmatpush1.bf16.msra.mxu0 %v1691
        %1717 = vmatprep.subr.bf16.mxu0 0
        %1718 = vmatpush1.bf16.msra.mxu0 0
        %1719 = vmatprep.subr.bf16.mxu0 0
        %1720 = vmatpush1.bf16.msra.mxu0 0
        %1721 = vmatprep.subr.bf16.mxu0 0
        %1722 = vmatpush1.bf16.msra.mxu0 0
        %1723 = vmatprep.subr.bf16.mxu0 0
        %1724 = vmatpush1.bf16.msra.mxu0 0
        %1725 = vmatprep.subr.bf16.mxu0 0
        %1726 = vmatpush1.bf16.msra.mxu0 0
        %1727 = vmatprep.subr.bf16.mxu0 0
        %1728 = vmatpush1.bf16.msra.mxu0 0
        %1729 = vmatprep.subr.bf16.mxu0 0
        %1730 = vmatpush1.bf16.msra.mxu0 0
        %1731 = vmatprep.subr.bf16.mxu0 0
        %1732 = vmatpush1.bf16.msra.mxu0 0
        %1733 = vmatprep.subr.bf16.mxu0 0
        %1734 = vmatpush1.bf16.msra.mxu0 0
        %1735 = vmatprep.subr.bf16.mxu0 0
        %1736 = vmatpush1.bf16.msra.mxu0 0
        %1737 = vmatprep.mubr.bf16.mxu0 0
        %1738 = vmatmul.mubr.bf16.gmra.mrb[0].mxu0 %v1700
        %v1739 = vpop.f32.mrb[0].mxu0
        %v1740 = vadd.f32 0.0, %v1739
        %v1741 = vpop.f32.mrb[0].mxu0
        %v1742 = vpop.f32.mrb[0].mxu0
        %v1743 = vadd.f32 0.0, %v1742
        %v1744 = vpop.f32.mrb[0].mxu0
        %1745 = vmatprep.mubr.bf16.mxu0 0
        %1746 = vmatmul.mubr.bf16.gmra.mrb[0].mxu0 %v1703
        %v1747 = vpop.f32.mrb[0].mxu0
        %v1748 = vadd.f32 0.0, %v1747
        %v1749 = vpop.f32.mrb[0].mxu0
        %v1750 = vpop.f32.mrb[0].mxu0
        %v1751 = vadd.f32 0.0, %v1750
        %v1752 = vpop.f32.mrb[0].mxu0
        %1753 = vdwg.mxu0
        %v1766 = vunpack.c.l.b16 %v1631
        %v1767 = vunpack.c.l.b16 %v1632
        %v1768 = vunpack.c.l.b16 %v1633
        %v1769 = vunpack.c.l.b16 %v1634
        %v1770 = vunpack.c.l.b16 %v1635
        %v1771 = vunpack.c.l.b16 %v1636
        %v1772 = vunpack.c.l.b16 %v1637
        %v1773 = vunpack.c.l.b16 %v1638
        %v1774 = vunpack.c.l.b16 %v1639
        %v1775 = vunpack.c.l.b16 %v1640
        %v1776 = vunpack.c.l.b16 %v1641
        %v1777 = vunpack.c.l.b16 %v1642
        %v1778 = vpack.c.b16 %v1767, %v1766
        %v1779 = vpack.c.b16 %v1769, %v1768
        %v1780 = vpack.c.b16 %v1771, %v1770
        %v1781 = vpack.c.b16 %v1773, %v1772
        %v1782 = vpack.c.b16 %v1775, %v1774
        %v1783 = vpack.c.b16 %v1777, %v1776
        %v1791 = vsel %vm1698, %v1629, 0
        %v1794 = vsel %vm1698, %v1630, 0
        %1796 = vmatprep.subr.bf16.mxu0 0
        %1797 = vmatpush1.bf16.msra.mxu0 %v1778
        %1798 = vmatprep.subr.bf16.mxu0 0
        %1799 = vmatpush1.bf16.msra.mxu0 %v1779
        %1800 = vmatprep.subr.bf16.mxu0 0
        %1801 = vmatpush1.bf16.msra.mxu0 %v1780
        %1802 = vmatprep.subr.bf16.mxu0 0
        %1803 = vmatpush1.bf16.msra.mxu0 %v1781
        %1804 = vmatprep.subr.bf16.mxu0 0
        %1805 = vmatpush1.bf16.msra.mxu0 %v1782
        %1806 = vmatprep.subr.bf16.mxu0 0
        %1807 = vmatpush1.bf16.msra.mxu0 %v1783
        %1808 = vmatprep.subr.bf16.mxu0 0
        %1809 = vmatpush1.bf16.msra.mxu0 0
        %1810 = vmatprep.subr.bf16.mxu0 0
        %1811 = vmatpush1.bf16.msra.mxu0 0
        %1812 = vmatprep.subr.bf16.mxu0 0
        %1813 = vmatpush1.bf16.msra.mxu0 0
        %1814 = vmatprep.subr.bf16.mxu0 0
        %1815 = vmatpush1.bf16.msra.mxu0 0
        %1816 = vmatprep.subr.bf16.mxu0 0
        %1817 = vmatpush1.bf16.msra.mxu0 0
        %1818 = vmatprep.subr.bf16.mxu0 0
        %1819 = vmatpush1.bf16.msra.mxu0 0
        %1820 = vmatprep.subr.bf16.mxu0 0
        %1821 = vmatpush1.bf16.msra.mxu0 0
        %1822 = vmatprep.subr.bf16.mxu0 0
        %1823 = vmatpush1.bf16.msra.mxu0 0
        %1824 = vmatprep.subr.bf16.mxu0 0
        %1825 = vmatpush1.bf16.msra.mxu0 0
        %1826 = vmatprep.subr.bf16.mxu0 0
        %1827 = vmatpush1.bf16.msra.mxu0 0
        %1828 = vmatprep.mubr.bf16.mxu0 0
        %1829 = vmatmul.mubr.bf16.gmra.mrb[0].mxu0 %v1791
        %v1830 = vpop.f32.mrb[0].mxu0
        %v1831 = vadd.f32 %v1740, %v1830
        %v1832 = vpop.f32.mrb[0].mxu0
        %v1833 = vpop.f32.mrb[0].mxu0
        %v1834 = vadd.f32 %v1743, %v1833
        %v1835 = vpop.f32.mrb[0].mxu0
        %1836 = vmatprep.mubr.bf16.mxu0 0
        %1837 = vmatmul.mubr.bf16.gmra.mrb[0].mxu0 %v1794
        %v1838 = vpop.f32.mrb[0].mxu0
        %v1839 = vadd.f32 %v1748, %v1838
        %v1840 = vpop.f32.mrb[0].mxu0
        %v1841 = vpop.f32.mrb[0].mxu0
        %v1842 = vadd.f32 %v1751, %v1841
        %v1843 = vpop.f32.mrb[0].mxu0
        %1844 = vdwg.mxu0
        %v1845 = vld [vmem:[%s1618 + $0x2] sm:$0xff]
        %v1846 = vld [vmem:[%s1618 + $0xa] sm:$0xff]
        %v1847 = vld [vmem:[%s1618 + $0x12] sm:$0xff]
        %v1848 = vld [vmem:[%s1618 + $0x1a] sm:$0xff]
        %v1849 = vpack.c.bf16 %v1846, %v1845
        %v1850 = vpack.c.bf16 %v1848, %v1847
        %s1851 = scalar_lea.vmem %s3, 96
        %v1852 = vld [vmem:[%s1851] sm:$0xf]
        %v1853 = vld [vmem:[%s1851 + $0x4] sm:$0xf]
        %v1854 = vld [vmem:[%s1851 + $0x8] sm:$0xf]
        %v1855 = vld [vmem:[%s1851 + $0xc] sm:$0xf]
        %v1856 = vld [vmem:[%s1851 + $0x10] sm:$0xf]
        %v1857 = vld [vmem:[%s1851 + $0x14] sm:$0xf]
        %v1858 = vld [vmem:[%s1851 + $0x18] sm:$0xf]
        %v1859 = vld [vmem:[%s1851 + $0x1c] sm:$0xf]
        %v1860 = vld [vmem:[%s1851 + $0x20] sm:$0xf]
        %v1861 = vld [vmem:[%s1851 + $0x24] sm:$0xf]
        %v1862 = vld [vmem:[%s1851 + $0x28] sm:$0xf]
        %v1863 = vld [vmem:[%s1851 + $0x2c] sm:$0xf]
        %v1876 = vunpack.c.l.b16 %v1852
        %v1877 = vunpack.c.l.b16 %v1853
        %v1878 = vunpack.c.l.b16 %v1854
        %v1879 = vunpack.c.l.b16 %v1855
        %v1880 = vunpack.c.l.b16 %v1856
        %v1881 = vunpack.c.l.b16 %v1857
        %v1882 = vunpack.c.l.b16 %v1858
        %v1883 = vunpack.c.l.b16 %v1859
        %v1884 = vunpack.c.l.b16 %v1860
        %v1885 = vunpack.c.l.b16 %v1861
        %v1886 = vunpack.c.l.b16 %v1862
        %v1887 = vunpack.c.l.b16 %v1863
        %v1888 = vpack.c.b16 %v1877, %v1876
        %v1889 = vpack.c.b16 %v1879, %v1878
        %v1890 = vpack.c.b16 %v1881, %v1880
        %v1891 = vpack.c.b16 %v1883, %v1882
        %v1892 = vpack.c.b16 %v1885, %v1884
        %v1893 = vpack.c.b16 %v1887, %v1886
        %v1901 = vsel %vm1698, %v1849, 0
        %v1904 = vsel %vm1698, %v1850, 0
        %1906 = vmatprep.subr.bf16.mxu0 0
        %1907 = vmatpush1.bf16.msra.mxu0 %v1888
        %1908 = vmatprep.subr.bf16.mxu0 0
        %1909 = vmatpush1.bf16.msra.mxu0 %v1889
        %1910 = vmatprep.subr.bf16.mxu0 0
        %1911 = vmatpush1.bf16.msra.mxu0 %v1890
        %1912 = vmatprep.subr.bf16.mxu0 0
        %1913 = vmatpush1.bf16.msra.mxu0 %v1891
        %1914 = vmatprep.subr.bf16.mxu0 0
        %1915 = vmatpush1.bf16.msra.mxu0 %v1892
        %1916 = vmatprep.subr.bf16.mxu0 0
        %1917 = vmatpush1.bf16.msra.mxu0 %v1893
        %1918 = vmatprep.subr.bf16.mxu0 0
        %1919 = vmatpush1.bf16.msra.mxu0 0
        %1920 = vmatprep.subr.bf16.mxu0 0
        %1921 = vmatpush1.bf16.msra.mxu0 0
        %1922 = vmatprep.subr.bf16.mxu0 0
        %1923 = vmatpush1.bf16.msra.mxu0 0
        %1924 = vmatprep.subr.bf16.mxu0 0
        %1925 = vmatpush1.bf16.msra.mxu0 0
        %1926 = vmatprep.subr.bf16.mxu0 0
        %1927 = vmatpush1.bf16.msra.mxu0 0
        %1928 = vmatprep.subr.bf16.mxu0 0
        %1929 = vmatpush1.bf16.msra.mxu0 0
        %1930 = vmatprep.subr.bf16.mxu0 0
        %1931 = vmatpush1.bf16.msra.mxu0 0
        %1932 = vmatprep.subr.bf16.mxu0 0
        %1933 = vmatpush1.bf16.msra.mxu0 0
        %1934 = vmatprep.subr.bf16.mxu0 0
        %1935 = vmatpush1.bf16.msra.mxu0 0
        %1936 = vmatprep.subr.bf16.mxu0 0
        %1937 = vmatpush1.bf16.msra.mxu0 0
        %1938 = vmatprep.mubr.bf16.mxu0 0
        %1939 = vmatmul.mubr.bf16.gmra.mrb[0].mxu0 %v1901
        %v1940 = vpop.f32.mrb[0].mxu0
        %v1941 = vadd.f32 0.0, %v1940
        %v1942 = vpop.f32.mrb[0].mxu0
        %v1943 = vpop.f32.mrb[0].mxu0
        %v1944 = vadd.f32 0.0, %v1943
        %v1945 = vpop.f32.mrb[0].mxu0
        %1946 = vmatprep.mubr.bf16.mxu0 0
        %1947 = vmatmul.mubr.bf16.gmra.mrb[0].mxu0 %v1904
        %v1948 = vpop.f32.mrb[0].mxu0
        %v1949 = vadd.f32 0.0, %v1948
        %v1950 = vpop.f32.mrb[0].mxu0
        %v1951 = vpop.f32.mrb[0].mxu0
        %v1952 = vadd.f32 0.0, %v1951
        %v1953 = vpop.f32.mrb[0].mxu0
        %1954 = vdwg.mxu0
        %v1955 = vadd.f32 %v1831, %v1941
        %v1956 = vadd.f32 %v1834, %v1944
        %v1957 = vadd.f32 %v1839, %v1949
        %v1958 = vadd.f32 %v1842, %v1952
        %v1959 = vld [vmem:[%s5] sm:$0x1]
        %v1961 = vlaneseq
        %v1962 = vshrl.u32 %v1961, 7
        %v1963 = vsub.s32 0, %v1962
        %v1964 = vrot.slane %v1959, %v1963
        %v1966 = vadd.f32 %v1955, %v1964
        %v1967 = vadd.f32 %v1956, %v1964
        %v1968 = vadd.f32 %v1957, %v1964
        %v1969 = vadd.f32 %v1958, %v1964
        %vm1970 = vcmp.gt.f32.partialorder %v1966, 0.0
        %vm1971 = vcmp.gt.f32.partialorder %v1967, 0.0
        %vm1972 = vcmp.gt.f32.partialorder %v1968, 0.0
        %vm1973 = vcmp.gt.f32.partialorder %v1969, 0.0
        %v1974 = vmul.f32 %v1966, 0.1
        %v1975 = vmul.f32 %v1967, 0.1
        %v1976 = vmul.f32 %v1968, 0.1
        %v1977 = vmul.f32 %v1969, 0.1
        %v1978 = vsel %vm1970, %v1966, %v1974
        %v1979 = vsel %vm1971, %v1967, %v1975
        %v1980 = vsel %vm1972, %v1968, %v1976
        %v1981 = vsel %vm1973, %v1969, %v1977
        %1982 = vst [vmem:[#allocation2 + $0x1] sm:$0xff] %v1978
        %1983 = vst [vmem:[#allocation2 + $0x9] sm:$0xff] %v1979
        %1984 = vst [vmem:[#allocation2 + $0x11] sm:$0xff] %v1980
        %1985 = vst [vmem:[#allocation2 + $0x19] sm:$0xff] %v1981
        %v1986 = vld [vmem:[#allocation2] sm:$0xff]
        %v1987 = vld [vmem:[#allocation2 + $0x8] sm:$0xff]
        %v1988 = vld [vmem:[#allocation2 + $0x10] sm:$0xff]
        %v1989 = vld [vmem:[#allocation2 + $0x18] sm:$0xff]
        %v1990 = vpack.c.bf16 %v1987, %v1986
        %v1991 = vpack.c.bf16 %v1989, %v1988
        %v1992 = vld [vmem:[%s7] sm:$0xf]
        %v1993 = vld [vmem:[%s7 + $0x4] sm:$0xf]
        %v1994 = vld [vmem:[%s7 + $0x8] sm:$0xf]
        %v1995 = vld [vmem:[%s7 + $0xc] sm:$0xf]
        %v1996 = vld [vmem:[%s7 + $0x10] sm:$0xf]
        %v1997 = vld [vmem:[%s7 + $0x14] sm:$0xf]
        %v1998 = vld [vmem:[%s7 + $0x18] sm:$0xf]
        %v1999 = vld [vmem:[%s7 + $0x1c] sm:$0xf]
        %v2000 = vld [vmem:[%s7 + $0x20] sm:$0xf]
        %v2001 = vld [vmem:[%s7 + $0x24] sm:$0xf]
        %v2002 = vld [vmem:[%s7 + $0x28] sm:$0xf]
        %v2003 = vld [vmem:[%s7 + $0x2c] sm:$0xf]
        %v2004 = vld [vmem:[%s7 + $0x30] sm:$0xf]
        %v2005 = vld [vmem:[%s7 + $0x34] sm:$0xf]
        %v2006 = vld [vmem:[%s7 + $0x38] sm:$0xf]
        %v2007 = vld [vmem:[%s7 + $0x3c] sm:$0xf]
        %v2008 = vld [vmem:[#allocation2 + $0x1] sm:$0xff]
        %v2009 = vld [vmem:[#allocation2 + $0x9] sm:$0xff]
        %v2010 = vld [vmem:[#allocation2 + $0x11] sm:$0xff]
        %v2011 = vld [vmem:[#allocation2 + $0x19] sm:$0xff]
        %v2012 = vpack.c.bf16 %v2009, %v2008
        %v2013 = vpack.c.bf16 %v2011, %v2010
        %s2014 = scalar_lea.vmem %s7, 64
        %v2015 = vld [vmem:[%s2014] sm:$0xf]
        %v2016 = vld [vmem:[%s2014 + $0x4] sm:$0xf]
        %v2017 = vld [vmem:[%s2014 + $0x8] sm:$0xf]
        %v2018 = vld [vmem:[%s2014 + $0xc] sm:$0xf]
        %v2019 = vld [vmem:[%s2014 + $0x10] sm:$0xf]
        %v2020 = vld [vmem:[%s2014 + $0x14] sm:$0xf]
        %v2021 = vld [vmem:[%s2014 + $0x18] sm:$0xf]
        %v2022 = vld [vmem:[%s2014 + $0x1c] sm:$0xf]
        %v2023 = vld [vmem:[%s2014 + $0x20] sm:$0xf]
        %v2024 = vld [vmem:[%s2014 + $0x24] sm:$0xf]
        %v2025 = vld [vmem:[%s2014 + $0x28] sm:$0xf]
        %v2026 = vld [vmem:[%s2014 + $0x2c] sm:$0xf]
        %v2027 = vld [vmem:[%s2014 + $0x30] sm:$0xf]
        %v2028 = vld [vmem:[%s2014 + $0x34] sm:$0xf]
        %v2029 = vld [vmem:[%s2014 + $0x38] sm:$0xf]
        %v2030 = vld [vmem:[%s2014 + $0x3c] sm:$0xf]
        %v2047 = vunpack.c.l.b16 %v2015
        %v2048 = vunpack.c.l.b16 %v2016
        %v2049 = vunpack.c.l.b16 %v2017
        %v2050 = vunpack.c.l.b16 %v2018
        %v2051 = vunpack.c.l.b16 %v2019
        %v2052 = vunpack.c.l.b16 %v2020
        %v2053 = vunpack.c.l.b16 %v2021
        %v2054 = vunpack.c.l.b16 %v2022
        %v2055 = vunpack.c.l.b16 %v2023
        %v2056 = vunpack.c.l.b16 %v2024
        %v2057 = vunpack.c.l.b16 %v2025
        %v2058 = vunpack.c.l.b16 %v2026
        %v2059 = vunpack.c.l.b16 %v2027
        %v2060 = vunpack.c.l.b16 %v2028
        %v2061 = vunpack.c.l.b16 %v2029
        %v2062 = vunpack.c.l.b16 %v2030
        %v2063 = vpack.c.b16 %v2048, %v2047
        %v2064 = vpack.c.b16 %v2050, %v2049
        %v2065 = vpack.c.b16 %v2052, %v2051
        %v2066 = vpack.c.b16 %v2054, %v2053
        %v2067 = vpack.c.b16 %v2056, %v2055
        %v2068 = vpack.c.b16 %v2058, %v2057
        %v2069 = vpack.c.b16 %v2060, %v2059
        %v2070 = vpack.c.b16 %v2062, %v2061
        %2079 = vmatprep.subr.bf16.mxu0 0
        %2080 = vmatpush1.bf16.msra.mxu0 %v2063
        %2081 = vmatprep.subr.bf16.mxu0 0
        %2082 = vmatpush1.bf16.msra.mxu0 %v2064
        %2083 = vmatprep.subr.bf16.mxu0 0
        %2084 = vmatpush1.bf16.msra.mxu0 %v2065
        %2085 = vmatprep.subr.bf16.mxu0 0
        %2086 = vmatpush1.bf16.msra.mxu0 %v2066
        %2087 = vmatprep.subr.bf16.mxu0 0
        %2088 = vmatpush1.bf16.msra.mxu0 %v2067
        %2089 = vmatprep.subr.bf16.mxu0 0
        %2090 = vmatpush1.bf16.msra.mxu0 %v2068
        %2091 = vmatprep.subr.bf16.mxu0 0
        %2092 = vmatpush1.bf16.msra.mxu0 %v2069
        %2093 = vmatprep.subr.bf16.mxu0 0
        %2094 = vmatpush1.bf16.msra.mxu0 %v2070
        %2095 = vmatprep.subr.bf16.mxu0 0
        %2096 = vmatpush1.bf16.msra.mxu0 0
        %2097 = vmatprep.subr.bf16.mxu0 0
        %2098 = vmatpush1.bf16.msra.mxu0 0
        %2099 = vmatprep.subr.bf16.mxu0 0
        %2100 = vmatpush1.bf16.msra.mxu0 0
        %2101 = vmatprep.subr.bf16.mxu0 0
        %2102 = vmatpush1.bf16.msra.mxu0 0
        %2103 = vmatprep.subr.bf16.mxu0 0
        %2104 = vmatpush1.bf16.msra.mxu0 0
        %2105 = vmatprep.subr.bf16.mxu0 0
        %2106 = vmatpush1.bf16.msra.mxu0 0
        %2107 = vmatprep.subr.bf16.mxu0 0
        %2108 = vmatpush1.bf16.msra.mxu0 0
        %2109 = vmatprep.subr.bf16.mxu0 0
        %2110 = vmatpush1.bf16.msra.mxu0 0
        %2111 = vmatprep.mubr.bf16.mxu0 0
        %2112 = vmatmul.mubr.bf16.gmra.mrb[0].mxu0 %v2012
        %v2113 = vpop.f32.mrb[0].mxu0
        %v2114 = vadd.f32 0.0, %v2113
        %v2115 = vpop.f32.mrb[0].mxu0
        %v2116 = vpop.f32.mrb[0].mxu0
        %v2117 = vadd.f32 0.0, %v2116
        %v2118 = vpop.f32.mrb[0].mxu0
        %2119 = vmatprep.mubr.bf16.mxu0 0
        %2120 = vmatmul.mubr.bf16.gmra.mrb[0].mxu0 %v2013
        %v2121 = vpop.f32.mrb[0].mxu0
        %v2122 = vadd.f32 0.0, %v2121
        %v2123 = vpop.f32.mrb[0].mxu0
        %v2124 = vpop.f32.mrb[0].mxu0
        %v2125 = vadd.f32 0.0, %v2124
        %v2126 = vpop.f32.mrb[0].mxu0
        %2127 = vdwg.mxu0
        %v2144 = vunpack.c.l.b16 %v1992
        %v2145 = vunpack.c.l.b16 %v1993
        %v2146 = vunpack.c.l.b16 %v1994
        %v2147 = vunpack.c.l.b16 %v1995
        %v2148 = vunpack.c.l.b16 %v1996
        %v2149 = vunpack.c.l.b16 %v1997
        %v2150 = vunpack.c.l.b16 %v1998
        %v2151 = vunpack.c.l.b16 %v1999
        %v2152 = vunpack.c.l.b16 %v2000
        %v2153 = vunpack.c.l.b16 %v2001
        %v2154 = vunpack.c.l.b16 %v2002
        %v2155 = vunpack.c.l.b16 %v2003
        %v2156 = vunpack.c.l.b16 %v2004
        %v2157 = vunpack.c.l.b16 %v2005
        %v2158 = vunpack.c.l.b16 %v2006
        %v2159 = vunpack.c.l.b16 %v2007
        %v2160 = vpack.c.b16 %v2145, %v2144
        %v2161 = vpack.c.b16 %v2147, %v2146
        %v2162 = vpack.c.b16 %v2149, %v2148
        %v2163 = vpack.c.b16 %v2151, %v2150
        %v2164 = vpack.c.b16 %v2153, %v2152
        %v2165 = vpack.c.b16 %v2155, %v2154
        %v2166 = vpack.c.b16 %v2157, %v2156
        %v2167 = vpack.c.b16 %v2159, %v2158
        %2176 = vmatprep.subr.bf16.mxu0 0
        %2177 = vmatpush1.bf16.msra.mxu0 %v2160
        %2178 = vmatprep.subr.bf16.mxu0 0
        %2179 = vmatpush1.bf16.msra.mxu0 %v2161
        %2180 = vmatprep.subr.bf16.mxu0 0
        %2181 = vmatpush1.bf16.msra.mxu0 %v2162
        %2182 = vmatprep.subr.bf16.mxu0 0
        %2183 = vmatpush1.bf16.msra.mxu0 %v2163
        %2184 = vmatprep.subr.bf16.mxu0 0
        %2185 = vmatpush1.bf16.msra.mxu0 %v2164
        %2186 = vmatprep.subr.bf16.mxu0 0
        %2187 = vmatpush1.bf16.msra.mxu0 %v2165
        %2188 = vmatprep.subr.bf16.mxu0 0
        %2189 = vmatpush1.bf16.msra.mxu0 %v2166
        %2190 = vmatprep.subr.bf16.mxu0 0
        %2191 = vmatpush1.bf16.msra.mxu0 %v2167
        %2192 = vmatprep.subr.bf16.mxu0 0
        %2193 = vmatpush1.bf16.msra.mxu0 0
        %2194 = vmatprep.subr.bf16.mxu0 0
        %2195 = vmatpush1.bf16.msra.mxu0 0
        %2196 = vmatprep.subr.bf16.mxu0 0
        %2197 = vmatpush1.bf16.msra.mxu0 0
        %2198 = vmatprep.subr.bf16.mxu0 0
        %2199 = vmatpush1.bf16.msra.mxu0 0
        %2200 = vmatprep.subr.bf16.mxu0 0
        %2201 = vmatpush1.bf16.msra.mxu0 0
        %2202 = vmatprep.subr.bf16.mxu0 0
        %2203 = vmatpush1.bf16.msra.mxu0 0
        %2204 = vmatprep.subr.bf16.mxu0 0
        %2205 = vmatpush1.bf16.msra.mxu0 0
        %2206 = vmatprep.subr.bf16.mxu0 0
        %2207 = vmatpush1.bf16.msra.mxu0 0
        %2208 = vmatprep.mubr.bf16.mxu0 0
        %2209 = vmatmul.mubr.bf16.gmra.mrb[0].mxu0 %v1990
        %v2210 = vpop.f32.mrb[0].mxu0
        %v2211 = vadd.f32 %v2114, %v2210
        %v2212 = vpop.f32.mrb[0].mxu0
        %v2213 = vpop.f32.mrb[0].mxu0
        %v2214 = vadd.f32 %v2117, %v2213
        %v2215 = vpop.f32.mrb[0].mxu0
        %2216 = vmatprep.mubr.bf16.mxu0 0
        %2217 = vmatmul.mubr.bf16.gmra.mrb[0].mxu0 %v1991
        %v2218 = vpop.f32.mrb[0].mxu0
        %v2219 = vadd.f32 %v2122, %v2218
        %v2220 = vpop.f32.mrb[0].mxu0
        %v2221 = vpop.f32.mrb[0].mxu0
        %v2222 = vadd.f32 %v2125, %v2221
        %v2223 = vpop.f32.mrb[0].mxu0
        %2224 = vdwg.mxu0
        %v2225 = vld [vmem:[#allocation2 + $0x2] sm:$0xff]
        %v2226 = vld [vmem:[#allocation2 + $0xa] sm:$0xff]
        %v2227 = vld [vmem:[#allocation2 + $0x12] sm:$0xff]
        %v2228 = vld [vmem:[#allocation2 + $0x1a] sm:$0xff]
        %v2229 = vpack.c.bf16 %v2226, %v2225
        %v2230 = vpack.c.bf16 %v2228, %v2227
        %s2231 = scalar_lea.vmem %s7, 128
        %v2232 = vld [vmem:[%s2231] sm:$0xf]
        %v2233 = vld [vmem:[%s2231 + $0x4] sm:$0xf]
        %v2234 = vld [vmem:[%s2231 + $0x8] sm:$0xf]
        %v2235 = vld [vmem:[%s2231 + $0xc] sm:$0xf]
        %v2236 = vld [vmem:[%s2231 + $0x10] sm:$0xf]
        %v2237 = vld [vmem:[%s2231 + $0x14] sm:$0xf]
        %v2238 = vld [vmem:[%s2231 + $0x18] sm:$0xf]
        %v2239 = vld [vmem:[%s2231 + $0x1c] sm:$0xf]
        %v2240 = vld [vmem:[%s2231 + $0x20] sm:$0xf]
        %v2241 = vld [vmem:[%s2231 + $0x24] sm:$0xf]
        %v2242 = vld [vmem:[%s2231 + $0x28] sm:$0xf]
        %v2243 = vld [vmem:[%s2231 + $0x2c] sm:$0xf]
        %v2244 = vld [vmem:[%s2231 + $0x30] sm:$0xf]
        %v2245 = vld [vmem:[%s2231 + $0x34] sm:$0xf]
        %v2246 = vld [vmem:[%s2231 + $0x38] sm:$0xf]
        %v2247 = vld [vmem:[%s2231 + $0x3c] sm:$0xf]
        %v2264 = vunpack.c.l.b16 %v2232
        %v2265 = vunpack.c.l.b16 %v2233
        %v2266 = vunpack.c.l.b16 %v2234
        %v2267 = vunpack.c.l.b16 %v2235
        %v2268 = vunpack.c.l.b16 %v2236
        %v2269 = vunpack.c.l.b16 %v2237
        %v2270 = vunpack.c.l.b16 %v2238
        %v2271 = vunpack.c.l.b16 %v2239
        %v2272 = vunpack.c.l.b16 %v2240
        %v2273 = vunpack.c.l.b16 %v2241
        %v2274 = vunpack.c.l.b16 %v2242
        %v2275 = vunpack.c.l.b16 %v2243
        %v2276 = vunpack.c.l.b16 %v2244
        %v2277 = vunpack.c.l.b16 %v2245
        %v2278 = vunpack.c.l.b16 %v2246
        %v2279 = vunpack.c.l.b16 %v2247
        %v2280 = vpack.c.b16 %v2265, %v2264
        %v2281 = vpack.c.b16 %v2267, %v2266
        %v2282 = vpack.c.b16 %v2269, %v2268
        %v2283 = vpack.c.b16 %v2271, %v2270
        %v2284 = vpack.c.b16 %v2273, %v2272
        %v2285 = vpack.c.b16 %v2275, %v2274
        %v2286 = vpack.c.b16 %v2277, %v2276
        %v2287 = vpack.c.b16 %v2279, %v2278
        %2296 = vmatprep.subr.bf16.mxu0 0
        %2297 = vmatpush1.bf16.msra.mxu0 %v2280
        %2298 = vmatprep.subr.bf16.mxu0 0
        %2299 = vmatpush1.bf16.msra.mxu0 %v2281
        %2300 = vmatprep.subr.bf16.mxu0 0
        %2301 = vmatpush1.bf16.msra.mxu0 %v2282
        %2302 = vmatprep.subr.bf16.mxu0 0
        %2303 = vmatpush1.bf16.msra.mxu0 %v2283
        %2304 = vmatprep.subr.bf16.mxu0 0
        %2305 = vmatpush1.bf16.msra.mxu0 %v2284
        %2306 = vmatprep.subr.bf16.mxu0 0
        %2307 = vmatpush1.bf16.msra.mxu0 %v2285
        %2308 = vmatprep.subr.bf16.mxu0 0
        %2309 = vmatpush1.bf16.msra.mxu0 %v2286
        %2310 = vmatprep.subr.bf16.mxu0 0
        %2311 = vmatpush1.bf16.msra.mxu0 %v2287
        %2312 = vmatprep.subr.bf16.mxu0 0
        %2313 = vmatpush1.bf16.msra.mxu0 0
        %2314 = vmatprep.subr.bf16.mxu0 0
        %2315 = vmatpush1.bf16.msra.mxu0 0
        %2316 = vmatprep.subr.bf16.mxu0 0
        %2317 = vmatpush1.bf16.msra.mxu0 0
        %2318 = vmatprep.subr.bf16.mxu0 0
        %2319 = vmatpush1.bf16.msra.mxu0 0
        %2320 = vmatprep.subr.bf16.mxu0 0
        %2321 = vmatpush1.bf16.msra.mxu0 0
        %2322 = vmatprep.subr.bf16.mxu0 0
        %2323 = vmatpush1.bf16.msra.mxu0 0
        %2324 = vmatprep.subr.bf16.mxu0 0
        %2325 = vmatpush1.bf16.msra.mxu0 0
        %2326 = vmatprep.subr.bf16.mxu0 0
        %2327 = vmatpush1.bf16.msra.mxu0 0
        %2328 = vmatprep.mubr.bf16.mxu0 0
        %2329 = vmatmul.mubr.bf16.gmra.mrb[0].mxu0 %v2229
        %v2330 = vpop.f32.mrb[0].mxu0
        %v2331 = vadd.f32 0.0, %v2330
        %v2332 = vpop.f32.mrb[0].mxu0
        %v2333 = vpop.f32.mrb[0].mxu0
        %v2334 = vadd.f32 0.0, %v2333
        %v2335 = vpop.f32.mrb[0].mxu0
        %2336 = vmatprep.mubr.bf16.mxu0 0
        %2337 = vmatmul.mubr.bf16.gmra.mrb[0].mxu0 %v2230
        %v2338 = vpop.f32.mrb[0].mxu0
        %v2339 = vadd.f32 0.0, %v2338
        %v2340 = vpop.f32.mrb[0].mxu0
        %v2341 = vpop.f32.mrb[0].mxu0
        %v2342 = vadd.f32 0.0, %v2341
        %v2343 = vpop.f32.mrb[0].mxu0
        %2344 = vdwg.mxu0
        %v2345 = vadd.f32 %v2211, %v2331
        %v2346 = vadd.f32 %v2214, %v2334
        %v2347 = vadd.f32 %v2219, %v2339
        %v2348 = vadd.f32 %v2222, %v2342
        %v2349 = vld [vmem:[#allocation10] sm:$0x1]
        %v2351 = vlaneseq
        %v2352 = vshrl.u32 %v2351, 7
        %v2353 = vsub.s32 0, %v2352
        %v2354 = vrot.slane %v2349, %v2353
        %v2356 = vadd.f32 %v2345, %v2354
        %v2357 = vadd.f32 %v2346, %v2354
        %v2358 = vadd.f32 %v2347, %v2354
        %v2359 = vadd.f32 %v2348, %v2354
        %vm2360 = vcmp.gt.f32.partialorder %v2356, 0.0
        %vm2361 = vcmp.gt.f32.partialorder %v2357, 0.0
        %vm2362 = vcmp.gt.f32.partialorder %v2358, 0.0
        %vm2363 = vcmp.gt.f32.partialorder %v2359, 0.0
        %v2364 = vmul.f32 %v2356, 0.1
        %v2365 = vmul.f32 %v2357, 0.1
        %v2366 = vmul.f32 %v2358, 0.1
        %v2367 = vmul.f32 %v2359, 0.1
        %v2368 = vsel %vm2360, %v2356, %v2364
        %v2369 = vsel %vm2361, %v2357, %v2365
        %v2370 = vsel %vm2362, %v2358, %v2366
        %v2371 = vsel %vm2363, %v2359, %v2367
        %2372 = vst [vmem:[#allocation2 + $0x1] sm:$0xff] %v2368
        %2373 = vst [vmem:[#allocation2 + $0x9] sm:$0xff] %v2369
        %2374 = vst [vmem:[#allocation2 + $0x11] sm:$0xff] %v2370
        %2375 = vst [vmem:[#allocation2 + $0x19] sm:$0xff] %v2371
        %v2376 = vld [vmem:[#allocation2] sm:$0xff]
        %v2377 = vld [vmem:[#allocation2 + $0x8] sm:$0xff]
        %v2378 = vld [vmem:[#allocation2 + $0x10] sm:$0xff]
        %v2379 = vld [vmem:[#allocation2 + $0x18] sm:$0xff]
        %v2380 = vpack.c.bf16 %v2377, %v2376
        %v2381 = vpack.c.bf16 %v2379, %v2378
        %v2382 = vld [vmem:[%s11] sm:$0xf]
        %v2383 = vld [vmem:[%s11 + $0x4] sm:$0xf]
        %v2384 = vld [vmem:[%s11 + $0x8] sm:$0xf]
        %v2385 = vld [vmem:[%s11 + $0xc] sm:$0xf]
        %v2386 = vld [vmem:[%s11 + $0x10] sm:$0xf]
        %v2387 = vld [vmem:[%s11 + $0x14] sm:$0xf]
        %v2388 = vld [vmem:[%s11 + $0x18] sm:$0xf]
        %v2389 = vld [vmem:[%s11 + $0x1c] sm:$0xf]
        %v2390 = vld [vmem:[%s11 + $0x20] sm:$0xf]
        %v2391 = vld [vmem:[%s11 + $0x24] sm:$0xf]
        %v2392 = vld [vmem:[%s11 + $0x28] sm:$0xf]
        %v2393 = vld [vmem:[%s11 + $0x2c] sm:$0xf]
        %v2394 = vld [vmem:[%s11 + $0x30] sm:$0xf]
        %v2395 = vld [vmem:[%s11 + $0x34] sm:$0xf]
        %v2396 = vld [vmem:[%s11 + $0x38] sm:$0xf]
        %v2397 = vld [vmem:[%s11 + $0x3c] sm:$0xf]
        %v2398 = vld [vmem:[#allocation2 + $0x1] sm:$0xff]
        %v2399 = vld [vmem:[#allocation2 + $0x9] sm:$0xff]
        %v2400 = vld [vmem:[#allocation2 + $0x11] sm:$0xff]
        %v2401 = vld [vmem:[#allocation2 + $0x19] sm:$0xff]
        %v2402 = vpack.c.bf16 %v2399, %v2398
        %v2403 = vpack.c.bf16 %v2401, %v2400
        %s2404 = scalar_lea.vmem %s11, 64
        %v2405 = vld [vmem:[%s2404] sm:$0xf]
        %v2406 = vld [vmem:[%s2404 + $0x4] sm:$0xf]
        %v2407 = vld [vmem:[%s2404 + $0x8] sm:$0xf]
        %v2408 = vld [vmem:[%s2404 + $0xc] sm:$0xf]
        %v2409 = vld [vmem:[%s2404 + $0x10] sm:$0xf]
        %v2410 = vld [vmem:[%s2404 + $0x14] sm:$0xf]
        %v2411 = vld [vmem:[%s2404 + $0x18] sm:$0xf]
        %v2412 = vld [vmem:[%s2404 + $0x1c] sm:$0xf]
        %v2413 = vld [vmem:[%s2404 + $0x20] sm:$0xf]
        %v2414 = vld [vmem:[%s2404 + $0x24] sm:$0xf]
        %v2415 = vld [vmem:[%s2404 + $0x28] sm:$0xf]
        %v2416 = vld [vmem:[%s2404 + $0x2c] sm:$0xf]
        %v2417 = vld [vmem:[%s2404 + $0x30] sm:$0xf]
        %v2418 = vld [vmem:[%s2404 + $0x34] sm:$0xf]
        %v2419 = vld [vmem:[%s2404 + $0x38] sm:$0xf]
        %v2420 = vld [vmem:[%s2404 + $0x3c] sm:$0xf]
        %v2437 = vunpack.c.l.b16 %v2405
        %v2438 = vunpack.c.l.b16 %v2406
        %v2439 = vunpack.c.l.b16 %v2407
        %v2440 = vunpack.c.l.b16 %v2408
        %v2441 = vunpack.c.l.b16 %v2409
        %v2442 = vunpack.c.l.b16 %v2410
        %v2443 = vunpack.c.l.b16 %v2411
        %v2444 = vunpack.c.l.b16 %v2412
        %v2445 = vunpack.c.l.b16 %v2413
        %v2446 = vunpack.c.l.b16 %v2414
        %v2447 = vunpack.c.l.b16 %v2415
        %v2448 = vunpack.c.l.b16 %v2416
        %v2449 = vunpack.c.l.b16 %v2417
        %v2450 = vunpack.c.l.b16 %v2418
        %v2451 = vunpack.c.l.b16 %v2419
        %v2452 = vunpack.c.l.b16 %v2420
        %v2453 = vpack.c.b16 %v2438, %v2437
        %v2454 = vpack.c.b16 %v2440, %v2439
        %v2455 = vpack.c.b16 %v2442, %v2441
        %v2456 = vpack.c.b16 %v2444, %v2443
        %v2457 = vpack.c.b16 %v2446, %v2445
        %v2458 = vpack.c.b16 %v2448, %v2447
        %v2459 = vpack.c.b16 %v2450, %v2449
        %v2460 = vpack.c.b16 %v2452, %v2451
        %2469 = vmatprep.subr.bf16.mxu0 0
        %2470 = vmatpush1.bf16.msra.mxu0 %v2453
        %2471 = vmatprep.subr.bf16.mxu0 0
        %2472 = vmatpush1.bf16.msra.mxu0 %v2454
        %2473 = vmatprep.subr.bf16.mxu0 0
        %2474 = vmatpush1.bf16.msra.mxu0 %v2455
        %2475 = vmatprep.subr.bf16.mxu0 0
        %2476 = vmatpush1.bf16.msra.mxu0 %v2456
        %2477 = vmatprep.subr.bf16.mxu0 0
        %2478 = vmatpush1.bf16.msra.mxu0 %v2457
        %2479 = vmatprep.subr.bf16.mxu0 0
        %2480 = vmatpush1.bf16.msra.mxu0 %v2458
        %2481 = vmatprep.subr.bf16.mxu0 0
        %2482 = vmatpush1.bf16.msra.mxu0 %v2459
        %2483 = vmatprep.subr.bf16.mxu0 0
        %2484 = vmatpush1.bf16.msra.mxu0 %v2460
        %2485 = vmatprep.subr.bf16.mxu0 0
        %2486 = vmatpush1.bf16.msra.mxu0 0
        %2487 = vmatprep.subr.bf16.mxu0 0
        %2488 = vmatpush1.bf16.msra.mxu0 0
        %2489 = vmatprep.subr.bf16.mxu0 0
        %2490 = vmatpush1.bf16.msra.mxu0 0
        %2491 = vmatprep.subr.bf16.mxu0 0
        %2492 = vmatpush1.bf16.msra.mxu0 0
        %2493 = vmatprep.subr.bf16.mxu0 0
        %2494 = vmatpush1.bf16.msra.mxu0 0
        %2495 = vmatprep.subr.bf16.mxu0 0
        %2496 = vmatpush1.bf16.msra.mxu0 0
        %2497 = vmatprep.subr.bf16.mxu0 0
        %2498 = vmatpush1.bf16.msra.mxu0 0
        %2499 = vmatprep.subr.bf16.mxu0 0
        %2500 = vmatpush1.bf16.msra.mxu0 0
        %2501 = vmatprep.mubr.bf16.mxu0 0
        %2502 = vmatmul.mubr.bf16.gmra.mrb[0].mxu0 %v2402
        %v2503 = vpop.f32.mrb[0].mxu0
        %v2504 = vadd.f32 0.0, %v2503
        %v2505 = vpop.f32.mrb[0].mxu0
        %v2506 = vpop.f32.mrb[0].mxu0
        %v2507 = vadd.f32 0.0, %v2506
        %v2508 = vpop.f32.mrb[0].mxu0
        %2509 = vmatprep.mubr.bf16.mxu0 0
        %2510 = vmatmul.mubr.bf16.gmra.mrb[0].mxu0 %v2403
        %v2511 = vpop.f32.mrb[0].mxu0
        %v2512 = vadd.f32 0.0, %v2511
        %v2513 = vpop.f32.mrb[0].mxu0
        %v2514 = vpop.f32.mrb[0].mxu0
        %v2515 = vadd.f32 0.0, %v2514
        %v2516 = vpop.f32.mrb[0].mxu0
        %2517 = vdwg.mxu0
        %v2534 = vunpack.c.l.b16 %v2382
        %v2535 = vunpack.c.l.b16 %v2383
        %v2536 = vunpack.c.l.b16 %v2384
        %v2537 = vunpack.c.l.b16 %v2385
        %v2538 = vunpack.c.l.b16 %v2386
        %v2539 = vunpack.c.l.b16 %v2387
        %v2540 = vunpack.c.l.b16 %v2388
        %v2541 = vunpack.c.l.b16 %v2389
        %v2542 = vunpack.c.l.b16 %v2390
        %v2543 = vunpack.c.l.b16 %v2391
        %v2544 = vunpack.c.l.b16 %v2392
        %v2545 = vunpack.c.l.b16 %v2393
        %v2546 = vunpack.c.l.b16 %v2394
        %v2547 = vunpack.c.l.b16 %v2395
        %v2548 = vunpack.c.l.b16 %v2396
        %v2549 = vunpack.c.l.b16 %v2397
        %v2550 = vpack.c.b16 %v2535, %v2534
        %v2551 = vpack.c.b16 %v2537, %v2536
        %v2552 = vpack.c.b16 %v2539, %v2538
        %v2553 = vpack.c.b16 %v2541, %v2540
        %v2554 = vpack.c.b16 %v2543, %v2542
        %v2555 = vpack.c.b16 %v2545, %v2544
        %v2556 = vpack.c.b16 %v2547, %v2546
        %v2557 = vpack.c.b16 %v2549, %v2548
        %2566 = vmatprep.subr.bf16.mxu0 0
        %2567 = vmatpush1.bf16.msra.mxu0 %v2550
        %2568 = vmatprep.subr.bf16.mxu0 0
        %2569 = vmatpush1.bf16.msra.mxu0 %v2551
        %2570 = vmatprep.subr.bf16.mxu0 0
        %2571 = vmatpush1.bf16.msra.mxu0 %v2552
        %2572 = vmatprep.subr.bf16.mxu0 0
        %2573 = vmatpush1.bf16.msra.mxu0 %v2553
        %2574 = vmatprep.subr.bf16.mxu0 0
        %2575 = vmatpush1.bf16.msra.mxu0 %v2554
        %2576 = vmatprep.subr.bf16.mxu0 0
        %2577 = vmatpush1.bf16.msra.mxu0 %v2555
        %2578 = vmatprep.subr.bf16.mxu0 0
        %2579 = vmatpush1.bf16.msra.mxu0 %v2556
        %2580 = vmatprep.subr.bf16.mxu0 0
        %2581 = vmatpush1.bf16.msra.mxu0 %v2557
        %2582 = vmatprep.subr.bf16.mxu0 0
        %2583 = vmatpush1.bf16.msra.mxu0 0
        %2584 = vmatprep.subr.bf16.mxu0 0
        %2585 = vmatpush1.bf16.msra.mxu0 0
        %2586 = vmatprep.subr.bf16.mxu0 0
        %2587 = vmatpush1.bf16.msra.mxu0 0
        %2588 = vmatprep.subr.bf16.mxu0 0
        %2589 = vmatpush1.bf16.msra.mxu0 0
        %2590 = vmatprep.subr.bf16.mxu0 0
        %2591 = vmatpush1.bf16.msra.mxu0 0
        %2592 = vmatprep.subr.bf16.mxu0 0
        %2593 = vmatpush1.bf16.msra.mxu0 0
        %2594 = vmatprep.subr.bf16.mxu0 0
        %2595 = vmatpush1.bf16.msra.mxu0 0
        %2596 = vmatprep.subr.bf16.mxu0 0
        %2597 = vmatpush1.bf16.msra.mxu0 0
        %2598 = vmatprep.mubr.bf16.mxu0 0
        %2599 = vmatmul.mubr.bf16.gmra.mrb[0].mxu0 %v2380
        %v2600 = vpop.f32.mrb[0].mxu0
        %v2601 = vadd.f32 %v2504, %v2600
        %v2602 = vpop.f32.mrb[0].mxu0
        %v2603 = vpop.f32.mrb[0].mxu0
        %v2604 = vadd.f32 %v2507, %v2603
        %v2605 = vpop.f32.mrb[0].mxu0
        %2606 = vmatprep.mubr.bf16.mxu0 0
        %2607 = vmatmul.mubr.bf16.gmra.mrb[0].mxu0 %v2381
        %v2608 = vpop.f32.mrb[0].mxu0
        %v2609 = vadd.f32 %v2512, %v2608
        %v2610 = vpop.f32.mrb[0].mxu0
        %v2611 = vpop.f32.mrb[0].mxu0
        %v2612 = vadd.f32 %v2515, %v2611
        %v2613 = vpop.f32.mrb[0].mxu0
        %2614 = vdwg.mxu0
        %v2615 = vld [vmem:[#allocation2 + $0x2] sm:$0xff]
        %v2616 = vld [vmem:[#allocation2 + $0xa] sm:$0xff]
        %v2617 = vld [vmem:[#allocation2 + $0x12] sm:$0xff]
        %v2618 = vld [vmem:[#allocation2 + $0x1a] sm:$0xff]
        %v2619 = vpack.c.bf16 %v2616, %v2615
        %v2620 = vpack.c.bf16 %v2618, %v2617
        %s2621 = scalar_lea.vmem %s11, 128
        %v2622 = vld [vmem:[%s2621] sm:$0xf]
        %v2623 = vld [vmem:[%s2621 + $0x4] sm:$0xf]
        %v2624 = vld [vmem:[%s2621 + $0x8] sm:$0xf]
        %v2625 = vld [vmem:[%s2621 + $0xc] sm:$0xf]
        %v2626 = vld [vmem:[%s2621 + $0x10] sm:$0xf]
        %v2627 = vld [vmem:[%s2621 + $0x14] sm:$0xf]
        %v2628 = vld [vmem:[%s2621 + $0x18] sm:$0xf]
        %v2629 = vld [vmem:[%s2621 + $0x1c] sm:$0xf]
        %v2630 = vld [vmem:[%s2621 + $0x20] sm:$0xf]
        %v2631 = vld [vmem:[%s2621 + $0x24] sm:$0xf]
        %v2632 = vld [vmem:[%s2621 + $0x28] sm:$0xf]
        %v2633 = vld [vmem:[%s2621 + $0x2c] sm:$0xf]
        %v2634 = vld [vmem:[%s2621 + $0x30] sm:$0xf]
        %v2635 = vld [vmem:[%s2621 + $0x34] sm:$0xf]
        %v2636 = vld [vmem:[%s2621 + $0x38] sm:$0xf]
        %v2637 = vld [vmem:[%s2621 + $0x3c] sm:$0xf]
        %v2654 = vunpack.c.l.b16 %v2622
        %v2655 = vunpack.c.l.b16 %v2623
        %v2656 = vunpack.c.l.b16 %v2624
        %v2657 = vunpack.c.l.b16 %v2625
        %v2658 = vunpack.c.l.b16 %v2626
        %v2659 = vunpack.c.l.b16 %v2627
        %v2660 = vunpack.c.l.b16 %v2628
        %v2661 = vunpack.c.l.b16 %v2629
        %v2662 = vunpack.c.l.b16 %v2630
        %v2663 = vunpack.c.l.b16 %v2631
        %v2664 = vunpack.c.l.b16 %v2632
        %v2665 = vunpack.c.l.b16 %v2633
        %v2666 = vunpack.c.l.b16 %v2634
        %v2667 = vunpack.c.l.b16 %v2635
        %v2668 = vunpack.c.l.b16 %v2636
        %v2669 = vunpack.c.l.b16 %v2637
        %v2670 = vpack.c.b16 %v2655, %v2654
        %v2671 = vpack.c.b16 %v2657, %v2656
        %v2672 = vpack.c.b16 %v2659, %v2658
        %v2673 = vpack.c.b16 %v2661, %v2660
        %v2674 = vpack.c.b16 %v2663, %v2662
        %v2675 = vpack.c.b16 %v2665, %v2664
        %v2676 = vpack.c.b16 %v2667, %v2666
        %v2677 = vpack.c.b16 %v2669, %v2668
        %2686 = vmatprep.subr.bf16.mxu0 0
        %2687 = vmatpush1.bf16.msra.mxu0 %v2670
        %2688 = vmatprep.subr.bf16.mxu0 0
        %2689 = vmatpush1.bf16.msra.mxu0 %v2671
        %2690 = vmatprep.subr.bf16.mxu0 0
        %2691 = vmatpush1.bf16.msra.mxu0 %v2672
        %2692 = vmatprep.subr.bf16.mxu0 0
        %2693 = vmatpush1.bf16.msra.mxu0 %v2673
        %2694 = vmatprep.subr.bf16.mxu0 0
        %2695 = vmatpush1.bf16.msra.mxu0 %v2674
        %2696 = vmatprep.subr.bf16.mxu0 0
        %2697 = vmatpush1.bf16.msra.mxu0 %v2675
        %2698 = vmatprep.subr.bf16.mxu0 0
        %2699 = vmatpush1.bf16.msra.mxu0 %v2676
        %2700 = vmatprep.subr.bf16.mxu0 0
        %2701 = vmatpush1.bf16.msra.mxu0 %v2677
        %2702 = vmatprep.subr.bf16.mxu0 0
        %2703 = vmatpush1.bf16.msra.mxu0 0
        %2704 = vmatprep.subr.bf16.mxu0 0
        %2705 = vmatpush1.bf16.msra.mxu0 0
        %2706 = vmatprep.subr.bf16.mxu0 0
        %2707 = vmatpush1.bf16.msra.mxu0 0
        %2708 = vmatprep.subr.bf16.mxu0 0
        %2709 = vmatpush1.bf16.msra.mxu0 0
        %2710 = vmatprep.subr.bf16.mxu0 0
        %2711 = vmatpush1.bf16.msra.mxu0 0
        %2712 = vmatprep.subr.bf16.mxu0 0
        %2713 = vmatpush1.bf16.msra.mxu0 0
        %2714 = vmatprep.subr.bf16.mxu0 0
        %2715 = vmatpush1.bf16.msra.mxu0 0
        %2716 = vmatprep.subr.bf16.mxu0 0
        %2717 = vmatpush1.bf16.msra.mxu0 0
        %2718 = vmatprep.mubr.bf16.mxu0 0
        %2719 = vmatmul.mubr.bf16.gmra.mrb[0].mxu0 %v2619
        %v2720 = vpop.f32.mrb[0].mxu0
        %v2721 = vadd.f32 0.0, %v2720
        %v2722 = vpop.f32.mrb[0].mxu0
        %v2723 = vpop.f32.mrb[0].mxu0
        %v2724 = vadd.f32 0.0, %v2723
        %v2725 = vpop.f32.mrb[0].mxu0
        %2726 = vmatprep.mubr.bf16.mxu0 0
        %2727 = vmatmul.mubr.bf16.gmra.mrb[0].mxu0 %v2620
        %v2728 = vpop.f32.mrb[0].mxu0
        %v2729 = vadd.f32 0.0, %v2728
        %v2730 = vpop.f32.mrb[0].mxu0
        %v2731 = vpop.f32.mrb[0].mxu0
        %v2732 = vadd.f32 0.0, %v2731
        %v2733 = vpop.f32.mrb[0].mxu0
        %2734 = vdwg.mxu0
        %v2735 = vadd.f32 %v2601, %v2721
        %v2736 = vadd.f32 %v2604, %v2724
        %v2737 = vadd.f32 %v2609, %v2729
        %v2738 = vadd.f32 %v2612, %v2732
        %v2739 = vld [vmem:[#allocation13] sm:$0x1]
        %v2741 = vlaneseq
        %v2742 = vshrl.u32 %v2741, 7
        %v2743 = vsub.s32 0, %v2742
        %v2744 = vrot.slane %v2739, %v2743
        %v2746 = vadd.f32 %v2735, %v2744
        %v2747 = vadd.f32 %v2736, %v2744
        %v2748 = vadd.f32 %v2737, %v2744
        %v2749 = vadd.f32 %v2738, %v2744
        %v2750 = vld [vmem:[%s1618 + $0x1] sm:$0xff]
        %v2751 = vld [vmem:[%s1618 + $0x9] sm:$0xff]
        %v2752 = vld [vmem:[%s1618 + $0x11] sm:$0xff]
        %v2753 = vld [vmem:[%s1618 + $0x19] sm:$0xff]
        %v2754 = vpack.c.bf16 %v2751, %v2750
        %v2755 = vpack.c.bf16 %v2753, %v2752
        %v2756 = vld [vmem:[#allocation15] sm:$0xf]
        %v2757 = vld [vmem:[#allocation15 + $0x4] sm:$0xf]
        %v2758 = vld [vmem:[#allocation15 + $0x8] sm:$0xf]
        %v2759 = vld [vmem:[#allocation15 + $0xc] sm:$0xf]
        %v2760 = vld [vmem:[#allocation15 + $0x10] sm:$0xf]
        %v2761 = vld [vmem:[#allocation15 + $0x14] sm:$0xf]
        %v2762 = vld [vmem:[#allocation15 + $0x18] sm:$0xf]
        %v2763 = vld [vmem:[#allocation15 + $0x1c] sm:$0xf]
        %v2764 = vld [vmem:[#allocation15 + $0x20] sm:$0xf]
        %v2765 = vld [vmem:[#allocation15 + $0x24] sm:$0xf]
        %v2766 = vld [vmem:[#allocation15 + $0x28] sm:$0xf]
        %v2767 = vld [vmem:[#allocation15 + $0x2c] sm:$0xf]
        %v2768 = vld [vmem:[#allocation16] sm:$0x1]
        %v2770 = vlaneseq
        %v2771 = vshrl.u32 %v2770, 7
        %v2772 = vsub.s32 0, %v2771
        %v2773 = vrot.slane %v2768, %v2772
        %v2787 = vunpack.c.l.b16 %v2756
        %v2788 = vunpack.c.l.b16 %v2757
        %v2789 = vunpack.c.l.b16 %v2758
        %v2790 = vunpack.c.l.b16 %v2759
        %v2791 = vunpack.c.l.b16 %v2760
        %v2792 = vunpack.c.l.b16 %v2761
        %v2793 = vunpack.c.l.b16 %v2762
        %v2794 = vunpack.c.l.b16 %v2763
        %v2795 = vunpack.c.l.b16 %v2764
        %v2796 = vunpack.c.l.b16 %v2765
        %v2797 = vunpack.c.l.b16 %v2766
        %v2798 = vunpack.c.l.b16 %v2767
        %v2799 = vpack.c.b16 %v2788, %v2787
        %v2800 = vpack.c.b16 %v2790, %v2789
        %v2801 = vpack.c.b16 %v2792, %v2791
        %v2802 = vpack.c.b16 %v2794, %v2793
        %v2803 = vpack.c.b16 %v2796, %v2795
        %v2804 = vpack.c.b16 %v2798, %v2797
        %v2812 = vsel %vm1698, %v2754, 0
        %v2815 = vsel %vm1698, %v2755, 0
        %2817 = vmatprep.subr.bf16.mxu0 0
        %2818 = vmatpush1.bf16.msra.mxu0 %v2799
        %2819 = vmatprep.subr.bf16.mxu0 0
        %2820 = vmatpush1.bf16.msra.mxu0 %v2800
        %2821 = vmatprep.subr.bf16.mxu0 0
        %2822 = vmatpush1.bf16.msra.mxu0 %v2801
        %2823 = vmatprep.subr.bf16.mxu0 0
        %2824 = vmatpush1.bf16.msra.mxu0 %v2802
        %2825 = vmatprep.subr.bf16.mxu0 0
        %2826 = vmatpush1.bf16.msra.mxu0 %v2803
        %2827 = vmatprep.subr.bf16.mxu0 0
        %2828 = vmatpush1.bf16.msra.mxu0 %v2804
        %2829 = vmatprep.subr.bf16.mxu0 0
        %2830 = vmatpush1.bf16.msra.mxu0 0
        %2831 = vmatprep.subr.bf16.mxu0 0
        %2832 = vmatpush1.bf16.msra.mxu0 0
        %2833 = vmatprep.subr.bf16.mxu0 0
        %2834 = vmatpush1.bf16.msra.mxu0 0
        %2835 = vmatprep.subr.bf16.mxu0 0
        %2836 = vmatpush1.bf16.msra.mxu0 0
        %2837 = vmatprep.subr.bf16.mxu0 0
        %2838 = vmatpush1.bf16.msra.mxu0 0
        %2839 = vmatprep.subr.bf16.mxu0 0
        %2840 = vmatpush1.bf16.msra.mxu0 0
        %2841 = vmatprep.subr.bf16.mxu0 0
        %2842 = vmatpush1.bf16.msra.mxu0 0
        %2843 = vmatprep.subr.bf16.mxu0 0
        %2844 = vmatpush1.bf16.msra.mxu0 0
        %2845 = vmatprep.subr.bf16.mxu0 0
        %2846 = vmatpush1.bf16.msra.mxu0 0
        %2847 = vmatprep.subr.bf16.mxu0 0
        %2848 = vmatpush1.bf16.msra.mxu0 0
        %2849 = vmatprep.mubr.bf16.mxu0 0
        %2850 = vmatmul.mubr.bf16.gmra.mrb[0].mxu0 %v2812
        %v2851 = vpop.f32.mrb[0].mxu0
        %v2852 = vadd.f32 %v2773, %v2851
        %v2853 = vpop.f32.mrb[0].mxu0
        %v2854 = vpop.f32.mrb[0].mxu0
        %v2855 = vadd.f32 %v2773, %v2854
        %v2856 = vpop.f32.mrb[0].mxu0
        %2857 = vmatprep.mubr.bf16.mxu0 0
        %2858 = vmatmul.mubr.bf16.gmra.mrb[0].mxu0 %v2815
        %v2859 = vpop.f32.mrb[0].mxu0
        %v2860 = vadd.f32 %v2773, %v2859
        %v2861 = vpop.f32.mrb[0].mxu0
        %v2862 = vpop.f32.mrb[0].mxu0
        %v2863 = vadd.f32 %v2773, %v2862
        %v2864 = vpop.f32.mrb[0].mxu0
        %2865 = vdwg.mxu0
        %v2866 = vadd.f32 %v2746, %v2852
        %v2867 = vadd.f32 %v2747, %v2855
        %v2868 = vadd.f32 %v2748, %v2860
        %v2869 = vadd.f32 %v2749, %v2863
        %vm2870 = vcmp.gt.f32.partialorder %v2866, 0.0
        %vm2871 = vcmp.gt.f32.partialorder %v2867, 0.0
        %vm2872 = vcmp.gt.f32.partialorder %v2868, 0.0
        %vm2873 = vcmp.gt.f32.partialorder %v2869, 0.0
        %v2874 = vmul.f32 %v2866, 0.1
        %v2875 = vmul.f32 %v2867, 0.1
        %v2876 = vmul.f32 %v2868, 0.1
        %v2877 = vmul.f32 %v2869, 0.1
        %v2878 = vsel %vm2870, %v2866, %v2874
        %v2879 = vsel %vm2871, %v2867, %v2875
        %v2880 = vsel %vm2872, %v2868, %v2876
        %v2881 = vsel %vm2873, %v2869, %v2877
        %2882 = vst [vmem:[#allocation2 + $0x1] sm:$0xff] %v2878
        %2883 = vst [vmem:[#allocation2 + $0x9] sm:$0xff] %v2879
        %2884 = vst [vmem:[#allocation2 + $0x11] sm:$0xff] %v2880
        %2885 = vst [vmem:[#allocation2 + $0x19] sm:$0xff] %v2881
        %v2886 = vld [vmem:[#allocation2 + $0x1] sm:$0xff]
        %v2887 = vld [vmem:[#allocation2 + $0x9] sm:$0xff]
        %v2888 = vld [vmem:[#allocation2 + $0x11] sm:$0xff]
        %v2889 = vld [vmem:[#allocation2 + $0x19] sm:$0x7f]
        %v2890 = vld [vmem:[#allocation2 + $0x2] sm:$0xff]
        %v2891 = vld [vmem:[#allocation2 + $0xa] sm:$0xff]
        %v2892 = vld [vmem:[#allocation2 + $0x12] sm:$0xff]
        %v2893 = vld [vmem:[#allocation2 + $0x1a] sm:$0x7f]
        %v2894 = vmax.f32 %v2886, %v2890
        %v2895 = vmax.f32 %v2887, %v2891
        %v2896 = vmax.f32 %v2888, %v2892
        %v2897 = vmax.f32 %v2889, %v2893
        %v2898 = vld [vmem:[%s19] sm:$0xff]
        %v2899 = vld [vmem:[%s19 + $0x8] sm:$0xff]
        %v2900 = vld [vmem:[%s19 + $0x10] sm:$0xff]
        %v2901 = vld [vmem:[%s19 + $0x18] sm:$0xff]
        %v2902 = vld [vmem:[%s19 + $0x20] sm:$0xff]
        %v2903 = vld [vmem:[%s19 + $0x28] sm:$0xff]
        %v2904 = vld [vmem:[%s19 + $0x30] sm:$0xff]
        %v2905 = vld [vmem:[%s19 + $0x38] sm:$0xff]
        %v2906 = vld [vmem:[%s19 + $0x40] sm:$0xff]
        %v2907 = vld [vmem:[%s19 + $0x48] sm:$0xff]
        %v2908 = vld [vmem:[%s19 + $0x50] sm:$0xff]
        %v2909 = vld [vmem:[%s19 + $0x58] sm:$0xff]
        %v2910 = vld [vmem:[%s19 + $0x60] sm:$0xff]
        %v2911 = vld [vmem:[%s19 + $0x68] sm:$0xff]
        %v2912 = vld [vmem:[%s19 + $0x70] sm:$0xff]
        %v2913 = vld [vmem:[%s19 + $0x78] sm:$0xff]
        %2914 = vmatprep.subr.mxu0 0.0
        %2915 = vmatpush1.msra.mxu0 %v2898
        %2916 = vmatprep.subr.mxu0 0.0
        %2917 = vmatpush1.msra.mxu0 %v2899
        %2918 = vmatprep.subr.mxu0 0.0
        %2919 = vmatpush1.msra.mxu0 %v2900
        %2920 = vmatprep.subr.mxu0 0.0
        %2921 = vmatpush1.msra.mxu0 %v2901
        %2922 = vmatprep.subr.mxu0 0.0
        %2923 = vmatpush1.msra.mxu0 %v2902
        %2924 = vmatprep.subr.mxu0 0.0
        %2925 = vmatpush1.msra.mxu0 %v2903
        %2926 = vmatprep.subr.mxu0 0.0
        %2927 = vmatpush1.msra.mxu0 %v2904
        %2928 = vmatprep.subr.mxu0 0.0
        %2929 = vmatpush1.msra.mxu0 %v2905
        %2930 = vmatprep.subr.mxu0 0.0
        %2931 = vmatpush1.msra.mxu0 %v2906
        %2932 = vmatprep.subr.mxu0 0.0
        %2933 = vmatpush1.msra.mxu0 %v2907
        %2934 = vmatprep.subr.mxu0 0.0
        %2935 = vmatpush1.msra.mxu0 %v2908
        %2936 = vmatprep.subr.mxu0 0.0
        %2937 = vmatpush1.msra.mxu0 %v2909
        %2938 = vmatprep.subr.mxu0 0.0
        %2939 = vmatpush1.msra.mxu0 %v2910
        %2940 = vmatprep.subr.mxu0 0.0
        %2941 = vmatpush1.msra.mxu0 %v2911
        %2942 = vmatprep.subr.mxu0 0.0
        %2943 = vmatpush1.msra.mxu0 %v2912
        %2944 = vmatprep.subr.mxu0 0.0
        %2945 = vmatpush1.msra.mxu0 %v2913
        %2946 = vmatprep.subr.mxu0 0.0
        %2947 = vmatpush1.msra.mxu0 0.0
        %2948 = vmatprep.subr.mxu0 0.0
        %2949 = vmatpush1.msra.mxu0 0.0
        %2950 = vmatprep.subr.mxu0 0.0
        %2951 = vmatpush1.msra.mxu0 0.0
        %2952 = vmatprep.subr.mxu0 0.0
        %2953 = vmatpush1.msra.mxu0 0.0
        %2954 = vmatprep.subr.mxu0 0.0
        %2955 = vmatpush1.msra.mxu0 0.0
        %2956 = vmatprep.subr.mxu0 0.0
        %2957 = vmatpush1.msra.mxu0 0.0
        %2958 = vmatprep.subr.mxu0 0.0
        %2959 = vmatpush1.msra.mxu0 0.0
        %2960 = vmatprep.subr.mxu0 0.0
        %2961 = vmatpush1.msra.mxu0 0.0
        %2962 = vmatprep.subr.mxu0 0.0
        %2963 = vmatpush1.msra.mxu0 0.0
        %2964 = vmatprep.subr.mxu0 0.0
        %2965 = vmatpush1.msra.mxu0 0.0
        %2966 = vmatprep.subr.mxu0 0.0
        %2967 = vmatpush1.msra.mxu0 0.0
        %2968 = vmatprep.subr.mxu0 0.0
        %2969 = vmatpush1.msra.mxu0 0.0
        %2970 = vmatprep.subr.mxu0 0.0
        %2971 = vmatpush1.msra.mxu0 0.0
        %2972 = vmatprep.subr.mxu0 0.0
        %2973 = vmatpush1.msra.mxu0 0.0
        %2974 = vmatprep.subr.mxu0 0.0
        %2975 = vmatpush1.msra.mxu0 0.0
        %2976 = vmatprep.subr.mxu0 0.0
        %2977 = vmatpush1.msra.mxu0 0.0
        %2978 = vmatprep.mubr.f32.mxu0 0.0
        %2979 = vmatmul.mubr.f32.gmra.mrb[0].mxu0 %v2894
        %v2980 = vpop.f32.mrb[0].mxu0
        %v2981 = vadd.f32 0.0, %v2980
        %v2982 = vpop.f32.mrb[0].mxu0
        %2983 = vmatprep.mubr.f32.mxu0 0.0
        %2984 = vmatmul.mubr.f32.gmra.mrb[0].mxu0 %v2895
        %v2985 = vpop.f32.mrb[0].mxu0
        %v2986 = vadd.f32 0.0, %v2985
        %v2987 = vpop.f32.mrb[0].mxu0
        %2988 = vmatprep.mubr.f32.mxu0 0.0
        %2989 = vmatmul.mubr.f32.gmra.mrb[0].mxu0 %v2896
        %v2990 = vpop.f32.mrb[0].mxu0
        %v2991 = vadd.f32 0.0, %v2990
        %v2992 = vpop.f32.mrb[0].mxu0
        %2993 = vmatprep.mubr.f32.mxu0 0.0
        %2994 = vmatmul.mubr.f32.gmra.mrb[0].mxu0 %v2897
        %v2995 = vpop.f32.mrb[0].mxu0
        %v2996 = vadd.f32 0.0, %v2995
        %v2997 = vpop.f32.mrb[0].mxu0
        %2998 = vdwg.mxu0
        %v2999 = vld [vmem:[%s21] sm:$0xff]
        %v3000 = vld [vmem:[%s21 + $0x8] sm:$0xff]
        %v3001 = vld [vmem:[%s21 + $0x10] sm:$0xff]
        %v3002 = vld [vmem:[%s21 + $0x18] sm:$0xff]
        %v3003 = vld [vmem:[%s21 + $0x20] sm:$0xff]
        %v3004 = vld [vmem:[%s21 + $0x28] sm:$0xff]
        %v3005 = vld [vmem:[%s21 + $0x30] sm:$0xff]
        %v3006 = vld [vmem:[%s21 + $0x38] sm:$0xff]
        %v3007 = vld [vmem:[%s21 + $0x40] sm:$0xff]
        %v3008 = vld [vmem:[%s21 + $0x48] sm:$0xff]
        %v3009 = vld [vmem:[%s21 + $0x50] sm:$0xff]
        %v3010 = vld [vmem:[%s21 + $0x58] sm:$0xff]
        %v3011 = vld [vmem:[%s21 + $0x60] sm:$0xff]
        %v3012 = vld [vmem:[%s21 + $0x68] sm:$0xff]
        %v3013 = vld [vmem:[%s21 + $0x70] sm:$0xff]
        %v3014 = vld [vmem:[%s21 + $0x78] sm:$0xff]
        %3015 = vmatprep.subr.mxu0 0.0
        %3016 = vmatpush1.msra.mxu0 %v2999
        %3017 = vmatprep.subr.mxu0 0.0
        %3018 = vmatpush1.msra.mxu0 %v3000
        %3019 = vmatprep.subr.mxu0 0.0
        %3020 = vmatpush1.msra.mxu0 %v3001
        %3021 = vmatprep.subr.mxu0 0.0
        %3022 = vmatpush1.msra.mxu0 %v3002
        %3023 = vmatprep.subr.mxu0 0.0
        %3024 = vmatpush1.msra.mxu0 %v3003
        %3025 = vmatprep.subr.mxu0 0.0
        %3026 = vmatpush1.msra.mxu0 %v3004
        %3027 = vmatprep.subr.mxu0 0.0
        %3028 = vmatpush1.msra.mxu0 %v3005
        %3029 = vmatprep.subr.mxu0 0.0
        %3030 = vmatpush1.msra.mxu0 %v3006
        %3031 = vmatprep.subr.mxu0 0.0
        %3032 = vmatpush1.msra.mxu0 %v3007
        %3033 = vmatprep.subr.mxu0 0.0
        %3034 = vmatpush1.msra.mxu0 %v3008
        %3035 = vmatprep.subr.mxu0 0.0
        %3036 = vmatpush1.msra.mxu0 %v3009
        %3037 = vmatprep.subr.mxu0 0.0
        %3038 = vmatpush1.msra.mxu0 %v3010
        %3039 = vmatprep.subr.mxu0 0.0
        %3040 = vmatpush1.msra.mxu0 %v3011
        %3041 = vmatprep.subr.mxu0 0.0
        %3042 = vmatpush1.msra.mxu0 %v3012
        %3043 = vmatprep.subr.mxu0 0.0
        %3044 = vmatpush1.msra.mxu0 %v3013
        %3045 = vmatprep.subr.mxu0 0.0
        %3046 = vmatpush1.msra.mxu0 %v3014
        %3047 = vmatprep.subr.mxu0 0.0
        %3048 = vmatpush1.msra.mxu0 0.0
        %3049 = vmatprep.subr.mxu0 0.0
        %3050 = vmatpush1.msra.mxu0 0.0
        %3051 = vmatprep.subr.mxu0 0.0
        %3052 = vmatpush1.msra.mxu0 0.0
        %3053 = vmatprep.subr.mxu0 0.0
        %3054 = vmatpush1.msra.mxu0 0.0
        %3055 = vmatprep.subr.mxu0 0.0
        %3056 = vmatpush1.msra.mxu0 0.0
        %3057 = vmatprep.subr.mxu0 0.0
        %3058 = vmatpush1.msra.mxu0 0.0
        %3059 = vmatprep.subr.mxu0 0.0
        %3060 = vmatpush1.msra.mxu0 0.0
        %3061 = vmatprep.subr.mxu0 0.0
        %3062 = vmatpush1.msra.mxu0 0.0
        %3063 = vmatprep.subr.mxu0 0.0
        %3064 = vmatpush1.msra.mxu0 0.0
        %3065 = vmatprep.subr.mxu0 0.0
        %3066 = vmatpush1.msra.mxu0 0.0
        %3067 = vmatprep.subr.mxu0 0.0
        %3068 = vmatpush1.msra.mxu0 0.0
        %3069 = vmatprep.subr.mxu0 0.0
        %3070 = vmatpush1.msra.mxu0 0.0
        %3071 = vmatprep.subr.mxu0 0.0
        %3072 = vmatpush1.msra.mxu0 0.0
        %3073 = vmatprep.subr.mxu0 0.0
        %3074 = vmatpush1.msra.mxu0 0.0
        %3075 = vmatprep.subr.mxu0 0.0
        %3076 = vmatpush1.msra.mxu0 0.0
        %3077 = vmatprep.subr.mxu0 0.0
        %3078 = vmatpush1.msra.mxu0 0.0
        %3079 = vmatprep.mubr.f32.mxu0 0.0
        %3080 = vmatmul.mubr.f32.gmra.mrb[0].mxu0 %v2894
        %v3081 = vpop.f32.mrb[0].mxu0
        %v3082 = vadd.f32 0.0, %v3081
        %v3083 = vpop.f32.mrb[0].mxu0
        %3084 = vmatprep.mubr.f32.mxu0 0.0
        %3085 = vmatmul.mubr.f32.gmra.mrb[0].mxu0 %v2895
        %v3086 = vpop.f32.mrb[0].mxu0
        %v3087 = vadd.f32 0.0, %v3086
        %v3088 = vpop.f32.mrb[0].mxu0
        %3089 = vmatprep.mubr.f32.mxu0 0.0
        %3090 = vmatmul.mubr.f32.gmra.mrb[0].mxu0 %v2896
        %v3091 = vpop.f32.mrb[0].mxu0
        %v3092 = vadd.f32 0.0, %v3091
        %v3093 = vpop.f32.mrb[0].mxu0
        %3094 = vmatprep.mubr.f32.mxu0 0.0
        %3095 = vmatmul.mubr.f32.gmra.mrb[0].mxu0 %v2897
        %v3096 = vpop.f32.mrb[0].mxu0
        %v3097 = vadd.f32 0.0, %v3096
        %v3098 = vpop.f32.mrb[0].mxu0
        %3099 = vdwg.mxu0
        %v3100 = vmax.f32 %v2981, %v3082
        %v3101 = vmax.f32 %v2986, %v3087
        %v3102 = vmax.f32 %v2991, %v3092
        %v3103 = vmax.f32 %v2996, %v3097
        %v3104 = vld [vmem:[%s23] sm:$0xff]
        %v3105 = vld [vmem:[%s23 + $0x8] sm:$0xff]
        %v3106 = vld [vmem:[%s23 + $0x10] sm:$0x3]
        %vm3107 = vcmask 252928
        %v3109 = vsel %vm3107, %v3104, 0
        %v3112 = vsel %vm3107, %v3105, 0
        %v3115 = vsel %vm3107, %v3106, 0
        %vm3117 = vcmask 1046528
        %v3119 = vsel %vm3117, %v3103, 0
        %3121 = vmatprep.subr.mxu0 0.0
        %3122 = vmatpush1.msra.mxu0 %v3100
        %3123 = vmatprep.subr.mxu0 0.0
        %3124 = vmatpush1.msra.mxu0 %v3101
        %3125 = vmatprep.subr.mxu0 0.0
        %3126 = vmatpush1.msra.mxu0 %v3102
        %3127 = vmatprep.subr.mxu0 0.0
        %3128 = vmatpush1.msra.mxu0 %v3119
        %3129 = vmatprep.subr.mxu0 0.0
        %3130 = vmatpush1.msra.mxu0 0.0
        %3131 = vmatprep.subr.mxu0 0.0
        %3132 = vmatpush1.msra.mxu0 0.0
        %3133 = vmatprep.subr.mxu0 0.0
        %3134 = vmatpush1.msra.mxu0 0.0
        %3135 = vmatprep.subr.mxu0 0.0
        %3136 = vmatpush1.msra.mxu0 0.0
        %3137 = vmatprep.subr.mxu0 0.0
        %3138 = vmatpush1.msra.mxu0 0.0
        %3139 = vmatprep.subr.mxu0 0.0
        %3140 = vmatpush1.msra.mxu0 0.0
        %3141 = vmatprep.subr.mxu0 0.0
        %3142 = vmatpush1.msra.mxu0 0.0
        %3143 = vmatprep.subr.mxu0 0.0
        %3144 = vmatpush1.msra.mxu0 0.0
        %3145 = vmatprep.subr.mxu0 0.0
        %3146 = vmatpush1.msra.mxu0 0.0
        %3147 = vmatprep.subr.mxu0 0.0
        %3148 = vmatpush1.msra.mxu0 0.0
        %3149 = vmatprep.subr.mxu0 0.0
        %3150 = vmatpush1.msra.mxu0 0.0
        %3151 = vmatprep.subr.mxu0 0.0
        %3152 = vmatpush1.msra.mxu0 0.0
        %3153 = vmatprep.subr.mxu0 0.0
        %3154 = vmatpush1.msra.mxu0 0.0
        %3155 = vmatprep.subr.mxu0 0.0
        %3156 = vmatpush1.msra.mxu0 0.0
        %3157 = vmatprep.subr.mxu0 0.0
        %3158 = vmatpush1.msra.mxu0 0.0
        %3159 = vmatprep.subr.mxu0 0.0
        %3160 = vmatpush1.msra.mxu0 0.0
        %3161 = vmatprep.subr.mxu0 0.0
        %3162 = vmatpush1.msra.mxu0 0.0
        %3163 = vmatprep.subr.mxu0 0.0
        %3164 = vmatpush1.msra.mxu0 0.0
        %3165 = vmatprep.subr.mxu0 0.0
        %3166 = vmatpush1.msra.mxu0 0.0
        %3167 = vmatprep.subr.mxu0 0.0
        %3168 = vmatpush1.msra.mxu0 0.0
        %3169 = vmatprep.subr.mxu0 0.0
        %3170 = vmatpush1.msra.mxu0 0.0
        %3171 = vmatprep.subr.mxu0 0.0
        %3172 = vmatpush1.msra.mxu0 0.0
        %3173 = vmatprep.subr.mxu0 0.0
        %3174 = vmatpush1.msra.mxu0 0.0
        %3175 = vmatprep.subr.mxu0 0.0
        %3176 = vmatpush1.msra.mxu0 0.0
        %3177 = vmatprep.subr.mxu0 0.0
        %3178 = vmatpush1.msra.mxu0 0.0
        %3179 = vmatprep.subr.mxu0 0.0
        %3180 = vmatpush1.msra.mxu0 0.0
        %3181 = vmatprep.subr.mxu0 0.0
        %3182 = vmatpush1.msra.mxu0 0.0
        %3183 = vmatprep.subr.mxu0 0.0
        %3184 = vmatpush1.msra.mxu0 0.0
        %3185 = vmatprep.mubr.f32.mxu0 0.0
        %3186 = vmatmul.mubr.f32.gmra.mrb[0].mxu0 %v3109
        %v3187 = vpop.f32.mrb[0].mxu0
        %v3188 = vadd.f32 0.0, %v3187
        %v3189 = vpop.f32.mrb[0].mxu0
        %3190 = vmatprep.mubr.f32.mxu0 0.0
        %3191 = vmatmul.mubr.f32.gmra.mrb[0].mxu0 %v3112
        %v3192 = vpop.f32.mrb[0].mxu0
        %v3193 = vadd.f32 0.0, %v3192
        %v3194 = vpop.f32.mrb[0].mxu0
        %3195 = vmatprep.mubr.f32.mxu0 0.0
        %3196 = vmatmul.mubr.f32.gmra.mrb[0].mxu0 %v3115
        %v3197 = vpop.f32.mrb[0].mxu0
        %v3198 = vadd.f32 0.0, %v3197
        %v3199 = vpop.f32.mrb[0].mxu0
        %3200 = vdwg.mxu0
        %vm3201 = vcmask 523264
        %3202 = vst.msk [vmem:[#allocation6] sm:$0xff] %vm3201, %v3188
        %3203 = vst.msk [vmem:[#allocation6 + $0x8] sm:$0xff] %vm3201, %v3193
        %vm3204 = vcmask 517120
        %3205 = vst.msk [vmem:[#allocation6 + $0x10] sm:$0x3] %vm3204, %v3198
        %3206 = vst [vmem:[#allocation3] sm:$0xff] 0.0
        %3207 = vst [vmem:[#allocation3 + $0x8] sm:$0xff] 0.0
        %3208 = vst [vmem:[#allocation3 + $0x10] sm:$0x3] 0.0
        %v3209 = vld [vmem:[#allocation6] sm:$0xff]
        %v3210 = vld [vmem:[#allocation6 + $0x8] sm:$0xff]
        %v3211 = vpack.c.bf16 %v3210, %v3209
        %v3212 = vld [vmem:[%s25] sm:$0xf]
        %v3213 = vld [vmem:[%s25 + $0x4] sm:$0xf]
        %v3214 = vld [vmem:[%s25 + $0x8] sm:$0xf]
        %v3215 = vld [vmem:[%s25 + $0xc] sm:$0xf]
        %v3216 = vld [vmem:[%s25 + $0x10] sm:$0xf]
        %v3217 = vld [vmem:[%s25 + $0x14] sm:$0xf]
        %v3218 = vld [vmem:[%s25 + $0x18] sm:$0xf]
        %v3219 = vld [vmem:[%s25 + $0x1c] sm:$0xf]
        %v3220 = vld [vmem:[#allocation6 + $0x1] sm:$0xff]
        %v3221 = vld [vmem:[#allocation6 + $0x9] sm:$0xff]
        %v3222 = vpack.c.bf16 %v3221, %v3220
        %s3223 = scalar_lea.vmem %s25, 32
        %v3224 = vld [vmem:[%s3223] sm:$0xf]
        %v3225 = vld [vmem:[%s3223 + $0x4] sm:$0xf]
        %v3226 = vld [vmem:[%s3223 + $0x8] sm:$0xf]
        %v3227 = vld [vmem:[%s3223 + $0xc] sm:$0xf]
        %v3228 = vld [vmem:[%s3223 + $0x10] sm:$0xf]
        %v3229 = vld [vmem:[%s3223 + $0x14] sm:$0xf]
        %v3230 = vld [vmem:[%s3223 + $0x18] sm:$0xf]
        %v3231 = vld [vmem:[%s3223 + $0x1c] sm:$0xf]
        %v3240 = vunpack.c.l.b16 %v3224
        %v3241 = vunpack.c.l.b16 %v3225
        %v3242 = vunpack.c.l.b16 %v3226
        %v3243 = vunpack.c.l.b16 %v3227
        %v3244 = vunpack.c.l.b16 %v3228
        %v3245 = vunpack.c.l.b16 %v3229
        %v3246 = vunpack.c.l.b16 %v3230
        %v3247 = vunpack.c.l.b16 %v3231
        %v3248 = vpack.c.b16 %v3241, %v3240
        %v3249 = vpack.c.b16 %v3243, %v3242
        %v3250 = vpack.c.b16 %v3245, %v3244
        %v3251 = vpack.c.b16 %v3247, %v3246
        %v3257 = vsel %vm3201, %v3222, 0
        %3259 = vmatprep.subr.bf16.mxu0 0
        %3260 = vmatpush1.bf16.msra.mxu0 %v3248
        %3261 = vmatprep.subr.bf16.mxu0 0
        %3262 = vmatpush1.bf16.msra.mxu0 %v3249
        %3263 = vmatprep.subr.bf16.mxu0 0
        %3264 = vmatpush1.bf16.msra.mxu0 %v3250
        %3265 = vmatprep.subr.bf16.mxu0 0
        %3266 = vmatpush1.bf16.msra.mxu0 %v3251
        %3267 = vmatprep.subr.bf16.mxu0 0
        %3268 = vmatpush1.bf16.msra.mxu0 0
        %3269 = vmatprep.subr.bf16.mxu0 0
        %3270 = vmatpush1.bf16.msra.mxu0 0
        %3271 = vmatprep.subr.bf16.mxu0 0
        %3272 = vmatpush1.bf16.msra.mxu0 0
        %3273 = vmatprep.subr.bf16.mxu0 0
        %3274 = vmatpush1.bf16.msra.mxu0 0
        %3275 = vmatprep.subr.bf16.mxu0 0
        %3276 = vmatpush1.bf16.msra.mxu0 0
        %3277 = vmatprep.subr.bf16.mxu0 0
        %3278 = vmatpush1.bf16.msra.mxu0 0
        %3279 = vmatprep.subr.bf16.mxu0 0
        %3280 = vmatpush1.bf16.msra.mxu0 0
        %3281 = vmatprep.subr.bf16.mxu0 0
        %3282 = vmatpush1.bf16.msra.mxu0 0
        %3283 = vmatprep.subr.bf16.mxu0 0
        %3284 = vmatpush1.bf16.msra.mxu0 0
        %3285 = vmatprep.subr.bf16.mxu0 0
        %3286 = vmatpush1.bf16.msra.mxu0 0
        %3287 = vmatprep.subr.bf16.mxu0 0
        %3288 = vmatpush1.bf16.msra.mxu0 0
        %3289 = vmatprep.subr.bf16.mxu0 0
        %3290 = vmatpush1.bf16.msra.mxu0 0
        %3291 = vmatprep.mubr.bf16.mxu0 0
        %3292 = vmatmul.mubr.bf16.gmra.mrb[0].mxu0 %v3257
        %v3293 = vpop.f32.mrb[0].mxu0
        %v3294 = vadd.f32 0.0, %v3293
        %v3295 = vpop.f32.mrb[0].mxu0
        %v3296 = vpop.f32.mrb[0].mxu0
        %v3297 = vadd.f32 0.0, %v3296
        %v3298 = vpop.f32.mrb[0].mxu0
        %3299 = vdwg.mxu0
        %v3308 = vunpack.c.l.b16 %v3212
        %v3309 = vunpack.c.l.b16 %v3213
        %v3310 = vunpack.c.l.b16 %v3214
        %v3311 = vunpack.c.l.b16 %v3215
        %v3312 = vunpack.c.l.b16 %v3216
        %v3313 = vunpack.c.l.b16 %v3217
        %v3314 = vunpack.c.l.b16 %v3218
        %v3315 = vunpack.c.l.b16 %v3219
        %v3316 = vpack.c.b16 %v3309, %v3308
        %v3317 = vpack.c.b16 %v3311, %v3310
        %v3318 = vpack.c.b16 %v3313, %v3312
        %v3319 = vpack.c.b16 %v3315, %v3314
        %v3325 = vsel %vm3201, %v3211, 0
        %3327 = vmatprep.subr.bf16.mxu0 0
        %3328 = vmatpush1.bf16.msra.mxu0 %v3316
        %3329 = vmatprep.subr.bf16.mxu0 0
        %3330 = vmatpush1.bf16.msra.mxu0 %v3317
        %3331 = vmatprep.subr.bf16.mxu0 0
        %3332 = vmatpush1.bf16.msra.mxu0 %v3318
        %3333 = vmatprep.subr.bf16.mxu0 0
        %3334 = vmatpush1.bf16.msra.mxu0 %v3319
        %3335 = vmatprep.subr.bf16.mxu0 0
        %3336 = vmatpush1.bf16.msra.mxu0 0
        %3337 = vmatprep.subr.bf16.mxu0 0
        %3338 = vmatpush1.bf16.msra.mxu0 0
        %3339 = vmatprep.subr.bf16.mxu0 0
        %3340 = vmatpush1.bf16.msra.mxu0 0
        %3341 = vmatprep.subr.bf16.mxu0 0
        %3342 = vmatpush1.bf16.msra.mxu0 0
        %3343 = vmatprep.subr.bf16.mxu0 0
        %3344 = vmatpush1.bf16.msra.mxu0 0
        %3345 = vmatprep.subr.bf16.mxu0 0
        %3346 = vmatpush1.bf16.msra.mxu0 0
        %3347 = vmatprep.subr.bf16.mxu0 0
        %3348 = vmatpush1.bf16.msra.mxu0 0
        %3349 = vmatprep.subr.bf16.mxu0 0
        %3350 = vmatpush1.bf16.msra.mxu0 0
        %3351 = vmatprep.subr.bf16.mxu0 0
        %3352 = vmatpush1.bf16.msra.mxu0 0
        %3353 = vmatprep.subr.bf16.mxu0 0
        %3354 = vmatpush1.bf16.msra.mxu0 0
        %3355 = vmatprep.subr.bf16.mxu0 0
        %3356 = vmatpush1.bf16.msra.mxu0 0
        %3357 = vmatprep.subr.bf16.mxu0 0
        %3358 = vmatpush1.bf16.msra.mxu0 0
        %3359 = vmatprep.mubr.bf16.mxu0 0
        %3360 = vmatmul.mubr.bf16.gmra.mrb[0].mxu0 %v3325
        %v3361 = vpop.f32.mrb[0].mxu0
        %v3362 = vadd.f32 %v3294, %v3361
        %v3363 = vpop.f32.mrb[0].mxu0
        %v3364 = vpop.f32.mrb[0].mxu0
        %v3365 = vadd.f32 %v3297, %v3364
        %v3366 = vpop.f32.mrb[0].mxu0
        %3367 = vdwg.mxu0
        %v3368 = vld [vmem:[#allocation6 + $0x2] sm:$0xff]
        %v3369 = vld [vmem:[#allocation6 + $0xa] sm:$0xff]
        %v3370 = vpack.c.bf16 %v3369, %v3368
        %s3371 = scalar_lea.vmem %s25, 64
        %v3372 = vld [vmem:[%s3371] sm:$0xf]
        %v3373 = vld [vmem:[%s3371 + $0x4] sm:$0xf]
        %v3374 = vld [vmem:[%s3371 + $0x8] sm:$0xf]
        %v3375 = vld [vmem:[%s3371 + $0xc] sm:$0xf]
        %v3376 = vld [vmem:[%s3371 + $0x10] sm:$0xf]
        %v3377 = vld [vmem:[%s3371 + $0x14] sm:$0xf]
        %v3378 = vld [vmem:[%s3371 + $0x18] sm:$0xf]
        %v3379 = vld [vmem:[%s3371 + $0x1c] sm:$0xf]
        %v3388 = vunpack.c.l.b16 %v3372
        %v3389 = vunpack.c.l.b16 %v3373
        %v3390 = vunpack.c.l.b16 %v3374
        %v3391 = vunpack.c.l.b16 %v3375
        %v3392 = vunpack.c.l.b16 %v3376
        %v3393 = vunpack.c.l.b16 %v3377
        %v3394 = vunpack.c.l.b16 %v3378
        %v3395 = vunpack.c.l.b16 %v3379
        %v3396 = vpack.c.b16 %v3389, %v3388
        %v3397 = vpack.c.b16 %v3391, %v3390
        %v3398 = vpack.c.b16 %v3393, %v3392
        %v3399 = vpack.c.b16 %v3395, %v3394
        %v3405 = vsel %vm3201, %v3370, 0
        %3407 = vmatprep.subr.bf16.mxu0 0
        %3408 = vmatpush1.bf16.msra.mxu0 %v3396
        %3409 = vmatprep.subr.bf16.mxu0 0
        %3410 = vmatpush1.bf16.msra.mxu0 %v3397
        %3411 = vmatprep.subr.bf16.mxu0 0
        %3412 = vmatpush1.bf16.msra.mxu0 %v3398
        %3413 = vmatprep.subr.bf16.mxu0 0
        %3414 = vmatpush1.bf16.msra.mxu0 %v3399
        %3415 = vmatprep.subr.bf16.mxu0 0
        %3416 = vmatpush1.bf16.msra.mxu0 0
        %3417 = vmatprep.subr.bf16.mxu0 0
        %3418 = vmatpush1.bf16.msra.mxu0 0
        %3419 = vmatprep.subr.bf16.mxu0 0
        %3420 = vmatpush1.bf16.msra.mxu0 0
        %3421 = vmatprep.subr.bf16.mxu0 0
        %3422 = vmatpush1.bf16.msra.mxu0 0
        %3423 = vmatprep.subr.bf16.mxu0 0
        %3424 = vmatpush1.bf16.msra.mxu0 0
        %3425 = vmatprep.subr.bf16.mxu0 0
        %3426 = vmatpush1.bf16.msra.mxu0 0
        %3427 = vmatprep.subr.bf16.mxu0 0
        %3428 = vmatpush1.bf16.msra.mxu0 0
        %3429 = vmatprep.subr.bf16.mxu0 0
        %3430 = vmatpush1.bf16.msra.mxu0 0
        %3431 = vmatprep.subr.bf16.mxu0 0
        %3432 = vmatpush1.bf16.msra.mxu0 0
        %3433 = vmatprep.subr.bf16.mxu0 0
        %3434 = vmatpush1.bf16.msra.mxu0 0
        %3435 = vmatprep.subr.bf16.mxu0 0
        %3436 = vmatpush1.bf16.msra.mxu0 0
        %3437 = vmatprep.subr.bf16.mxu0 0
        %3438 = vmatpush1.bf16.msra.mxu0 0
        %3439 = vmatprep.mubr.bf16.mxu0 0
        %3440 = vmatmul.mubr.bf16.gmra.mrb[0].mxu0 %v3405
        %v3441 = vpop.f32.mrb[0].mxu0
        %v3442 = vadd.f32 0.0, %v3441
        %v3443 = vpop.f32.mrb[0].mxu0
        %v3444 = vpop.f32.mrb[0].mxu0
        %v3445 = vadd.f32 0.0, %v3444
        %v3446 = vpop.f32.mrb[0].mxu0
        %3447 = vdwg.mxu0
        %v3448 = vadd.f32 %v3362, %v3442
        %v3449 = vadd.f32 %v3365, %v3445
        %v3450 = vld [vmem:[#allocation18] sm:$0x1]
        %v3452 = vlaneseq
        %v3453 = vshrl.u32 %v3452, 7
        %v3454 = vsub.s32 0, %v3453
        %v3455 = vrot.slane %v3450, %v3454
        %v3457 = vadd.f32 %v3448, %v3455
        %v3458 = vadd.f32 %v3449, %v3455
        %vm3459 = vcmp.gt.f32.partialorder %v3457, 0.0
        %vm3460 = vcmp.gt.f32.partialorder %v3458, 0.0
        %v3461 = vmul.f32 %v3457, 0.1
        %v3462 = vmul.f32 %v3458, 0.1
        %v3463 = vsel %vm3459, %v3457, %v3461
        %v3464 = vsel %vm3460, %v3458, %v3462
        %3465 = vst [vmem:[#allocation3 + $0x1] sm:$0xff] %v3463
        %3466 = vst [vmem:[#allocation3 + $0x9] sm:$0xff] %v3464
        %v3467 = vld [vmem:[#allocation3] sm:$0xff]
        %v3468 = vld [vmem:[#allocation3 + $0x8] sm:$0xff]
        %v3469 = vpack.c.bf16 %v3468, %v3467
        %v3470 = vld [vmem:[%s29] sm:$0xf]
        %v3471 = vld [vmem:[%s29 + $0x4] sm:$0xf]
        %v3472 = vld [vmem:[%s29 + $0x8] sm:$0xf]
        %v3473 = vld [vmem:[%s29 + $0xc] sm:$0xf]
        %v3474 = vld [vmem:[%s29 + $0x10] sm:$0xf]
        %v3475 = vld [vmem:[%s29 + $0x14] sm:$0xf]
        %v3476 = vld [vmem:[%s29 + $0x18] sm:$0xf]
        %v3477 = vld [vmem:[%s29 + $0x1c] sm:$0xf]
        %v3478 = vld [vmem:[%s29 + $0x20] sm:$0xf]
        %v3479 = vld [vmem:[%s29 + $0x24] sm:$0xf]
        %v3480 = vld [vmem:[%s29 + $0x28] sm:$0xf]
        %v3481 = vld [vmem:[%s29 + $0x2c] sm:$0xf]
        %v3482 = vld [vmem:[%s29 + $0x30] sm:$0xf]
        %v3483 = vld [vmem:[%s29 + $0x34] sm:$0xf]
        %v3484 = vld [vmem:[%s29 + $0x38] sm:$0xf]
        %v3485 = vld [vmem:[%s29 + $0x3c] sm:$0xf]
        %v3486 = vld [vmem:[#allocation3 + $0x1] sm:$0xff]
        %v3487 = vld [vmem:[#allocation3 + $0x9] sm:$0xff]
        %v3488 = vpack.c.bf16 %v3487, %v3486
        %s3489 = scalar_lea.vmem %s29, 64
        %v3490 = vld [vmem:[%s3489] sm:$0xf]
        %v3491 = vld [vmem:[%s3489 + $0x4] sm:$0xf]
        %v3492 = vld [vmem:[%s3489 + $0x8] sm:$0xf]
        %v3493 = vld [vmem:[%s3489 + $0xc] sm:$0xf]
        %v3494 = vld [vmem:[%s3489 + $0x10] sm:$0xf]
        %v3495 = vld [vmem:[%s3489 + $0x14] sm:$0xf]
        %v3496 = vld [vmem:[%s3489 + $0x18] sm:$0xf]
        %v3497 = vld [vmem:[%s3489 + $0x1c] sm:$0xf]
        %v3498 = vld [vmem:[%s3489 + $0x20] sm:$0xf]
        %v3499 = vld [vmem:[%s3489 + $0x24] sm:$0xf]
        %v3500 = vld [vmem:[%s3489 + $0x28] sm:$0xf]
        %v3501 = vld [vmem:[%s3489 + $0x2c] sm:$0xf]
        %v3502 = vld [vmem:[%s3489 + $0x30] sm:$0xf]
        %v3503 = vld [vmem:[%s3489 + $0x34] sm:$0xf]
        %v3504 = vld [vmem:[%s3489 + $0x38] sm:$0xf]
        %v3505 = vld [vmem:[%s3489 + $0x3c] sm:$0xf]
        %v3522 = vunpack.c.l.b16 %v3490
        %v3523 = vunpack.c.l.b16 %v3491
        %v3524 = vunpack.c.l.b16 %v3492
        %v3525 = vunpack.c.l.b16 %v3493
        %v3526 = vunpack.c.l.b16 %v3494
        %v3527 = vunpack.c.l.b16 %v3495
        %v3528 = vunpack.c.l.b16 %v3496
        %v3529 = vunpack.c.l.b16 %v3497
        %v3530 = vunpack.c.l.b16 %v3498
        %v3531 = vunpack.c.l.b16 %v3499
        %v3532 = vunpack.c.l.b16 %v3500
        %v3533 = vunpack.c.l.b16 %v3501
        %v3534 = vunpack.c.l.b16 %v3502
        %v3535 = vunpack.c.l.b16 %v3503
        %v3536 = vunpack.c.l.b16 %v3504
        %v3537 = vunpack.c.l.b16 %v3505
        %v3538 = vpack.c.b16 %v3523, %v3522
        %v3539 = vpack.c.b16 %v3525, %v3524
        %v3540 = vpack.c.b16 %v3527, %v3526
        %v3541 = vpack.c.b16 %v3529, %v3528
        %v3542 = vpack.c.b16 %v3531, %v3530
        %v3543 = vpack.c.b16 %v3533, %v3532
        %v3544 = vpack.c.b16 %v3535, %v3534
        %v3545 = vpack.c.b16 %v3537, %v3536
        %3554 = vmatprep.subr.bf16.mxu0 0
        %3555 = vmatpush1.bf16.msra.mxu0 %v3538
        %3556 = vmatprep.subr.bf16.mxu0 0
        %3557 = vmatpush1.bf16.msra.mxu0 %v3539
        %3558 = vmatprep.subr.bf16.mxu0 0
        %3559 = vmatpush1.bf16.msra.mxu0 %v3540
        %3560 = vmatprep.subr.bf16.mxu0 0
        %3561 = vmatpush1.bf16.msra.mxu0 %v3541
        %3562 = vmatprep.subr.bf16.mxu0 0
        %3563 = vmatpush1.bf16.msra.mxu0 %v3542
        %3564 = vmatprep.subr.bf16.mxu0 0
        %3565 = vmatpush1.bf16.msra.mxu0 %v3543
        %3566 = vmatprep.subr.bf16.mxu0 0
        %3567 = vmatpush1.bf16.msra.mxu0 %v3544
        %3568 = vmatprep.subr.bf16.mxu0 0
        %3569 = vmatpush1.bf16.msra.mxu0 %v3545
        %3570 = vmatprep.subr.bf16.mxu0 0
        %3571 = vmatpush1.bf16.msra.mxu0 0
        %3572 = vmatprep.subr.bf16.mxu0 0
        %3573 = vmatpush1.bf16.msra.mxu0 0
        %3574 = vmatprep.subr.bf16.mxu0 0
        %3575 = vmatpush1.bf16.msra.mxu0 0
        %3576 = vmatprep.subr.bf16.mxu0 0
        %3577 = vmatpush1.bf16.msra.mxu0 0
        %3578 = vmatprep.subr.bf16.mxu0 0
        %3579 = vmatpush1.bf16.msra.mxu0 0
        %3580 = vmatprep.subr.bf16.mxu0 0
        %3581 = vmatpush1.bf16.msra.mxu0 0
        %3582 = vmatprep.subr.bf16.mxu0 0
        %3583 = vmatpush1.bf16.msra.mxu0 0
        %3584 = vmatprep.subr.bf16.mxu0 0
        %3585 = vmatpush1.bf16.msra.mxu0 0
        %3586 = vmatprep.mubr.bf16.mxu0 0
        %3587 = vmatmul.mubr.bf16.gmra.mrb[0].mxu0 %v3488
        %v3588 = vpop.f32.mrb[0].mxu0
        %v3589 = vadd.f32 0.0, %v3588
        %v3590 = vpop.f32.mrb[0].mxu0
        %v3591 = vpop.f32.mrb[0].mxu0
        %v3592 = vadd.f32 0.0, %v3591
        %v3593 = vpop.f32.mrb[0].mxu0
        %3594 = vdwg.mxu0
        %v3611 = vunpack.c.l.b16 %v3470
        %v3612 = vunpack.c.l.b16 %v3471
        %v3613 = vunpack.c.l.b16 %v3472
        %v3614 = vunpack.c.l.b16 %v3473
        %v3615 = vunpack.c.l.b16 %v3474
        %v3616 = vunpack.c.l.b16 %v3475
        %v3617 = vunpack.c.l.b16 %v3476
        %v3618 = vunpack.c.l.b16 %v3477
        %v3619 = vunpack.c.l.b16 %v3478
        %v3620 = vunpack.c.l.b16 %v3479
        %v3621 = vunpack.c.l.b16 %v3480
        %v3622 = vunpack.c.l.b16 %v3481
        %v3623 = vunpack.c.l.b16 %v3482
        %v3624 = vunpack.c.l.b16 %v3483
        %v3625 = vunpack.c.l.b16 %v3484
        %v3626 = vunpack.c.l.b16 %v3485
        %v3627 = vpack.c.b16 %v3612, %v3611
        %v3628 = vpack.c.b16 %v3614, %v3613
        %v3629 = vpack.c.b16 %v3616, %v3615
        %v3630 = vpack.c.b16 %v3618, %v3617
        %v3631 = vpack.c.b16 %v3620, %v3619
        %v3632 = vpack.c.b16 %v3622, %v3621
        %v3633 = vpack.c.b16 %v3624, %v3623
        %v3634 = vpack.c.b16 %v3626, %v3625
        %3643 = vmatprep.subr.bf16.mxu0 0
        %3644 = vmatpush1.bf16.msra.mxu0 %v3627
        %3645 = vmatprep.subr.bf16.mxu0 0
        %3646 = vmatpush1.bf16.msra.mxu0 %v3628
        %3647 = vmatprep.subr.bf16.mxu0 0
        %3648 = vmatpush1.bf16.msra.mxu0 %v3629
        %3649 = vmatprep.subr.bf16.mxu0 0
        %3650 = vmatpush1.bf16.msra.mxu0 %v3630
        %3651 = vmatprep.subr.bf16.mxu0 0
        %3652 = vmatpush1.bf16.msra.mxu0 %v3631
        %3653 = vmatprep.subr.bf16.mxu0 0
        %3654 = vmatpush1.bf16.msra.mxu0 %v3632
        %3655 = vmatprep.subr.bf16.mxu0 0
        %3656 = vmatpush1.bf16.msra.mxu0 %v3633
        %3657 = vmatprep.subr.bf16.mxu0 0
        %3658 = vmatpush1.bf16.msra.mxu0 %v3634
        %3659 = vmatprep.subr.bf16.mxu0 0
        %3660 = vmatpush1.bf16.msra.mxu0 0
        %3661 = vmatprep.subr.bf16.mxu0 0
        %3662 = vmatpush1.bf16.msra.mxu0 0
        %3663 = vmatprep.subr.bf16.mxu0 0
        %3664 = vmatpush1.bf16.msra.mxu0 0
        %3665 = vmatprep.subr.bf16.mxu0 0
        %3666 = vmatpush1.bf16.msra.mxu0 0
        %3667 = vmatprep.subr.bf16.mxu0 0
        %3668 = vmatpush1.bf16.msra.mxu0 0
        %3669 = vmatprep.subr.bf16.mxu0 0
        %3670 = vmatpush1.bf16.msra.mxu0 0
        %3671 = vmatprep.subr.bf16.mxu0 0
        %3672 = vmatpush1.bf16.msra.mxu0 0
        %3673 = vmatprep.subr.bf16.mxu0 0
        %3674 = vmatpush1.bf16.msra.mxu0 0
        %3675 = vmatprep.mubr.bf16.mxu0 0
        %3676 = vmatmul.mubr.bf16.gmra.mrb[0].mxu0 %v3469
        %v3677 = vpop.f32.mrb[0].mxu0
        %v3678 = vadd.f32 %v3589, %v3677
        %v3679 = vpop.f32.mrb[0].mxu0
        %v3680 = vpop.f32.mrb[0].mxu0
        %v3681 = vadd.f32 %v3592, %v3680
        %v3682 = vpop.f32.mrb[0].mxu0
        %3683 = vdwg.mxu0
        %v3684 = vld [vmem:[#allocation3 + $0x2] sm:$0xff]
        %v3685 = vld [vmem:[#allocation3 + $0xa] sm:$0xff]
        %v3686 = vpack.c.bf16 %v3685, %v3684
        %s3687 = scalar_lea.vmem %s29, 128
        %v3688 = vld [vmem:[%s3687] sm:$0xf]
        %v3689 = vld [vmem:[%s3687 + $0x4] sm:$0xf]
        %v3690 = vld [vmem:[%s3687 + $0x8] sm:$0xf]
        %v3691 = vld [vmem:[%s3687 + $0xc] sm:$0xf]
        %v3692 = vld [vmem:[%s3687 + $0x10] sm:$0xf]
        %v3693 = vld [vmem:[%s3687 + $0x14] sm:$0xf]
        %v3694 = vld [vmem:[%s3687 + $0x18] sm:$0xf]
        %v3695 = vld [vmem:[%s3687 + $0x1c] sm:$0xf]
        %v3696 = vld [vmem:[%s3687 + $0x20] sm:$0xf]
        %v3697 = vld [vmem:[%s3687 + $0x24] sm:$0xf]
        %v3698 = vld [vmem:[%s3687 + $0x28] sm:$0xf]
        %v3699 = vld [vmem:[%s3687 + $0x2c] sm:$0xf]
        %v3700 = vld [vmem:[%s3687 + $0x30] sm:$0xf]
        %v3701 = vld [vmem:[%s3687 + $0x34] sm:$0xf]
        %v3702 = vld [vmem:[%s3687 + $0x38] sm:$0xf]
        %v3703 = vld [vmem:[%s3687 + $0x3c] sm:$0xf]
        %v3720 = vunpack.c.l.b16 %v3688
        %v3721 = vunpack.c.l.b16 %v3689
        %v3722 = vunpack.c.l.b16 %v3690
        %v3723 = vunpack.c.l.b16 %v3691
        %v3724 = vunpack.c.l.b16 %v3692
        %v3725 = vunpack.c.l.b16 %v3693
        %v3726 = vunpack.c.l.b16 %v3694
        %v3727 = vunpack.c.l.b16 %v3695
        %v3728 = vunpack.c.l.b16 %v3696
        %v3729 = vunpack.c.l.b16 %v3697
        %v3730 = vunpack.c.l.b16 %v3698
        %v3731 = vunpack.c.l.b16 %v3699
        %v3732 = vunpack.c.l.b16 %v3700
        %v3733 = vunpack.c.l.b16 %v3701
        %v3734 = vunpack.c.l.b16 %v3702
        %v3735 = vunpack.c.l.b16 %v3703
        %v3736 = vpack.c.b16 %v3721, %v3720
        %v3737 = vpack.c.b16 %v3723, %v3722
        %v3738 = vpack.c.b16 %v3725, %v3724
        %v3739 = vpack.c.b16 %v3727, %v3726
        %v3740 = vpack.c.b16 %v3729, %v3728
        %v3741 = vpack.c.b16 %v3731, %v3730
        %v3742 = vpack.c.b16 %v3733, %v3732
        %v3743 = vpack.c.b16 %v3735, %v3734
        %3752 = vmatprep.subr.bf16.mxu0 0
        %3753 = vmatpush1.bf16.msra.mxu0 %v3736
        %3754 = vmatprep.subr.bf16.mxu0 0
        %3755 = vmatpush1.bf16.msra.mxu0 %v3737
        %3756 = vmatprep.subr.bf16.mxu0 0
        %3757 = vmatpush1.bf16.msra.mxu0 %v3738
        %3758 = vmatprep.subr.bf16.mxu0 0
        %3759 = vmatpush1.bf16.msra.mxu0 %v3739
        %3760 = vmatprep.subr.bf16.mxu0 0
        %3761 = vmatpush1.bf16.msra.mxu0 %v3740
        %3762 = vmatprep.subr.bf16.mxu0 0
        %3763 = vmatpush1.bf16.msra.mxu0 %v3741
        %3764 = vmatprep.subr.bf16.mxu0 0
        %3765 = vmatpush1.bf16.msra.mxu0 %v3742
        %3766 = vmatprep.subr.bf16.mxu0 0
        %3767 = vmatpush1.bf16.msra.mxu0 %v3743
        %3768 = vmatprep.subr.bf16.mxu0 0
        %3769 = vmatpush1.bf16.msra.mxu0 0
        %3770 = vmatprep.subr.bf16.mxu0 0
        %3771 = vmatpush1.bf16.msra.mxu0 0
        %3772 = vmatprep.subr.bf16.mxu0 0
        %3773 = vmatpush1.bf16.msra.mxu0 0
        %3774 = vmatprep.subr.bf16.mxu0 0
        %3775 = vmatpush1.bf16.msra.mxu0 0
        %3776 = vmatprep.subr.bf16.mxu0 0
        %3777 = vmatpush1.bf16.msra.mxu0 0
        %3778 = vmatprep.subr.bf16.mxu0 0
        %3779 = vmatpush1.bf16.msra.mxu0 0
        %3780 = vmatprep.subr.bf16.mxu0 0
        %3781 = vmatpush1.bf16.msra.mxu0 0
        %3782 = vmatprep.subr.bf16.mxu0 0
        %3783 = vmatpush1.bf16.msra.mxu0 0
        %3784 = vmatprep.mubr.bf16.mxu0 0
        %3785 = vmatmul.mubr.bf16.gmra.mrb[0].mxu0 %v3686
        %v3786 = vpop.f32.mrb[0].mxu0
        %v3787 = vadd.f32 0.0, %v3786
        %v3788 = vpop.f32.mrb[0].mxu0
        %v3789 = vpop.f32.mrb[0].mxu0
        %v3790 = vadd.f32 0.0, %v3789
        %v3791 = vpop.f32.mrb[0].mxu0
        %3792 = vdwg.mxu0
        %v3793 = vadd.f32 %v3678, %v3787
        %v3794 = vadd.f32 %v3681, %v3790
        %v3795 = vld [vmem:[#allocation19] sm:$0x1]
        %v3797 = vlaneseq
        %v3798 = vshrl.u32 %v3797, 7
        %v3799 = vsub.s32 0, %v3798
        %v3800 = vrot.slane %v3795, %v3799
        %v3802 = vadd.f32 %v3793, %v3800
        %v3803 = vadd.f32 %v3794, %v3800
        %vm3804 = vcmp.gt.f32.partialorder %v3802, 0.0
        %vm3805 = vcmp.gt.f32.partialorder %v3803, 0.0
        %v3806 = vmul.f32 %v3802, 0.1
        %v3807 = vmul.f32 %v3803, 0.1
        %v3808 = vsel %vm3804, %v3802, %v3806
        %v3809 = vsel %vm3805, %v3803, %v3807
        %3810 = vst [vmem:[#allocation3 + $0x1] sm:$0xff] %v3808
        %3811 = vst [vmem:[#allocation3 + $0x9] sm:$0xff] %v3809
        %v3812 = vld [vmem:[#allocation3] sm:$0xff]
        %v3813 = vld [vmem:[#allocation3 + $0x8] sm:$0xff]
        %v3814 = vpack.c.bf16 %v3813, %v3812
        %v3815 = vld [vmem:[%s33] sm:$0xf]
        %v3816 = vld [vmem:[%s33 + $0x4] sm:$0xf]
        %v3817 = vld [vmem:[%s33 + $0x8] sm:$0xf]
        %v3818 = vld [vmem:[%s33 + $0xc] sm:$0xf]
        %v3819 = vld [vmem:[%s33 + $0x10] sm:$0xf]
        %v3820 = vld [vmem:[%s33 + $0x14] sm:$0xf]
        %v3821 = vld [vmem:[%s33 + $0x18] sm:$0xf]
        %v3822 = vld [vmem:[%s33 + $0x1c] sm:$0xf]
        %v3823 = vld [vmem:[%s33 + $0x20] sm:$0xf]
        %v3824 = vld [vmem:[%s33 + $0x24] sm:$0xf]
        %v3825 = vld [vmem:[%s33 + $0x28] sm:$0xf]
        %v3826 = vld [vmem:[%s33 + $0x2c] sm:$0xf]
        %v3827 = vld [vmem:[%s33 + $0x30] sm:$0xf]
        %v3828 = vld [vmem:[%s33 + $0x34] sm:$0xf]
        %v3829 = vld [vmem:[%s33 + $0x38] sm:$0xf]
        %v3830 = vld [vmem:[%s33 + $0x3c] sm:$0xf]
        %v3831 = vld [vmem:[#allocation3 + $0x1] sm:$0xff]
        %v3832 = vld [vmem:[#allocation3 + $0x9] sm:$0xff]
        %v3833 = vpack.c.bf16 %v3832, %v3831
        %s3834 = scalar_lea.vmem %s33, 64
        %v3835 = vld [vmem:[%s3834] sm:$0xf]
        %v3836 = vld [vmem:[%s3834 + $0x4] sm:$0xf]
        %v3837 = vld [vmem:[%s3834 + $0x8] sm:$0xf]
        %v3838 = vld [vmem:[%s3834 + $0xc] sm:$0xf]
        %v3839 = vld [vmem:[%s3834 + $0x10] sm:$0xf]
        %v3840 = vld [vmem:[%s3834 + $0x14] sm:$0xf]
        %v3841 = vld [vmem:[%s3834 + $0x18] sm:$0xf]
        %v3842 = vld [vmem:[%s3834 + $0x1c] sm:$0xf]
        %v3843 = vld [vmem:[%s3834 + $0x20] sm:$0xf]
        %v3844 = vld [vmem:[%s3834 + $0x24] sm:$0xf]
        %v3845 = vld [vmem:[%s3834 + $0x28] sm:$0xf]
        %v3846 = vld [vmem:[%s3834 + $0x2c] sm:$0xf]
        %v3847 = vld [vmem:[%s3834 + $0x30] sm:$0xf]
        %v3848 = vld [vmem:[%s3834 + $0x34] sm:$0xf]
        %v3849 = vld [vmem:[%s3834 + $0x38] sm:$0xf]
        %v3850 = vld [vmem:[%s3834 + $0x3c] sm:$0xf]
        %v3867 = vunpack.c.l.b16 %v3835
        %v3868 = vunpack.c.l.b16 %v3836
        %v3869 = vunpack.c.l.b16 %v3837
        %v3870 = vunpack.c.l.b16 %v3838
        %v3871 = vunpack.c.l.b16 %v3839
        %v3872 = vunpack.c.l.b16 %v3840
        %v3873 = vunpack.c.l.b16 %v3841
        %v3874 = vunpack.c.l.b16 %v3842
        %v3875 = vunpack.c.l.b16 %v3843
        %v3876 = vunpack.c.l.b16 %v3844
        %v3877 = vunpack.c.l.b16 %v3845
        %v3878 = vunpack.c.l.b16 %v3846
        %v3879 = vunpack.c.l.b16 %v3847
        %v3880 = vunpack.c.l.b16 %v3848
        %v3881 = vunpack.c.l.b16 %v3849
        %v3882 = vunpack.c.l.b16 %v3850
        %v3883 = vpack.c.b16 %v3868, %v3867
        %v3884 = vpack.c.b16 %v3870, %v3869
        %v3885 = vpack.c.b16 %v3872, %v3871
        %v3886 = vpack.c.b16 %v3874, %v3873
        %v3887 = vpack.c.b16 %v3876, %v3875
        %v3888 = vpack.c.b16 %v3878, %v3877
        %v3889 = vpack.c.b16 %v3880, %v3879
        %v3890 = vpack.c.b16 %v3882, %v3881
        %3899 = vmatprep.subr.bf16.mxu0 0
        %3900 = vmatpush1.bf16.msra.mxu0 %v3883
        %3901 = vmatprep.subr.bf16.mxu0 0
        %3902 = vmatpush1.bf16.msra.mxu0 %v3884
        %3903 = vmatprep.subr.bf16.mxu0 0
        %3904 = vmatpush1.bf16.msra.mxu0 %v3885
        %3905 = vmatprep.subr.bf16.mxu0 0
        %3906 = vmatpush1.bf16.msra.mxu0 %v3886
        %3907 = vmatprep.subr.bf16.mxu0 0
        %3908 = vmatpush1.bf16.msra.mxu0 %v3887
        %3909 = vmatprep.subr.bf16.mxu0 0
        %3910 = vmatpush1.bf16.msra.mxu0 %v3888
        %3911 = vmatprep.subr.bf16.mxu0 0
        %3912 = vmatpush1.bf16.msra.mxu0 %v3889
        %3913 = vmatprep.subr.bf16.mxu0 0
        %3914 = vmatpush1.bf16.msra.mxu0 %v3890
        %3915 = vmatprep.subr.bf16.mxu0 0
        %3916 = vmatpush1.bf16.msra.mxu0 0
        %3917 = vmatprep.subr.bf16.mxu0 0
        %3918 = vmatpush1.bf16.msra.mxu0 0
        %3919 = vmatprep.subr.bf16.mxu0 0
        %3920 = vmatpush1.bf16.msra.mxu0 0
        %3921 = vmatprep.subr.bf16.mxu0 0
        %3922 = vmatpush1.bf16.msra.mxu0 0
        %3923 = vmatprep.subr.bf16.mxu0 0
        %3924 = vmatpush1.bf16.msra.mxu0 0
        %3925 = vmatprep.subr.bf16.mxu0 0
        %3926 = vmatpush1.bf16.msra.mxu0 0
        %3927 = vmatprep.subr.bf16.mxu0 0
        %3928 = vmatpush1.bf16.msra.mxu0 0
        %3929 = vmatprep.subr.bf16.mxu0 0
        %3930 = vmatpush1.bf16.msra.mxu0 0
        %3931 = vmatprep.mubr.bf16.mxu0 0
        %3932 = vmatmul.mubr.bf16.gmra.mrb[0].mxu0 %v3833
        %v3933 = vpop.f32.mrb[0].mxu0
        %v3934 = vadd.f32 0.0, %v3933
        %v3935 = vpop.f32.mrb[0].mxu0
        %v3936 = vpop.f32.mrb[0].mxu0
        %v3937 = vadd.f32 0.0, %v3936
        %v3938 = vpop.f32.mrb[0].mxu0
        %3939 = vdwg.mxu0
        %v3956 = vunpack.c.l.b16 %v3815
        %v3957 = vunpack.c.l.b16 %v3816
        %v3958 = vunpack.c.l.b16 %v3817
        %v3959 = vunpack.c.l.b16 %v3818
        %v3960 = vunpack.c.l.b16 %v3819
        %v3961 = vunpack.c.l.b16 %v3820
        %v3962 = vunpack.c.l.b16 %v3821
        %v3963 = vunpack.c.l.b16 %v3822
        %v3964 = vunpack.c.l.b16 %v3823
        %v3965 = vunpack.c.l.b16 %v3824
        %v3966 = vunpack.c.l.b16 %v3825
        %v3967 = vunpack.c.l.b16 %v3826
        %v3968 = vunpack.c.l.b16 %v3827
        %v3969 = vunpack.c.l.b16 %v3828
        %v3970 = vunpack.c.l.b16 %v3829
        %v3971 = vunpack.c.l.b16 %v3830
        %v3972 = vpack.c.b16 %v3957, %v3956
        %v3973 = vpack.c.b16 %v3959, %v3958
        %v3974 = vpack.c.b16 %v3961, %v3960
        %v3975 = vpack.c.b16 %v3963, %v3962
        %v3976 = vpack.c.b16 %v3965, %v3964
        %v3977 = vpack.c.b16 %v3967, %v3966
        %v3978 = vpack.c.b16 %v3969, %v3968
        %v3979 = vpack.c.b16 %v3971, %v3970
        %3988 = vmatprep.subr.bf16.mxu0 0
        %3989 = vmatpush1.bf16.msra.mxu0 %v3972
        %3990 = vmatprep.subr.bf16.mxu0 0
        %3991 = vmatpush1.bf16.msra.mxu0 %v3973
        %3992 = vmatprep.subr.bf16.mxu0 0
        %3993 = vmatpush1.bf16.msra.mxu0 %v3974
        %3994 = vmatprep.subr.bf16.mxu0 0
        %3995 = vmatpush1.bf16.msra.mxu0 %v3975
        %3996 = vmatprep.subr.bf16.mxu0 0
        %3997 = vmatpush1.bf16.msra.mxu0 %v3976
        %3998 = vmatprep.subr.bf16.mxu0 0
        %3999 = vmatpush1.bf16.msra.mxu0 %v3977
        %4000 = vmatprep.subr.bf16.mxu0 0
        %4001 = vmatpush1.bf16.msra.mxu0 %v3978
        %4002 = vmatprep.subr.bf16.mxu0 0
        %4003 = vmatpush1.bf16.msra.mxu0 %v3979
        %4004 = vmatprep.subr.bf16.mxu0 0
        %4005 = vmatpush1.bf16.msra.mxu0 0
        %4006 = vmatprep.subr.bf16.mxu0 0
        %4007 = vmatpush1.bf16.msra.mxu0 0
        %4008 = vmatprep.subr.bf16.mxu0 0
        %4009 = vmatpush1.bf16.msra.mxu0 0
        %4010 = vmatprep.subr.bf16.mxu0 0
        %4011 = vmatpush1.bf16.msra.mxu0 0
        %4012 = vmatprep.subr.bf16.mxu0 0
        %4013 = vmatpush1.bf16.msra.mxu0 0
        %4014 = vmatprep.subr.bf16.mxu0 0
        %4015 = vmatpush1.bf16.msra.mxu0 0
        %4016 = vmatprep.subr.bf16.mxu0 0
        %4017 = vmatpush1.bf16.msra.mxu0 0
        %4018 = vmatprep.subr.bf16.mxu0 0
        %4019 = vmatpush1.bf16.msra.mxu0 0
        %4020 = vmatprep.mubr.bf16.mxu0 0
        %4021 = vmatmul.mubr.bf16.gmra.mrb[0].mxu0 %v3814
        %v4022 = vpop.f32.mrb[0].mxu0
        %v4023 = vadd.f32 %v3934, %v4022
        %v4024 = vpop.f32.mrb[0].mxu0
        %v4025 = vpop.f32.mrb[0].mxu0
        %v4026 = vadd.f32 %v3937, %v4025
        %v4027 = vpop.f32.mrb[0].mxu0
        %4028 = vdwg.mxu0
        %v4029 = vld [vmem:[#allocation3 + $0x2] sm:$0xff]
        %v4030 = vld [vmem:[#allocation3 + $0xa] sm:$0xff]
        %v4031 = vpack.c.bf16 %v4030, %v4029
        %s4032 = scalar_lea.vmem %s33, 128
        %v4033 = vld [vmem:[%s4032] sm:$0xf]
        %v4034 = vld [vmem:[%s4032 + $0x4] sm:$0xf]
        %v4035 = vld [vmem:[%s4032 + $0x8] sm:$0xf]
        %v4036 = vld [vmem:[%s4032 + $0xc] sm:$0xf]
        %v4037 = vld [vmem:[%s4032 + $0x10] sm:$0xf]
        %v4038 = vld [vmem:[%s4032 + $0x14] sm:$0xf]
        %v4039 = vld [vmem:[%s4032 + $0x18] sm:$0xf]
        %v4040 = vld [vmem:[%s4032 + $0x1c] sm:$0xf]
        %v4041 = vld [vmem:[%s4032 + $0x20] sm:$0xf]
        %v4042 = vld [vmem:[%s4032 + $0x24] sm:$0xf]
        %v4043 = vld [vmem:[%s4032 + $0x28] sm:$0xf]
        %v4044 = vld [vmem:[%s4032 + $0x2c] sm:$0xf]
        %v4045 = vld [vmem:[%s4032 + $0x30] sm:$0xf]
        %v4046 = vld [vmem:[%s4032 + $0x34] sm:$0xf]
        %v4047 = vld [vmem:[%s4032 + $0x38] sm:$0xf]
        %v4048 = vld [vmem:[%s4032 + $0x3c] sm:$0xf]
        %v4065 = vunpack.c.l.b16 %v4033
        %v4066 = vunpack.c.l.b16 %v4034
        %v4067 = vunpack.c.l.b16 %v4035
        %v4068 = vunpack.c.l.b16 %v4036
        %v4069 = vunpack.c.l.b16 %v4037
        %v4070 = vunpack.c.l.b16 %v4038
        %v4071 = vunpack.c.l.b16 %v4039
        %v4072 = vunpack.c.l.b16 %v4040
        %v4073 = vunpack.c.l.b16 %v4041
        %v4074 = vunpack.c.l.b16 %v4042
        %v4075 = vunpack.c.l.b16 %v4043
        %v4076 = vunpack.c.l.b16 %v4044
        %v4077 = vunpack.c.l.b16 %v4045
        %v4078 = vunpack.c.l.b16 %v4046
        %v4079 = vunpack.c.l.b16 %v4047
        %v4080 = vunpack.c.l.b16 %v4048
        %v4081 = vpack.c.b16 %v4066, %v4065
        %v4082 = vpack.c.b16 %v4068, %v4067
        %v4083 = vpack.c.b16 %v4070, %v4069
        %v4084 = vpack.c.b16 %v4072, %v4071
        %v4085 = vpack.c.b16 %v4074, %v4073
        %v4086 = vpack.c.b16 %v4076, %v4075
        %v4087 = vpack.c.b16 %v4078, %v4077
        %v4088 = vpack.c.b16 %v4080, %v4079
        %4097 = vmatprep.subr.bf16.mxu0 0
        %4098 = vmatpush1.bf16.msra.mxu0 %v4081
        %4099 = vmatprep.subr.bf16.mxu0 0
        %4100 = vmatpush1.bf16.msra.mxu0 %v4082
        %4101 = vmatprep.subr.bf16.mxu0 0
        %4102 = vmatpush1.bf16.msra.mxu0 %v4083
        %4103 = vmatprep.subr.bf16.mxu0 0
        %4104 = vmatpush1.bf16.msra.mxu0 %v4084
        %4105 = vmatprep.subr.bf16.mxu0 0
        %4106 = vmatpush1.bf16.msra.mxu0 %v4085
        %4107 = vmatprep.subr.bf16.mxu0 0
        %4108 = vmatpush1.bf16.msra.mxu0 %v4086
        %4109 = vmatprep.subr.bf16.mxu0 0
        %4110 = vmatpush1.bf16.msra.mxu0 %v4087
        %4111 = vmatprep.subr.bf16.mxu0 0
        %4112 = vmatpush1.bf16.msra.mxu0 %v4088
        %4113 = vmatprep.subr.bf16.mxu0 0
        %4114 = vmatpush1.bf16.msra.mxu0 0
        %4115 = vmatprep.subr.bf16.mxu0 0
        %4116 = vmatpush1.bf16.msra.mxu0 0
        %4117 = vmatprep.subr.bf16.mxu0 0
        %4118 = vmatpush1.bf16.msra.mxu0 0
        %4119 = vmatprep.subr.bf16.mxu0 0
        %4120 = vmatpush1.bf16.msra.mxu0 0
        %4121 = vmatprep.subr.bf16.mxu0 0
        %4122 = vmatpush1.bf16.msra.mxu0 0
        %4123 = vmatprep.subr.bf16.mxu0 0
        %4124 = vmatpush1.bf16.msra.mxu0 0
        %4125 = vmatprep.subr.bf16.mxu0 0
        %4126 = vmatpush1.bf16.msra.mxu0 0
        %4127 = vmatprep.subr.bf16.mxu0 0
        %4128 = vmatpush1.bf16.msra.mxu0 0
        %4129 = vmatprep.mubr.bf16.mxu0 0
        %4130 = vmatmul.mubr.bf16.gmra.mrb[0].mxu0 %v4031
        %v4131 = vpop.f32.mrb[0].mxu0
        %v4132 = vadd.f32 0.0, %v4131
        %v4133 = vpop.f32.mrb[0].mxu0
        %v4134 = vpop.f32.mrb[0].mxu0
        %v4135 = vadd.f32 0.0, %v4134
        %v4136 = vpop.f32.mrb[0].mxu0
        %4137 = vdwg.mxu0
        %v4138 = vadd.f32 %v4023, %v4132
        %v4139 = vadd.f32 %v4026, %v4135
        %v4140 = vld [vmem:[#allocation21] sm:$0x1]
        %v4142 = vlaneseq
        %v4143 = vshrl.u32 %v4142, 7
        %v4144 = vsub.s32 0, %v4143
        %v4145 = vrot.slane %v4140, %v4144
        %v4147 = vadd.f32 %v4138, %v4145
        %v4148 = vadd.f32 %v4139, %v4145
        %v4149 = vld [vmem:[#allocation6 + $0x1] sm:$0xff]
        %v4150 = vld [vmem:[#allocation6 + $0x9] sm:$0xff]
        %v4151 = vpack.c.bf16 %v4150, %v4149
        %v4152 = vld [vmem:[#allocation22] sm:$0xf]
        %v4153 = vld [vmem:[#allocation22 + $0x4] sm:$0xf]
        %v4154 = vld [vmem:[#allocation22 + $0x8] sm:$0xf]
        %v4155 = vld [vmem:[#allocation22 + $0xc] sm:$0xf]
        %v4156 = vld [vmem:[#allocation22 + $0x10] sm:$0xf]
        %v4157 = vld [vmem:[#allocation22 + $0x14] sm:$0xf]
        %v4158 = vld [vmem:[#allocation22 + $0x18] sm:$0xf]
        %v4159 = vld [vmem:[#allocation22 + $0x1c] sm:$0xf]
        %v4160 = vld [vmem:[#allocation24] sm:$0x1]
        %v4162 = vlaneseq
        %v4163 = vshrl.u32 %v4162, 7
        %v4164 = vsub.s32 0, %v4163
        %v4165 = vrot.slane %v4160, %v4164
        %v4175 = vunpack.c.l.b16 %v4152
        %v4176 = vunpack.c.l.b16 %v4153
        %v4177 = vunpack.c.l.b16 %v4154
        %v4178 = vunpack.c.l.b16 %v4155
        %v4179 = vunpack.c.l.b16 %v4156
        %v4180 = vunpack.c.l.b16 %v4157
        %v4181 = vunpack.c.l.b16 %v4158
        %v4182 = vunpack.c.l.b16 %v4159
        %v4183 = vpack.c.b16 %v4176, %v4175
        %v4184 = vpack.c.b16 %v4178, %v4177
        %v4185 = vpack.c.b16 %v4180, %v4179
        %v4186 = vpack.c.b16 %v4182, %v4181
        %v4192 = vsel %vm3201, %v4151, 0
        %4194 = vmatprep.subr.bf16.mxu0 0
        %4195 = vmatpush1.bf16.msra.mxu0 %v4183
        %4196 = vmatprep.subr.bf16.mxu0 0
        %4197 = vmatpush1.bf16.msra.mxu0 %v4184
        %4198 = vmatprep.subr.bf16.mxu0 0
        %4199 = vmatpush1.bf16.msra.mxu0 %v4185
        %4200 = vmatprep.subr.bf16.mxu0 0
        %4201 = vmatpush1.bf16.msra.mxu0 %v4186
        %4202 = vmatprep.subr.bf16.mxu0 0
        %4203 = vmatpush1.bf16.msra.mxu0 0
        %4204 = vmatprep.subr.bf16.mxu0 0
        %4205 = vmatpush1.bf16.msra.mxu0 0
        %4206 = vmatprep.subr.bf16.mxu0 0
        %4207 = vmatpush1.bf16.msra.mxu0 0
        %4208 = vmatprep.subr.bf16.mxu0 0
        %4209 = vmatpush1.bf16.msra.mxu0 0
        %4210 = vmatprep.subr.bf16.mxu0 0
        %4211 = vmatpush1.bf16.msra.mxu0 0
        %4212 = vmatprep.subr.bf16.mxu0 0
        %4213 = vmatpush1.bf16.msra.mxu0 0
        %4214 = vmatprep.subr.bf16.mxu0 0
        %4215 = vmatpush1.bf16.msra.mxu0 0
        %4216 = vmatprep.subr.bf16.mxu0 0
        %4217 = vmatpush1.bf16.msra.mxu0 0
        %4218 = vmatprep.subr.bf16.mxu0 0
        %4219 = vmatpush1.bf16.msra.mxu0 0
        %4220 = vmatprep.subr.bf16.mxu0 0
        %4221 = vmatpush1.bf16.msra.mxu0 0
        %4222 = vmatprep.subr.bf16.mxu0 0
        %4223 = vmatpush1.bf16.msra.mxu0 0
        %4224 = vmatprep.subr.bf16.mxu0 0
        %4225 = vmatpush1.bf16.msra.mxu0 0
        %4226 = vmatprep.mubr.bf16.mxu0 0
        %4227 = vmatmul.mubr.bf16.gmra.mrb[0].mxu0 %v4192
        %v4228 = vpop.f32.mrb[0].mxu0
        %v4229 = vadd.f32 %v4165, %v4228
        %v4230 = vpop.f32.mrb[0].mxu0
        %v4231 = vpop.f32.mrb[0].mxu0
        %v4232 = vadd.f32 %v4165, %v4231
        %v4233 = vpop.f32.mrb[0].mxu0
        %4234 = vdwg.mxu0
        %v4235 = vadd.f32 %v4147, %v4229
        %v4236 = vadd.f32 %v4148, %v4232
        %vm4237 = vcmp.gt.f32.partialorder %v4235, 0.0
        %vm4238 = vcmp.gt.f32.partialorder %v4236, 0.0
        %v4239 = vmul.f32 %v4235, 0.1
        %v4240 = vmul.f32 %v4236, 0.1
        %v4241 = vsel %vm4237, %v4235, %v4239
        %v4242 = vsel %vm4238, %v4236, %v4240
        %4243 = vst [vmem:[#allocation3 + $0x1] sm:$0xff] %v4241
        %4244 = vst [vmem:[#allocation3 + $0x9] sm:$0xff] %v4242
        %v4245 = vld [vmem:[#allocation3 + $0x1] sm:$0xff]
        %v4246 = vld [vmem:[#allocation3 + $0x9] sm:$0x7f]
        %v4247 = vld [vmem:[#allocation3 + $0x2] sm:$0xff]
        %v4248 = vld [vmem:[#allocation3 + $0xa] sm:$0x7f]
        %v4249 = vmax.f32 %v4245, %v4247
        %v4250 = vmax.f32 %v4246, %v4248
        %v4251 = vld [vmem:[%s41] sm:$0xff]
        %v4252 = vld [vmem:[%s41 + $0x8] sm:$0xff]
        %v4253 = vld [vmem:[%s41 + $0x10] sm:$0xff]
        %v4254 = vld [vmem:[%s41 + $0x18] sm:$0xff]
        %v4255 = vld [vmem:[%s41 + $0x20] sm:$0xff]
        %v4256 = vld [vmem:[%s41 + $0x28] sm:$0xff]
        %v4257 = vld [vmem:[%s41 + $0x30] sm:$0xff]
        %v4258 = vld [vmem:[%s41 + $0x38] sm:$0xff]
        %v4259 = vld [vmem:[%s41 + $0x40] sm:$0xff]
        %v4260 = vld [vmem:[%s41 + $0x48] sm:$0xff]
        %v4261 = vld [vmem:[%s41 + $0x50] sm:$0xff]
        %v4262 = vld [vmem:[%s41 + $0x58] sm:$0xff]
        %v4263 = vld [vmem:[%s41 + $0x60] sm:$0xff]
        %v4264 = vld [vmem:[%s41 + $0x68] sm:$0xff]
        %v4265 = vld [vmem:[%s41 + $0x70] sm:$0xff]
        %v4266 = vld [vmem:[%s41 + $0x78] sm:$0xff]
        %4267 = vmatprep.subr.mxu0 0.0
        %4268 = vmatpush1.msra.mxu0 %v4251
        %4269 = vmatprep.subr.mxu0 0.0
        %4270 = vmatpush1.msra.mxu0 %v4252
        %4271 = vmatprep.subr.mxu0 0.0
        %4272 = vmatpush1.msra.mxu0 %v4253
        %4273 = vmatprep.subr.mxu0 0.0
        %4274 = vmatpush1.msra.mxu0 %v4254
        %4275 = vmatprep.subr.mxu0 0.0
        %4276 = vmatpush1.msra.mxu0 %v4255
        %4277 = vmatprep.subr.mxu0 0.0
        %4278 = vmatpush1.msra.mxu0 %v4256
        %4279 = vmatprep.subr.mxu0 0.0
        %4280 = vmatpush1.msra.mxu0 %v4257
        %4281 = vmatprep.subr.mxu0 0.0
        %4282 = vmatpush1.msra.mxu0 %v4258
        %4283 = vmatprep.subr.mxu0 0.0
        %4284 = vmatpush1.msra.mxu0 %v4259
        %4285 = vmatprep.subr.mxu0 0.0
        %4286 = vmatpush1.msra.mxu0 %v4260
        %4287 = vmatprep.subr.mxu0 0.0
        %4288 = vmatpush1.msra.mxu0 %v4261
        %4289 = vmatprep.subr.mxu0 0.0
        %4290 = vmatpush1.msra.mxu0 %v4262
        %4291 = vmatprep.subr.mxu0 0.0
        %4292 = vmatpush1.msra.mxu0 %v4263
        %4293 = vmatprep.subr.mxu0 0.0
        %4294 = vmatpush1.msra.mxu0 %v4264
        %4295 = vmatprep.subr.mxu0 0.0
        %4296 = vmatpush1.msra.mxu0 %v4265
        %4297 = vmatprep.subr.mxu0 0.0
        %4298 = vmatpush1.msra.mxu0 %v4266
        %4299 = vmatprep.subr.mxu0 0.0
        %4300 = vmatpush1.msra.mxu0 0.0
        %4301 = vmatprep.subr.mxu0 0.0
        %4302 = vmatpush1.msra.mxu0 0.0
        %4303 = vmatprep.subr.mxu0 0.0
        %4304 = vmatpush1.msra.mxu0 0.0
        %4305 = vmatprep.subr.mxu0 0.0
        %4306 = vmatpush1.msra.mxu0 0.0
        %4307 = vmatprep.subr.mxu0 0.0
        %4308 = vmatpush1.msra.mxu0 0.0
        %4309 = vmatprep.subr.mxu0 0.0
        %4310 = vmatpush1.msra.mxu0 0.0
        %4311 = vmatprep.subr.mxu0 0.0
        %4312 = vmatpush1.msra.mxu0 0.0
        %4313 = vmatprep.subr.mxu0 0.0
        %4314 = vmatpush1.msra.mxu0 0.0
        %4315 = vmatprep.subr.mxu0 0.0
        %4316 = vmatpush1.msra.mxu0 0.0
        %4317 = vmatprep.subr.mxu0 0.0
        %4318 = vmatpush1.msra.mxu0 0.0
        %4319 = vmatprep.subr.mxu0 0.0
        %4320 = vmatpush1.msra.mxu0 0.0
        %4321 = vmatprep.subr.mxu0 0.0
        %4322 = vmatpush1.msra.mxu0 0.0
        %4323 = vmatprep.subr.mxu0 0.0
        %4324 = vmatpush1.msra.mxu0 0.0
        %4325 = vmatprep.subr.mxu0 0.0
        %4326 = vmatpush1.msra.mxu0 0.0
        %4327 = vmatprep.subr.mxu0 0.0
        %4328 = vmatpush1.msra.mxu0 0.0
        %4329 = vmatprep.subr.mxu0 0.0
        %4330 = vmatpush1.msra.mxu0 0.0
        %4331 = vmatprep.mubr.f32.mxu0 0.0
        %4332 = vmatmul.mubr.f32.gmra.mrb[0].mxu0 %v4249
        %v4333 = vpop.f32.mrb[0].mxu0
        %v4334 = vadd.f32 0.0, %v4333
        %v4335 = vpop.f32.mrb[0].mxu0
        %4336 = vmatprep.mubr.f32.mxu0 0.0
        %4337 = vmatmul.mubr.f32.gmra.mrb[0].mxu0 %v4250
        %v4338 = vpop.f32.mrb[0].mxu0
        %v4339 = vadd.f32 0.0, %v4338
        %v4340 = vpop.f32.mrb[0].mxu0
        %4341 = vdwg.mxu0
        %v4342 = vld [vmem:[%s43] sm:$0xff]
        %v4343 = vld [vmem:[%s43 + $0x8] sm:$0xff]
        %v4344 = vld [vmem:[%s43 + $0x10] sm:$0xff]
        %v4345 = vld [vmem:[%s43 + $0x18] sm:$0xff]
        %v4346 = vld [vmem:[%s43 + $0x20] sm:$0xff]
        %v4347 = vld [vmem:[%s43 + $0x28] sm:$0xff]
        %v4348 = vld [vmem:[%s43 + $0x30] sm:$0xff]
        %v4349 = vld [vmem:[%s43 + $0x38] sm:$0xff]
        %v4350 = vld [vmem:[%s43 + $0x40] sm:$0xff]
        %v4351 = vld [vmem:[%s43 + $0x48] sm:$0xff]
        %v4352 = vld [vmem:[%s43 + $0x50] sm:$0xff]
        %v4353 = vld [vmem:[%s43 + $0x58] sm:$0xff]
        %v4354 = vld [vmem:[%s43 + $0x60] sm:$0xff]
        %v4355 = vld [vmem:[%s43 + $0x68] sm:$0xff]
        %v4356 = vld [vmem:[%s43 + $0x70] sm:$0xff]
        %v4357 = vld [vmem:[%s43 + $0x78] sm:$0xff]
        %4358 = vmatprep.subr.mxu0 0.0
        %4359 = vmatpush1.msra.mxu0 %v4342
        %4360 = vmatprep.subr.mxu0 0.0
        %4361 = vmatpush1.msra.mxu0 %v4343
        %4362 = vmatprep.subr.mxu0 0.0
        %4363 = vmatpush1.msra.mxu0 %v4344
        %4364 = vmatprep.subr.mxu0 0.0
        %4365 = vmatpush1.msra.mxu0 %v4345
        %4366 = vmatprep.subr.mxu0 0.0
        %4367 = vmatpush1.msra.mxu0 %v4346
        %4368 = vmatprep.subr.mxu0 0.0
        %4369 = vmatpush1.msra.mxu0 %v4347
        %4370 = vmatprep.subr.mxu0 0.0
        %4371 = vmatpush1.msra.mxu0 %v4348
        %4372 = vmatprep.subr.mxu0 0.0
        %4373 = vmatpush1.msra.mxu0 %v4349
        %4374 = vmatprep.subr.mxu0 0.0
        %4375 = vmatpush1.msra.mxu0 %v4350
        %4376 = vmatprep.subr.mxu0 0.0
        %4377 = vmatpush1.msra.mxu0 %v4351
        %4378 = vmatprep.subr.mxu0 0.0
        %4379 = vmatpush1.msra.mxu0 %v4352
        %4380 = vmatprep.subr.mxu0 0.0
        %4381 = vmatpush1.msra.mxu0 %v4353
        %4382 = vmatprep.subr.mxu0 0.0
        %4383 = vmatpush1.msra.mxu0 %v4354
        %4384 = vmatprep.subr.mxu0 0.0
        %4385 = vmatpush1.msra.mxu0 %v4355
        %4386 = vmatprep.subr.mxu0 0.0
        %4387 = vmatpush1.msra.mxu0 %v4356
        %4388 = vmatprep.subr.mxu0 0.0
        %4389 = vmatpush1.msra.mxu0 %v4357
        %4390 = vmatprep.subr.mxu0 0.0
        %4391 = vmatpush1.msra.mxu0 0.0
        %4392 = vmatprep.subr.mxu0 0.0
        %4393 = vmatpush1.msra.mxu0 0.0
        %4394 = vmatprep.subr.mxu0 0.0
        %4395 = vmatpush1.msra.mxu0 0.0
        %4396 = vmatprep.subr.mxu0 0.0
        %4397 = vmatpush1.msra.mxu0 0.0
        %4398 = vmatprep.subr.mxu0 0.0
        %4399 = vmatpush1.msra.mxu0 0.0
        %4400 = vmatprep.subr.mxu0 0.0
        %4401 = vmatpush1.msra.mxu0 0.0
        %4402 = vmatprep.subr.mxu0 0.0
        %4403 = vmatpush1.msra.mxu0 0.0
        %4404 = vmatprep.subr.mxu0 0.0
        %4405 = vmatpush1.msra.mxu0 0.0
        %4406 = vmatprep.subr.mxu0 0.0
        %4407 = vmatpush1.msra.mxu0 0.0
        %4408 = vmatprep.subr.mxu0 0.0
        %4409 = vmatpush1.msra.mxu0 0.0
        %4410 = vmatprep.subr.mxu0 0.0
        %4411 = vmatpush1.msra.mxu0 0.0
        %4412 = vmatprep.subr.mxu0 0.0
        %4413 = vmatpush1.msra.mxu0 0.0
        %4414 = vmatprep.subr.mxu0 0.0
        %4415 = vmatpush1.msra.mxu0 0.0
        %4416 = vmatprep.subr.mxu0 0.0
        %4417 = vmatpush1.msra.mxu0 0.0
        %4418 = vmatprep.subr.mxu0 0.0
        %4419 = vmatpush1.msra.mxu0 0.0
        %4420 = vmatprep.subr.mxu0 0.0
        %4421 = vmatpush1.msra.mxu0 0.0
        %4422 = vmatprep.mubr.f32.mxu0 0.0
        %4423 = vmatmul.mubr.f32.gmra.mrb[0].mxu0 %v4249
        %v4424 = vpop.f32.mrb[0].mxu0
        %v4425 = vadd.f32 0.0, %v4424
        %v4426 = vpop.f32.mrb[0].mxu0
        %4427 = vmatprep.mubr.f32.mxu0 0.0
        %4428 = vmatmul.mubr.f32.gmra.mrb[0].mxu0 %v4250
        %v4429 = vpop.f32.mrb[0].mxu0
        %v4430 = vadd.f32 0.0, %v4429
        %v4431 = vpop.f32.mrb[0].mxu0
        %4432 = vdwg.mxu0
        %v4433 = vmax.f32 %v4334, %v4425
        %v4434 = vmax.f32 %v4339, %v4430
        %v4435 = vld [vmem:[%s45] sm:$0xff]
        %v4436 = vld [vmem:[%s45 + $0x8] sm:$0x3]
        %vm4437 = vcmask 121856
        %v4439 = vsel %vm4437, %v4435, 0
        %v4442 = vsel %vm4437, %v4436, 0
        %v4445 = vsel %vm3117, %v4434, 0
        %4447 = vmatprep.subr.mxu0 0.0
        %4448 = vmatpush1.msra.mxu0 %v4433
        %4449 = vmatprep.subr.mxu0 0.0
        %4450 = vmatpush1.msra.mxu0 %v4445
        %4451 = vmatprep.subr.mxu0 0.0
        %4452 = vmatpush1.msra.mxu0 0.0
        %4453 = vmatprep.subr.mxu0 0.0
        %4454 = vmatpush1.msra.mxu0 0.0
        %4455 = vmatprep.subr.mxu0 0.0
        %4456 = vmatpush1.msra.mxu0 0.0
        %4457 = vmatprep.subr.mxu0 0.0
        %4458 = vmatpush1.msra.mxu0 0.0
        %4459 = vmatprep.subr.mxu0 0.0
        %4460 = vmatpush1.msra.mxu0 0.0
        %4461 = vmatprep.subr.mxu0 0.0
        %4462 = vmatpush1.msra.mxu0 0.0
        %4463 = vmatprep.subr.mxu0 0.0
        %4464 = vmatpush1.msra.mxu0 0.0
        %4465 = vmatprep.subr.mxu0 0.0
        %4466 = vmatpush1.msra.mxu0 0.0
        %4467 = vmatprep.subr.mxu0 0.0
        %4468 = vmatpush1.msra.mxu0 0.0
        %4469 = vmatprep.subr.mxu0 0.0
        %4470 = vmatpush1.msra.mxu0 0.0
        %4471 = vmatprep.subr.mxu0 0.0
        %4472 = vmatpush1.msra.mxu0 0.0
        %4473 = vmatprep.subr.mxu0 0.0
        %4474 = vmatpush1.msra.mxu0 0.0
        %4475 = vmatprep.subr.mxu0 0.0
        %4476 = vmatpush1.msra.mxu0 0.0
        %4477 = vmatprep.subr.mxu0 0.0
        %4478 = vmatpush1.msra.mxu0 0.0
        %4479 = vmatprep.subr.mxu0 0.0
        %4480 = vmatpush1.msra.mxu0 0.0
        %4481 = vmatprep.subr.mxu0 0.0
        %4482 = vmatpush1.msra.mxu0 0.0
        %4483 = vmatprep.subr.mxu0 0.0
        %4484 = vmatpush1.msra.mxu0 0.0
        %4485 = vmatprep.subr.mxu0 0.0
        %4486 = vmatpush1.msra.mxu0 0.0
        %4487 = vmatprep.subr.mxu0 0.0
        %4488 = vmatpush1.msra.mxu0 0.0
        %4489 = vmatprep.subr.mxu0 0.0
        %4490 = vmatpush1.msra.mxu0 0.0
        %4491 = vmatprep.subr.mxu0 0.0
        %4492 = vmatpush1.msra.mxu0 0.0
        %4493 = vmatprep.subr.mxu0 0.0
        %4494 = vmatpush1.msra.mxu0 0.0
        %4495 = vmatprep.subr.mxu0 0.0
        %4496 = vmatpush1.msra.mxu0 0.0
        %4497 = vmatprep.subr.mxu0 0.0
        %4498 = vmatpush1.msra.mxu0 0.0
        %4499 = vmatprep.subr.mxu0 0.0
        %4500 = vmatpush1.msra.mxu0 0.0
        %4501 = vmatprep.subr.mxu0 0.0
        %4502 = vmatpush1.msra.mxu0 0.0
        %4503 = vmatprep.subr.mxu0 0.0
        %4504 = vmatpush1.msra.mxu0 0.0
        %4505 = vmatprep.subr.mxu0 0.0
        %4506 = vmatpush1.msra.mxu0 0.0
        %4507 = vmatprep.subr.mxu0 0.0
        %4508 = vmatpush1.msra.mxu0 0.0
        %4509 = vmatprep.subr.mxu0 0.0
        %4510 = vmatpush1.msra.mxu0 0.0
        %4511 = vmatprep.mubr.f32.mxu0 0.0
        %4512 = vmatmul.mubr.f32.gmra.mrb[0].mxu0 %v4439
        %v4513 = vpop.f32.mrb[0].mxu0
        %v4514 = vadd.f32 0.0, %v4513
        %v4515 = vpop.f32.mrb[0].mxu0
        %4516 = vmatprep.mubr.f32.mxu0 0.0
        %4517 = vmatmul.mubr.f32.gmra.mrb[0].mxu0 %v4442
        %v4518 = vpop.f32.mrb[0].mxu0
        %v4519 = vadd.f32 0.0, %v4518
        %v4520 = vpop.f32.mrb[0].mxu0
        %4521 = vdwg.mxu0
        %4522 = vst.msk [vmem:[#allocation7] sm:$0xff] %vm3201, %v4514
        %4523 = vst.msk [vmem:[#allocation7 + $0x8] sm:$0x3] %vm3204, %v4519
        %4524 = vst [vmem:[#allocation4] sm:$0xff] 0.0
        %4525 = vst [vmem:[#allocation4 + $0x8] sm:$0x3] 0.0
        %v4526 = vld [vmem:[#allocation7] sm:$0xff]
        %v4527 = vpack.c.bf16 %v4526, %v4526
        %v4528 = vld [vmem:[%s47] sm:$0xf]
        %v4529 = vld [vmem:[%s47 + $0x4] sm:$0xf]
        %v4530 = vld [vmem:[%s47 + $0x8] sm:$0xf]
        %v4531 = vld [vmem:[%s47 + $0xc] sm:$0xf]
        %v4532 = vld [vmem:[%s47 + $0x10] sm:$0xf]
        %v4533 = vld [vmem:[%s47 + $0x14] sm:$0xf]
        %v4534 = vld [vmem:[%s47 + $0x18] sm:$0xf]
        %v4535 = vld [vmem:[%s47 + $0x1c] sm:$0xf]
        %v4536 = vld [vmem:[#allocation7 + $0x1] sm:$0xff]
        %v4537 = vpack.c.bf16 %v4536, %v4536
        %s4538 = scalar_lea.vmem %s47, 32
        %v4539 = vld [vmem:[%s4538] sm:$0xf]
        %v4540 = vld [vmem:[%s4538 + $0x4] sm:$0xf]
        %v4541 = vld [vmem:[%s4538 + $0x8] sm:$0xf]
        %v4542 = vld [vmem:[%s4538 + $0xc] sm:$0xf]
        %v4543 = vld [vmem:[%s4538 + $0x10] sm:$0xf]
        %v4544 = vld [vmem:[%s4538 + $0x14] sm:$0xf]
        %v4545 = vld [vmem:[%s4538 + $0x18] sm:$0xf]
        %v4546 = vld [vmem:[%s4538 + $0x1c] sm:$0xf]
        %v4555 = vunpack.c.l.b16 %v4539
        %v4556 = vunpack.c.l.b16 %v4540
        %v4557 = vunpack.c.l.b16 %v4541
        %v4558 = vunpack.c.l.b16 %v4542
        %v4559 = vunpack.c.l.b16 %v4543
        %v4560 = vunpack.c.l.b16 %v4544
        %v4561 = vunpack.c.l.b16 %v4545
        %v4562 = vunpack.c.l.b16 %v4546
        %v4563 = vpack.c.b16 %v4556, %v4555
        %v4564 = vpack.c.b16 %v4558, %v4557
        %v4565 = vpack.c.b16 %v4560, %v4559
        %v4566 = vpack.c.b16 %v4562, %v4561
        %v4572 = vsel %vm3201, %v4537, 0
        %4574 = vmatprep.subr.bf16.mxu0 0
        %4575 = vmatpush1.bf16.msra.mxu0 %v4563
        %4576 = vmatprep.subr.bf16.mxu0 0
        %4577 = vmatpush1.bf16.msra.mxu0 %v4564
        %4578 = vmatprep.subr.bf16.mxu0 0
        %4579 = vmatpush1.bf16.msra.mxu0 %v4565
        %4580 = vmatprep.subr.bf16.mxu0 0
        %4581 = vmatpush1.bf16.msra.mxu0 %v4566
        %4582 = vmatprep.subr.bf16.mxu0 0
        %4583 = vmatpush1.bf16.msra.mxu0 0
        %4584 = vmatprep.subr.bf16.mxu0 0
        %4585 = vmatpush1.bf16.msra.mxu0 0
        %4586 = vmatprep.subr.bf16.mxu0 0
        %4587 = vmatpush1.bf16.msra.mxu0 0
        %4588 = vmatprep.subr.bf16.mxu0 0
        %4589 = vmatpush1.bf16.msra.mxu0 0
        %4590 = vmatprep.subr.bf16.mxu0 0
        %4591 = vmatpush1.bf16.msra.mxu0 0
        %4592 = vmatprep.subr.bf16.mxu0 0
        %4593 = vmatpush1.bf16.msra.mxu0 0
        %4594 = vmatprep.subr.bf16.mxu0 0
        %4595 = vmatpush1.bf16.msra.mxu0 0
        %4596 = vmatprep.subr.bf16.mxu0 0
        %4597 = vmatpush1.bf16.msra.mxu0 0
        %4598 = vmatprep.subr.bf16.mxu0 0
        %4599 = vmatpush1.bf16.msra.mxu0 0
        %4600 = vmatprep.subr.bf16.mxu0 0
        %4601 = vmatpush1.bf16.msra.mxu0 0
        %4602 = vmatprep.subr.bf16.mxu0 0
        %4603 = vmatpush1.bf16.msra.mxu0 0
        %4604 = vmatprep.subr.bf16.mxu0 0
        %4605 = vmatpush1.bf16.msra.mxu0 0
        %4606 = vmatprep.mubr.bf16.mxu0 0
        %4607 = vmatmul.mubr.bf16.gmra.mrb[0].mxu0 %v4572
        %v4608 = vpop.f32.mrb[0].mxu0
        %v4609 = vadd.f32 0.0, %v4608
        %v4610 = vpop.f32.mrb[0].mxu0
        %v4611 = vpop.f32.mrb[0].mxu0
        %v4612 = vpop.f32.mrb[0].mxu0
        %4613 = vdwg.mxu0
        %v4622 = vunpack.c.l.b16 %v4528
        %v4623 = vunpack.c.l.b16 %v4529
        %v4624 = vunpack.c.l.b16 %v4530
        %v4625 = vunpack.c.l.b16 %v4531
        %v4626 = vunpack.c.l.b16 %v4532
        %v4627 = vunpack.c.l.b16 %v4533
        %v4628 = vunpack.c.l.b16 %v4534
        %v4629 = vunpack.c.l.b16 %v4535
        %v4630 = vpack.c.b16 %v4623, %v4622
        %v4631 = vpack.c.b16 %v4625, %v4624
        %v4632 = vpack.c.b16 %v4627, %v4626
        %v4633 = vpack.c.b16 %v4629, %v4628
        %v4639 = vsel %vm3201, %v4527, 0
        %4641 = vmatprep.subr.bf16.mxu0 0
        %4642 = vmatpush1.bf16.msra.mxu0 %v4630
        %4643 = vmatprep.subr.bf16.mxu0 0
        %4644 = vmatpush1.bf16.msra.mxu0 %v4631
        %4645 = vmatprep.subr.bf16.mxu0 0
        %4646 = vmatpush1.bf16.msra.mxu0 %v4632
        %4647 = vmatprep.subr.bf16.mxu0 0
        %4648 = vmatpush1.bf16.msra.mxu0 %v4633
        %4649 = vmatprep.subr.bf16.mxu0 0
        %4650 = vmatpush1.bf16.msra.mxu0 0
        %4651 = vmatprep.subr.bf16.mxu0 0
        %4652 = vmatpush1.bf16.msra.mxu0 0
        %4653 = vmatprep.subr.bf16.mxu0 0
        %4654 = vmatpush1.bf16.msra.mxu0 0
        %4655 = vmatprep.subr.bf16.mxu0 0
        %4656 = vmatpush1.bf16.msra.mxu0 0
        %4657 = vmatprep.subr.bf16.mxu0 0
        %4658 = vmatpush1.bf16.msra.mxu0 0
        %4659 = vmatprep.subr.bf16.mxu0 0
        %4660 = vmatpush1.bf16.msra.mxu0 0
        %4661 = vmatprep.subr.bf16.mxu0 0
        %4662 = vmatpush1.bf16.msra.mxu0 0
        %4663 = vmatprep.subr.bf16.mxu0 0
        %4664 = vmatpush1.bf16.msra.mxu0 0
        %4665 = vmatprep.subr.bf16.mxu0 0
        %4666 = vmatpush1.bf16.msra.mxu0 0
        %4667 = vmatprep.subr.bf16.mxu0 0
        %4668 = vmatpush1.bf16.msra.mxu0 0
        %4669 = vmatprep.subr.bf16.mxu0 0
        %4670 = vmatpush1.bf16.msra.mxu0 0
        %4671 = vmatprep.subr.bf16.mxu0 0
        %4672 = vmatpush1.bf16.msra.mxu0 0
        %4673 = vmatprep.mubr.bf16.mxu0 0
        %4674 = vmatmul.mubr.bf16.gmra.mrb[0].mxu0 %v4639
        %v4675 = vpop.f32.mrb[0].mxu0
        %v4676 = vadd.f32 %v4609, %v4675
        %v4677 = vpop.f32.mrb[0].mxu0
        %v4678 = vpop.f32.mrb[0].mxu0
        %v4679 = vpop.f32.mrb[0].mxu0
        %4680 = vdwg.mxu0
        %v4681 = vld [vmem:[#allocation7 + $0x2] sm:$0xff]
        %v4682 = vpack.c.bf16 %v4681, %v4681
        %s4683 = scalar_lea.vmem %s47, 64
        %v4684 = vld [vmem:[%s4683] sm:$0xf]
        %v4685 = vld [vmem:[%s4683 + $0x4] sm:$0xf]
        %v4686 = vld [vmem:[%s4683 + $0x8] sm:$0xf]
        %v4687 = vld [vmem:[%s4683 + $0xc] sm:$0xf]
        %v4688 = vld [vmem:[%s4683 + $0x10] sm:$0xf]
        %v4689 = vld [vmem:[%s4683 + $0x14] sm:$0xf]
        %v4690 = vld [vmem:[%s4683 + $0x18] sm:$0xf]
        %v4691 = vld [vmem:[%s4683 + $0x1c] sm:$0xf]
        %v4700 = vunpack.c.l.b16 %v4684
        %v4701 = vunpack.c.l.b16 %v4685
        %v4702 = vunpack.c.l.b16 %v4686
        %v4703 = vunpack.c.l.b16 %v4687
        %v4704 = vunpack.c.l.b16 %v4688
        %v4705 = vunpack.c.l.b16 %v4689
        %v4706 = vunpack.c.l.b16 %v4690
        %v4707 = vunpack.c.l.b16 %v4691
        %v4708 = vpack.c.b16 %v4701, %v4700
        %v4709 = vpack.c.b16 %v4703, %v4702
        %v4710 = vpack.c.b16 %v4705, %v4704
        %v4711 = vpack.c.b16 %v4707, %v4706
        %v4717 = vsel %vm3201, %v4682, 0
        %4719 = vmatprep.subr.bf16.mxu0 0
        %4720 = vmatpush1.bf16.msra.mxu0 %v4708
        %4721 = vmatprep.subr.bf16.mxu0 0
        %4722 = vmatpush1.bf16.msra.mxu0 %v4709
        %4723 = vmatprep.subr.bf16.mxu0 0
        %4724 = vmatpush1.bf16.msra.mxu0 %v4710
        %4725 = vmatprep.subr.bf16.mxu0 0
        %4726 = vmatpush1.bf16.msra.mxu0 %v4711
        %4727 = vmatprep.subr.bf16.mxu0 0
        %4728 = vmatpush1.bf16.msra.mxu0 0
        %4729 = vmatprep.subr.bf16.mxu0 0
        %4730 = vmatpush1.bf16.msra.mxu0 0
        %4731 = vmatprep.subr.bf16.mxu0 0
        %4732 = vmatpush1.bf16.msra.mxu0 0
        %4733 = vmatprep.subr.bf16.mxu0 0
        %4734 = vmatpush1.bf16.msra.mxu0 0
        %4735 = vmatprep.subr.bf16.mxu0 0
        %4736 = vmatpush1.bf16.msra.mxu0 0
        %4737 = vmatprep.subr.bf16.mxu0 0
        %4738 = vmatpush1.bf16.msra.mxu0 0
        %4739 = vmatprep.subr.bf16.mxu0 0
        %4740 = vmatpush1.bf16.msra.mxu0 0
        %4741 = vmatprep.subr.bf16.mxu0 0
        %4742 = vmatpush1.bf16.msra.mxu0 0
        %4743 = vmatprep.subr.bf16.mxu0 0
        %4744 = vmatpush1.bf16.msra.mxu0 0
        %4745 = vmatprep.subr.bf16.mxu0 0
        %4746 = vmatpush1.bf16.msra.mxu0 0
        %4747 = vmatprep.subr.bf16.mxu0 0
        %4748 = vmatpush1.bf16.msra.mxu0 0
        %4749 = vmatprep.subr.bf16.mxu0 0
        %4750 = vmatpush1.bf16.msra.mxu0 0
        %4751 = vmatprep.mubr.bf16.mxu0 0
        %4752 = vmatmul.mubr.bf16.gmra.mrb[0].mxu0 %v4717
        %v4753 = vpop.f32.mrb[0].mxu0
        %v4754 = vadd.f32 0.0, %v4753
        %v4755 = vpop.f32.mrb[0].mxu0
        %v4756 = vpop.f32.mrb[0].mxu0
        %v4757 = vpop.f32.mrb[0].mxu0
        %4758 = vdwg.mxu0
        %v4759 = vadd.f32 %v4676, %v4754
        %v4760 = vld [vmem:[#allocation25] sm:$0x1]
        %v4762 = vlaneseq
        %v4763 = vshrl.u32 %v4762, 7
        %v4764 = vsub.s32 0, %v4763
        %v4765 = vrot.slane %v4760, %v4764
        %v4767 = vadd.f32 %v4759, %v4765
        %vm4768 = vcmp.gt.f32.partialorder %v4767, 0.0
        %v4769 = vmul.f32 %v4767, 0.1
        %v4770 = vsel %vm4768, %v4767, %v4769
        %4771 = vst [vmem:[#allocation4 + $0x1] sm:$0xff] %v4770
        %v4772 = vld [vmem:[#allocation4] sm:$0xff]
        %v4773 = vpack.c.bf16 %v4772, %v4772
        %v4774 = vld [vmem:[%s51] sm:$0xf]
        %v4775 = vld [vmem:[%s51 + $0x4] sm:$0xf]
        %v4776 = vld [vmem:[%s51 + $0x8] sm:$0xf]
        %v4777 = vld [vmem:[%s51 + $0xc] sm:$0xf]
        %v4778 = vld [vmem:[%s51 + $0x10] sm:$0xf]
        %v4779 = vld [vmem:[%s51 + $0x14] sm:$0xf]
        %v4780 = vld [vmem:[%s51 + $0x18] sm:$0xf]
        %v4781 = vld [vmem:[%s51 + $0x1c] sm:$0xf]
        %v4782 = vld [vmem:[%s51 + $0x20] sm:$0xf]
        %v4783 = vld [vmem:[%s51 + $0x24] sm:$0xf]
        %v4784 = vld [vmem:[%s51 + $0x28] sm:$0xf]
        %v4785 = vld [vmem:[%s51 + $0x2c] sm:$0xf]
        %v4786 = vld [vmem:[%s51 + $0x30] sm:$0xf]
        %v4787 = vld [vmem:[%s51 + $0x34] sm:$0xf]
        %v4788 = vld [vmem:[%s51 + $0x38] sm:$0xf]
        %v4789 = vld [vmem:[%s51 + $0x3c] sm:$0xf]
        %v4790 = vld [vmem:[#allocation4 + $0x1] sm:$0xff]
        %v4791 = vpack.c.bf16 %v4790, %v4790
        %s4792 = scalar_lea.vmem %s51, 64
        %v4793 = vld [vmem:[%s4792] sm:$0xf]
        %v4794 = vld [vmem:[%s4792 + $0x4] sm:$0xf]
        %v4795 = vld [vmem:[%s4792 + $0x8] sm:$0xf]
        %v4796 = vld [vmem:[%s4792 + $0xc] sm:$0xf]
        %v4797 = vld [vmem:[%s4792 + $0x10] sm:$0xf]
        %v4798 = vld [vmem:[%s4792 + $0x14] sm:$0xf]
        %v4799 = vld [vmem:[%s4792 + $0x18] sm:$0xf]
        %v4800 = vld [vmem:[%s4792 + $0x1c] sm:$0xf]
        %v4801 = vld [vmem:[%s4792 + $0x20] sm:$0xf]
        %v4802 = vld [vmem:[%s4792 + $0x24] sm:$0xf]
        %v4803 = vld [vmem:[%s4792 + $0x28] sm:$0xf]
        %v4804 = vld [vmem:[%s4792 + $0x2c] sm:$0xf]
        %v4805 = vld [vmem:[%s4792 + $0x30] sm:$0xf]
        %v4806 = vld [vmem:[%s4792 + $0x34] sm:$0xf]
        %v4807 = vld [vmem:[%s4792 + $0x38] sm:$0xf]
        %v4808 = vld [vmem:[%s4792 + $0x3c] sm:$0xf]
        %v4825 = vunpack.c.l.b16 %v4793
        %v4826 = vunpack.c.l.b16 %v4794
        %v4827 = vunpack.c.l.b16 %v4795
        %v4828 = vunpack.c.l.b16 %v4796
        %v4829 = vunpack.c.l.b16 %v4797
        %v4830 = vunpack.c.l.b16 %v4798
        %v4831 = vunpack.c.l.b16 %v4799
        %v4832 = vunpack.c.l.b16 %v4800
        %v4833 = vunpack.c.l.b16 %v4801
        %v4834 = vunpack.c.l.b16 %v4802
        %v4835 = vunpack.c.l.b16 %v4803
        %v4836 = vunpack.c.l.b16 %v4804
        %v4837 = vunpack.c.l.b16 %v4805
        %v4838 = vunpack.c.l.b16 %v4806
        %v4839 = vunpack.c.l.b16 %v4807
        %v4840 = vunpack.c.l.b16 %v4808
        %v4841 = vpack.c.b16 %v4826, %v4825
        %v4842 = vpack.c.b16 %v4828, %v4827
        %v4843 = vpack.c.b16 %v4830, %v4829
        %v4844 = vpack.c.b16 %v4832, %v4831
        %v4845 = vpack.c.b16 %v4834, %v4833
        %v4846 = vpack.c.b16 %v4836, %v4835
        %v4847 = vpack.c.b16 %v4838, %v4837
        %v4848 = vpack.c.b16 %v4840, %v4839
        %4857 = vmatprep.subr.bf16.mxu0 0
        %4858 = vmatpush1.bf16.msra.mxu0 %v4841
        %4859 = vmatprep.subr.bf16.mxu0 0
        %4860 = vmatpush1.bf16.msra.mxu0 %v4842
        %4861 = vmatprep.subr.bf16.mxu0 0
        %4862 = vmatpush1.bf16.msra.mxu0 %v4843
        %4863 = vmatprep.subr.bf16.mxu0 0
        %4864 = vmatpush1.bf16.msra.mxu0 %v4844
        %4865 = vmatprep.subr.bf16.mxu0 0
        %4866 = vmatpush1.bf16.msra.mxu0 %v4845
        %4867 = vmatprep.subr.bf16.mxu0 0
        %4868 = vmatpush1.bf16.msra.mxu0 %v4846
        %4869 = vmatprep.subr.bf16.mxu0 0
        %4870 = vmatpush1.bf16.msra.mxu0 %v4847
        %4871 = vmatprep.subr.bf16.mxu0 0
        %4872 = vmatpush1.bf16.msra.mxu0 %v4848
        %4873 = vmatprep.subr.bf16.mxu0 0
        %4874 = vmatpush1.bf16.msra.mxu0 0
        %4875 = vmatprep.subr.bf16.mxu0 0
        %4876 = vmatpush1.bf16.msra.mxu0 0
        %4877 = vmatprep.subr.bf16.mxu0 0
        %4878 = vmatpush1.bf16.msra.mxu0 0
        %4879 = vmatprep.subr.bf16.mxu0 0
        %4880 = vmatpush1.bf16.msra.mxu0 0
        %4881 = vmatprep.subr.bf16.mxu0 0
        %4882 = vmatpush1.bf16.msra.mxu0 0
        %4883 = vmatprep.subr.bf16.mxu0 0
        %4884 = vmatpush1.bf16.msra.mxu0 0
        %4885 = vmatprep.subr.bf16.mxu0 0
        %4886 = vmatpush1.bf16.msra.mxu0 0
        %4887 = vmatprep.subr.bf16.mxu0 0
        %4888 = vmatpush1.bf16.msra.mxu0 0
        %4889 = vmatprep.mubr.bf16.mxu0 0
        %4890 = vmatmul.mubr.bf16.gmra.mrb[0].mxu0 %v4791
        %v4891 = vpop.f32.mrb[0].mxu0
        %v4892 = vadd.f32 0.0, %v4891
        %v4893 = vpop.f32.mrb[0].mxu0
        %v4894 = vpop.f32.mrb[0].mxu0
        %v4895 = vpop.f32.mrb[0].mxu0
        %4896 = vdwg.mxu0
        %v4913 = vunpack.c.l.b16 %v4774
        %v4914 = vunpack.c.l.b16 %v4775
        %v4915 = vunpack.c.l.b16 %v4776
        %v4916 = vunpack.c.l.b16 %v4777
        %v4917 = vunpack.c.l.b16 %v4778
        %v4918 = vunpack.c.l.b16 %v4779
        %v4919 = vunpack.c.l.b16 %v4780
        %v4920 = vunpack.c.l.b16 %v4781
        %v4921 = vunpack.c.l.b16 %v4782
        %v4922 = vunpack.c.l.b16 %v4783
        %v4923 = vunpack.c.l.b16 %v4784
        %v4924 = vunpack.c.l.b16 %v4785
        %v4925 = vunpack.c.l.b16 %v4786
        %v4926 = vunpack.c.l.b16 %v4787
        %v4927 = vunpack.c.l.b16 %v4788
        %v4928 = vunpack.c.l.b16 %v4789
        %v4929 = vpack.c.b16 %v4914, %v4913
        %v4930 = vpack.c.b16 %v4916, %v4915
        %v4931 = vpack.c.b16 %v4918, %v4917
        %v4932 = vpack.c.b16 %v4920, %v4919
        %v4933 = vpack.c.b16 %v4922, %v4921
        %v4934 = vpack.c.b16 %v4924, %v4923
        %v4935 = vpack.c.b16 %v4926, %v4925
        %v4936 = vpack.c.b16 %v4928, %v4927
        %4945 = vmatprep.subr.bf16.mxu0 0
        %4946 = vmatpush1.bf16.msra.mxu0 %v4929
        %4947 = vmatprep.subr.bf16.mxu0 0
        %4948 = vmatpush1.bf16.msra.mxu0 %v4930
        %4949 = vmatprep.subr.bf16.mxu0 0
        %4950 = vmatpush1.bf16.msra.mxu0 %v4931
        %4951 = vmatprep.subr.bf16.mxu0 0
        %4952 = vmatpush1.bf16.msra.mxu0 %v4932
        %4953 = vmatprep.subr.bf16.mxu0 0
        %4954 = vmatpush1.bf16.msra.mxu0 %v4933
        %4955 = vmatprep.subr.bf16.mxu0 0
        %4956 = vmatpush1.bf16.msra.mxu0 %v4934
        %4957 = vmatprep.subr.bf16.mxu0 0
        %4958 = vmatpush1.bf16.msra.mxu0 %v4935
        %4959 = vmatprep.subr.bf16.mxu0 0
        %4960 = vmatpush1.bf16.msra.mxu0 %v4936
        %4961 = vmatprep.subr.bf16.mxu0 0
        %4962 = vmatpush1.bf16.msra.mxu0 0
        %4963 = vmatprep.subr.bf16.mxu0 0
        %4964 = vmatpush1.bf16.msra.mxu0 0
        %4965 = vmatprep.subr.bf16.mxu0 0
        %4966 = vmatpush1.bf16.msra.mxu0 0
        %4967 = vmatprep.subr.bf16.mxu0 0
        %4968 = vmatpush1.bf16.msra.mxu0 0
        %4969 = vmatprep.subr.bf16.mxu0 0
        %4970 = vmatpush1.bf16.msra.mxu0 0
        %4971 = vmatprep.subr.bf16.mxu0 0
        %4972 = vmatpush1.bf16.msra.mxu0 0
        %4973 = vmatprep.subr.bf16.mxu0 0
        %4974 = vmatpush1.bf16.msra.mxu0 0
        %4975 = vmatprep.subr.bf16.mxu0 0
        %4976 = vmatpush1.bf16.msra.mxu0 0
        %4977 = vmatprep.mubr.bf16.mxu0 0
        %4978 = vmatmul.mubr.bf16.gmra.mrb[0].mxu0 %v4773
        %v4979 = vpop.f32.mrb[0].mxu0
        %v4980 = vadd.f32 %v4892, %v4979
        %v4981 = vpop.f32.mrb[0].mxu0
        %v4982 = vpop.f32.mrb[0].mxu0
        %v4983 = vpop.f32.mrb[0].mxu0
        %4984 = vdwg.mxu0
        %v4985 = vld [vmem:[#allocation4 + $0x2] sm:$0xff]
        %v4986 = vpack.c.bf16 %v4985, %v4985
        %s4987 = scalar_lea.vmem %s51, 128
        %v4988 = vld [vmem:[%s4987] sm:$0xf]
        %v4989 = vld [vmem:[%s4987 + $0x4] sm:$0xf]
        %v4990 = vld [vmem:[%s4987 + $0x8] sm:$0xf]
        %v4991 = vld [vmem:[%s4987 + $0xc] sm:$0xf]
        %v4992 = vld [vmem:[%s4987 + $0x10] sm:$0xf]
        %v4993 = vld [vmem:[%s4987 + $0x14] sm:$0xf]
        %v4994 = vld [vmem:[%s4987 + $0x18] sm:$0xf]
        %v4995 = vld [vmem:[%s4987 + $0x1c] sm:$0xf]
        %v4996 = vld [vmem:[%s4987 + $0x20] sm:$0xf]
        %v4997 = vld [vmem:[%s4987 + $0x24] sm:$0xf]
        %v4998 = vld [vmem:[%s4987 + $0x28] sm:$0xf]
        %v4999 = vld [vmem:[%s4987 + $0x2c] sm:$0xf]
        %v5000 = vld [vmem:[%s4987 + $0x30] sm:$0xf]
        %v5001 = vld [vmem:[%s4987 + $0x34] sm:$0xf]
        %v5002 = vld [vmem:[%s4987 + $0x38] sm:$0xf]
        %v5003 = vld [vmem:[%s4987 + $0x3c] sm:$0xf]
        %v5020 = vunpack.c.l.b16 %v4988
        %v5021 = vunpack.c.l.b16 %v4989
        %v5022 = vunpack.c.l.b16 %v4990
        %v5023 = vunpack.c.l.b16 %v4991
        %v5024 = vunpack.c.l.b16 %v4992
        %v5025 = vunpack.c.l.b16 %v4993
        %v5026 = vunpack.c.l.b16 %v4994
        %v5027 = vunpack.c.l.b16 %v4995
        %v5028 = vunpack.c.l.b16 %v4996
        %v5029 = vunpack.c.l.b16 %v4997
        %v5030 = vunpack.c.l.b16 %v4998
        %v5031 = vunpack.c.l.b16 %v4999
        %v5032 = vunpack.c.l.b16 %v5000
        %v5033 = vunpack.c.l.b16 %v5001
        %v5034 = vunpack.c.l.b16 %v5002
        %v5035 = vunpack.c.l.b16 %v5003
        %v5036 = vpack.c.b16 %v5021, %v5020
        %v5037 = vpack.c.b16 %v5023, %v5022
        %v5038 = vpack.c.b16 %v5025, %v5024
        %v5039 = vpack.c.b16 %v5027, %v5026
        %v5040 = vpack.c.b16 %v5029, %v5028
        %v5041 = vpack.c.b16 %v5031, %v5030
        %v5042 = vpack.c.b16 %v5033, %v5032
        %v5043 = vpack.c.b16 %v5035, %v5034
        %5052 = vmatprep.subr.bf16.mxu0 0
        %5053 = vmatpush1.bf16.msra.mxu0 %v5036
        %5054 = vmatprep.subr.bf16.mxu0 0
        %5055 = vmatpush1.bf16.msra.mxu0 %v5037
        %5056 = vmatprep.subr.bf16.mxu0 0
        %5057 = vmatpush1.bf16.msra.mxu0 %v5038
        %5058 = vmatprep.subr.bf16.mxu0 0
        %5059 = vmatpush1.bf16.msra.mxu0 %v5039
        %5060 = vmatprep.subr.bf16.mxu0 0
        %5061 = vmatpush1.bf16.msra.mxu0 %v5040
        %5062 = vmatprep.subr.bf16.mxu0 0
        %5063 = vmatpush1.bf16.msra.mxu0 %v5041
        %5064 = vmatprep.subr.bf16.mxu0 0
        %5065 = vmatpush1.bf16.msra.mxu0 %v5042
        %5066 = vmatprep.subr.bf16.mxu0 0
        %5067 = vmatpush1.bf16.msra.mxu0 %v5043
        %5068 = vmatprep.subr.bf16.mxu0 0
        %5069 = vmatpush1.bf16.msra.mxu0 0
        %5070 = vmatprep.subr.bf16.mxu0 0
        %5071 = vmatpush1.bf16.msra.mxu0 0
        %5072 = vmatprep.subr.bf16.mxu0 0
        %5073 = vmatpush1.bf16.msra.mxu0 0
        %5074 = vmatprep.subr.bf16.mxu0 0
        %5075 = vmatpush1.bf16.msra.mxu0 0
        %5076 = vmatprep.subr.bf16.mxu0 0
        %5077 = vmatpush1.bf16.msra.mxu0 0
        %5078 = vmatprep.subr.bf16.mxu0 0
        %5079 = vmatpush1.bf16.msra.mxu0 0
        %5080 = vmatprep.subr.bf16.mxu0 0
        %5081 = vmatpush1.bf16.msra.mxu0 0
        %5082 = vmatprep.subr.bf16.mxu0 0
        %5083 = vmatpush1.bf16.msra.mxu0 0
        %5084 = vmatprep.mubr.bf16.mxu0 0
        %5085 = vmatmul.mubr.bf16.gmra.mrb[0].mxu0 %v4986
        %v5086 = vpop.f32.mrb[0].mxu0
        %v5087 = vadd.f32 0.0, %v5086
        %v5088 = vpop.f32.mrb[0].mxu0
        %v5089 = vpop.f32.mrb[0].mxu0
        %v5090 = vpop.f32.mrb[0].mxu0
        %5091 = vdwg.mxu0
        %v5092 = vadd.f32 %v4980, %v5087
        %v5093 = vld [vmem:[#allocation27] sm:$0x1]
        %v5095 = vlaneseq
        %v5096 = vshrl.u32 %v5095, 7
        %v5097 = vsub.s32 0, %v5096
        %v5098 = vrot.slane %v5093, %v5097
        %v5100 = vadd.f32 %v5092, %v5098
        %vm5101 = vcmp.gt.f32.partialorder %v5100, 0.0
        %v5102 = vmul.f32 %v5100, 0.1
        %v5103 = vsel %vm5101, %v5100, %v5102
        %5104 = vst [vmem:[#allocation4 + $0x1] sm:$0xff] %v5103
        %v5105 = vld [vmem:[#allocation4] sm:$0xff]
        %v5106 = vpack.c.bf16 %v5105, %v5105
        %v5107 = vld [vmem:[%s55] sm:$0xf]
        %v5108 = vld [vmem:[%s55 + $0x4] sm:$0xf]
        %v5109 = vld [vmem:[%s55 + $0x8] sm:$0xf]
        %v5110 = vld [vmem:[%s55 + $0xc] sm:$0xf]
        %v5111 = vld [vmem:[%s55 + $0x10] sm:$0xf]
        %v5112 = vld [vmem:[%s55 + $0x14] sm:$0xf]
        %v5113 = vld [vmem:[%s55 + $0x18] sm:$0xf]
        %v5114 = vld [vmem:[%s55 + $0x1c] sm:$0xf]
        %v5115 = vld [vmem:[%s55 + $0x20] sm:$0xf]
        %v5116 = vld [vmem:[%s55 + $0x24] sm:$0xf]
        %v5117 = vld [vmem:[%s55 + $0x28] sm:$0xf]
        %v5118 = vld [vmem:[%s55 + $0x2c] sm:$0xf]
        %v5119 = vld [vmem:[%s55 + $0x30] sm:$0xf]
        %v5120 = vld [vmem:[%s55 + $0x34] sm:$0xf]
        %v5121 = vld [vmem:[%s55 + $0x38] sm:$0xf]
        %v5122 = vld [vmem:[%s55 + $0x3c] sm:$0xf]
        %v5123 = vld [vmem:[#allocation4 + $0x1] sm:$0xff]
        %v5124 = vpack.c.bf16 %v5123, %v5123
        %s5125 = scalar_lea.vmem %s55, 64
        %v5126 = vld [vmem:[%s5125] sm:$0xf]
        %v5127 = vld [vmem:[%s5125 + $0x4] sm:$0xf]
        %v5128 = vld [vmem:[%s5125 + $0x8] sm:$0xf]
        %v5129 = vld [vmem:[%s5125 + $0xc] sm:$0xf]
        %v5130 = vld [vmem:[%s5125 + $0x10] sm:$0xf]
        %v5131 = vld [vmem:[%s5125 + $0x14] sm:$0xf]
        %v5132 = vld [vmem:[%s5125 + $0x18] sm:$0xf]
        %v5133 = vld [vmem:[%s5125 + $0x1c] sm:$0xf]
        %v5134 = vld [vmem:[%s5125 + $0x20] sm:$0xf]
        %v5135 = vld [vmem:[%s5125 + $0x24] sm:$0xf]
        %v5136 = vld [vmem:[%s5125 + $0x28] sm:$0xf]
        %v5137 = vld [vmem:[%s5125 + $0x2c] sm:$0xf]
        %v5138 = vld [vmem:[%s5125 + $0x30] sm:$0xf]
        %v5139 = vld [vmem:[%s5125 + $0x34] sm:$0xf]
        %v5140 = vld [vmem:[%s5125 + $0x38] sm:$0xf]
        %v5141 = vld [vmem:[%s5125 + $0x3c] sm:$0xf]
        %v5158 = vunpack.c.l.b16 %v5126
        %v5159 = vunpack.c.l.b16 %v5127
        %v5160 = vunpack.c.l.b16 %v5128
        %v5161 = vunpack.c.l.b16 %v5129
        %v5162 = vunpack.c.l.b16 %v5130
        %v5163 = vunpack.c.l.b16 %v5131
        %v5164 = vunpack.c.l.b16 %v5132
        %v5165 = vunpack.c.l.b16 %v5133
        %v5166 = vunpack.c.l.b16 %v5134
        %v5167 = vunpack.c.l.b16 %v5135
        %v5168 = vunpack.c.l.b16 %v5136
        %v5169 = vunpack.c.l.b16 %v5137
        %v5170 = vunpack.c.l.b16 %v5138
        %v5171 = vunpack.c.l.b16 %v5139
        %v5172 = vunpack.c.l.b16 %v5140
        %v5173 = vunpack.c.l.b16 %v5141
        %v5174 = vpack.c.b16 %v5159, %v5158
        %v5175 = vpack.c.b16 %v5161, %v5160
        %v5176 = vpack.c.b16 %v5163, %v5162
        %v5177 = vpack.c.b16 %v5165, %v5164
        %v5178 = vpack.c.b16 %v5167, %v5166
        %v5179 = vpack.c.b16 %v5169, %v5168
        %v5180 = vpack.c.b16 %v5171, %v5170
        %v5181 = vpack.c.b16 %v5173, %v5172
        %5190 = vmatprep.subr.bf16.mxu0 0
        %5191 = vmatpush1.bf16.msra.mxu0 %v5174
        %5192 = vmatprep.subr.bf16.mxu0 0
        %5193 = vmatpush1.bf16.msra.mxu0 %v5175
        %5194 = vmatprep.subr.bf16.mxu0 0
        %5195 = vmatpush1.bf16.msra.mxu0 %v5176
        %5196 = vmatprep.subr.bf16.mxu0 0
        %5197 = vmatpush1.bf16.msra.mxu0 %v5177
        %5198 = vmatprep.subr.bf16.mxu0 0
        %5199 = vmatpush1.bf16.msra.mxu0 %v5178
        %5200 = vmatprep.subr.bf16.mxu0 0
        %5201 = vmatpush1.bf16.msra.mxu0 %v5179
        %5202 = vmatprep.subr.bf16.mxu0 0
        %5203 = vmatpush1.bf16.msra.mxu0 %v5180
        %5204 = vmatprep.subr.bf16.mxu0 0
        %5205 = vmatpush1.bf16.msra.mxu0 %v5181
        %5206 = vmatprep.subr.bf16.mxu0 0
        %5207 = vmatpush1.bf16.msra.mxu0 0
        %5208 = vmatprep.subr.bf16.mxu0 0
        %5209 = vmatpush1.bf16.msra.mxu0 0
        %5210 = vmatprep.subr.bf16.mxu0 0
        %5211 = vmatpush1.bf16.msra.mxu0 0
        %5212 = vmatprep.subr.bf16.mxu0 0
        %5213 = vmatpush1.bf16.msra.mxu0 0
        %5214 = vmatprep.subr.bf16.mxu0 0
        %5215 = vmatpush1.bf16.msra.mxu0 0
        %5216 = vmatprep.subr.bf16.mxu0 0
        %5217 = vmatpush1.bf16.msra.mxu0 0
        %5218 = vmatprep.subr.bf16.mxu0 0
        %5219 = vmatpush1.bf16.msra.mxu0 0
        %5220 = vmatprep.subr.bf16.mxu0 0
        %5221 = vmatpush1.bf16.msra.mxu0 0
        %5222 = vmatprep.mubr.bf16.mxu0 0
        %5223 = vmatmul.mubr.bf16.gmra.mrb[0].mxu0 %v5124
        %v5224 = vpop.f32.mrb[0].mxu0
        %v5225 = vadd.f32 0.0, %v5224
        %v5226 = vpop.f32.mrb[0].mxu0
        %v5227 = vpop.f32.mrb[0].mxu0
        %v5228 = vpop.f32.mrb[0].mxu0
        %5229 = vdwg.mxu0
        %v5246 = vunpack.c.l.b16 %v5107
        %v5247 = vunpack.c.l.b16 %v5108
        %v5248 = vunpack.c.l.b16 %v5109
        %v5249 = vunpack.c.l.b16 %v5110
        %v5250 = vunpack.c.l.b16 %v5111
        %v5251 = vunpack.c.l.b16 %v5112
        %v5252 = vunpack.c.l.b16 %v5113
        %v5253 = vunpack.c.l.b16 %v5114
        %v5254 = vunpack.c.l.b16 %v5115
        %v5255 = vunpack.c.l.b16 %v5116
        %v5256 = vunpack.c.l.b16 %v5117
        %v5257 = vunpack.c.l.b16 %v5118
        %v5258 = vunpack.c.l.b16 %v5119
        %v5259 = vunpack.c.l.b16 %v5120
        %v5260 = vunpack.c.l.b16 %v5121
        %v5261 = vunpack.c.l.b16 %v5122
        %v5262 = vpack.c.b16 %v5247, %v5246
        %v5263 = vpack.c.b16 %v5249, %v5248
        %v5264 = vpack.c.b16 %v5251, %v5250
        %v5265 = vpack.c.b16 %v5253, %v5252
        %v5266 = vpack.c.b16 %v5255, %v5254
        %v5267 = vpack.c.b16 %v5257, %v5256
        %v5268 = vpack.c.b16 %v5259, %v5258
        %v5269 = vpack.c.b16 %v5261, %v5260
        %5278 = vmatprep.subr.bf16.mxu0 0
        %5279 = vmatpush1.bf16.msra.mxu0 %v5262
        %5280 = vmatprep.subr.bf16.mxu0 0
        %5281 = vmatpush1.bf16.msra.mxu0 %v5263
        %5282 = vmatprep.subr.bf16.mxu0 0
        %5283 = vmatpush1.bf16.msra.mxu0 %v5264
        %5284 = vmatprep.subr.bf16.mxu0 0
        %5285 = vmatpush1.bf16.msra.mxu0 %v5265
        %5286 = vmatprep.subr.bf16.mxu0 0
        %5287 = vmatpush1.bf16.msra.mxu0 %v5266
        %5288 = vmatprep.subr.bf16.mxu0 0
        %5289 = vmatpush1.bf16.msra.mxu0 %v5267
        %5290 = vmatprep.subr.bf16.mxu0 0
        %5291 = vmatpush1.bf16.msra.mxu0 %v5268
        %5292 = vmatprep.subr.bf16.mxu0 0
        %5293 = vmatpush1.bf16.msra.mxu0 %v5269
        %5294 = vmatprep.subr.bf16.mxu0 0
        %5295 = vmatpush1.bf16.msra.mxu0 0
        %5296 = vmatprep.subr.bf16.mxu0 0
        %5297 = vmatpush1.bf16.msra.mxu0 0
        %5298 = vmatprep.subr.bf16.mxu0 0
        %5299 = vmatpush1.bf16.msra.mxu0 0
        %5300 = vmatprep.subr.bf16.mxu0 0
        %5301 = vmatpush1.bf16.msra.mxu0 0
        %5302 = vmatprep.subr.bf16.mxu0 0
        %5303 = vmatpush1.bf16.msra.mxu0 0
        %5304 = vmatprep.subr.bf16.mxu0 0
        %5305 = vmatpush1.bf16.msra.mxu0 0
        %5306 = vmatprep.subr.bf16.mxu0 0
        %5307 = vmatpush1.bf16.msra.mxu0 0
        %5308 = vmatprep.subr.bf16.mxu0 0
        %5309 = vmatpush1.bf16.msra.mxu0 0
        %5310 = vmatprep.mubr.bf16.mxu0 0
        %5311 = vmatmul.mubr.bf16.gmra.mrb[0].mxu0 %v5106
        %v5312 = vpop.f32.mrb[0].mxu0
        %v5313 = vadd.f32 %v5225, %v5312
        %v5314 = vpop.f32.mrb[0].mxu0
        %v5315 = vpop.f32.mrb[0].mxu0
        %v5316 = vpop.f32.mrb[0].mxu0
        %5317 = vdwg.mxu0
        %v5318 = vld [vmem:[#allocation4 + $0x2] sm:$0xff]
        %v5319 = vpack.c.bf16 %v5318, %v5318
        %s5320 = scalar_lea.vmem %s55, 128
        %v5321 = vld [vmem:[%s5320] sm:$0xf]
        %v5322 = vld [vmem:[%s5320 + $0x4] sm:$0xf]
        %v5323 = vld [vmem:[%s5320 + $0x8] sm:$0xf]
        %v5324 = vld [vmem:[%s5320 + $0xc] sm:$0xf]
        %v5325 = vld [vmem:[%s5320 + $0x10] sm:$0xf]
        %v5326 = vld [vmem:[%s5320 + $0x14] sm:$0xf]
        %v5327 = vld [vmem:[%s5320 + $0x18] sm:$0xf]
        %v5328 = vld [vmem:[%s5320 + $0x1c] sm:$0xf]
        %v5329 = vld [vmem:[%s5320 + $0x20] sm:$0xf]
        %v5330 = vld [vmem:[%s5320 + $0x24] sm:$0xf]
        %v5331 = vld [vmem:[%s5320 + $0x28] sm:$0xf]
        %v5332 = vld [vmem:[%s5320 + $0x2c] sm:$0xf]
        %v5333 = vld [vmem:[%s5320 + $0x30] sm:$0xf]
        %v5334 = vld [vmem:[%s5320 + $0x34] sm:$0xf]
        %v5335 = vld [vmem:[%s5320 + $0x38] sm:$0xf]
        %v5336 = vld [vmem:[%s5320 + $0x3c] sm:$0xf]
        %v5353 = vunpack.c.l.b16 %v5321
        %v5354 = vunpack.c.l.b16 %v5322
        %v5355 = vunpack.c.l.b16 %v5323
        %v5356 = vunpack.c.l.b16 %v5324
        %v5357 = vunpack.c.l.b16 %v5325
        %v5358 = vunpack.c.l.b16 %v5326
        %v5359 = vunpack.c.l.b16 %v5327
        %v5360 = vunpack.c.l.b16 %v5328
        %v5361 = vunpack.c.l.b16 %v5329
        %v5362 = vunpack.c.l.b16 %v5330
        %v5363 = vunpack.c.l.b16 %v5331
        %v5364 = vunpack.c.l.b16 %v5332
        %v5365 = vunpack.c.l.b16 %v5333
        %v5366 = vunpack.c.l.b16 %v5334
        %v5367 = vunpack.c.l.b16 %v5335
        %v5368 = vunpack.c.l.b16 %v5336
        %v5369 = vpack.c.b16 %v5354, %v5353
        %v5370 = vpack.c.b16 %v5356, %v5355
        %v5371 = vpack.c.b16 %v5358, %v5357
        %v5372 = vpack.c.b16 %v5360, %v5359
        %v5373 = vpack.c.b16 %v5362, %v5361
        %v5374 = vpack.c.b16 %v5364, %v5363
        %v5375 = vpack.c.b16 %v5366, %v5365
        %v5376 = vpack.c.b16 %v5368, %v5367
        %5385 = vmatprep.subr.bf16.mxu0 0
        %5386 = vmatpush1.bf16.msra.mxu0 %v5369
        %5387 = vmatprep.subr.bf16.mxu0 0
        %5388 = vmatpush1.bf16.msra.mxu0 %v5370
        %5389 = vmatprep.subr.bf16.mxu0 0
        %5390 = vmatpush1.bf16.msra.mxu0 %v5371
        %5391 = vmatprep.subr.bf16.mxu0 0
        %5392 = vmatpush1.bf16.msra.mxu0 %v5372
        %5393 = vmatprep.subr.bf16.mxu0 0
        %5394 = vmatpush1.bf16.msra.mxu0 %v5373
        %5395 = vmatprep.subr.bf16.mxu0 0
        %5396 = vmatpush1.bf16.msra.mxu0 %v5374
        %5397 = vmatprep.subr.bf16.mxu0 0
        %5398 = vmatpush1.bf16.msra.mxu0 %v5375
        %5399 = vmatprep.subr.bf16.mxu0 0
        %5400 = vmatpush1.bf16.msra.mxu0 %v5376
        %5401 = vmatprep.subr.bf16.mxu0 0
        %5402 = vmatpush1.bf16.msra.mxu0 0
        %5403 = vmatprep.subr.bf16.mxu0 0
        %5404 = vmatpush1.bf16.msra.mxu0 0
        %5405 = vmatprep.subr.bf16.mxu0 0
        %5406 = vmatpush1.bf16.msra.mxu0 0
        %5407 = vmatprep.subr.bf16.mxu0 0
        %5408 = vmatpush1.bf16.msra.mxu0 0
        %5409 = vmatprep.subr.bf16.mxu0 0
        %5410 = vmatpush1.bf16.msra.mxu0 0
        %5411 = vmatprep.subr.bf16.mxu0 0
        %5412 = vmatpush1.bf16.msra.mxu0 0
        %5413 = vmatprep.subr.bf16.mxu0 0
        %5414 = vmatpush1.bf16.msra.mxu0 0
        %5415 = vmatprep.subr.bf16.mxu0 0
        %5416 = vmatpush1.bf16.msra.mxu0 0
        %5417 = vmatprep.mubr.bf16.mxu0 0
        %5418 = vmatmul.mubr.bf16.gmra.mrb[0].mxu0 %v5319
        %v5419 = vpop.f32.mrb[0].mxu0
        %v5420 = vadd.f32 0.0, %v5419
        %v5421 = vpop.f32.mrb[0].mxu0
        %v5422 = vpop.f32.mrb[0].mxu0
        %v5423 = vpop.f32.mrb[0].mxu0
        %5424 = vdwg.mxu0
        %v5425 = vadd.f32 %v5313, %v5420
        %v5426 = vld [vmem:[#allocation28] sm:$0x1]
        %v5428 = vlaneseq
        %v5429 = vshrl.u32 %v5428, 7
        %v5430 = vsub.s32 0, %v5429
        %v5431 = vrot.slane %v5426, %v5430
        %v5433 = vadd.f32 %v5425, %v5431
        %v5434 = vld [vmem:[#allocation7 + $0x1] sm:$0xff]
        %v5435 = vpack.c.bf16 %v5434, %v5434
        %v5436 = vld [vmem:[#allocation30] sm:$0xf]
        %v5437 = vld [vmem:[#allocation30 + $0x4] sm:$0xf]
        %v5438 = vld [vmem:[#allocation30 + $0x8] sm:$0xf]
        %v5439 = vld [vmem:[#allocation30 + $0xc] sm:$0xf]
        %v5440 = vld [vmem:[#allocation30 + $0x10] sm:$0xf]
        %v5441 = vld [vmem:[#allocation30 + $0x14] sm:$0xf]
        %v5442 = vld [vmem:[#allocation30 + $0x18] sm:$0xf]
        %v5443 = vld [vmem:[#allocation30 + $0x1c] sm:$0xf]
        %v5444 = vld [vmem:[#allocation31] sm:$0x1]
        %v5446 = vlaneseq
        %v5447 = vshrl.u32 %v5446, 7
        %v5448 = vsub.s32 0, %v5447
        %v5449 = vrot.slane %v5444, %v5448
        %v5459 = vunpack.c.l.b16 %v5436
        %v5460 = vunpack.c.l.b16 %v5437
        %v5461 = vunpack.c.l.b16 %v5438
        %v5462 = vunpack.c.l.b16 %v5439
        %v5463 = vunpack.c.l.b16 %v5440
        %v5464 = vunpack.c.l.b16 %v5441
        %v5465 = vunpack.c.l.b16 %v5442
        %v5466 = vunpack.c.l.b16 %v5443
        %v5467 = vpack.c.b16 %v5460, %v5459
        %v5468 = vpack.c.b16 %v5462, %v5461
        %v5469 = vpack.c.b16 %v5464, %v5463
        %v5470 = vpack.c.b16 %v5466, %v5465
        %v5476 = vsel %vm3201, %v5435, 0
        %5478 = vmatprep.subr.bf16.mxu0 0
        %5479 = vmatpush1.bf16.msra.mxu0 %v5467
        %5480 = vmatprep.subr.bf16.mxu0 0
        %5481 = vmatpush1.bf16.msra.mxu0 %v5468
        %5482 = vmatprep.subr.bf16.mxu0 0
        %5483 = vmatpush1.bf16.msra.mxu0 %v5469
        %5484 = vmatprep.subr.bf16.mxu0 0
        %5485 = vmatpush1.bf16.msra.mxu0 %v5470
        %5486 = vmatprep.subr.bf16.mxu0 0
        %5487 = vmatpush1.bf16.msra.mxu0 0
        %5488 = vmatprep.subr.bf16.mxu0 0
        %5489 = vmatpush1.bf16.msra.mxu0 0
        %5490 = vmatprep.subr.bf16.mxu0 0
        %5491 = vmatpush1.bf16.msra.mxu0 0
        %5492 = vmatprep.subr.bf16.mxu0 0
        %5493 = vmatpush1.bf16.msra.mxu0 0
        %5494 = vmatprep.subr.bf16.mxu0 0
        %5495 = vmatpush1.bf16.msra.mxu0 0
        %5496 = vmatprep.subr.bf16.mxu0 0
        %5497 = vmatpush1.bf16.msra.mxu0 0
        %5498 = vmatprep.subr.bf16.mxu0 0
        %5499 = vmatpush1.bf16.msra.mxu0 0
        %5500 = vmatprep.subr.bf16.mxu0 0
        %5501 = vmatpush1.bf16.msra.mxu0 0
        %5502 = vmatprep.subr.bf16.mxu0 0
        %5503 = vmatpush1.bf16.msra.mxu0 0
        %5504 = vmatprep.subr.bf16.mxu0 0
        %5505 = vmatpush1.bf16.msra.mxu0 0
        %5506 = vmatprep.subr.bf16.mxu0 0
        %5507 = vmatpush1.bf16.msra.mxu0 0
        %5508 = vmatprep.subr.bf16.mxu0 0
        %5509 = vmatpush1.bf16.msra.mxu0 0
        %5510 = vmatprep.mubr.bf16.mxu0 0
        %5511 = vmatmul.mubr.bf16.gmra.mrb[0].mxu0 %v5476
        %v5512 = vpop.f32.mrb[0].mxu0
        %v5513 = vadd.f32 %v5449, %v5512
        %v5514 = vpop.f32.mrb[0].mxu0
        %v5515 = vpop.f32.mrb[0].mxu0
        %v5516 = vpop.f32.mrb[0].mxu0
        %5517 = vdwg.mxu0
        %v5518 = vadd.f32 %v5433, %v5513
        %vm5519 = vcmp.gt.f32.partialorder %v5518, 0.0
        %v5520 = vmul.f32 %v5518, 0.1
        %v5521 = vsel %vm5519, %v5518, %v5520
        %5522 = vst [vmem:[#allocation4 + $0x1] sm:$0xff] %v5521
        %v5523 = vld [vmem:[#allocation4 + $0x1] sm:$0x7f]
        %v5524 = vld [vmem:[#allocation4 + $0x2] sm:$0x7f]
        %v5525 = vmax.f32 %v5523, %v5524
        %v5526 = vld [vmem:[%s63] sm:$0xff]
        %v5527 = vld [vmem:[%s63 + $0x8] sm:$0xff]
        %v5528 = vld [vmem:[%s63 + $0x10] sm:$0xff]
        %v5529 = vld [vmem:[%s63 + $0x18] sm:$0xff]
        %v5530 = vld [vmem:[%s63 + $0x20] sm:$0xff]
        %v5531 = vld [vmem:[%s63 + $0x28] sm:$0xff]
        %v5532 = vld [vmem:[%s63 + $0x30] sm:$0xff]
        %v5533 = vld [vmem:[%s63 + $0x38] sm:$0xff]
        %v5534 = vld [vmem:[%s63 + $0x40] sm:$0xff]
        %v5535 = vld [vmem:[%s63 + $0x48] sm:$0xff]
        %v5536 = vld [vmem:[%s63 + $0x50] sm:$0xff]
        %v5537 = vld [vmem:[%s63 + $0x58] sm:$0xff]
        %v5538 = vld [vmem:[%s63 + $0x60] sm:$0xff]
        %v5539 = vld [vmem:[%s63 + $0x68] sm:$0xff]
        %v5540 = vld [vmem:[%s63 + $0x70] sm:$0xff]
        %v5541 = vld [vmem:[%s63 + $0x78] sm:$0xff]
        %5542 = vmatprep.subr.mxu0 0.0
        %5543 = vmatpush1.msra.mxu0 %v5526
        %5544 = vmatprep.subr.mxu0 0.0
        %5545 = vmatpush1.msra.mxu0 %v5527
        %5546 = vmatprep.subr.mxu0 0.0
        %5547 = vmatpush1.msra.mxu0 %v5528
        %5548 = vmatprep.subr.mxu0 0.0
        %5549 = vmatpush1.msra.mxu0 %v5529
        %5550 = vmatprep.subr.mxu0 0.0
        %5551 = vmatpush1.msra.mxu0 %v5530
        %5552 = vmatprep.subr.mxu0 0.0
        %5553 = vmatpush1.msra.mxu0 %v5531
        %5554 = vmatprep.subr.mxu0 0.0
        %5555 = vmatpush1.msra.mxu0 %v5532
        %5556 = vmatprep.subr.mxu0 0.0
        %5557 = vmatpush1.msra.mxu0 %v5533
        %5558 = vmatprep.subr.mxu0 0.0
        %5559 = vmatpush1.msra.mxu0 %v5534
        %5560 = vmatprep.subr.mxu0 0.0
        %5561 = vmatpush1.msra.mxu0 %v5535
        %5562 = vmatprep.subr.mxu0 0.0
        %5563 = vmatpush1.msra.mxu0 %v5536
        %5564 = vmatprep.subr.mxu0 0.0
        %5565 = vmatpush1.msra.mxu0 %v5537
        %5566 = vmatprep.subr.mxu0 0.0
        %5567 = vmatpush1.msra.mxu0 %v5538
        %5568 = vmatprep.subr.mxu0 0.0
        %5569 = vmatpush1.msra.mxu0 %v5539
        %5570 = vmatprep.subr.mxu0 0.0
        %5571 = vmatpush1.msra.mxu0 %v5540
        %5572 = vmatprep.subr.mxu0 0.0
        %5573 = vmatpush1.msra.mxu0 %v5541
        %5574 = vmatprep.subr.mxu0 0.0
        %5575 = vmatpush1.msra.mxu0 0.0
        %5576 = vmatprep.subr.mxu0 0.0
        %5577 = vmatpush1.msra.mxu0 0.0
        %5578 = vmatprep.subr.mxu0 0.0
        %5579 = vmatpush1.msra.mxu0 0.0
        %5580 = vmatprep.subr.mxu0 0.0
        %5581 = vmatpush1.msra.mxu0 0.0
        %5582 = vmatprep.subr.mxu0 0.0
        %5583 = vmatpush1.msra.mxu0 0.0
        %5584 = vmatprep.subr.mxu0 0.0
        %5585 = vmatpush1.msra.mxu0 0.0
        %5586 = vmatprep.subr.mxu0 0.0
        %5587 = vmatpush1.msra.mxu0 0.0
        %5588 = vmatprep.subr.mxu0 0.0
        %5589 = vmatpush1.msra.mxu0 0.0
        %5590 = vmatprep.subr.mxu0 0.0
        %5591 = vmatpush1.msra.mxu0 0.0
        %5592 = vmatprep.subr.mxu0 0.0
        %5593 = vmatpush1.msra.mxu0 0.0
        %5594 = vmatprep.subr.mxu0 0.0
        %5595 = vmatpush1.msra.mxu0 0.0
        %5596 = vmatprep.subr.mxu0 0.0
        %5597 = vmatpush1.msra.mxu0 0.0
        %5598 = vmatprep.subr.mxu0 0.0
        %5599 = vmatpush1.msra.mxu0 0.0
        %5600 = vmatprep.subr.mxu0 0.0
        %5601 = vmatpush1.msra.mxu0 0.0
        %5602 = vmatprep.subr.mxu0 0.0
        %5603 = vmatpush1.msra.mxu0 0.0
        %5604 = vmatprep.subr.mxu0 0.0
        %5605 = vmatpush1.msra.mxu0 0.0
        %5606 = vmatprep.mubr.f32.mxu0 0.0
        %5607 = vmatmul.mubr.f32.gmra.mrb[0].mxu0 %v5525
        %v5608 = vpop.f32.mrb[0].mxu0
        %v5609 = vadd.f32 0.0, %v5608
        %v5610 = vpop.f32.mrb[0].mxu0
        %5611 = vdwg.mxu0
        %v5612 = vld [vmem:[%s65] sm:$0xff]
        %v5613 = vld [vmem:[%s65 + $0x8] sm:$0xff]
        %v5614 = vld [vmem:[%s65 + $0x10] sm:$0xff]
        %v5615 = vld [vmem:[%s65 + $0x18] sm:$0xff]
        %v5616 = vld [vmem:[%s65 + $0x20] sm:$0xff]
        %v5617 = vld [vmem:[%s65 + $0x28] sm:$0xff]
        %v5618 = vld [vmem:[%s65 + $0x30] sm:$0xff]
        %v5619 = vld [vmem:[%s65 + $0x38] sm:$0xff]
        %v5620 = vld [vmem:[%s65 + $0x40] sm:$0xff]
        %v5621 = vld [vmem:[%s65 + $0x48] sm:$0xff]
        %v5622 = vld [vmem:[%s65 + $0x50] sm:$0xff]
        %v5623 = vld [vmem:[%s65 + $0x58] sm:$0xff]
        %v5624 = vld [vmem:[%s65 + $0x60] sm:$0xff]
        %v5625 = vld [vmem:[%s65 + $0x68] sm:$0xff]
        %v5626 = vld [vmem:[%s65 + $0x70] sm:$0xff]
        %v5627 = vld [vmem:[%s65 + $0x78] sm:$0xff]
        %5628 = vmatprep.subr.mxu0 0.0
        %5629 = vmatpush1.msra.mxu0 %v5612
        %5630 = vmatprep.subr.mxu0 0.0
        %5631 = vmatpush1.msra.mxu0 %v5613
        %5632 = vmatprep.subr.mxu0 0.0
        %5633 = vmatpush1.msra.mxu0 %v5614
        %5634 = vmatprep.subr.mxu0 0.0
        %5635 = vmatpush1.msra.mxu0 %v5615
        %5636 = vmatprep.subr.mxu0 0.0
        %5637 = vmatpush1.msra.mxu0 %v5616
        %5638 = vmatprep.subr.mxu0 0.0
        %5639 = vmatpush1.msra.mxu0 %v5617
        %5640 = vmatprep.subr.mxu0 0.0
        %5641 = vmatpush1.msra.mxu0 %v5618
        %5642 = vmatprep.subr.mxu0 0.0
        %5643 = vmatpush1.msra.mxu0 %v5619
        %5644 = vmatprep.subr.mxu0 0.0
        %5645 = vmatpush1.msra.mxu0 %v5620
        %5646 = vmatprep.subr.mxu0 0.0
        %5647 = vmatpush1.msra.mxu0 %v5621
        %5648 = vmatprep.subr.mxu0 0.0
        %5649 = vmatpush1.msra.mxu0 %v5622
        %5650 = vmatprep.subr.mxu0 0.0
        %5651 = vmatpush1.msra.mxu0 %v5623
        %5652 = vmatprep.subr.mxu0 0.0
        %5653 = vmatpush1.msra.mxu0 %v5624
        %5654 = vmatprep.subr.mxu0 0.0
        %5655 = vmatpush1.msra.mxu0 %v5625
        %5656 = vmatprep.subr.mxu0 0.0
        %5657 = vmatpush1.msra.mxu0 %v5626
        %5658 = vmatprep.subr.mxu0 0.0
        %5659 = vmatpush1.msra.mxu0 %v5627
        %5660 = vmatprep.subr.mxu0 0.0
        %5661 = vmatpush1.msra.mxu0 0.0
        %5662 = vmatprep.subr.mxu0 0.0
        %5663 = vmatpush1.msra.mxu0 0.0
        %5664 = vmatprep.subr.mxu0 0.0
        %5665 = vmatpush1.msra.mxu0 0.0
        %5666 = vmatprep.subr.mxu0 0.0
        %5667 = vmatpush1.msra.mxu0 0.0
        %5668 = vmatprep.subr.mxu0 0.0
        %5669 = vmatpush1.msra.mxu0 0.0
        %5670 = vmatprep.subr.mxu0 0.0
        %5671 = vmatpush1.msra.mxu0 0.0
        %5672 = vmatprep.subr.mxu0 0.0
        %5673 = vmatpush1.msra.mxu0 0.0
        %5674 = vmatprep.subr.mxu0 0.0
        %5675 = vmatpush1.msra.mxu0 0.0
        %5676 = vmatprep.subr.mxu0 0.0
        %5677 = vmatpush1.msra.mxu0 0.0
        %5678 = vmatprep.subr.mxu0 0.0
        %5679 = vmatpush1.msra.mxu0 0.0
        %5680 = vmatprep.subr.mxu0 0.0
        %5681 = vmatpush1.msra.mxu0 0.0
        %5682 = vmatprep.subr.mxu0 0.0
        %5683 = vmatpush1.msra.mxu0 0.0
        %5684 = vmatprep.subr.mxu0 0.0
        %5685 = vmatpush1.msra.mxu0 0.0
        %5686 = vmatprep.subr.mxu0 0.0
        %5687 = vmatpush1.msra.mxu0 0.0
        %5688 = vmatprep.subr.mxu0 0.0
        %5689 = vmatpush1.msra.mxu0 0.0
        %5690 = vmatprep.subr.mxu0 0.0
        %5691 = vmatpush1.msra.mxu0 0.0
        %5692 = vmatprep.mubr.f32.mxu0 0.0
        %5693 = vmatmul.mubr.f32.gmra.mrb[0].mxu0 %v5525
        %v5694 = vpop.f32.mrb[0].mxu0
        %v5695 = vadd.f32 0.0, %v5694
        %v5696 = vpop.f32.mrb[0].mxu0
        %5697 = vdwg.mxu0
        %v5698 = vmax.f32 %v5609, %v5695
        %v5699 = vld [vmem:[#allocation33] sm:$0x3f]
        %vm5700 = vcmask 56320
        %v5702 = vsel %vm5700, %v5699, 0
        %v5705 = vsel %vm3117, %v5698, 0
        %5707 = vmatprep.subr.mxu0 0.0
        %5708 = vmatpush1.msra.mxu0 %v5705
        %5709 = vmatprep.subr.mxu0 0.0
        %5710 = vmatpush1.msra.mxu0 0.0
        %5711 = vmatprep.subr.mxu0 0.0
        %5712 = vmatpush1.msra.mxu0 0.0
        %5713 = vmatprep.subr.mxu0 0.0
        %5714 = vmatpush1.msra.mxu0 0.0
        %5715 = vmatprep.subr.mxu0 0.0
        %5716 = vmatpush1.msra.mxu0 0.0
        %5717 = vmatprep.subr.mxu0 0.0
        %5718 = vmatpush1.msra.mxu0 0.0
        %5719 = vmatprep.subr.mxu0 0.0
        %5720 = vmatpush1.msra.mxu0 0.0
        %5721 = vmatprep.subr.mxu0 0.0
        %5722 = vmatpush1.msra.mxu0 0.0
        %5723 = vmatprep.subr.mxu0 0.0
        %5724 = vmatpush1.msra.mxu0 0.0
        %5725 = vmatprep.subr.mxu0 0.0
        %5726 = vmatpush1.msra.mxu0 0.0
        %5727 = vmatprep.subr.mxu0 0.0
        %5728 = vmatpush1.msra.mxu0 0.0
        %5729 = vmatprep.subr.mxu0 0.0
        %5730 = vmatpush1.msra.mxu0 0.0
        %5731 = vmatprep.subr.mxu0 0.0
        %5732 = vmatpush1.msra.mxu0 0.0
        %5733 = vmatprep.subr.mxu0 0.0
        %5734 = vmatpush1.msra.mxu0 0.0
        %5735 = vmatprep.subr.mxu0 0.0
        %5736 = vmatpush1.msra.mxu0 0.0
        %5737 = vmatprep.subr.mxu0 0.0
        %5738 = vmatpush1.msra.mxu0 0.0
        %5739 = vmatprep.subr.mxu0 0.0
        %5740 = vmatpush1.msra.mxu0 0.0
        %5741 = vmatprep.subr.mxu0 0.0
        %5742 = vmatpush1.msra.mxu0 0.0
        %5743 = vmatprep.subr.mxu0 0.0
        %5744 = vmatpush1.msra.mxu0 0.0
        %5745 = vmatprep.subr.mxu0 0.0
        %5746 = vmatpush1.msra.mxu0 0.0
        %5747 = vmatprep.subr.mxu0 0.0
        %5748 = vmatpush1.msra.mxu0 0.0
        %5749 = vmatprep.subr.mxu0 0.0
        %5750 = vmatpush1.msra.mxu0 0.0
        %5751 = vmatprep.subr.mxu0 0.0
        %5752 = vmatpush1.msra.mxu0 0.0
        %5753 = vmatprep.subr.mxu0 0.0
        %5754 = vmatpush1.msra.mxu0 0.0
        %5755 = vmatprep.subr.mxu0 0.0
        %5756 = vmatpush1.msra.mxu0 0.0
        %5757 = vmatprep.subr.mxu0 0.0
        %5758 = vmatpush1.msra.mxu0 0.0
        %5759 = vmatprep.subr.mxu0 0.0
        %5760 = vmatpush1.msra.mxu0 0.0
        %5761 = vmatprep.subr.mxu0 0.0
        %5762 = vmatpush1.msra.mxu0 0.0
        %5763 = vmatprep.subr.mxu0 0.0
        %5764 = vmatpush1.msra.mxu0 0.0
        %5765 = vmatprep.subr.mxu0 0.0
        %5766 = vmatpush1.msra.mxu0 0.0
        %5767 = vmatprep.subr.mxu0 0.0
        %5768 = vmatpush1.msra.mxu0 0.0
        %5769 = vmatprep.subr.mxu0 0.0
        %5770 = vmatpush1.msra.mxu0 0.0
        %5771 = vmatprep.mubr.f32.mxu0 0.0
        %5772 = vmatmul.mubr.f32.gmra.mrb[0].mxu0 %v5702
        %v5773 = vpop.f32.mrb[0].mxu0
        %v5774 = vadd.f32 0.0, %v5773
        %v5775 = vpop.f32.mrb[0].mxu0
        %5776 = vdwg.mxu0
        %vm5777 = vcmask 521216
        %5778 = vst.msk [vmem:[#allocation8] sm:$0x3f] %vm5777, %v5774
        %5779 = vst [vmem:[#allocation5] sm:$0x3f] 0.0
        %v5780 = vld [vmem:[#allocation8] sm:$0xf]
        %v5781 = vpack.c.bf16 %v5780, %v5780
        %v5782 = vld [vmem:[%s69] sm:$0xf]
        %v5783 = vld [vmem:[%s69 + $0x4] sm:$0xf]
        %v5784 = vld [vmem:[%s69 + $0x8] sm:$0xf]
        %v5785 = vld [vmem:[%s69 + $0xc] sm:$0xf]
        %v5786 = vld [vmem:[%s69 + $0x10] sm:$0xf]
        %v5787 = vld [vmem:[%s69 + $0x14] sm:$0xf]
        %v5788 = vld [vmem:[%s69 + $0x18] sm:$0xf]
        %v5789 = vld [vmem:[%s69 + $0x1c] sm:$0xf]
        %v5790 = vld [vmem:[#allocation8 + $0x1] sm:$0xf]
        %v5791 = vpack.c.bf16 %v5790, %v5790
        %s5792 = scalar_lea.vmem %s69, 32
        %v5793 = vld [vmem:[%s5792] sm:$0xf]
        %v5794 = vld [vmem:[%s5792 + $0x4] sm:$0xf]
        %v5795 = vld [vmem:[%s5792 + $0x8] sm:$0xf]
        %v5796 = vld [vmem:[%s5792 + $0xc] sm:$0xf]
        %v5797 = vld [vmem:[%s5792 + $0x10] sm:$0xf]
        %v5798 = vld [vmem:[%s5792 + $0x14] sm:$0xf]
        %v5799 = vld [vmem:[%s5792 + $0x18] sm:$0xf]
        %v5800 = vld [vmem:[%s5792 + $0x1c] sm:$0xf]
        %v5809 = vunpack.c.l.b16 %v5793
        %v5810 = vunpack.c.l.b16 %v5794
        %v5811 = vunpack.c.l.b16 %v5795
        %v5812 = vunpack.c.l.b16 %v5796
        %v5813 = vunpack.c.l.b16 %v5797
        %v5814 = vunpack.c.l.b16 %v5798
        %v5815 = vunpack.c.l.b16 %v5799
        %v5816 = vunpack.c.l.b16 %v5800
        %v5817 = vpack.c.b16 %v5810, %v5809
        %v5818 = vpack.c.b16 %v5812, %v5811
        %v5819 = vpack.c.b16 %v5814, %v5813
        %v5820 = vpack.c.b16 %v5816, %v5815
        %v5826 = vsel %vm3201, %v5791, 0
        %5828 = vmatprep.subr.bf16.mxu0 0
        %5829 = vmatpush1.bf16.msra.mxu0 %v5817
        %5830 = vmatprep.subr.bf16.mxu0 0
        %5831 = vmatpush1.bf16.msra.mxu0 %v5818
        %5832 = vmatprep.subr.bf16.mxu0 0
        %5833 = vmatpush1.bf16.msra.mxu0 %v5819
        %5834 = vmatprep.subr.bf16.mxu0 0
        %5835 = vmatpush1.bf16.msra.mxu0 %v5820
        %5836 = vmatprep.subr.bf16.mxu0 0
        %5837 = vmatpush1.bf16.msra.mxu0 0
        %5838 = vmatprep.subr.bf16.mxu0 0
        %5839 = vmatpush1.bf16.msra.mxu0 0
        %5840 = vmatprep.subr.bf16.mxu0 0
        %5841 = vmatpush1.bf16.msra.mxu0 0
        %5842 = vmatprep.subr.bf16.mxu0 0
        %5843 = vmatpush1.bf16.msra.mxu0 0
        %5844 = vmatprep.subr.bf16.mxu0 0
        %5845 = vmatpush1.bf16.msra.mxu0 0
        %5846 = vmatprep.subr.bf16.mxu0 0
        %5847 = vmatpush1.bf16.msra.mxu0 0
        %5848 = vmatprep.subr.bf16.mxu0 0
        %5849 = vmatpush1.bf16.msra.mxu0 0
        %5850 = vmatprep.subr.bf16.mxu0 0
        %5851 = vmatpush1.bf16.msra.mxu0 0
        %5852 = vmatprep.subr.bf16.mxu0 0
        %5853 = vmatpush1.bf16.msra.mxu0 0
        %5854 = vmatprep.subr.bf16.mxu0 0
        %5855 = vmatpush1.bf16.msra.mxu0 0
        %5856 = vmatprep.subr.bf16.mxu0 0
        %5857 = vmatpush1.bf16.msra.mxu0 0
        %5858 = vmatprep.subr.bf16.mxu0 0
        %5859 = vmatpush1.bf16.msra.mxu0 0
        %5860 = vmatprep.mubr.bf16.mxu0 0
        %5861 = vmatmul.mubr.bf16.gmra.mrb[0].mxu0 %v5826
        %v5862 = vpop.f32.mrb[0].mxu0
        %v5863 = vadd.f32 0.0, %v5862
        %v5864 = vpop.f32.mrb[0].mxu0
        %v5865 = vpop.f32.mrb[0].mxu0
        %v5866 = vpop.f32.mrb[0].mxu0
        %5867 = vdwg.mxu0
        %v5876 = vunpack.c.l.b16 %v5782
        %v5877 = vunpack.c.l.b16 %v5783
        %v5878 = vunpack.c.l.b16 %v5784
        %v5879 = vunpack.c.l.b16 %v5785
        %v5880 = vunpack.c.l.b16 %v5786
        %v5881 = vunpack.c.l.b16 %v5787
        %v5882 = vunpack.c.l.b16 %v5788
        %v5883 = vunpack.c.l.b16 %v5789
        %v5884 = vpack.c.b16 %v5877, %v5876
        %v5885 = vpack.c.b16 %v5879, %v5878
        %v5886 = vpack.c.b16 %v5881, %v5880
        %v5887 = vpack.c.b16 %v5883, %v5882
        %v5893 = vsel %vm3201, %v5781, 0
        %5895 = vmatprep.subr.bf16.mxu0 0
        %5896 = vmatpush1.bf16.msra.mxu0 %v5884
        %5897 = vmatprep.subr.bf16.mxu0 0
        %5898 = vmatpush1.bf16.msra.mxu0 %v5885
        %5899 = vmatprep.subr.bf16.mxu0 0
        %5900 = vmatpush1.bf16.msra.mxu0 %v5886
        %5901 = vmatprep.subr.bf16.mxu0 0
        %5902 = vmatpush1.bf16.msra.mxu0 %v5887
        %5903 = vmatprep.subr.bf16.mxu0 0
        %5904 = vmatpush1.bf16.msra.mxu0 0
        %5905 = vmatprep.subr.bf16.mxu0 0
        %5906 = vmatpush1.bf16.msra.mxu0 0
        %5907 = vmatprep.subr.bf16.mxu0 0
        %5908 = vmatpush1.bf16.msra.mxu0 0
        %5909 = vmatprep.subr.bf16.mxu0 0
        %5910 = vmatpush1.bf16.msra.mxu0 0
        %5911 = vmatprep.subr.bf16.mxu0 0
        %5912 = vmatpush1.bf16.msra.mxu0 0
        %5913 = vmatprep.subr.bf16.mxu0 0
        %5914 = vmatpush1.bf16.msra.mxu0 0
        %5915 = vmatprep.subr.bf16.mxu0 0
        %5916 = vmatpush1.bf16.msra.mxu0 0
        %5917 = vmatprep.subr.bf16.mxu0 0
        %5918 = vmatpush1.bf16.msra.mxu0 0
        %5919 = vmatprep.subr.bf16.mxu0 0
        %5920 = vmatpush1.bf16.msra.mxu0 0
        %5921 = vmatprep.subr.bf16.mxu0 0
        %5922 = vmatpush1.bf16.msra.mxu0 0
        %5923 = vmatprep.subr.bf16.mxu0 0
        %5924 = vmatpush1.bf16.msra.mxu0 0
        %5925 = vmatprep.subr.bf16.mxu0 0
        %5926 = vmatpush1.bf16.msra.mxu0 0
        %5927 = vmatprep.mubr.bf16.mxu0 0
        %5928 = vmatmul.mubr.bf16.gmra.mrb[0].mxu0 %v5893
        %v5929 = vpop.f32.mrb[0].mxu0
        %v5930 = vadd.f32 %v5863, %v5929
        %v5931 = vpop.f32.mrb[0].mxu0
        %v5932 = vpop.f32.mrb[0].mxu0
        %v5933 = vpop.f32.mrb[0].mxu0
        %5934 = vdwg.mxu0
        %v5935 = vld [vmem:[#allocation8 + $0x2] sm:$0xf]
        %v5936 = vpack.c.bf16 %v5935, %v5935
        %s5937 = scalar_lea.vmem %s69, 64
        %v5938 = vld [vmem:[%s5937] sm:$0xf]
        %v5939 = vld [vmem:[%s5937 + $0x4] sm:$0xf]
        %v5940 = vld [vmem:[%s5937 + $0x8] sm:$0xf]
        %v5941 = vld [vmem:[%s5937 + $0xc] sm:$0xf]
        %v5942 = vld [vmem:[%s5937 + $0x10] sm:$0xf]
        %v5943 = vld [vmem:[%s5937 + $0x14] sm:$0xf]
        %v5944 = vld [vmem:[%s5937 + $0x18] sm:$0xf]
        %v5945 = vld [vmem:[%s5937 + $0x1c] sm:$0xf]
        %v5954 = vunpack.c.l.b16 %v5938
        %v5955 = vunpack.c.l.b16 %v5939
        %v5956 = vunpack.c.l.b16 %v5940
        %v5957 = vunpack.c.l.b16 %v5941
        %v5958 = vunpack.c.l.b16 %v5942
        %v5959 = vunpack.c.l.b16 %v5943
        %v5960 = vunpack.c.l.b16 %v5944
        %v5961 = vunpack.c.l.b16 %v5945
        %v5962 = vpack.c.b16 %v5955, %v5954
        %v5963 = vpack.c.b16 %v5957, %v5956
        %v5964 = vpack.c.b16 %v5959, %v5958
        %v5965 = vpack.c.b16 %v5961, %v5960
        %v5971 = vsel %vm3201, %v5936, 0
        %5973 = vmatprep.subr.bf16.mxu0 0
        %5974 = vmatpush1.bf16.msra.mxu0 %v5962
        %5975 = vmatprep.subr.bf16.mxu0 0
        %5976 = vmatpush1.bf16.msra.mxu0 %v5963
        %5977 = vmatprep.subr.bf16.mxu0 0
        %5978 = vmatpush1.bf16.msra.mxu0 %v5964
        %5979 = vmatprep.subr.bf16.mxu0 0
        %5980 = vmatpush1.bf16.msra.mxu0 %v5965
        %5981 = vmatprep.subr.bf16.mxu0 0
        %5982 = vmatpush1.bf16.msra.mxu0 0
        %5983 = vmatprep.subr.bf16.mxu0 0
        %5984 = vmatpush1.bf16.msra.mxu0 0
        %5985 = vmatprep.subr.bf16.mxu0 0
        %5986 = vmatpush1.bf16.msra.mxu0 0
        %5987 = vmatprep.subr.bf16.mxu0 0
        %5988 = vmatpush1.bf16.msra.mxu0 0
        %5989 = vmatprep.subr.bf16.mxu0 0
        %5990 = vmatpush1.bf16.msra.mxu0 0
        %5991 = vmatprep.subr.bf16.mxu0 0
        %5992 = vmatpush1.bf16.msra.mxu0 0
        %5993 = vmatprep.subr.bf16.mxu0 0
        %5994 = vmatpush1.bf16.msra.mxu0 0
        %5995 = vmatprep.subr.bf16.mxu0 0
        %5996 = vmatpush1.bf16.msra.mxu0 0
        %5997 = vmatprep.subr.bf16.mxu0 0
        %5998 = vmatpush1.bf16.msra.mxu0 0
        %5999 = vmatprep.subr.bf16.mxu0 0
        %6000 = vmatpush1.bf16.msra.mxu0 0
        %6001 = vmatprep.subr.bf16.mxu0 0
        %6002 = vmatpush1.bf16.msra.mxu0 0
        %6003 = vmatprep.subr.bf16.mxu0 0
        %6004 = vmatpush1.bf16.msra.mxu0 0
        %6005 = vmatprep.mubr.bf16.mxu0 0
        %6006 = vmatmul.mubr.bf16.gmra.mrb[0].mxu0 %v5971
        %v6007 = vpop.f32.mrb[0].mxu0
        %v6008 = vadd.f32 0.0, %v6007
        %v6009 = vpop.f32.mrb[0].mxu0
        %v6010 = vpop.f32.mrb[0].mxu0
        %v6011 = vpop.f32.mrb[0].mxu0
        %6012 = vdwg.mxu0
        %v6013 = vadd.f32 %v5930, %v6008
        %v6014 = vld [vmem:[#allocation34] sm:$0x1]
        %v6016 = vlaneseq
        %v6017 = vshrl.u32 %v6016, 7
        %v6018 = vsub.s32 0, %v6017
        %v6019 = vrot.slane %v6014, %v6018
        %v6021 = vadd.f32 %v6013, %v6019
        %vm6022 = vcmp.gt.f32.partialorder %v6021, 0.0
        %v6023 = vmul.f32 %v6021, 0.1
        %v6024 = vsel %vm6022, %v6021, %v6023
        %6025 = vst [vmem:[#allocation5 + $0x1] sm:$0xf] %v6024
        %v6026 = vld [vmem:[#allocation5] sm:$0xf]
        %v6027 = vpack.c.bf16 %v6026, %v6026
        %v6028 = vld [vmem:[%s73] sm:$0xf]
        %v6029 = vld [vmem:[%s73 + $0x4] sm:$0xf]
        %v6030 = vld [vmem:[%s73 + $0x8] sm:$0xf]
        %v6031 = vld [vmem:[%s73 + $0xc] sm:$0xf]
        %v6032 = vld [vmem:[%s73 + $0x10] sm:$0xf]
        %v6033 = vld [vmem:[%s73 + $0x14] sm:$0xf]
        %v6034 = vld [vmem:[%s73 + $0x18] sm:$0xf]
        %v6035 = vld [vmem:[%s73 + $0x1c] sm:$0xf]
        %v6036 = vld [vmem:[%s73 + $0x20] sm:$0xf]
        %v6037 = vld [vmem:[%s73 + $0x24] sm:$0xf]
        %v6038 = vld [vmem:[%s73 + $0x28] sm:$0xf]
        %v6039 = vld [vmem:[%s73 + $0x2c] sm:$0xf]
        %v6040 = vld [vmem:[%s73 + $0x30] sm:$0xf]
        %v6041 = vld [vmem:[%s73 + $0x34] sm:$0xf]
        %v6042 = vld [vmem:[%s73 + $0x38] sm:$0xf]
        %v6043 = vld [vmem:[%s73 + $0x3c] sm:$0xf]
        %v6044 = vld [vmem:[#allocation5 + $0x1] sm:$0xf]
        %v6045 = vpack.c.bf16 %v6044, %v6044
        %s6046 = scalar_lea.vmem %s73, 64
        %v6047 = vld [vmem:[%s6046] sm:$0xf]
        %v6048 = vld [vmem:[%s6046 + $0x4] sm:$0xf]
        %v6049 = vld [vmem:[%s6046 + $0x8] sm:$0xf]
        %v6050 = vld [vmem:[%s6046 + $0xc] sm:$0xf]
        %v6051 = vld [vmem:[%s6046 + $0x10] sm:$0xf]
        %v6052 = vld [vmem:[%s6046 + $0x14] sm:$0xf]
        %v6053 = vld [vmem:[%s6046 + $0x18] sm:$0xf]
        %v6054 = vld [vmem:[%s6046 + $0x1c] sm:$0xf]
        %v6055 = vld [vmem:[%s6046 + $0x20] sm:$0xf]
        %v6056 = vld [vmem:[%s6046 + $0x24] sm:$0xf]
        %v6057 = vld [vmem:[%s6046 + $0x28] sm:$0xf]
        %v6058 = vld [vmem:[%s6046 + $0x2c] sm:$0xf]
        %v6059 = vld [vmem:[%s6046 + $0x30] sm:$0xf]
        %v6060 = vld [vmem:[%s6046 + $0x34] sm:$0xf]
        %v6061 = vld [vmem:[%s6046 + $0x38] sm:$0xf]
        %v6062 = vld [vmem:[%s6046 + $0x3c] sm:$0xf]
        %v6079 = vunpack.c.l.b16 %v6047
        %v6080 = vunpack.c.l.b16 %v6048
        %v6081 = vunpack.c.l.b16 %v6049
        %v6082 = vunpack.c.l.b16 %v6050
        %v6083 = vunpack.c.l.b16 %v6051
        %v6084 = vunpack.c.l.b16 %v6052
        %v6085 = vunpack.c.l.b16 %v6053
        %v6086 = vunpack.c.l.b16 %v6054
        %v6087 = vunpack.c.l.b16 %v6055
        %v6088 = vunpack.c.l.b16 %v6056
        %v6089 = vunpack.c.l.b16 %v6057
        %v6090 = vunpack.c.l.b16 %v6058
        %v6091 = vunpack.c.l.b16 %v6059
        %v6092 = vunpack.c.l.b16 %v6060
        %v6093 = vunpack.c.l.b16 %v6061
        %v6094 = vunpack.c.l.b16 %v6062
        %v6095 = vpack.c.b16 %v6080, %v6079
        %v6096 = vpack.c.b16 %v6082, %v6081
        %v6097 = vpack.c.b16 %v6084, %v6083
        %v6098 = vpack.c.b16 %v6086, %v6085
        %v6099 = vpack.c.b16 %v6088, %v6087
        %v6100 = vpack.c.b16 %v6090, %v6089
        %v6101 = vpack.c.b16 %v6092, %v6091
        %v6102 = vpack.c.b16 %v6094, %v6093
        %6111 = vmatprep.subr.bf16.mxu0 0
        %6112 = vmatpush1.bf16.msra.mxu0 %v6095
        %6113 = vmatprep.subr.bf16.mxu0 0
        %6114 = vmatpush1.bf16.msra.mxu0 %v6096
        %6115 = vmatprep.subr.bf16.mxu0 0
        %6116 = vmatpush1.bf16.msra.mxu0 %v6097
        %6117 = vmatprep.subr.bf16.mxu0 0
        %6118 = vmatpush1.bf16.msra.mxu0 %v6098
        %6119 = vmatprep.subr.bf16.mxu0 0
        %6120 = vmatpush1.bf16.msra.mxu0 %v6099
        %6121 = vmatprep.subr.bf16.mxu0 0
        %6122 = vmatpush1.bf16.msra.mxu0 %v6100
        %6123 = vmatprep.subr.bf16.mxu0 0
        %6124 = vmatpush1.bf16.msra.mxu0 %v6101
        %6125 = vmatprep.subr.bf16.mxu0 0
        %6126 = vmatpush1.bf16.msra.mxu0 %v6102
        %6127 = vmatprep.subr.bf16.mxu0 0
        %6128 = vmatpush1.bf16.msra.mxu0 0
        %6129 = vmatprep.subr.bf16.mxu0 0
        %6130 = vmatpush1.bf16.msra.mxu0 0
        %6131 = vmatprep.subr.bf16.mxu0 0
        %6132 = vmatpush1.bf16.msra.mxu0 0
        %6133 = vmatprep.subr.bf16.mxu0 0
        %6134 = vmatpush1.bf16.msra.mxu0 0
        %6135 = vmatprep.subr.bf16.mxu0 0
        %6136 = vmatpush1.bf16.msra.mxu0 0
        %6137 = vmatprep.subr.bf16.mxu0 0
        %6138 = vmatpush1.bf16.msra.mxu0 0
        %6139 = vmatprep.subr.bf16.mxu0 0
        %6140 = vmatpush1.bf16.msra.mxu0 0
        %6141 = vmatprep.subr.bf16.mxu0 0
        %6142 = vmatpush1.bf16.msra.mxu0 0
        %6143 = vmatprep.mubr.bf16.mxu0 0
        %6144 = vmatmul.mubr.bf16.gmra.mrb[0].mxu0 %v6045
        %v6145 = vpop.f32.mrb[0].mxu0
        %v6146 = vadd.f32 0.0, %v6145
        %v6147 = vpop.f32.mrb[0].mxu0
        %v6148 = vpop.f32.mrb[0].mxu0
        %v6149 = vpop.f32.mrb[0].mxu0
        %6150 = vdwg.mxu0
        %v6167 = vunpack.c.l.b16 %v6028
        %v6168 = vunpack.c.l.b16 %v6029
        %v6169 = vunpack.c.l.b16 %v6030
        %v6170 = vunpack.c.l.b16 %v6031
        %v6171 = vunpack.c.l.b16 %v6032
        %v6172 = vunpack.c.l.b16 %v6033
        %v6173 = vunpack.c.l.b16 %v6034
        %v6174 = vunpack.c.l.b16 %v6035
        %v6175 = vunpack.c.l.b16 %v6036
        %v6176 = vunpack.c.l.b16 %v6037
        %v6177 = vunpack.c.l.b16 %v6038
        %v6178 = vunpack.c.l.b16 %v6039
        %v6179 = vunpack.c.l.b16 %v6040
        %v6180 = vunpack.c.l.b16 %v6041
        %v6181 = vunpack.c.l.b16 %v6042
        %v6182 = vunpack.c.l.b16 %v6043
        %v6183 = vpack.c.b16 %v6168, %v6167
        %v6184 = vpack.c.b16 %v6170, %v6169
        %v6185 = vpack.c.b16 %v6172, %v6171
        %v6186 = vpack.c.b16 %v6174, %v6173
        %v6187 = vpack.c.b16 %v6176, %v6175
        %v6188 = vpack.c.b16 %v6178, %v6177
        %v6189 = vpack.c.b16 %v6180, %v6179
        %v6190 = vpack.c.b16 %v6182, %v6181
        %6199 = vmatprep.subr.bf16.mxu0 0
        %6200 = vmatpush1.bf16.msra.mxu0 %v6183
        %6201 = vmatprep.subr.bf16.mxu0 0
        %6202 = vmatpush1.bf16.msra.mxu0 %v6184
        %6203 = vmatprep.subr.bf16.mxu0 0
        %6204 = vmatpush1.bf16.msra.mxu0 %v6185
        %6205 = vmatprep.subr.bf16.mxu0 0
        %6206 = vmatpush1.bf16.msra.mxu0 %v6186
        %6207 = vmatprep.subr.bf16.mxu0 0
        %6208 = vmatpush1.bf16.msra.mxu0 %v6187
        %6209 = vmatprep.subr.bf16.mxu0 0
        %6210 = vmatpush1.bf16.msra.mxu0 %v6188
        %6211 = vmatprep.subr.bf16.mxu0 0
        %6212 = vmatpush1.bf16.msra.mxu0 %v6189
        %6213 = vmatprep.subr.bf16.mxu0 0
        %6214 = vmatpush1.bf16.msra.mxu0 %v6190
        %6215 = vmatprep.subr.bf16.mxu0 0
        %6216 = vmatpush1.bf16.msra.mxu0 0
        %6217 = vmatprep.subr.bf16.mxu0 0
        %6218 = vmatpush1.bf16.msra.mxu0 0
        %6219 = vmatprep.subr.bf16.mxu0 0
        %6220 = vmatpush1.bf16.msra.mxu0 0
        %6221 = vmatprep.subr.bf16.mxu0 0
        %6222 = vmatpush1.bf16.msra.mxu0 0
        %6223 = vmatprep.subr.bf16.mxu0 0
        %6224 = vmatpush1.bf16.msra.mxu0 0
        %6225 = vmatprep.subr.bf16.mxu0 0
        %6226 = vmatpush1.bf16.msra.mxu0 0
        %6227 = vmatprep.subr.bf16.mxu0 0
        %6228 = vmatpush1.bf16.msra.mxu0 0
        %6229 = vmatprep.subr.bf16.mxu0 0
        %6230 = vmatpush1.bf16.msra.mxu0 0
        %6231 = vmatprep.mubr.bf16.mxu0 0
        %6232 = vmatmul.mubr.bf16.gmra.mrb[0].mxu0 %v6027
        %v6233 = vpop.f32.mrb[0].mxu0
        %v6234 = vadd.f32 %v6146, %v6233
        %v6235 = vpop.f32.mrb[0].mxu0
        %v6236 = vpop.f32.mrb[0].mxu0
        %v6237 = vpop.f32.mrb[0].mxu0
        %6238 = vdwg.mxu0
        %v6239 = vld [vmem:[#allocation5 + $0x2] sm:$0xf]
        %v6240 = vpack.c.bf16 %v6239, %v6239
        %s6241 = scalar_lea.vmem %s73, 128
        %v6242 = vld [vmem:[%s6241] sm:$0xf]
        %v6243 = vld [vmem:[%s6241 + $0x4] sm:$0xf]
        %v6244 = vld [vmem:[%s6241 + $0x8] sm:$0xf]
        %v6245 = vld [vmem:[%s6241 + $0xc] sm:$0xf]
        %v6246 = vld [vmem:[%s6241 + $0x10] sm:$0xf]
        %v6247 = vld [vmem:[%s6241 + $0x14] sm:$0xf]
        %v6248 = vld [vmem:[%s6241 + $0x18] sm:$0xf]
        %v6249 = vld [vmem:[%s6241 + $0x1c] sm:$0xf]
        %v6250 = vld [vmem:[%s6241 + $0x20] sm:$0xf]
        %v6251 = vld [vmem:[%s6241 + $0x24] sm:$0xf]
        %v6252 = vld [vmem:[%s6241 + $0x28] sm:$0xf]
        %v6253 = vld [vmem:[%s6241 + $0x2c] sm:$0xf]
        %v6254 = vld [vmem:[%s6241 + $0x30] sm:$0xf]
        %v6255 = vld [vmem:[%s6241 + $0x34] sm:$0xf]
        %v6256 = vld [vmem:[%s6241 + $0x38] sm:$0xf]
        %v6257 = vld [vmem:[%s6241 + $0x3c] sm:$0xf]
        %v6274 = vunpack.c.l.b16 %v6242
        %v6275 = vunpack.c.l.b16 %v6243
        %v6276 = vunpack.c.l.b16 %v6244
        %v6277 = vunpack.c.l.b16 %v6245
        %v6278 = vunpack.c.l.b16 %v6246
        %v6279 = vunpack.c.l.b16 %v6247
        %v6280 = vunpack.c.l.b16 %v6248
        %v6281 = vunpack.c.l.b16 %v6249
        %v6282 = vunpack.c.l.b16 %v6250
        %v6283 = vunpack.c.l.b16 %v6251
        %v6284 = vunpack.c.l.b16 %v6252
        %v6285 = vunpack.c.l.b16 %v6253
        %v6286 = vunpack.c.l.b16 %v6254
        %v6287 = vunpack.c.l.b16 %v6255
        %v6288 = vunpack.c.l.b16 %v6256
        %v6289 = vunpack.c.l.b16 %v6257
        %v6290 = vpack.c.b16 %v6275, %v6274
        %v6291 = vpack.c.b16 %v6277, %v6276
        %v6292 = vpack.c.b16 %v6279, %v6278
        %v6293 = vpack.c.b16 %v6281, %v6280
        %v6294 = vpack.c.b16 %v6283, %v6282
        %v6295 = vpack.c.b16 %v6285, %v6284
        %v6296 = vpack.c.b16 %v6287, %v6286
        %v6297 = vpack.c.b16 %v6289, %v6288
        %6306 = vmatprep.subr.bf16.mxu0 0
        %6307 = vmatpush1.bf16.msra.mxu0 %v6290
        %6308 = vmatprep.subr.bf16.mxu0 0
        %6309 = vmatpush1.bf16.msra.mxu0 %v6291
        %6310 = vmatprep.subr.bf16.mxu0 0
        %6311 = vmatpush1.bf16.msra.mxu0 %v6292
        %6312 = vmatprep.subr.bf16.mxu0 0
        %6313 = vmatpush1.bf16.msra.mxu0 %v6293
        %6314 = vmatprep.subr.bf16.mxu0 0
        %6315 = vmatpush1.bf16.msra.mxu0 %v6294
        %6316 = vmatprep.subr.bf16.mxu0 0
        %6317 = vmatpush1.bf16.msra.mxu0 %v6295
        %6318 = vmatprep.subr.bf16.mxu0 0
        %6319 = vmatpush1.bf16.msra.mxu0 %v6296
        %6320 = vmatprep.subr.bf16.mxu0 0
        %6321 = vmatpush1.bf16.msra.mxu0 %v6297
        %6322 = vmatprep.subr.bf16.mxu0 0
        %6323 = vmatpush1.bf16.msra.mxu0 0
        %6324 = vmatprep.subr.bf16.mxu0 0
        %6325 = vmatpush1.bf16.msra.mxu0 0
        %6326 = vmatprep.subr.bf16.mxu0 0
        %6327 = vmatpush1.bf16.msra.mxu0 0
        %6328 = vmatprep.subr.bf16.mxu0 0
        %6329 = vmatpush1.bf16.msra.mxu0 0
        %6330 = vmatprep.subr.bf16.mxu0 0
        %6331 = vmatpush1.bf16.msra.mxu0 0
        %6332 = vmatprep.subr.bf16.mxu0 0
        %6333 = vmatpush1.bf16.msra.mxu0 0
        %6334 = vmatprep.subr.bf16.mxu0 0
        %6335 = vmatpush1.bf16.msra.mxu0 0
        %6336 = vmatprep.subr.bf16.mxu0 0
        %6337 = vmatpush1.bf16.msra.mxu0 0
        %6338 = vmatprep.mubr.bf16.mxu0 0
        %6339 = vmatmul.mubr.bf16.gmra.mrb[0].mxu0 %v6240
        %v6340 = vpop.f32.mrb[0].mxu0
        %v6341 = vadd.f32 0.0, %v6340
        %v6342 = vpop.f32.mrb[0].mxu0
        %v6343 = vpop.f32.mrb[0].mxu0
        %v6344 = vpop.f32.mrb[0].mxu0
        %6345 = vdwg.mxu0
        %v6346 = vadd.f32 %v6234, %v6341
        %v6347 = vld [vmem:[#allocation36] sm:$0x1]
        %v6349 = vlaneseq
        %v6350 = vshrl.u32 %v6349, 7
        %v6351 = vsub.s32 0, %v6350
        %v6352 = vrot.slane %v6347, %v6351
        %v6354 = vadd.f32 %v6346, %v6352
        %vm6355 = vcmp.gt.f32.partialorder %v6354, 0.0
        %v6356 = vmul.f32 %v6354, 0.1
        %v6357 = vsel %vm6355, %v6354, %v6356
        %6358 = vst [vmem:[#allocation5 + $0x1] sm:$0xf] %v6357
        %v6359 = vld [vmem:[#allocation5] sm:$0xf]
        %v6360 = vpack.c.bf16 %v6359, %v6359
        %v6361 = vld [vmem:[%s77] sm:$0xf]
        %v6362 = vld [vmem:[%s77 + $0x4] sm:$0xf]
        %v6363 = vld [vmem:[%s77 + $0x8] sm:$0xf]
        %v6364 = vld [vmem:[%s77 + $0xc] sm:$0xf]
        %v6365 = vld [vmem:[%s77 + $0x10] sm:$0xf]
        %v6366 = vld [vmem:[%s77 + $0x14] sm:$0xf]
        %v6367 = vld [vmem:[%s77 + $0x18] sm:$0xf]
        %v6368 = vld [vmem:[%s77 + $0x1c] sm:$0xf]
        %v6369 = vld [vmem:[%s77 + $0x20] sm:$0xf]
        %v6370 = vld [vmem:[%s77 + $0x24] sm:$0xf]
        %v6371 = vld [vmem:[%s77 + $0x28] sm:$0xf]
        %v6372 = vld [vmem:[%s77 + $0x2c] sm:$0xf]
        %v6373 = vld [vmem:[%s77 + $0x30] sm:$0xf]
        %v6374 = vld [vmem:[%s77 + $0x34] sm:$0xf]
        %v6375 = vld [vmem:[%s77 + $0x38] sm:$0xf]
        %v6376 = vld [vmem:[%s77 + $0x3c] sm:$0xf]
        %v6377 = vld [vmem:[#allocation5 + $0x1] sm:$0xf]
        %v6378 = vpack.c.bf16 %v6377, %v6377
        %s6379 = scalar_lea.vmem %s77, 64
        %v6380 = vld [vmem:[%s6379] sm:$0xf]
        %v6381 = vld [vmem:[%s6379 + $0x4] sm:$0xf]
        %v6382 = vld [vmem:[%s6379 + $0x8] sm:$0xf]
        %v6383 = vld [vmem:[%s6379 + $0xc] sm:$0xf]
        %v6384 = vld [vmem:[%s6379 + $0x10] sm:$0xf]
        %v6385 = vld [vmem:[%s6379 + $0x14] sm:$0xf]
        %v6386 = vld [vmem:[%s6379 + $0x18] sm:$0xf]
        %v6387 = vld [vmem:[%s6379 + $0x1c] sm:$0xf]
        %v6388 = vld [vmem:[%s6379 + $0x20] sm:$0xf]
        %v6389 = vld [vmem:[%s6379 + $0x24] sm:$0xf]
        %v6390 = vld [vmem:[%s6379 + $0x28] sm:$0xf]
        %v6391 = vld [vmem:[%s6379 + $0x2c] sm:$0xf]
        %v6392 = vld [vmem:[%s6379 + $0x30] sm:$0xf]
        %v6393 = vld [vmem:[%s6379 + $0x34] sm:$0xf]
        %v6394 = vld [vmem:[%s6379 + $0x38] sm:$0xf]
        %v6395 = vld [vmem:[%s6379 + $0x3c] sm:$0xf]
        %v6412 = vunpack.c.l.b16 %v6380
        %v6413 = vunpack.c.l.b16 %v6381
        %v6414 = vunpack.c.l.b16 %v6382
        %v6415 = vunpack.c.l.b16 %v6383
        %v6416 = vunpack.c.l.b16 %v6384
        %v6417 = vunpack.c.l.b16 %v6385
        %v6418 = vunpack.c.l.b16 %v6386
        %v6419 = vunpack.c.l.b16 %v6387
        %v6420 = vunpack.c.l.b16 %v6388
        %v6421 = vunpack.c.l.b16 %v6389
        %v6422 = vunpack.c.l.b16 %v6390
        %v6423 = vunpack.c.l.b16 %v6391
        %v6424 = vunpack.c.l.b16 %v6392
        %v6425 = vunpack.c.l.b16 %v6393
        %v6426 = vunpack.c.l.b16 %v6394
        %v6427 = vunpack.c.l.b16 %v6395
        %v6428 = vpack.c.b16 %v6413, %v6412
        %v6429 = vpack.c.b16 %v6415, %v6414
        %v6430 = vpack.c.b16 %v6417, %v6416
        %v6431 = vpack.c.b16 %v6419, %v6418
        %v6432 = vpack.c.b16 %v6421, %v6420
        %v6433 = vpack.c.b16 %v6423, %v6422
        %v6434 = vpack.c.b16 %v6425, %v6424
        %v6435 = vpack.c.b16 %v6427, %v6426
        %6444 = vmatprep.subr.bf16.mxu0 0
        %6445 = vmatpush1.bf16.msra.mxu0 %v6428
        %6446 = vmatprep.subr.bf16.mxu0 0
        %6447 = vmatpush1.bf16.msra.mxu0 %v6429
        %6448 = vmatprep.subr.bf16.mxu0 0
        %6449 = vmatpush1.bf16.msra.mxu0 %v6430
        %6450 = vmatprep.subr.bf16.mxu0 0
        %6451 = vmatpush1.bf16.msra.mxu0 %v6431
        %6452 = vmatprep.subr.bf16.mxu0 0
        %6453 = vmatpush1.bf16.msra.mxu0 %v6432
        %6454 = vmatprep.subr.bf16.mxu0 0
        %6455 = vmatpush1.bf16.msra.mxu0 %v6433
        %6456 = vmatprep.subr.bf16.mxu0 0
        %6457 = vmatpush1.bf16.msra.mxu0 %v6434
        %6458 = vmatprep.subr.bf16.mxu0 0
        %6459 = vmatpush1.bf16.msra.mxu0 %v6435
        %6460 = vmatprep.subr.bf16.mxu0 0
        %6461 = vmatpush1.bf16.msra.mxu0 0
        %6462 = vmatprep.subr.bf16.mxu0 0
        %6463 = vmatpush1.bf16.msra.mxu0 0
        %6464 = vmatprep.subr.bf16.mxu0 0
        %6465 = vmatpush1.bf16.msra.mxu0 0
        %6466 = vmatprep.subr.bf16.mxu0 0
        %6467 = vmatpush1.bf16.msra.mxu0 0
        %6468 = vmatprep.subr.bf16.mxu0 0
        %6469 = vmatpush1.bf16.msra.mxu0 0
        %6470 = vmatprep.subr.bf16.mxu0 0
        %6471 = vmatpush1.bf16.msra.mxu0 0
        %6472 = vmatprep.subr.bf16.mxu0 0
        %6473 = vmatpush1.bf16.msra.mxu0 0
        %6474 = vmatprep.subr.bf16.mxu0 0
        %6475 = vmatpush1.bf16.msra.mxu0 0
        %6476 = vmatprep.mubr.bf16.mxu0 0
        %6477 = vmatmul.mubr.bf16.gmra.mrb[0].mxu0 %v6378
        %v6478 = vpop.f32.mrb[0].mxu0
        %v6479 = vadd.f32 0.0, %v6478
        %v6480 = vpop.f32.mrb[0].mxu0
        %v6481 = vpop.f32.mrb[0].mxu0
        %v6482 = vpop.f32.mrb[0].mxu0
        %6483 = vdwg.mxu0
        %v6500 = vunpack.c.l.b16 %v6361
        %v6501 = vunpack.c.l.b16 %v6362
        %v6502 = vunpack.c.l.b16 %v6363
        %v6503 = vunpack.c.l.b16 %v6364
        %v6504 = vunpack.c.l.b16 %v6365
        %v6505 = vunpack.c.l.b16 %v6366
        %v6506 = vunpack.c.l.b16 %v6367
        %v6507 = vunpack.c.l.b16 %v6368
        %v6508 = vunpack.c.l.b16 %v6369
        %v6509 = vunpack.c.l.b16 %v6370
        %v6510 = vunpack.c.l.b16 %v6371
        %v6511 = vunpack.c.l.b16 %v6372
        %v6512 = vunpack.c.l.b16 %v6373
        %v6513 = vunpack.c.l.b16 %v6374
        %v6514 = vunpack.c.l.b16 %v6375
        %v6515 = vunpack.c.l.b16 %v6376
        %v6516 = vpack.c.b16 %v6501, %v6500
        %v6517 = vpack.c.b16 %v6503, %v6502
        %v6518 = vpack.c.b16 %v6505, %v6504
        %v6519 = vpack.c.b16 %v6507, %v6506
        %v6520 = vpack.c.b16 %v6509, %v6508
        %v6521 = vpack.c.b16 %v6511, %v6510
        %v6522 = vpack.c.b16 %v6513, %v6512
        %v6523 = vpack.c.b16 %v6515, %v6514
        %6532 = vmatprep.subr.bf16.mxu0 0
        %6533 = vmatpush1.bf16.msra.mxu0 %v6516
        %6534 = vmatprep.subr.bf16.mxu0 0
        %6535 = vmatpush1.bf16.msra.mxu0 %v6517
        %6536 = vmatprep.subr.bf16.mxu0 0
        %6537 = vmatpush1.bf16.msra.mxu0 %v6518
        %6538 = vmatprep.subr.bf16.mxu0 0
        %6539 = vmatpush1.bf16.msra.mxu0 %v6519
        %6540 = vmatprep.subr.bf16.mxu0 0
        %6541 = vmatpush1.bf16.msra.mxu0 %v6520
        %6542 = vmatprep.subr.bf16.mxu0 0
        %6543 = vmatpush1.bf16.msra.mxu0 %v6521
        %6544 = vmatprep.subr.bf16.mxu0 0
        %6545 = vmatpush1.bf16.msra.mxu0 %v6522
        %6546 = vmatprep.subr.bf16.mxu0 0
        %6547 = vmatpush1.bf16.msra.mxu0 %v6523
        %6548 = vmatprep.subr.bf16.mxu0 0
        %6549 = vmatpush1.bf16.msra.mxu0 0
        %6550 = vmatprep.subr.bf16.mxu0 0
        %6551 = vmatpush1.bf16.msra.mxu0 0
        %6552 = vmatprep.subr.bf16.mxu0 0
        %6553 = vmatpush1.bf16.msra.mxu0 0
        %6554 = vmatprep.subr.bf16.mxu0 0
        %6555 = vmatpush1.bf16.msra.mxu0 0
        %6556 = vmatprep.subr.bf16.mxu0 0
        %6557 = vmatpush1.bf16.msra.mxu0 0
        %6558 = vmatprep.subr.bf16.mxu0 0
        %6559 = vmatpush1.bf16.msra.mxu0 0
        %6560 = vmatprep.subr.bf16.mxu0 0
        %6561 = vmatpush1.bf16.msra.mxu0 0
        %6562 = vmatprep.subr.bf16.mxu0 0
        %6563 = vmatpush1.bf16.msra.mxu0 0
        %6564 = vmatprep.mubr.bf16.mxu0 0
        %6565 = vmatmul.mubr.bf16.gmra.mrb[0].mxu0 %v6360
        %v6566 = vpop.f32.mrb[0].mxu0
        %v6567 = vadd.f32 %v6479, %v6566
        %v6568 = vpop.f32.mrb[0].mxu0
        %v6569 = vpop.f32.mrb[0].mxu0
        %v6570 = vpop.f32.mrb[0].mxu0
        %6571 = vdwg.mxu0
        %v6572 = vld [vmem:[#allocation5 + $0x2] sm:$0xf]
        %v6573 = vpack.c.bf16 %v6572, %v6572
        %s6574 = scalar_lea.vmem %s77, 128
        %v6575 = vld [vmem:[%s6574] sm:$0xf]
        %v6576 = vld [vmem:[%s6574 + $0x4] sm:$0xf]
        %v6577 = vld [vmem:[%s6574 + $0x8] sm:$0xf]
        %v6578 = vld [vmem:[%s6574 + $0xc] sm:$0xf]
        %v6579 = vld [vmem:[%s6574 + $0x10] sm:$0xf]
        %v6580 = vld [vmem:[%s6574 + $0x14] sm:$0xf]
        %v6581 = vld [vmem:[%s6574 + $0x18] sm:$0xf]
        %v6582 = vld [vmem:[%s6574 + $0x1c] sm:$0xf]
        %v6583 = vld [vmem:[%s6574 + $0x20] sm:$0xf]
        %v6584 = vld [vmem:[%s6574 + $0x24] sm:$0xf]
        %v6585 = vld [vmem:[%s6574 + $0x28] sm:$0xf]
        %v6586 = vld [vmem:[%s6574 + $0x2c] sm:$0xf]
        %v6587 = vld [vmem:[%s6574 + $0x30] sm:$0xf]
        %v6588 = vld [vmem:[%s6574 + $0x34] sm:$0xf]
        %v6589 = vld [vmem:[%s6574 + $0x38] sm:$0xf]
        %v6590 = vld [vmem:[%s6574 + $0x3c] sm:$0xf]
        %v6607 = vunpack.c.l.b16 %v6575
        %v6608 = vunpack.c.l.b16 %v6576
        %v6609 = vunpack.c.l.b16 %v6577
        %v6610 = vunpack.c.l.b16 %v6578
        %v6611 = vunpack.c.l.b16 %v6579
        %v6612 = vunpack.c.l.b16 %v6580
        %v6613 = vunpack.c.l.b16 %v6581
        %v6614 = vunpack.c.l.b16 %v6582
        %v6615 = vunpack.c.l.b16 %v6583
        %v6616 = vunpack.c.l.b16 %v6584
        %v6617 = vunpack.c.l.b16 %v6585
        %v6618 = vunpack.c.l.b16 %v6586
        %v6619 = vunpack.c.l.b16 %v6587
        %v6620 = vunpack.c.l.b16 %v6588
        %v6621 = vunpack.c.l.b16 %v6589
        %v6622 = vunpack.c.l.b16 %v6590
        %v6623 = vpack.c.b16 %v6608, %v6607
        %v6624 = vpack.c.b16 %v6610, %v6609
        %v6625 = vpack.c.b16 %v6612, %v6611
        %v6626 = vpack.c.b16 %v6614, %v6613
        %v6627 = vpack.c.b16 %v6616, %v6615
        %v6628 = vpack.c.b16 %v6618, %v6617
        %v6629 = vpack.c.b16 %v6620, %v6619
        %v6630 = vpack.c.b16 %v6622, %v6621
        %6639 = vmatprep.subr.bf16.mxu0 0
        %6640 = vmatpush1.bf16.msra.mxu0 %v6623
        %6641 = vmatprep.subr.bf16.mxu0 0
        %6642 = vmatpush1.bf16.msra.mxu0 %v6624
        %6643 = vmatprep.subr.bf16.mxu0 0
        %6644 = vmatpush1.bf16.msra.mxu0 %v6625
        %6645 = vmatprep.subr.bf16.mxu0 0
        %6646 = vmatpush1.bf16.msra.mxu0 %v6626
        %6647 = vmatprep.subr.bf16.mxu0 0
        %6648 = vmatpush1.bf16.msra.mxu0 %v6627
        %6649 = vmatprep.subr.bf16.mxu0 0
        %6650 = vmatpush1.bf16.msra.mxu0 %v6628
        %6651 = vmatprep.subr.bf16.mxu0 0
        %6652 = vmatpush1.bf16.msra.mxu0 %v6629
        %6653 = vmatprep.subr.bf16.mxu0 0
        %6654 = vmatpush1.bf16.msra.mxu0 %v6630
        %6655 = vmatprep.subr.bf16.mxu0 0
        %6656 = vmatpush1.bf16.msra.mxu0 0
        %6657 = vmatprep.subr.bf16.mxu0 0
        %6658 = vmatpush1.bf16.msra.mxu0 0
        %6659 = vmatprep.subr.bf16.mxu0 0
        %6660 = vmatpush1.bf16.msra.mxu0 0
        %6661 = vmatprep.subr.bf16.mxu0 0
        %6662 = vmatpush1.bf16.msra.mxu0 0
        %6663 = vmatprep.subr.bf16.mxu0 0
        %6664 = vmatpush1.bf16.msra.mxu0 0
        %6665 = vmatprep.subr.bf16.mxu0 0
        %6666 = vmatpush1.bf16.msra.mxu0 0
        %6667 = vmatprep.subr.bf16.mxu0 0
        %6668 = vmatpush1.bf16.msra.mxu0 0
        %6669 = vmatprep.subr.bf16.mxu0 0
        %6670 = vmatpush1.bf16.msra.mxu0 0
        %6671 = vmatprep.mubr.bf16.mxu0 0
        %6672 = vmatmul.mubr.bf16.gmra.mrb[0].mxu0 %v6573
        %v6673 = vpop.f32.mrb[0].mxu0
        %v6674 = vadd.f32 0.0, %v6673
        %v6675 = vpop.f32.mrb[0].mxu0
        %v6676 = vpop.f32.mrb[0].mxu0
        %v6677 = vpop.f32.mrb[0].mxu0
        %6678 = vdwg.mxu0
        %v6679 = vadd.f32 %v6567, %v6674
        %v6680 = vld [vmem:[#allocation37] sm:$0x1]
        %v6682 = vlaneseq
        %v6683 = vshrl.u32 %v6682, 7
        %v6684 = vsub.s32 0, %v6683
        %v6685 = vrot.slane %v6680, %v6684
        %v6687 = vadd.f32 %v6679, %v6685
        %v6688 = vld [vmem:[#allocation8 + $0x1] sm:$0xf]
        %v6689 = vpack.c.bf16 %v6688, %v6688
        %v6690 = vld [vmem:[#allocation39] sm:$0xf]
        %v6691 = vld [vmem:[#allocation39 + $0x4] sm:$0xf]
        %v6692 = vld [vmem:[#allocation39 + $0x8] sm:$0xf]
        %v6693 = vld [vmem:[#allocation39 + $0xc] sm:$0xf]
        %v6694 = vld [vmem:[#allocation39 + $0x10] sm:$0xf]
        %v6695 = vld [vmem:[#allocation39 + $0x14] sm:$0xf]
        %v6696 = vld [vmem:[#allocation39 + $0x18] sm:$0xf]
        %v6697 = vld [vmem:[#allocation39 + $0x1c] sm:$0xf]
        %v6698 = vld [vmem:[#allocation40] sm:$0x1]
        %v6700 = vlaneseq
        %v6701 = vshrl.u32 %v6700, 7
        %v6702 = vsub.s32 0, %v6701
        %v6703 = vrot.slane %v6698, %v6702
        %v6713 = vunpack.c.l.b16 %v6690
        %v6714 = vunpack.c.l.b16 %v6691
        %v6715 = vunpack.c.l.b16 %v6692
        %v6716 = vunpack.c.l.b16 %v6693
        %v6717 = vunpack.c.l.b16 %v6694
        %v6718 = vunpack.c.l.b16 %v6695
        %v6719 = vunpack.c.l.b16 %v6696
        %v6720 = vunpack.c.l.b16 %v6697
        %v6721 = vpack.c.b16 %v6714, %v6713
        %v6722 = vpack.c.b16 %v6716, %v6715
        %v6723 = vpack.c.b16 %v6718, %v6717
        %v6724 = vpack.c.b16 %v6720, %v6719
        %v6730 = vsel %vm3201, %v6689, 0
        %6732 = vmatprep.subr.bf16.mxu0 0
        %6733 = vmatpush1.bf16.msra.mxu0 %v6721
        %6734 = vmatprep.subr.bf16.mxu0 0
        %6735 = vmatpush1.bf16.msra.mxu0 %v6722
        %6736 = vmatprep.subr.bf16.mxu0 0
        %6737 = vmatpush1.bf16.msra.mxu0 %v6723
        %6738 = vmatprep.subr.bf16.mxu0 0
        %6739 = vmatpush1.bf16.msra.mxu0 %v6724
        %6740 = vmatprep.subr.bf16.mxu0 0
        %6741 = vmatpush1.bf16.msra.mxu0 0
        %6742 = vmatprep.subr.bf16.mxu0 0
        %6743 = vmatpush1.bf16.msra.mxu0 0
        %6744 = vmatprep.subr.bf16.mxu0 0
        %6745 = vmatpush1.bf16.msra.mxu0 0
        %6746 = vmatprep.subr.bf16.mxu0 0
        %6747 = vmatpush1.bf16.msra.mxu0 0
        %6748 = vmatprep.subr.bf16.mxu0 0
        %6749 = vmatpush1.bf16.msra.mxu0 0
        %6750 = vmatprep.subr.bf16.mxu0 0
        %6751 = vmatpush1.bf16.msra.mxu0 0
        %6752 = vmatprep.subr.bf16.mxu0 0
        %6753 = vmatpush1.bf16.msra.mxu0 0
        %6754 = vmatprep.subr.bf16.mxu0 0
        %6755 = vmatpush1.bf16.msra.mxu0 0
        %6756 = vmatprep.subr.bf16.mxu0 0
        %6757 = vmatpush1.bf16.msra.mxu0 0
        %6758 = vmatprep.subr.bf16.mxu0 0
        %6759 = vmatpush1.bf16.msra.mxu0 0
        %6760 = vmatprep.subr.bf16.mxu0 0
        %6761 = vmatpush1.bf16.msra.mxu0 0
        %6762 = vmatprep.subr.bf16.mxu0 0
        %6763 = vmatpush1.bf16.msra.mxu0 0
        %6764 = vmatprep.mubr.bf16.mxu0 0
        %6765 = vmatmul.mubr.bf16.gmra.mrb[0].mxu0 %v6730
        %v6766 = vpop.f32.mrb[0].mxu0
        %v6767 = vadd.f32 %v6703, %v6766
        %v6768 = vpop.f32.mrb[0].mxu0
        %v6769 = vpop.f32.mrb[0].mxu0
        %v6770 = vpop.f32.mrb[0].mxu0
        %6771 = vdwg.mxu0
        %v6772 = vadd.f32 %v6687, %v6767
        %vm6773 = vcmp.gt.f32.partialorder %v6772, 0.0
        %v6774 = vmul.f32 %v6772, 0.1
        %v6775 = vsel %vm6773, %v6772, %v6774
        %6776 = vst [vmem:[#allocation5 + $0x1] sm:$0xf] %v6775
        %v6777 = vld [vmem:[#allocation5 + $0x1] sm:$0x7]
        %v6778 = vld [vmem:[#allocation5 + $0x2] sm:$0x7]
        %v6779 = vmax.f32 %v6777, %v6778
        %v6780 = vld [vmem:[%s85] sm:$0xff]
        %v6781 = vld [vmem:[%s85 + $0x8] sm:$0xff]
        %v6782 = vld [vmem:[%s85 + $0x10] sm:$0xff]
        %v6783 = vld [vmem:[%s85 + $0x18] sm:$0xff]
        %v6784 = vld [vmem:[%s85 + $0x20] sm:$0xff]
        %v6785 = vld [vmem:[%s85 + $0x28] sm:$0xff]
        %v6786 = vld [vmem:[%s85 + $0x30] sm:$0xff]
        %v6787 = vld [vmem:[%s85 + $0x38] sm:$0xff]
        %v6788 = vld [vmem:[%s85 + $0x40] sm:$0xff]
        %v6789 = vld [vmem:[%s85 + $0x48] sm:$0xff]
        %v6790 = vld [vmem:[%s85 + $0x50] sm:$0xff]
        %v6791 = vld [vmem:[%s85 + $0x58] sm:$0xff]
        %v6792 = vld [vmem:[%s85 + $0x60] sm:$0xff]
        %v6793 = vld [vmem:[%s85 + $0x68] sm:$0xff]
        %v6794 = vld [vmem:[%s85 + $0x70] sm:$0xff]
        %v6795 = vld [vmem:[%s85 + $0x78] sm:$0xff]
        %6796 = vmatprep.subr.mxu0 0.0
        %6797 = vmatpush1.msra.mxu0 %v6780
        %6798 = vmatprep.subr.mxu0 0.0
        %6799 = vmatpush1.msra.mxu0 %v6781
        %6800 = vmatprep.subr.mxu0 0.0
        %6801 = vmatpush1.msra.mxu0 %v6782
        %6802 = vmatprep.subr.mxu0 0.0
        %6803 = vmatpush1.msra.mxu0 %v6783
        %6804 = vmatprep.subr.mxu0 0.0
        %6805 = vmatpush1.msra.mxu0 %v6784
        %6806 = vmatprep.subr.mxu0 0.0
        %6807 = vmatpush1.msra.mxu0 %v6785
        %6808 = vmatprep.subr.mxu0 0.0
        %6809 = vmatpush1.msra.mxu0 %v6786
        %6810 = vmatprep.subr.mxu0 0.0
        %6811 = vmatpush1.msra.mxu0 %v6787
        %6812 = vmatprep.subr.mxu0 0.0
        %6813 = vmatpush1.msra.mxu0 %v6788
        %6814 = vmatprep.subr.mxu0 0.0
        %6815 = vmatpush1.msra.mxu0 %v6789
        %6816 = vmatprep.subr.mxu0 0.0
        %6817 = vmatpush1.msra.mxu0 %v6790
        %6818 = vmatprep.subr.mxu0 0.0
        %6819 = vmatpush1.msra.mxu0 %v6791
        %6820 = vmatprep.subr.mxu0 0.0
        %6821 = vmatpush1.msra.mxu0 %v6792
        %6822 = vmatprep.subr.mxu0 0.0
        %6823 = vmatpush1.msra.mxu0 %v6793
        %6824 = vmatprep.subr.mxu0 0.0
        %6825 = vmatpush1.msra.mxu0 %v6794
        %6826 = vmatprep.subr.mxu0 0.0
        %6827 = vmatpush1.msra.mxu0 %v6795
        %6828 = vmatprep.subr.mxu0 0.0
        %6829 = vmatpush1.msra.mxu0 0.0
        %6830 = vmatprep.subr.mxu0 0.0
        %6831 = vmatpush1.msra.mxu0 0.0
        %6832 = vmatprep.subr.mxu0 0.0
        %6833 = vmatpush1.msra.mxu0 0.0
        %6834 = vmatprep.subr.mxu0 0.0
        %6835 = vmatpush1.msra.mxu0 0.0
        %6836 = vmatprep.subr.mxu0 0.0
        %6837 = vmatpush1.msra.mxu0 0.0
        %6838 = vmatprep.subr.mxu0 0.0
        %6839 = vmatpush1.msra.mxu0 0.0
        %6840 = vmatprep.subr.mxu0 0.0
        %6841 = vmatpush1.msra.mxu0 0.0
        %6842 = vmatprep.subr.mxu0 0.0
        %6843 = vmatpush1.msra.mxu0 0.0
        %6844 = vmatprep.subr.mxu0 0.0
        %6845 = vmatpush1.msra.mxu0 0.0
        %6846 = vmatprep.subr.mxu0 0.0
        %6847 = vmatpush1.msra.mxu0 0.0
        %6848 = vmatprep.subr.mxu0 0.0
        %6849 = vmatpush1.msra.mxu0 0.0
        %6850 = vmatprep.subr.mxu0 0.0
        %6851 = vmatpush1.msra.mxu0 0.0
        %6852 = vmatprep.subr.mxu0 0.0
        %6853 = vmatpush1.msra.mxu0 0.0
        %6854 = vmatprep.subr.mxu0 0.0
        %6855 = vmatpush1.msra.mxu0 0.0
        %6856 = vmatprep.subr.mxu0 0.0
        %6857 = vmatpush1.msra.mxu0 0.0
        %6858 = vmatprep.subr.mxu0 0.0
        %6859 = vmatpush1.msra.mxu0 0.0
        %6860 = vmatprep.mubr.f32.mxu0 0.0
        %6861 = vmatmul.mubr.f32.gmra.mrb[0].mxu0 %v6779
        %v6862 = vpop.f32.mrb[0].mxu0
        %v6863 = vadd.f32 0.0, %v6862
        %v6864 = vpop.f32.mrb[0].mxu0
        %6865 = vdwg.mxu0
        %v6866 = vld [vmem:[%s87] sm:$0xff]
        %v6867 = vld [vmem:[%s87 + $0x8] sm:$0xff]
        %v6868 = vld [vmem:[%s87 + $0x10] sm:$0xff]
        %v6869 = vld [vmem:[%s87 + $0x18] sm:$0xff]
        %v6870 = vld [vmem:[%s87 + $0x20] sm:$0xff]
        %v6871 = vld [vmem:[%s87 + $0x28] sm:$0xff]
        %v6872 = vld [vmem:[%s87 + $0x30] sm:$0xff]
        %v6873 = vld [vmem:[%s87 + $0x38] sm:$0xff]
        %v6874 = vld [vmem:[%s87 + $0x40] sm:$0xff]
        %v6875 = vld [vmem:[%s87 + $0x48] sm:$0xff]
        %v6876 = vld [vmem:[%s87 + $0x50] sm:$0xff]
        %v6877 = vld [vmem:[%s87 + $0x58] sm:$0xff]
        %v6878 = vld [vmem:[%s87 + $0x60] sm:$0xff]
        %v6879 = vld [vmem:[%s87 + $0x68] sm:$0xff]
        %v6880 = vld [vmem:[%s87 + $0x70] sm:$0xff]
        %v6881 = vld [vmem:[%s87 + $0x78] sm:$0xff]
        %6882 = vmatprep.subr.mxu0 0.0
        %6883 = vmatpush1.msra.mxu0 %v6866
        %6884 = vmatprep.subr.mxu0 0.0
        %6885 = vmatpush1.msra.mxu0 %v6867
        %6886 = vmatprep.subr.mxu0 0.0
        %6887 = vmatpush1.msra.mxu0 %v6868
        %6888 = vmatprep.subr.mxu0 0.0
        %6889 = vmatpush1.msra.mxu0 %v6869
        %6890 = vmatprep.subr.mxu0 0.0
        %6891 = vmatpush1.msra.mxu0 %v6870
        %6892 = vmatprep.subr.mxu0 0.0
        %6893 = vmatpush1.msra.mxu0 %v6871
        %6894 = vmatprep.subr.mxu0 0.0
        %6895 = vmatpush1.msra.mxu0 %v6872
        %6896 = vmatprep.subr.mxu0 0.0
        %6897 = vmatpush1.msra.mxu0 %v6873
        %6898 = vmatprep.subr.mxu0 0.0
        %6899 = vmatpush1.msra.mxu0 %v6874
        %6900 = vmatprep.subr.mxu0 0.0
        %6901 = vmatpush1.msra.mxu0 %v6875
        %6902 = vmatprep.subr.mxu0 0.0
        %6903 = vmatpush1.msra.mxu0 %v6876
        %6904 = vmatprep.subr.mxu0 0.0
        %6905 = vmatpush1.msra.mxu0 %v6877
        %6906 = vmatprep.subr.mxu0 0.0
        %6907 = vmatpush1.msra.mxu0 %v6878
        %6908 = vmatprep.subr.mxu0 0.0
        %6909 = vmatpush1.msra.mxu0 %v6879
        %6910 = vmatprep.subr.mxu0 0.0
        %6911 = vmatpush1.msra.mxu0 %v6880
        %6912 = vmatprep.subr.mxu0 0.0
        %6913 = vmatpush1.msra.mxu0 %v6881
        %6914 = vmatprep.subr.mxu0 0.0
        %6915 = vmatpush1.msra.mxu0 0.0
        %6916 = vmatprep.subr.mxu0 0.0
        %6917 = vmatpush1.msra.mxu0 0.0
        %6918 = vmatprep.subr.mxu0 0.0
        %6919 = vmatpush1.msra.mxu0 0.0
        %6920 = vmatprep.subr.mxu0 0.0
        %6921 = vmatpush1.msra.mxu0 0.0
        %6922 = vmatprep.subr.mxu0 0.0
        %6923 = vmatpush1.msra.mxu0 0.0
        %6924 = vmatprep.subr.mxu0 0.0
        %6925 = vmatpush1.msra.mxu0 0.0
        %6926 = vmatprep.subr.mxu0 0.0
        %6927 = vmatpush1.msra.mxu0 0.0
        %6928 = vmatprep.subr.mxu0 0.0
        %6929 = vmatpush1.msra.mxu0 0.0
        %6930 = vmatprep.subr.mxu0 0.0
        %6931 = vmatpush1.msra.mxu0 0.0
        %6932 = vmatprep.subr.mxu0 0.0
        %6933 = vmatpush1.msra.mxu0 0.0
        %6934 = vmatprep.subr.mxu0 0.0
        %6935 = vmatpush1.msra.mxu0 0.0
        %6936 = vmatprep.subr.mxu0 0.0
        %6937 = vmatpush1.msra.mxu0 0.0
        %6938 = vmatprep.subr.mxu0 0.0
        %6939 = vmatpush1.msra.mxu0 0.0
        %6940 = vmatprep.subr.mxu0 0.0
        %6941 = vmatpush1.msra.mxu0 0.0
        %6942 = vmatprep.subr.mxu0 0.0
        %6943 = vmatpush1.msra.mxu0 0.0
        %6944 = vmatprep.subr.mxu0 0.0
        %6945 = vmatpush1.msra.mxu0 0.0
        %6946 = vmatprep.mubr.f32.mxu0 0.0
        %6947 = vmatmul.mubr.f32.gmra.mrb[0].mxu0 %v6779
        %v6948 = vpop.f32.mrb[0].mxu0
        %v6949 = vadd.f32 0.0, %v6948
        %v6950 = vpop.f32.mrb[0].mxu0
        %6951 = vdwg.mxu0
        %v6952 = vmax.f32 %v6863, %v6949
        %v6953 = vld [vmem:[#allocation42] sm:$0x3]
        %vm6954 = vcmask 23552
        %v6956 = vsel %vm6954, %v6953, 0
        %vm6958 = vcmask 1042432
        %v6960 = vsel %vm6958, %v6952, 0
        %6962 = vmatprep.subr.mxu0 0.0
        %6963 = vmatpush1.msra.mxu0 %v6960
        %6964 = vmatprep.subr.mxu0 0.0
        %6965 = vmatpush1.msra.mxu0 0.0
        %6966 = vmatprep.subr.mxu0 0.0
        %6967 = vmatpush1.msra.mxu0 0.0
        %6968 = vmatprep.subr.mxu0 0.0
        %6969 = vmatpush1.msra.mxu0 0.0
        %6970 = vmatprep.subr.mxu0 0.0
        %6971 = vmatpush1.msra.mxu0 0.0
        %6972 = vmatprep.subr.mxu0 0.0
        %6973 = vmatpush1.msra.mxu0 0.0
        %6974 = vmatprep.subr.mxu0 0.0
        %6975 = vmatpush1.msra.mxu0 0.0
        %6976 = vmatprep.subr.mxu0 0.0
        %6977 = vmatpush1.msra.mxu0 0.0
        %6978 = vmatprep.subr.mxu0 0.0
        %6979 = vmatpush1.msra.mxu0 0.0
        %6980 = vmatprep.subr.mxu0 0.0
        %6981 = vmatpush1.msra.mxu0 0.0
        %6982 = vmatprep.subr.mxu0 0.0
        %6983 = vmatpush1.msra.mxu0 0.0
        %6984 = vmatprep.subr.mxu0 0.0
        %6985 = vmatpush1.msra.mxu0 0.0
        %6986 = vmatprep.subr.mxu0 0.0
        %6987 = vmatpush1.msra.mxu0 0.0
        %6988 = vmatprep.subr.mxu0 0.0
        %6989 = vmatpush1.msra.mxu0 0.0
        %6990 = vmatprep.subr.mxu0 0.0
        %6991 = vmatpush1.msra.mxu0 0.0
        %6992 = vmatprep.subr.mxu0 0.0
        %6993 = vmatpush1.msra.mxu0 0.0
        %6994 = vmatprep.subr.mxu0 0.0
        %6995 = vmatpush1.msra.mxu0 0.0
        %6996 = vmatprep.subr.mxu0 0.0
        %6997 = vmatpush1.msra.mxu0 0.0
        %6998 = vmatprep.subr.mxu0 0.0
        %6999 = vmatpush1.msra.mxu0 0.0
        %7000 = vmatprep.subr.mxu0 0.0
        %7001 = vmatpush1.msra.mxu0 0.0
        %7002 = vmatprep.subr.mxu0 0.0
        %7003 = vmatpush1.msra.mxu0 0.0
        %7004 = vmatprep.subr.mxu0 0.0
        %7005 = vmatpush1.msra.mxu0 0.0
        %7006 = vmatprep.subr.mxu0 0.0
        %7007 = vmatpush1.msra.mxu0 0.0
        %7008 = vmatprep.subr.mxu0 0.0
        %7009 = vmatpush1.msra.mxu0 0.0
        %7010 = vmatprep.subr.mxu0 0.0
        %7011 = vmatpush1.msra.mxu0 0.0
        %7012 = vmatprep.subr.mxu0 0.0
        %7013 = vmatpush1.msra.mxu0 0.0
        %7014 = vmatprep.subr.mxu0 0.0
        %7015 = vmatpush1.msra.mxu0 0.0
        %7016 = vmatprep.subr.mxu0 0.0
        %7017 = vmatpush1.msra.mxu0 0.0
        %7018 = vmatprep.subr.mxu0 0.0
        %7019 = vmatpush1.msra.mxu0 0.0
        %7020 = vmatprep.subr.mxu0 0.0
        %7021 = vmatpush1.msra.mxu0 0.0
        %7022 = vmatprep.subr.mxu0 0.0
        %7023 = vmatpush1.msra.mxu0 0.0
        %7024 = vmatprep.subr.mxu0 0.0
        %7025 = vmatpush1.msra.mxu0 0.0
        %7026 = vmatprep.mubr.f32.mxu0 0.0
        %7027 = vmatmul.mubr.f32.gmra.mrb[0].mxu0 %v6956
        %v7028 = vpop.f32.mrb[0].mxu0
        %v7029 = vadd.f32 0.0, %v7028
        %v7030 = vpop.f32.mrb[0].mxu0
        %7031 = vdwg.mxu0
        %7032 = vst.msk [vmem:[#allocation9] sm:$0x3] %vm3204, %v7029
        %v7033 = vld [vmem:[#allocation9] sm:$0x1]
        %v7034 = vld [vmem:[#allocation9 + $0x1] sm:$0x1]
        %v7035 = vadd.f32 %v7033, 0.0
        %7037 = vrot.lane.b32.xlu0 %v7033, 96
        %v7038 = vpop.permute.xlu0 %7037
        %v7040 = vadd.f32 %v7035, %v7038
        %v7041 = vadd.f32 %v7040, %v7034
        %7043 = vrot.lane.b32.xlu0 %v7034, 96
        %v7044 = vpop.permute.xlu0 %7043
        %v7046 = vadd.f32 %v7041, %v7044
        %v7047 = vrcp.pop 4.0
        %v7048 = vmul.f32 %v7046, %v7047
        %v7049 = vsub.f32 %v7033, %v7048
        %v7050 = vmul.f32 %v7049, %v7049
        %7052 = vrot.lane.b32.xlu0 %v7048, 32
        %v7053 = vpop.permute.xlu0 %7052
        %v7055 = vsub.f32 %v7033, %v7053
        %v7056 = vmul.f32 %v7055, %v7055
        %v7057 = vsub.f32 %v7034, %v7048
        %v7058 = vmul.f32 %v7057, %v7057
        %v7059 = vsub.f32 %v7034, %v7053
        %v7060 = vmul.f32 %v7059, %v7059
        %v7061 = vadd.f32 %v7050, 0.0
        %7063 = vrot.lane.b32.xlu0 %v7056, 96
        %v7064 = vpop.permute.xlu0 %7063
        %v7066 = vadd.f32 %v7061, %v7064
        %v7067 = vadd.f32 %v7066, %v7058
        %7069 = vrot.lane.b32.xlu0 %v7060, 96
        %v7070 = vpop.permute.xlu0 %7069
        %v7072 = vadd.f32 %v7067, %v7070
        %v7073 = vrcp.pop 3.0
        %v7074 = vmul.f32 %v7072, %v7073
        %v7075 = vadd.f32 %v7074, 0.0001
        %v7076 = vmul.f32 %v7075, 4.0
        %v7077 = vrcp.pop %v7076
        %v7078 = vmul.f32 %v7050, %v7077
        %v7079 = vadd.f32 %v7078, 0.5
        %v7080 = vsub.f32 0.0, %v7079
        %v7081 = vmul.f32 %v7080, 1.442695
        %v7082 = vpow.pop %v7081
        %v7083 = vadd.f32 %v7082, 1.0
        %v7084 = vrcp.pop %v7083
        %v7085 = vmul.f32 1.0, %v7084
        %v7086 = vmul.f32 %v7033, %v7085
        %7088 = vrot.lane.b32.xlu0 %v7077, 32
        %v7089 = vpop.permute.xlu0 %7088
        %v7091 = vmul.f32 %v7056, %v7089
        %v7092 = vadd.f32 %v7091, 0.5
        %v7093 = vsub.f32 0.0, %v7092
        %v7094 = vmul.f32 %v7093, 1.442695
        %v7095 = vpow.pop %v7094
        %v7096 = vadd.f32 %v7095, 1.0
        %v7097 = vrcp.pop %v7096
        %v7098 = vmul.f32 1.0, %v7097
        %v7099 = vmul.f32 %v7033, %v7098
        %v7100 = vmul.f32 %v7058, %v7077
        %v7101 = vadd.f32 %v7100, 0.5
        %v7102 = vsub.f32 0.0, %v7101
        %v7103 = vmul.f32 %v7102, 1.442695
        %v7104 = vpow.pop %v7103
        %v7105 = vadd.f32 %v7104, 1.0
        %v7106 = vrcp.pop %v7105
        %v7107 = vmul.f32 1.0, %v7106
        %v7108 = vmul.f32 %v7034, %v7107
        %v7109 = vmul.f32 %v7060, %v7089
        %v7110 = vadd.f32 %v7109, 0.5
        %v7111 = vsub.f32 0.0, %v7110
        %v7112 = vmul.f32 %v7111, 1.442695
        %v7113 = vpow.pop %v7112
        %v7114 = vadd.f32 %v7113, 1.0
        %v7115 = vrcp.pop %v7114
        %v7116 = vmul.f32 1.0, %v7115
        %v7117 = vmul.f32 %v7034, %v7116
        %v7118 = vadd.f32 %v7086, 0.0
        %7120 = vrot.lane.b32.xlu0 %v7099, 96
        %v7121 = vpop.permute.xlu0 %7120
        %v7123 = vadd.f32 %v7118, %v7121
        %v7124 = vadd.f32 %v7123, %v7108
        %7126 = vrot.lane.b32.xlu0 %v7117, 96
        %v7127 = vpop.permute.xlu0 %7126
        %v7129 = vadd.f32 %v7124, %v7127
        %v7130 = vmul.f32 %v7129, %v7047
        %vm7131 = vcmask 253952
        %7132 = vst.msk [vmem:[%s1613] sm:$0x1] %vm7131, %v7130
        %s7133 = sand.u32 %s1074, 1
        %s7134 = scalar_lea.sflag [#allocation12], %s7133
        %s7135 = sand.u32 %s1074, 1
        %s7136 = scalar_lea.vmem [#allocation43], %s7135
        // Predicated region
        $region285: #{resnet12_forward.1} parent=199 // pred_check
          %p7137 = pneg %p1084
        $region286: #{resnet12_forward.1} parent=199 // pred_check_branch
          %7139 = sbr.rel (%p7137) target = $region288
        $region287: #{resnet12_forward.1} parent=199 // pred_region
          %s7141 = ssub.s32 16, 16
          %7142 = vsyncadd %s7134, %s7141
          %s7143 = smul.addr %s116, 16
          %s7144 = scalar_lea.hbm %s91, %s7143
          %s7146 = sshll.u32 %s7136, 4
          %s7147 = int_to_ptr.vmem [resolvable:$true] %s7146
          %7149 = dma.vmem_to_hbm [thread:$0]  %s7147, 16, %s7144, %s7134
        $region288: #{resnet12_forward.1} parent=199 // pred_fallthru
          _
      $region200: #{resnet12_forward.1} parent=5 // pred_fallthru
        _
      %p7150 = scmp.le.s32.totalorder 2, %s111
      // Predicated region
      $region289: #{resnet12_forward.1} parent=5 // pred_check
        %p7151 = pneg %p7150
      $region290: #{resnet12_forward.1} parent=5 // pred_check_branch
        %7153 = sbr.rel (%p7151) target = $region292
      $region291: #{resnet12_forward.1} parent=5 // pred_region
        %s7154 = ssub.s32 %s111, 2
        // Predicated region
        $region293: #{resnet12_forward.1} parent=291 // pred_check
          %p7155 = pneg %p1090
        $region294: #{resnet12_forward.1} parent=291 // pred_check_branch
          %7157 = sbr.rel (%p7155) target = $region296
        $region295: #{resnet12_forward.1} parent=291 // pred_region
          %s7158 = sand.u32 %s1075, 1
          %s7159 = scalar_lea.sflag [#allocation12], %s7158
          %s7160 = sand.u32 %s1075, 1
          %s7161 = scalar_lea.vmem [#allocation43], %s7160
          %7162 = dma.done %s7159, 16
        $region296: #{resnet12_forward.1} parent=291 // pred_fallthru
          _
      $region292: #{resnet12_forward.1} parent=5 // pred_fallthru
        _
    $region6: #{resnet12_forward.1} parent=1 // loop_footer
      %s115 = sadd.s32 1, %s111
    $region7: #{resnet12_forward.1} parent=1 // loop_footer_branch
      %110 = sbr.rel target = $region3
    $region8: #{resnet12_forward.1} parent=1 // loop_exit
      _
    %7163 = vsyncpa [#allocation11], 1
    %s7164 = scalar_lea.sflag [#allocation11], 1
    %7165 = vsyncpa %s7164, 1
    %7166 = vsyncpa [#allocation14], 1
    %7167 = vsyncpa [#allocation17], 1
    %7168 = vsyncpa [#allocation20], 1
    %7169 = vsyncpa [#allocation23], 1
    %7170 = vsyncpa [#allocation26], 1
    %7171 = vsyncpa [#allocation29], 1
    %7172 = vsyncpa [#allocation32], 1
    %7173 = vsyncpa [#allocation35], 1
    %7174 = vsyncpa [#allocation38], 1
    %7175 = vsyncpa [#allocation41], 1
    %7176 = vsyncpa [#allocation12], 1
    %s7177 = scalar_lea.sflag [#allocation12], 1
    %7178 = vsyncpa %s7177, 1

</llo_original>
